<compile_context>
chip_gen: v6e
topology: v6e:2x2x1
jax: 0.10.0
libtpu: 0.0.40
codegen_flags: <defaults>
</compile_context>

<pallas_src>
import functools

import jax
import jax.numpy as jnp
from jax.experimental import pallas as pl
from jax.experimental.pallas import tpu as pltpu


# --------------------------------- helpers ---------------------------------

def _q_tiling(hw, target=256):
    """Pick a q-row tile that is a multiple of 128 (lane-dense channel-major
    output store) and the padded row count it tiles exactly."""
    if hw % 128 == 0:
        t = max(128, (min(target, hw) // 128) * 128)
        while hw % t:
            t -= 128
        return t, hw
    # TODO(synk): masked tail instead of padding for HW not a multiple of 128.
    t = min(target, ((hw + 127) // 128) * 128)
    return t, ((hw + t - 1) // t) * t


# ------------------------------ fused kernel --------------------------------

def _sra_fused_kernel(xp_ref, xq_ref, rw_ref, rb_ref, kvw_ref, kvb_ref,
                      qw_ref, qb_ref, pwt_ref, pbt_ref, o_ref,
                      kv_scr, o_scr, *, num_head, head_ch, channels, eps,
                      inv_count):
    # xp : (Nkv, C*r*r) bf16 patches     rw : (C*r*r, C) bf16   rb : (1, C) f32
    # kvw: (C, 2C) bf16 = gamma[:,None]*kv_w (GroupNorm affine folded)
    # kvb: (1, 2C) f32  = gn_beta @ kv_w + kv_b
    # xq : (tq, C) bf16    qw: (C, C) bf16 (scale folded)   qb: (1, C) f32 (scaled)
    # pwt: (C, C) bf16 = proj_w.T         pbt: (C, 1) f32
    # kv_scr: (Nkv, 2C) bf16 VMEM scratch (persists across q tiles of a sample)
    # o_scr : (tq, C) f32 VMEM scratch (per-head output assembly)

    # ---- KV branch: once per sample, on its first q tile --------------------
    @pl.when(pl.program_id(1) == 0)
    def _():
        red = jnp.dot(xp_ref[...], rw_ref[...],
                      preferred_element_type=jnp.float32) + rb_ref[...]  # (Nkv, C)
        # GroupNorm(num_groups=1): one-pass stats over all (Nkv, C) elements.
        ssum = jnp.sum(jnp.sum(red, axis=1, keepdims=True), axis=0, keepdims=True)
        ssq = jnp.sum(jnp.sum(red * red, axis=1, keepdims=True), axis=0,
                      keepdims=True)
        mean = ssum * inv_count                                            # (1, 1)
        var = ssq * inv_count - mean * mean
        xhat = (red - mean) * jax.lax.rsqrt(var + eps)                     # f32
        kv = jnp.dot(xhat.astype(jnp.bfloat16), kvw_ref[...],
                     preferred_element_type=jnp.float32) + kvb_ref[...]    # (Nkv, 2C)
        kv_scr[...] = kv.astype(kv_scr.dtype)

    # ---- Q projection for this tile (attention scale folded into weights) ---
    q = jnp.dot(xq_ref[...], qw_ref[...],
                preferred_element_type=jnp.float32) + qb_ref[...]          # (tq, C)

    # ---- per-head attention; k/v sliced straight from the VMEM kv scratch ---
    for h in range(num_head):           # static unroll; heads live on the lane axis
        lo = h * head_ch
        q_h = q[:, lo:lo + head_ch].astype(jnp.bfloat16)                   # (tq, hc)
        k_h = kv_scr[:, lo:lo + head_ch]                                   # (Nkv, hc)
        v_h = kv_scr[:, channels + lo:channels + lo + head_ch]             # (Nkv, hc)

        # scores = (q*scale) @ k^T — NT dot_general, no k transpose needed.
        s = jax.lax.dot_general(q_h, k_h, (((1,), (1,)), ((), ())),
                                preferred_element_type=jnp.float32)        # (tq, Nkv)
        s = s - jnp.max(s, axis=-1, keepdims=True)
        p = jnp.exp(s)
        p = p * pl.reciprocal(jnp.sum(p, axis=-1, keepdims=True), approx=True)
        # TODO(synk): attention dropout is identity for dropout=0.0 (module default).

        o_scr[:, lo:lo + head_ch] = jnp.dot(p.astype(jnp.bfloat16), v_h,
                                            preferred_element_type=jnp.float32)

    # ---- output projection: single K=C matmul, channel-major (C, tq) store ---
    o_all = o_scr[...].astype(jnp.bfloat16)                                # (tq, C)
    out_t = jax.lax.dot_general(pwt_ref[...], o_all, (((1,), (1,)), ((), ())),
                                preferred_element_type=jnp.float32)        # (C, tq)
    o_ref[...] = (out_t + pbt_ref[...]).astype(o_ref.dtype)


# -------------------------------- SRA forward -------------------------------

def sra_forward(x, params, *, num_head, reduction, eps=1e-5):
    B, C, H, W = x.shape
    assert C % num_head == 0
    hc = C // num_head
    scale = float(hc) ** -0.5
    r = reduction
    assert H % r == 0 and W % r == 0
    Hr, Wr = H // r, W // r
    Nkv, HW = Hr * Wr, H * W
    Krr = C * r * r
    cdt = jnp.bfloat16  # MXU operand dtype (f32 accumulate)

    # --- trace-time weight prep: bf16 operands, GroupNorm affine folded into the
    #     kv weights, attention scale folded into the q weights, proj pre-transposed
    #     so the final matmul emits channel-major output directly.
    red_w = params["red_w"].astype(cdt)
    red_b = params["red_b"].reshape(1, C)
    kv_w = (params["gn_g"][:, None] * params["kv_w"]).astype(cdt)
    kv_b = (params["gn_b"] @ params["kv_w"] + params["kv_b"]).reshape(1, 2 * C)
    q_w = (params["q_w"] * scale).astype(cdt)
    q_b = (params["q_b"] * scale).reshape(1, C)
    pw_t = params["proj_w"].T.astype(cdt)                      # (C_out, C_in)
    pb_t = params["proj_b"].reshape(C, 1)

    # --- input glue (the only wrapper HBM passes): im2col patch rows for the
    #     strided reduction conv and NHWC rows for the q branch.
    xp = x.reshape(B, C, Hr, r, Wr, r).transpose(0, 2, 4, 1, 3, 5)
    xp = xp.reshape(B, Nkv, Krr).astype(cdt)
    xq = x.transpose(0, 2, 3, 1).reshape(B, HW, C).astype(cdt)

    # --- q-row tiling: multiple-of-128 tiles (lane-dense output store), target 256.
    tq, hw_pad = _q_tiling(HW, target=256)
    if hw_pad != HW:
        xq = jnp.pad(xq, ((0, 0), (0, hw_pad - HW), (0, 0)))
    n_qt = hw_pad // tq

    # --- VMEM budget: raise the scoped limit only when the blocks outgrow the
    #     smallest default (16 MiB on v5e); cap at v7x's 64 MiB physical VMEM.
    est_vmem = (2 * (Nkv * Krr * 2 + tq * C * 2 + C * tq * 4)
                + 4 * (Krr * C + 2 * C * C + 2 * C * C)
                + Nkv * 2 * C * 2 + tq * C * 4)
    vmem_limit = None
    if est_vmem > 12 * 2 ** 20:
        vmem_limit = int(min(max(2 * est_vmem, 32 * 2 ** 20), 64 * 2 ** 20))

    out = pl.pallas_call(
        functools.partial(_sra_fused_kernel, num_head=num_head, head_ch=hc,
                          channels=C, eps=eps,
                          inv_count=1.0 / float(Nkv * C)),
        out_shape=jax.ShapeDtypeStruct((B, C, hw_pad), x.dtype),
        grid=(B, n_qt),  # q tiles innermost: kv scratch reused across a sample
        in_specs=[
            pl.BlockSpec((None, Nkv, Krr), lambda b, i: (b, 0, 0)),  # xp, once per b
            pl.BlockSpec((None, tq, C), lambda b, i: (b, i, 0)),     # xq tile
            pl.BlockSpec((Krr, C), lambda b, i: (0, 0)),
            pl.BlockSpec((1, C), lambda b, i: (0, 0)),
            pl.BlockSpec((C, 2 * C), lambda b, i: (0, 0)),
            pl.BlockSpec((1, 2 * C), lambda b, i: (0, 0)),
            pl.BlockSpec((C, C), lambda b, i: (0, 0)),
            pl.BlockSpec((1, C), lambda b, i: (0, 0)),
            pl.BlockSpec((C, C), lambda b, i: (0, 0)),
            pl.BlockSpec((C, 1), lambda b, i: (0, 0)),
        ],
        out_specs=pl.BlockSpec((None, C, tq), lambda b, i: (b, 0, i)),
        scratch_shapes=[
            pltpu.VMEM((Nkv, 2 * C), cdt),       # kv slab (persists across q tiles)
            pltpu.VMEM((tq, C), jnp.float32),    # per-head output assembly
        ],
        compiler_params=pltpu.CompilerParams(
            dimension_semantics=("parallel", "arbitrary"),
            vmem_limit_bytes=vmem_limit),
    )(xp, xq, red_w, red_b, kv_w, kv_b, q_w, q_b, pw_t, pb_t)

    if hw_pad != HW:
        out = out[:, :, :HW]
    return out.reshape(B, C, H, W)                                  # (B, C, H, W)


# --------------------------- reference (pure JAX, f32) -----------------------

def sra_reference(x, params, *, num_head, reduction, eps=1e-5):
    B, C, H, W = x.shape
    hc = C // num_head
    scale = float(hc) ** -0.5
    r = reduction
    Hr, Wr = H // r, W // r
    Nkv, HW = Hr * Wr, H * W

    xp = x.reshape(B, C, Hr, r, Wr, r).transpose(0, 2, 4, 1, 3, 5)
    xp = xp.reshape(B, Nkv, C * r * r)
    red = xp @ params["red_w"] + params["red_b"]
    mean = red.mean(axis=(1, 2), keepdims=True)
    var = jnp.square(red - mean).mean(axis=(1, 2), keepdims=True)
    red = (red - mean) * jax.lax.rsqrt(var + eps) * params["gn_g"] + params["gn_b"]

    kv = red @ params["kv_w"] + params["kv_b"]
    kv = kv.reshape(B, Nkv, 2, num_head, hc)
    k = kv[:, :, 0].transpose(0, 2, 3, 1)
    v = kv[:, :, 1].transpose(0, 2, 1, 3)

    q = x.transpose(0, 2, 3, 1).reshape(B, HW, C) @ params["q_w"] + params["q_b"]
    q = q.reshape(B, HW, num_head, hc).transpose(0, 2, 1, 3)

    s = jnp.einsum("bnqc,bnck->bnqk", q, k) * scale
    p = jax.nn.softmax(s, axis=-1)
    o = jnp.einsum("bnqk,bnkc->bnqc", p, v)

    o = o.transpose(0, 2, 1, 3).reshape(B, HW, C) @ params["proj_w"] + params["proj_b"]
    return o.reshape(B, H, W, C).transpose(0, 3, 1, 2)


# -------------------------------- params / main ------------------------------

def init_params(key, C, reduction):
    r = reduction
    ks = jax.random.split(key, 10)

    def w(k, shape, s=0.05):
        return (s * jax.random.normal(k, shape)).astype(jnp.float32)

    return {
        "red_w": w(ks[0], (C * r * r, C)),
        "red_b": w(ks[1], (C,)),
        "gn_g": (1.0 + 0.1 * jax.random.normal(ks[2], (C,))).astype(jnp.float32),
        "gn_b": w(ks[3], (C,)),
        "kv_w": w(ks[4], (C, 2 * C)),
        "kv_b": w(ks[5], (2 * C,)),
        "q_w": w(ks[6], (C, C)),
        "q_b": w(ks[7], (C,)),
        "proj_w": w(ks[8], (C, C)),
        "proj_b": w(ks[9], (C,)),
    }


if __name__ == "__main__":
    B, C, H, W = 2, 32, 16, 16
    num_head, reduction = 8, 2

    key = jax.random.PRNGKey(0)
    kx, kp = jax.random.split(key)
    x = jax.random.normal(kx, (B, C, H, W), dtype=jnp.float32)
    params = init_params(kp, C, reduction)

    fwd = jax.jit(functools.partial(sra_forward, num_head=num_head,
                                    reduction=reduction))
    out = jax.block_until_ready(fwd(x, params))

    ref = sra_reference(x, params, num_head=num_head, reduction=reduction)
    assert out.shape == (B, C, H, W), out.shape
    assert out.dtype == jnp.float32, out.dtype
    max_err = float(jnp.max(jnp.abs(out - ref)))
    # bf16 MXU operands (f32 accumulate / f32 softmax & norm stats) vs a pure
    # f32 reference -> looser tolerance than an all-f32 pipeline.
    assert max_err < 3e-2, f"max abs error too large: {max_err}"
    print("KERNEL_OK")
</pallas_src>

<mosaic_0001>
module attributes {stable_mosaic.version = 11 : i64} {
  func.func @_sra_fused_kernel(%arg0: i32, %arg1: i32, %arg2: memref<1x64x128xbf16, #tpu.memory_space<vmem>>, %arg3: memref<1x256x32xbf16, #tpu.memory_space<vmem>>, %arg4: memref<128x32xbf16, #tpu.memory_space<vmem>>, %arg5: memref<1x32xf32, #tpu.memory_space<vmem>>, %arg6: memref<32x64xbf16, #tpu.memory_space<vmem>>, %arg7: memref<1x64xf32, #tpu.memory_space<vmem>>, %arg8: memref<32x32xbf16, #tpu.memory_space<vmem>>, %arg9: memref<1x32xf32, #tpu.memory_space<vmem>>, %arg10: memref<32x32xbf16, #tpu.memory_space<vmem>>, %arg11: memref<32x1xf32, #tpu.memory_space<vmem>>, %arg12: memref<1x32x256xf32, #tpu.memory_space<vmem>>, %arg13: memref<64x64xbf16, #tpu.memory_space<vmem>>, %arg14: memref<256x32xf32, #tpu.memory_space<vmem>>) attributes {dimension_semantics = [#tpu.dimension_semantics<parallel>, #tpu.dimension_semantics<arbitrary>], iteration_bounds = array<i64: 2, 1>, scalar_prefetch = 0 : i64, scratch_operands = 2 : i64, tpu.core_type = #tpu.core_type<tc>, window_params = [{transform_indices = @transform_0, window_bounds = array<i64: 1, 64, 128>}, {transform_indices = @transform_1, window_bounds = array<i64: 1, 256, 32>}, {pipeline_mode = #tpu.pipeline_mode<synchronous>, transform_indices = @transform_2, window_bounds = array<i64: 128, 32>}, {pipeline_mode = #tpu.pipeline_mode<synchronous>, transform_indices = @transform_3, window_bounds = array<i64: 1, 32>}, {pipeline_mode = #tpu.pipeline_mode<synchronous>, transform_indices = @transform_4, window_bounds = array<i64: 32, 64>}, {pipeline_mode = #tpu.pipeline_mode<synchronous>, transform_indices = @transform_5, window_bounds = array<i64: 1, 64>}, {pipeline_mode = #tpu.pipeline_mode<synchronous>, transform_indices = @transform_6, window_bounds = array<i64: 32, 32>}, {pipeline_mode = #tpu.pipeline_mode<synchronous>, transform_indices = @transform_7, window_bounds = array<i64: 1, 32>}, {pipeline_mode = #tpu.pipeline_mode<synchronous>, transform_indices = @transform_8, window_bounds = array<i64: 32, 32>}, {pipeline_mode = #tpu.pipeline_mode<synchronous>, transform_indices = @transform_9, window_bounds = array<i64: 32, 1>}, {transform_indices = @transform_10, window_bounds = array<i64: 1, 32, 256>}]} {
    %c0_i32 = arith.constant 0 : i32
    %0 = arith.cmpi eq, %arg1, %c0_i32 : i32
    %1 = arith.extui %0 : i1 to i32
    %c0_i32_0 = arith.constant 0 : i32
    %2 = arith.cmpi ne, %1, %c0_i32_0 : i32
    scf.if %2 {
      %c0_82 = arith.constant 0 : index
      %c0_83 = arith.constant 0 : index
      %c0_84 = arith.constant 0 : index
      %164 = vector.load %arg2[%c0_82, %c0_83, %c0_84] : memref<1x64x128xbf16, #tpu.memory_space<vmem>>, vector<1x64x128xbf16>
      %165 = vector.shape_cast %164 : vector<1x64x128xbf16> to vector<64x128xbf16>
      %c0_85 = arith.constant 0 : index
      %c0_86 = arith.constant 0 : index
      %166 = vector.load %arg4[%c0_85, %c0_86] : memref<128x32xbf16, #tpu.memory_space<vmem>>, vector<128x32xbf16>
      %cst_87 = arith.constant dense<0.000000e+00> : vector<64x32xf32>
      %167 = tpu.matmul %165, %166, %cst_87 {dimension_numbers = #tpu.dot_dimension_numbers<[1], [0], [0], [1], [0, 0, 1, 1], [], []>} : vector<64x128xbf16>, vector<128x32xbf16>, vector<64x32xf32> -> vector<64x32xf32>
      %c0_88 = arith.constant 0 : index
      %c0_89 = arith.constant 0 : index
      %168 = vector.load %arg5[%c0_88, %c0_89] : memref<1x32xf32, #tpu.memory_space<vmem>>, vector<1x32xf32>
      %169 = vector.broadcast %168 : vector<1x32xf32> to vector<64x32xf32>
      %170 = arith.addf %167, %169 : vector<64x32xf32>
      %cst_90 = arith.constant dense<0.000000e+00> : vector<64xf32>
      %171 = vector.multi_reduction <add>, %170, %cst_90 [1] : vector<64x32xf32> to vector<64xf32>
      %172 = vector.shape_cast %171 : vector<64xf32> to vector<64x1xf32>
      %cst_91 = arith.constant dense<0.000000e+00> : vector<1xf32>
      %173 = vector.multi_reduction <add>, %172, %cst_91 [0] : vector<64x1xf32> to vector<1xf32>
      %174 = vector.shape_cast %173 : vector<1xf32> to vector<1x1xf32>
      %175 = arith.mulf %170, %170 : vector<64x32xf32>
      %cst_92 = arith.constant dense<0.000000e+00> : vector<64xf32>
      %176 = vector.multi_reduction <add>, %175, %cst_92 [1] : vector<64x32xf32> to vector<64xf32>
      %177 = vector.shape_cast %176 : vector<64xf32> to vector<64x1xf32>
      %cst_93 = arith.constant dense<0.000000e+00> : vector<1xf32>
      %178 = vector.multi_reduction <add>, %177, %cst_93 [0] : vector<64x1xf32> to vector<1xf32>
      %179 = vector.shape_cast %178 : vector<1xf32> to vector<1x1xf32>
      %cst_94 = arith.constant 4.8828125E-4 : f32
      %180 = vector.broadcast %cst_94 : f32 to vector<1x1xf32>
      %181 = arith.mulf %174, %180 : vector<1x1xf32>
      %cst_95 = arith.constant 4.8828125E-4 : f32
      %182 = vector.broadcast %cst_95 : f32 to vector<1x1xf32>
      %183 = arith.mulf %179, %182 : vector<1x1xf32>
      %184 = arith.mulf %181, %181 : vector<1x1xf32>
      %185 = arith.subf %183, %184 : vector<1x1xf32>
      %186 = vector.broadcast %181 : vector<1x1xf32> to vector<64x32xf32>
      %187 = arith.subf %170, %186 : vector<64x32xf32>
      %cst_96 = arith.constant 9.99999974E-6 : f32
      %188 = vector.broadcast %cst_96 : f32 to vector<1x1xf32>
      %189 = arith.addf %185, %188 : vector<1x1xf32>
      %190 = math.rsqrt %189 : vector<1x1xf32>
      %191 = vector.broadcast %190 : vector<1x1xf32> to vector<64x32xf32>
      %192 = arith.mulf %187, %191 : vector<64x32xf32>
      %193 = arith.truncf %192 : vector<64x32xf32> to vector<64x32xbf16>
      %c0_97 = arith.constant 0 : index
      %c0_98 = arith.constant 0 : index
      %194 = vector.load %arg6[%c0_97, %c0_98] : memref<32x64xbf16, #tpu.memory_space<vmem>>, vector<32x64xbf16>
      %cst_99 = arith.constant dense<0.000000e+00> : vector<64x64xf32>
      %195 = tpu.matmul %193, %194, %cst_99 {dimension_numbers = #tpu.dot_dimension_numbers<[1], [0], [0], [1], [0, 0, 1, 1], [], []>} : vector<64x32xbf16>, vector<32x64xbf16>, vector<64x64xf32> -> vector<64x64xf32>
      %c0_100 = arith.constant 0 : index
      %c0_101 = arith.constant 0 : index
      %196 = vector.load %arg7[%c0_100, %c0_101] : memref<1x64xf32, #tpu.memory_space<vmem>>, vector<1x64xf32>
      %197 = vector.broadcast %196 : vector<1x64xf32> to vector<64x64xf32>
      %198 = arith.addf %195, %197 : vector<64x64xf32>
      %199 = arith.truncf %198 : vector<64x64xf32> to vector<64x64xbf16>
      %c0_102 = arith.constant 0 : index
      %c0_103 = arith.constant 0 : index
      %200 = vector.load %arg13[%c0_102, %c0_103] : memref<64x64xbf16, #tpu.memory_space<vmem>>, vector<64x64xbf16>
      tpu.vector_store %arg13[%c0_102, %c0_103], %199 {strides = array<i32>} : memref<64x64xbf16, #tpu.memory_space<vmem>>, vector<64x64xbf16>,
    } else {
    }
    %c0 = arith.constant 0 : index
    %c0_1 = arith.constant 0 : index
    %c0_2 = arith.constant 0 : index
    %3 = vector.load %arg3[%c0, %c0_1, %c0_2] : memref<1x256x32xbf16, #tpu.memory_space<vmem>>, vector<1x256x32xbf16>
    %4 = vector.shape_cast %3 : vector<1x256x32xbf16> to vector<256x32xbf16>
    %c0_3 = arith.constant 0 : index
    %c0_4 = arith.constant 0 : index
    %5 = vector.load %arg8[%c0_3, %c0_4] : memref<32x32xbf16, #tpu.memory_space<vmem>>, vector<32x32xbf16>
    %cst = arith.constant dense<0.000000e+00> : vector<256x32xf32>
    %6 = tpu.matmul %4, %5, %cst {dimension_numbers = #tpu.dot_dimension_numbers<[1], [0], [0], [1], [0, 0, 1, 1], [], []>} : vector<256x32xbf16>, vector<32x32xbf16>, vector<256x32xf32> -> vector<256x32xf32>
    %c0_5 = arith.constant 0 : index
    %c0_6 = arith.constant 0 : index
    %7 = vector.load %arg9[%c0_5, %c0_6] : memref<1x32xf32, #tpu.memory_space<vmem>>, vector<1x32xf32>
    %8 = vector.broadcast %7 : vector<1x32xf32> to vector<256x32xf32>
    %9 = arith.addf %6, %8 : vector<256x32xf32>
    %10 = vector.extract_strided_slice %9 {offsets = [0, 0], sizes = [256, 4], strides = [1, 1]} : vector<256x32xf32> to vector<256x4xf32>
    %11 = arith.truncf %10 : vector<256x4xf32> to vector<256x4xbf16>
    %c0_7 = arith.constant 0 : index
    %c0_8 = arith.constant 0 : index
    %12 = vector.load %arg13[%c0_7, %c0_8] : memref<64x64xbf16, #tpu.memory_space<vmem>>, vector<64x4xbf16>
    %c0_9 = arith.constant 0 : index
    %c32 = arith.constant 32 : index
    %13 = vector.load %arg13[%c0_9, %c32] : memref<64x64xbf16, #tpu.memory_space<vmem>>, vector<64x4xbf16>
    %cst_10 = arith.constant dense<0.000000e+00> : vector<256x64xf32>
    %14 = tpu.matmul %11, %12, %cst_10 {dimension_numbers = #tpu.dot_dimension_numbers<[1], [1], [0], [0], [0, 0, 1, 0], [], []>} : vector<256x4xbf16>, vector<64x4xbf16>, vector<256x64xf32> -> vector<256x64xf32>
    %cst_11 = arith.constant dense<0xFF800000> : vector<256xf32>
    %15 = vector.multi_reduction <maximumf>, %14, %cst_11 [1] : vector<256x64xf32> to vector<256xf32>
    %16 = vector.shape_cast %15 : vector<256xf32> to vector<256x1xf32>
    %17 = vector.broadcast %16 : vector<256x1xf32> to vector<256x64xf32>
    %18 = arith.subf %14, %17 : vector<256x64xf32>
    %19 = math.exp %18 : vector<256x64xf32>
    %cst_12 = arith.constant dense<0.000000e+00> : vector<256xf32>
    %20 = vector.multi_reduction <add>, %19, %cst_12 [1] : vector<256x64xf32> to vector<256xf32>
    %21 = vector.shape_cast %20 : vector<256xf32> to vector<256x1xf32>
    %22 = tpu.reciprocal %21 {approx = true} : vector<256x1xf32> -> vector<256x1xf32>
    %23 = vector.broadcast %22 : vector<256x1xf32> to vector<256x64xf32>
    %24 = arith.mulf %19, %23 : vector<256x64xf32>
    %25 = arith.truncf %24 : vector<256x64xf32> to vector<256x64xbf16>
    %cst_13 = arith.constant dense<0.000000e+00> : vector<256x4xf32>
    %26 = tpu.matmul %25, %13, %cst_13 {dimension_numbers = #tpu.dot_dimension_numbers<[1], [0], [0], [1], [0, 0, 1, 1], [], []>} : vector<256x64xbf16>, vector<64x4xbf16>, vector<256x4xf32> -> vector<256x4xf32>
    %c0_14 = arith.constant 0 : index
    %c0_15 = arith.constant 0 : index
    %27 = vector.load %arg14[%c0_14, %c0_15] : memref<256x32xf32, #tpu.memory_space<vmem>>, vector<256x4xf32>
    tpu.vector_store %arg14[%c0_14, %c0_15], %26 {strides = array<i32>} : memref<256x32xf32, #tpu.memory_space<vmem>>, vector<256x4xf32>,
    %28 = vector.extract_strided_slice %9 {offsets = [0, 4], sizes = [256, 4], strides = [1, 1]} : vector<256x32xf32> to vector<256x4xf32>
    %29 = arith.truncf %28 : vector<256x4xf32> to vector<256x4xbf16>
    %c0_16 = arith.constant 0 : index
    %c4 = arith.constant 4 : index
    %30 = vector.load %arg13[%c0_16, %c4] : memref<64x64xbf16, #tpu.memory_space<vmem>>, vector<64x4xbf16>
    %c0_17 = arith.constant 0 : index
    %c36 = arith.constant 36 : index
    %31 = vector.load %arg13[%c0_17, %c36] : memref<64x64xbf16, #tpu.memory_space<vmem>>, vector<64x4xbf16>
    %cst_18 = arith.constant dense<0.000000e+00> : vector<256x64xf32>
    %32 = tpu.matmul %29, %30, %cst_18 {dimension_numbers = #tpu.dot_dimension_numbers<[1], [1], [0], [0], [0, 0, 1, 0], [], []>} : vector<256x4xbf16>, vector<64x4xbf16>, vector<256x64xf32> -> vector<256x64xf32>
    %cst_19 = arith.constant dense<0xFF800000> : vector<256xf32>
    %33 = vector.multi_reduction <maximumf>, %32, %cst_19 [1] : vector<256x64xf32> to vector<256xf32>
    %34 = vector.shape_cast %33 : vector<256xf32> to vector<256x1xf32>
    %35 = vector.broadcast %34 : vector<256x1xf32> to vector<256x64xf32>
    %36 = arith.subf %32, %35 : vector<256x64xf32>
    %37 = math.exp %36 : vector<256x64xf32>
    %cst_20 = arith.constant dense<0.000000e+00> : vector<256xf32>
    %38 = vector.multi_reduction <add>, %37, %cst_20 [1] : vector<256x64xf32> to vector<256xf32>
    %39 = vector.shape_cast %38 : vector<256xf32> to vector<256x1xf32>
    %40 = tpu.reciprocal %39 {approx = true} : vector<256x1xf32> -> vector<256x1xf32>
    %41 = vector.broadcast %40 : vector<256x1xf32> to vector<256x64xf32>
    %42 = arith.mulf %37, %41 : vector<256x64xf32>
    %43 = arith.truncf %42 : vector<256x64xf32> to vector<256x64xbf16>
    %cst_21 = arith.constant dense<0.000000e+00> : vector<256x4xf32>
    %44 = tpu.matmul %43, %31, %cst_21 {dimension_numbers = #tpu.dot_dimension_numbers<[1], [0], [0], [1], [0, 0, 1, 1], [], []>} : vector<256x64xbf16>, vector<64x4xbf16>, vector<256x4xf32> -> vector<256x4xf32>
    %c0_22 = arith.constant 0 : index
    %c4_23 = arith.constant 4 : index
    %45 = vector.load %arg14[%c0_22, %c4_23] : memref<256x32xf32, #tpu.memory_space<vmem>>, vector<256x4xf32>
    tpu.vector_store %arg14[%c0_22, %c4_23], %44 {strides = array<i32>} : memref<256x32xf32, #tpu.memory_space<vmem>>, vector<256x4xf32>,
    %46 = vector.extract_strided_slice %9 {offsets = [0, 8], sizes = [256, 4], strides = [1, 1]} : vector<256x32xf32> to vector<256x4xf32>
    %47 = arith.truncf %46 : vector<256x4xf32> to vector<256x4xbf16>
    %c0_24 = arith.constant 0 : index
    %c8 = arith.constant 8 : index
    %48 = vector.load %arg13[%c0_24, %c8] : memref<64x64xbf16, #tpu.memory_space<vmem>>, vector<64x4xbf16>
    %c0_25 = arith.constant 0 : index
    %c40 = arith.constant 40 : index
    %49 = vector.load %arg13[%c0_25, %c40] : memref<64x64xbf16, #tpu.memory_space<vmem>>, vector<64x4xbf16>
    %cst_26 = arith.constant dense<0.000000e+00> : vector<256x64xf32>
    %50 = tpu.matmul %47, %48, %cst_26 {dimension_numbers = #tpu.dot_dimension_numbers<[1], [1], [0], [0], [0, 0, 1, 0], [], []>} : vector<256x4xbf16>, vector<64x4xbf16>, vector<256x64xf32> -> vector<256x64xf32>
    %cst_27 = arith.constant dense<0xFF800000> : vector<256xf32>
    %51 = vector.multi_reduction <maximumf>, %50, %cst_27 [1] : vector<256x64xf32> to vector<256xf32>
    %52 = vector.shape_cast %51 : vector<256xf32> to vector<256x1xf32>
    %53 = vector.broadcast %52 : vector<256x1xf32> to vector<256x64xf32>
    %54 = arith.subf %50, %53 : vector<256x64xf32>
    %55 = math.exp %54 : vector<256x64xf32>
    %cst_28 = arith.constant dense<0.000000e+00> : vector<256xf32>
    %56 = vector.multi_reduction <add>, %55, %cst_28 [1] : vector<256x64xf32> to vector<256xf32>
    %57 = vector.shape_cast %56 : vector<256xf32> to vector<256x1xf32>
    %58 = tpu.reciprocal %57 {approx = true} : vector<256x1xf32> -> vector<256x1xf32>
    %59 = vector.broadcast %58 : vector<256x1xf32> to vector<256x64xf32>
    %60 = arith.mulf %55, %59 : vector<256x64xf32>
    %61 = arith.truncf %60 : vector<256x64xf32> to vector<256x64xbf16>
    %cst_29 = arith.constant dense<0.000000e+00> : vector<256x4xf32>
    %62 = tpu.matmul %61, %49, %cst_29 {dimension_numbers = #tpu.dot_dimension_numbers<[1], [0], [0], [1], [0, 0, 1, 1], [], []>} : vector<256x64xbf16>, vector<64x4xbf16>, vector<256x4xf32> -> vector<256x4xf32>
    %c0_30 = arith.constant 0 : index
    %c8_31 = arith.constant 8 : index
    %63 = vector.load %arg14[%c0_30, %c8_31] : memref<256x32xf32, #tpu.memory_space<vmem>>, vector<256x4xf32>
    tpu.vector_store %arg14[%c0_30, %c8_31], %62 {strides = array<i32>} : memref<256x32xf32, #tpu.memory_space<vmem>>, vector<256x4xf32>,
    %64 = vector.extract_strided_slice %9 {offsets = [0, 12], sizes = [256, 4], strides = [1, 1]} : vector<256x32xf32> to vector<256x4xf32>
    %65 = arith.truncf %64 : vector<256x4xf32> to vector<256x4xbf16>
    %c0_32 = arith.constant 0 : index
    %c12 = arith.constant 12 : index
    %66 = vector.load %arg13[%c0_32, %c12] : memref<64x64xbf16, #tpu.memory_space<vmem>>, vector<64x4xbf16>
    %c0_33 = arith.constant 0 : index
    %c44 = arith.constant 44 : index
    %67 = vector.load %arg13[%c0_33, %c44] : memref<64x64xbf16, #tpu.memory_space<vmem>>, vector<64x4xbf16>
    %cst_34 = arith.constant dense<0.000000e+00> : vector<256x64xf32>
    %68 = tpu.matmul %65, %66, %cst_34 {dimension_numbers = #tpu.dot_dimension_numbers<[1], [1], [0], [0], [0, 0, 1, 0], [], []>} : vector<256x4xbf16>, vector<64x4xbf16>, vector<256x64xf32> -> vector<256x64xf32>
    %cst_35 = arith.constant dense<0xFF800000> : vector<256xf32>
    %69 = vector.multi_reduction <maximumf>, %68, %cst_35 [1] : vector<256x64xf32> to vector<256xf32>
    %70 = vector.shape_cast %69 : vector<256xf32> to vector<256x1xf32>
    %71 = vector.broadcast %70 : vector<256x1xf32> to vector<256x64xf32>
    %72 = arith.subf %68, %71 : vector<256x64xf32>
    %73 = math.exp %72 : vector<256x64xf32>
    %cst_36 = arith.constant dense<0.000000e+00> : vector<256xf32>
    %74 = vector.multi_reduction <add>, %73, %cst_36 [1] : vector<256x64xf32> to vector<256xf32>
    %75 = vector.shape_cast %74 : vector<256xf32> to vector<256x1xf32>
    %76 = tpu.reciprocal %75 {approx = true} : vector<256x1xf32> -> vector<256x1xf32>
    %77 = vector.broadcast %76 : vector<256x1xf32> to vector<256x64xf32>
    %78 = arith.mulf %73, %77 : vector<256x64xf32>
    %79 = arith.truncf %78 : vector<256x64xf32> to vector<256x64xbf16>
    %cst_37 = arith.constant dense<0.000000e+00> : vector<256x4xf32>
    %80 = tpu.matmul %79, %67, %cst_37 {dimension_numbers = #tpu.dot_dimension_numbers<[1], [0], [0], [1], [0, 0, 1, 1], [], []>} : vector<256x64xbf16>, vector<64x4xbf16>, vector<256x4xf32> -> vector<256x4xf32>
    %c0_38 = arith.constant 0 : index
    %c12_39 = arith.constant 12 : index
    %81 = vector.load %arg14[%c0_38, %c12_39] : memref<256x32xf32, #tpu.memory_space<vmem>>, vector<256x4xf32>
    tpu.vector_store %arg14[%c0_38, %c12_39], %80 {strides = array<i32>} : memref<256x32xf32, #tpu.memory_space<vmem>>, vector<256x4xf32>,
    %82 = vector.extract_strided_slice %9 {offsets = [0, 16], sizes = [256, 4], strides = [1, 1]} : vector<256x32xf32> to vector<256x4xf32>
    %83 = arith.truncf %82 : vector<256x4xf32> to vector<256x4xbf16>
    %c0_40 = arith.constant 0 : index
    %c16 = arith.constant 16 : index
    %84 = vector.load %arg13[%c0_40, %c16] : memref<64x64xbf16, #tpu.memory_space<vmem>>, vector<64x4xbf16>
    %c0_41 = arith.constant 0 : index
    %c48 = arith.constant 48 : index
    %85 = vector.load %arg13[%c0_41, %c48] : memref<64x64xbf16, #tpu.memory_space<vmem>>, vector<64x4xbf16>
    %cst_42 = arith.constant dense<0.000000e+00> : vector<256x64xf32>
    %86 = tpu.matmul %83, %84, %cst_42 {dimension_numbers = #tpu.dot_dimension_numbers<[1], [1], [0], [0], [0, 0, 1, 0], [], []>} : vector<256x4xbf16>, vector<64x4xbf16>, vector<256x64xf32> -> vector<256x64xf32>
    %cst_43 = arith.constant dense<0xFF800000> : vector<256xf32>
    %87 = vector.multi_reduction <maximumf>, %86, %cst_43 [1] : vector<256x64xf32> to vector<256xf32>
    %88 = vector.shape_cast %87 : vector<256xf32> to vector<256x1xf32>
    %89 = vector.broadcast %88 : vector<256x1xf32> to vector<256x64xf32>
    %90 = arith.subf %86, %89 : vector<256x64xf32>
    %91 = math.exp %90 : vector<256x64xf32>
    %cst_44 = arith.constant dense<0.000000e+00> : vector<256xf32>
    %92 = vector.multi_reduction <add>, %91, %cst_44 [1] : vector<256x64xf32> to vector<256xf32>
    %93 = vector.shape_cast %92 : vector<256xf32> to vector<256x1xf32>
    %94 = tpu.reciprocal %93 {approx = true} : vector<256x1xf32> -> vector<256x1xf32>
    %95 = vector.broadcast %94 : vector<256x1xf32> to vector<256x64xf32>
    %96 = arith.mulf %91, %95 : vector<256x64xf32>
    %97 = arith.truncf %96 : vector<256x64xf32> to vector<256x64xbf16>
    %cst_45 = arith.constant dense<0.000000e+00> : vector<256x4xf32>
    %98 = tpu.matmul %97, %85, %cst_45 {dimension_numbers = #tpu.dot_dimension_numbers<[1], [0], [0], [1], [0, 0, 1, 1], [], []>} : vector<256x64xbf16>, vector<64x4xbf16>, vector<256x4xf32> -> vector<256x4xf32>
    %c0_46 = arith.constant 0 : index
    %c16_47 = arith.constant 16 : index
    %99 = vector.load %arg14[%c0_46, %c16_47] : memref<256x32xf32, #tpu.memory_space<vmem>>, vector<256x4xf32>
    tpu.vector_store %arg14[%c0_46, %c16_47], %98 {strides = array<i32>} : memref<256x32xf32, #tpu.memory_space<vmem>>, vector<256x4xf32>,
    %100 = vector.extract_strided_slice %9 {offsets = [0, 20], sizes = [256, 4], strides = [1, 1]} : vector<256x32xf32> to vector<256x4xf32>
    %101 = arith.truncf %100 : vector<256x4xf32> to vector<256x4xbf16>
    %c0_48 = arith.constant 0 : index
    %c20 = arith.constant 20 : index
    %102 = vector.load %arg13[%c0_48, %c20] : memref<64x64xbf16, #tpu.memory_space<vmem>>, vector<64x4xbf16>
    %c0_49 = arith.constant 0 : index
    %c52 = arith.constant 52 : index
    %103 = vector.load %arg13[%c0_49, %c52] : memref<64x64xbf16, #tpu.memory_space<vmem>>, vector<64x4xbf16>
    %cst_50 = arith.constant dense<0.000000e+00> : vector<256x64xf32>
    %104 = tpu.matmul %101, %102, %cst_50 {dimension_numbers = #tpu.dot_dimension_numbers<[1], [1], [0], [0], [0, 0, 1, 0], [], []>} : vector<256x4xbf16>, vector<64x4xbf16>, vector<256x64xf32> -> vector<256x64xf32>
    %cst_51 = arith.constant dense<0xFF800000> : vector<256xf32>
    %105 = vector.multi_reduction <maximumf>, %104, %cst_51 [1] : vector<256x64xf32> to vector<256xf32>
    %106 = vector.shape_cast %105 : vector<256xf32> to vector<256x1xf32>
    %107 = vector.broadcast %106 : vector<256x1xf32> to vector<256x64xf32>
    %108 = arith.subf %104, %107 : vector<256x64xf32>
    %109 = math.exp %108 : vector<256x64xf32>
    %cst_52 = arith.constant dense<0.000000e+00> : vector<256xf32>
    %110 = vector.multi_reduction <add>, %109, %cst_52 [1] : vector<256x64xf32> to vector<256xf32>
    %111 = vector.shape_cast %110 : vector<256xf32> to vector<256x1xf32>
    %112 = tpu.reciprocal %111 {approx = true} : vector<256x1xf32> -> vector<256x1xf32>
    %113 = vector.broadcast %112 : vector<256x1xf32> to vector<256x64xf32>
    %114 = arith.mulf %109, %113 : vector<256x64xf32>
    %115 = arith.truncf %114 : vector<256x64xf32> to vector<256x64xbf16>
    %cst_53 = arith.constant dense<0.000000e+00> : vector<256x4xf32>
    %116 = tpu.matmul %115, %103, %cst_53 {dimension_numbers = #tpu.dot_dimension_numbers<[1], [0], [0], [1], [0, 0, 1, 1], [], []>} : vector<256x64xbf16>, vector<64x4xbf16>, vector<256x4xf32> -> vector<256x4xf32>
    %c0_54 = arith.constant 0 : index
    %c20_55 = arith.constant 20 : index
    %117 = vector.load %arg14[%c0_54, %c20_55] : memref<256x32xf32, #tpu.memory_space<vmem>>, vector<256x4xf32>
    tpu.vector_store %arg14[%c0_54, %c20_55], %116 {strides = array<i32>} : memref<256x32xf32, #tpu.memory_space<vmem>>, vector<256x4xf32>,
    %118 = vector.extract_strided_slice %9 {offsets = [0, 24], sizes = [256, 4], strides = [1, 1]} : vector<256x32xf32> to vector<256x4xf32>
    %119 = arith.truncf %118 : vector<256x4xf32> to vector<256x4xbf16>
    %c0_56 = arith.constant 0 : index
    %c24 = arith.constant 24 : index
    %120 = vector.load %arg13[%c0_56, %c24] : memref<64x64xbf16, #tpu.memory_space<vmem>>, vector<64x4xbf16>
    %c0_57 = arith.constant 0 : index
    %c56 = arith.constant 56 : index
    %121 = vector.load %arg13[%c0_57, %c56] : memref<64x64xbf16, #tpu.memory_space<vmem>>, vector<64x4xbf16>
    %cst_58 = arith.constant dense<0.000000e+00> : vector<256x64xf32>
    %122 = tpu.matmul %119, %120, %cst_58 {dimension_numbers = #tpu.dot_dimension_numbers<[1], [1], [0], [0], [0, 0, 1, 0], [], []>} : vector<256x4xbf16>, vector<64x4xbf16>, vector<256x64xf32> -> vector<256x64xf32>
    %cst_59 = arith.constant dense<0xFF800000> : vector<256xf32>
    %123 = vector.multi_reduction <maximumf>, %122, %cst_59 [1] : vector<256x64xf32> to vector<256xf32>
    %124 = vector.shape_cast %123 : vector<256xf32> to vector<256x1xf32>
    %125 = vector.broadcast %124 : vector<256x1xf32> to vector<256x64xf32>
    %126 = arith.subf %122, %125 : vector<256x64xf32>
    %127 = math.exp %126 : vector<256x64xf32>
    %cst_60 = arith.constant dense<0.000000e+00> : vector<256xf32>
    %128 = vector.multi_reduction <add>, %127, %cst_60 [1] : vector<256x64xf32> to vector<256xf32>
    %129 = vector.shape_cast %128 : vector<256xf32> to vector<256x1xf32>
    %130 = tpu.reciprocal %129 {approx = true} : vector<256x1xf32> -> vector<256x1xf32>
    %131 = vector.broadcast %130 : vector<256x1xf32> to vector<256x64xf32>
    %132 = arith.mulf %127, %131 : vector<256x64xf32>
    %133 = arith.truncf %132 : vector<256x64xf32> to vector<256x64xbf16>
    %cst_61 = arith.constant dense<0.000000e+00> : vector<256x4xf32>
    %134 = tpu.matmul %133, %121, %cst_61 {dimension_numbers = #tpu.dot_dimension_numbers<[1], [0], [0], [1], [0, 0, 1, 1], [], []>} : vector<256x64xbf16>, vector<64x4xbf16>, vector<256x4xf32> -> vector<256x4xf32>
    %c0_62 = arith.constant 0 : index
    %c24_63 = arith.constant 24 : index
    %135 = vector.load %arg14[%c0_62, %c24_63] : memref<256x32xf32, #tpu.memory_space<vmem>>, vector<256x4xf32>
    tpu.vector_store %arg14[%c0_62, %c24_63], %134 {strides = array<i32>} : memref<256x32xf32, #tpu.memory_space<vmem>>, vector<256x4xf32>,
    %136 = vector.extract_strided_slice %9 {offsets = [0, 28], sizes = [256, 4], strides = [1, 1]} : vector<256x32xf32> to vector<256x4xf32>
    %137 = arith.truncf %136 : vector<256x4xf32> to vector<256x4xbf16>
    %c0_64 = arith.constant 0 : index
    %c28 = arith.constant 28 : index
    %138 = vector.load %arg13[%c0_64, %c28] : memref<64x64xbf16, #tpu.memory_space<vmem>>, vector<64x4xbf16>
    %c0_65 = arith.constant 0 : index
    %c60 = arith.constant 60 : index
    %139 = vector.load %arg13[%c0_65, %c60] : memref<64x64xbf16, #tpu.memory_space<vmem>>, vector<64x4xbf16>
    %cst_66 = arith.constant dense<0.000000e+00> : vector<256x64xf32>
    %140 = tpu.matmul %137, %138, %cst_66 {dimension_numbers = #tpu.dot_dimension_numbers<[1], [1], [0], [0], [0, 0, 1, 0], [], []>} : vector<256x4xbf16>, vector<64x4xbf16>, vector<256x64xf32> -> vector<256x64xf32>
    %cst_67 = arith.constant dense<0xFF800000> : vector<256xf32>
    %141 = vector.multi_reduction <maximumf>, %140, %cst_67 [1] : vector<256x64xf32> to vector<256xf32>
    %142 = vector.shape_cast %141 : vector<256xf32> to vector<256x1xf32>
    %143 = vector.broadcast %142 : vector<256x1xf32> to vector<256x64xf32>
    %144 = arith.subf %140, %143 : vector<256x64xf32>
    %145 = math.exp %144 : vector<256x64xf32>
    %cst_68 = arith.constant dense<0.000000e+00> : vector<256xf32>
    %146 = vector.multi_reduction <add>, %145, %cst_68 [1] : vector<256x64xf32> to vector<256xf32>
    %147 = vector.shape_cast %146 : vector<256xf32> to vector<256x1xf32>
    %148 = tpu.reciprocal %147 {approx = true} : vector<256x1xf32> -> vector<256x1xf32>
    %149 = vector.broadcast %148 : vector<256x1xf32> to vector<256x64xf32>
    %150 = arith.mulf %145, %149 : vector<256x64xf32>
    %151 = arith.truncf %150 : vector<256x64xf32> to vector<256x64xbf16>
    %cst_69 = arith.constant dense<0.000000e+00> : vector<256x4xf32>
    %152 = tpu.matmul %151, %139, %cst_69 {dimension_numbers = #tpu.dot_dimension_numbers<[1], [0], [0], [1], [0, 0, 1, 1], [], []>} : vector<256x64xbf16>, vector<64x4xbf16>, vector<256x4xf32> -> vector<256x4xf32>
    %c0_70 = arith.constant 0 : index
    %c28_71 = arith.constant 28 : index
    %153 = vector.load %arg14[%c0_70, %c28_71] : memref<256x32xf32, #tpu.memory_space<vmem>>, vector<256x4xf32>
    tpu.vector_store %arg14[%c0_70, %c28_71], %152 {strides = array<i32>} : memref<256x32xf32, #tpu.memory_space<vmem>>, vector<256x4xf32>,
    %c0_72 = arith.constant 0 : index
    %c0_73 = arith.constant 0 : index
    %154 = vector.load %arg14[%c0_72, %c0_73] : memref<256x32xf32, #tpu.memory_space<vmem>>, vector<256x32xf32>
    %155 = arith.truncf %154 : vector<256x32xf32> to vector<256x32xbf16>
    %c0_74 = arith.constant 0 : index
    %c0_75 = arith.constant 0 : index
    %156 = vector.load %arg10[%c0_74, %c0_75] : memref<32x32xbf16, #tpu.memory_space<vmem>>, vector<32x32xbf16>
    %cst_76 = arith.constant dense<0.000000e+00> : vector<32x256xf32>
    %157 = tpu.matmul %156, %155, %cst_76 {dimension_numbers = #tpu.dot_dimension_numbers<[1], [1], [0], [0], [0, 0, 1, 0], [], []>} : vector<32x32xbf16>, vector<256x32xbf16>, vector<32x256xf32> -> vector<32x256xf32>
    %c0_77 = arith.constant 0 : index
    %c0_78 = arith.constant 0 : index
    %158 = vector.load %arg11[%c0_77, %c0_78] : memref<32x1xf32, #tpu.memory_space<vmem>>, vector<32x1xf32>
    %159 = vector.broadcast %158 : vector<32x1xf32> to vector<32x256xf32>
    %160 = arith.addf %157, %159 : vector<32x256xf32>
    %c0_79 = arith.constant 0 : index
    %c0_80 = arith.constant 0 : index
    %c0_81 = arith.constant 0 : index
    %161 = vector.load %arg12[%c0_79, %c0_80, %c0_81] : memref<1x32x256xf32, #tpu.memory_space<vmem>>, vector<1x32x256xf32>
    %162 = vector.shape_cast %161 : vector<1x32x256xf32> to vector<32x256xf32>
    %163 = vector.shape_cast %160 : vector<32x256xf32> to vector<1x32x256xf32>
    tpu.vector_store %arg12[%c0_79, %c0_80, %c0_81], %163 {strides = array<i32>} : memref<1x32x256xf32, #tpu.memory_space<vmem>>, vector<1x32x256xf32>,
    return
  }
  func.func @transform_0(%arg0: i32, %arg1: i32) -> (i32, i32, i32) {
    %c0_i32 = arith.constant 0 : i32
    %c0_i32_0 = arith.constant 0 : i32
    %c0_i32_1 = arith.constant 0 : i32
    return %arg0, %c0_i32, %c0_i32_0 : i32, i32, i32
  }
  func.func @transform_1(%arg0: i32, %arg1: i32) -> (i32, i32, i32) {
    %c0_i32 = arith.constant 0 : i32
    %c0_i32_0 = arith.constant 0 : i32
    return %arg0, %arg1, %c0_i32 : i32, i32, i32
  }
  func.func @transform_2(%arg0: i32, %arg1: i32) -> (i32, i32) {
    %c0_i32 = arith.constant 0 : i32
    %c0_i32_0 = arith.constant 0 : i32
    %c0_i32_1 = arith.constant 0 : i32
    return %c0_i32, %c0_i32_0 : i32, i32
  }
  func.func @transform_3(%arg0: i32, %arg1: i32) -> (i32, i32) {
    %c0_i32 = arith.constant 0 : i32
    %c0_i32_0 = arith.constant 0 : i32
    %c0_i32_1 = arith.constant 0 : i32
    return %c0_i32, %c0_i32_0 : i32, i32
  }
  func.func @transform_4(%arg0: i32, %arg1: i32) -> (i32, i32) {
    %c0_i32 = arith.constant 0 : i32
    %c0_i32_0 = arith.constant 0 : i32
    %c0_i32_1 = arith.constant 0 : i32
    return %c0_i32, %c0_i32_0 : i32, i32
  }
  func.func @transform_5(%arg0: i32, %arg1: i32) -> (i32, i32) {
    %c0_i32 = arith.constant 0 : i32
    %c0_i32_0 = arith.constant 0 : i32
    %c0_i32_1 = arith.constant 0 : i32
    return %c0_i32, %c0_i32_0 : i32, i32
  }
  func.func @transform_6(%arg0: i32, %arg1: i32) -> (i32, i32) {
    %c0_i32 = arith.constant 0 : i32
    %c0_i32_0 = arith.constant 0 : i32
    %c0_i32_1 = arith.constant 0 : i32
    return %c0_i32, %c0_i32_0 : i32, i32
  }
  func.func @transform_7(%arg0: i32, %arg1: i32) -> (i32, i32) {
    %c0_i32 = arith.constant 0 : i32
    %c0_i32_0 = arith.constant 0 : i32
    %c0_i32_1 = arith.constant 0 : i32
    return %c0_i32, %c0_i32_0 : i32, i32
  }
  func.func @transform_8(%arg0: i32, %arg1: i32) -> (i32, i32) {
    %c0_i32 = arith.constant 0 : i32
    %c0_i32_0 = arith.constant 0 : i32
    %c0_i32_1 = arith.constant 0 : i32
    return %c0_i32, %c0_i32_0 : i32, i32
  }
  func.func @transform_9(%arg0: i32, %arg1: i32) -> (i32, i32) {
    %c0_i32 = arith.constant 0 : i32
    %c0_i32_0 = arith.constant 0 : i32
    %c0_i32_1 = arith.constant 0 : i32
    return %c0_i32, %c0_i32_0 : i32, i32
  }
  func.func @transform_10(%arg0: i32, %arg1: i32) -> (i32, i32, i32) {
    %c0_i32 = arith.constant 0 : i32
    %c0_i32_0 = arith.constant 0 : i32
    return %arg0, %c0_i32, %arg1 : i32, i32, i32
  }
}

</mosaic_0001>

<llo_original>
// kernel: sra_forward.1
$region0: #{sra_forward.1}
  #allocation0 [shape = 'u32[]', space=smem, size = 0x4, offset = 0x4, fixed_abs, tag = 'smem constant byte address 0x4 - core index']
  #allocation1 [shape = 'u32[144,128]{1,0:T(1,128)}', space=vmem, size = 0x12000, scoped, tag = 'internal scratch']
  #allocation2 [shape = 'bf16[64,64]{1,0:T(8,128)(2,1)}', space=vmem, size = 0x4000, scoped, tag = 'scratch operand']
  #allocation3 [shape = 'f32[256,32]{1,0:T(8,128)}', space=vmem, size = 0x20000, scoped, tag = 'scratch operand']
  %s0 = inlined_call_operand.vmem [shape: bf16[2,64,128], index: 0, kind: input, shape index: {}]
  %s1 = inlined_call_operand.vmem [shape: bf16[2,256,32], index: 1, kind: input, shape index: {}]
  %s2 = inlined_call_operand.vmem [shape: bf16[128,32], index: 2, kind: input, shape index: {}]
  %s3 = inlined_call_operand.vmem [shape: f32[1,32], index: 3, kind: input, shape index: {}]
  %s4 = inlined_call_operand.vmem [shape: bf16[32,64], index: 4, kind: input, shape index: {}]
  %s5 = inlined_call_operand.vmem [shape: f32[1,64], index: 5, kind: input, shape index: {}]
  %s6 = inlined_call_operand.vmem [shape: bf16[32,32], index: 6, kind: input, shape index: {}]
  %s7 = inlined_call_operand.vmem [shape: f32[1,32], index: 7, kind: input, shape index: {}]
  %s8 = inlined_call_operand.vmem [shape: bf16[32,32], index: 8, kind: input, shape index: {}]
  %s9 = inlined_call_operand.vmem [shape: f32[32,1], index: 9, kind: input, shape index: {}]
  %s10 = inlined_call_operand.vmem [shape: f32[2,32,256], index: 10, kind: output, shape index: {}]
  %s11 = sld [smem:[#allocation0]]
  $region77: #{sra_forward.1} parent=0
    _
  %s13 = ssub.s32 1, %s11
  %s14 = scalar_select 0, %s13, %s11
  loop: start=0, step=1, limit=4
  $region2: #{sra_forward.1} parent=0 // loop_pre_header
    _
  $region3: #{sra_forward.1} parent=0 // loop_header
    %s16 = sphi 0, %s20
    %p17 = scmp.ge.s32.totalorder %s16, 4
    %s23 = sphi 0, %s35
    %s24 = sphi 0, %s31
    %s25 = sphi 0, %s23
    %s26 = sphi 0, %s24
    %s27 = sphi 0, %s25
    %s28 = sphi 0, %s26
    %s38 = sphi 0, %s40
    %s41 = sphi 0, %s38
    %s42 = sphi 0, %s41
    %s58 = sphi 0, %s42
    %s66 = sphi 0, %s68
    %s69 = sphi 0, %s66
    %s70 = sphi 0, %s69
    %s86 = sphi 0, %s70
    %s90 = sphi 0, %s90
    %s92 = sphi 0, %s90
    %s93 = sphi 0, %s92
    %s107 = sphi 0, %s93
    %s111 = sphi 0, %s111
    %s113 = sphi 0, %s111
    %s114 = sphi 0, %s113
    %s128 = sphi 0, %s114
    %s132 = sphi 0, %s132
    %s134 = sphi 0, %s132
    %s135 = sphi 0, %s134
    %s149 = sphi 0, %s135
    %s153 = sphi 0, %s153
    %s155 = sphi 0, %s153
    %s156 = sphi 0, %s155
    %s170 = sphi 0, %s156
    %s174 = sphi 0, %s174
    %s176 = sphi 0, %s174
    %s177 = sphi 0, %s176
    %s191 = sphi 0, %s177
    %s195 = sphi 0, %s195
    %s197 = sphi 0, %s195
    %s198 = sphi 0, %s197
    %s212 = sphi 0, %s198
    %s216 = sphi 0, %s216
    %s218 = sphi 0, %s216
    %s219 = sphi 0, %s218
    %s233 = sphi 0, %s219
    %s237 = sphi 0, %s237
    %s239 = sphi 0, %s237
    %s240 = sphi 0, %s239
    %s254 = sphi 0, %s240
    %s262 = sphi 0, %s264
    %s265 = sphi 0, %s262
    %s266 = sphi 0, %s265
    %s282 = sphi 0, %s266
  $region4: #{sra_forward.1} parent=0 // loop_header_branch
    %19 = sbr.rel (%p17) target = $region8
  $region5: #{sra_forward.1} parent=0 // loop_body
    %s21 = ssub.s32 %s16, 1
    %s22 = ssub.s32 %s16, 2
    %s29 = sadd.s32 1, %s24
    %p30 = scmp.ge.s32.totalorder %s29, 1
    %s31 = scalar_select %p30, 0, %s29
    %s32 = sadd.s32 1, %s23
    %s33 = scalar_select %p30, %s32, %s23
    %p34 = scmp.ge.s32.totalorder %s33, 2
    %s35 = scalar_select %p34, 0, %s33
    %s36 = ssub.s32 %s23, %s35
    %p37 = scmp.eq.s32.totalorder %s36, 0
    %s39 = sadd.s32 %s38, 1
    %s40 = scalar_select %p37, %s38, %s39
    %p43 = pneg %p37
    %p44 = scmp.eq.s32.totalorder %s16, 1
    %p45 = por %p43, %p44
    %p46 = scmp.ne.s32.totalorder %s38, %s41
    %p47 = scmp.eq.s32.totalorder %s16, 0
    %p48 = por %p46, %p47
    %p49 = scmp.ne.s32.totalorder %s38, %s41
    %p50 = scmp.eq.s32.totalorder %s21, 1
    %p51 = por %p49, %p50
    %p52 = scmp.ne.s32.totalorder %s41, %s42
    %p53 = scmp.eq.s32.totalorder %s21, 0
    %p54 = por %p52, %p53
    %p55 = scmp.ne.s32.totalorder %s41, %s42
    %p56 = scmp.eq.s32.totalorder %s22, 1
    %p57 = por %p55, %p56
    %p59 = scmp.ne.s32.totalorder %s42, %s58
    %p60 = scmp.eq.s32.totalorder %s22, 0
    %p61 = por %p59, %p60
    %s62 = ssub.s32 %s23, %s35
    %s63 = ssub.s32 %s24, %s31
    %s64 = sor.u32 %s62, %s63
    %p65 = scmp.eq.s32.totalorder %s64, 0
    %s67 = sadd.s32 %s66, 1
    %s68 = scalar_select %p65, %s66, %s67
    %p71 = pneg %p65
    %p72 = scmp.eq.s32.totalorder %s16, 1
    %p73 = por %p71, %p72
    %p74 = scmp.ne.s32.totalorder %s66, %s69
    %p75 = scmp.eq.s32.totalorder %s16, 0
    %p76 = por %p74, %p75
    %p77 = scmp.ne.s32.totalorder %s66, %s69
    %p78 = scmp.eq.s32.totalorder %s21, 1
    %p79 = por %p77, %p78
    %p80 = scmp.ne.s32.totalorder %s69, %s70
    %p81 = scmp.eq.s32.totalorder %s21, 0
    %p82 = por %p80, %p81
    %p83 = scmp.ne.s32.totalorder %s69, %s70
    %p84 = scmp.eq.s32.totalorder %s22, 1
    %p85 = por %p83, %p84
    %p87 = scmp.ne.s32.totalorder %s70, %s86
    %p88 = scmp.eq.s32.totalorder %s22, 0
    %p89 = por %p87, %p88
    %s91 = sadd.s32 %s90, 1
    %p94 = scmp.eq.s32.totalorder %s16, 1
    %p95 = scmp.ne.s32.totalorder %s90, %s92
    %p96 = scmp.eq.s32.totalorder %s16, 0
    %p97 = por %p95, %p96
    %p98 = scmp.ne.s32.totalorder %s90, %s92
    %p99 = scmp.eq.s32.totalorder %s21, 1
    %p100 = por %p98, %p99
    %p101 = scmp.ne.s32.totalorder %s92, %s93
    %p102 = scmp.eq.s32.totalorder %s21, 0
    %p103 = por %p101, %p102
    %p104 = scmp.ne.s32.totalorder %s92, %s93
    %p105 = scmp.eq.s32.totalorder %s22, 1
    %p106 = por %p104, %p105
    %p108 = scmp.ne.s32.totalorder %s93, %s107
    %p109 = scmp.eq.s32.totalorder %s22, 0
    %p110 = por %p108, %p109
    %s112 = sadd.s32 %s111, 1
    %p115 = scmp.eq.s32.totalorder %s16, 1
    %p116 = scmp.ne.s32.totalorder %s111, %s113
    %p117 = scmp.eq.s32.totalorder %s16, 0
    %p118 = por %p116, %p117
    %p119 = scmp.ne.s32.totalorder %s111, %s113
    %p120 = scmp.eq.s32.totalorder %s21, 1
    %p121 = por %p119, %p120
    %p122 = scmp.ne.s32.totalorder %s113, %s114
    %p123 = scmp.eq.s32.totalorder %s21, 0
    %p124 = por %p122, %p123
    %p125 = scmp.ne.s32.totalorder %s113, %s114
    %p126 = scmp.eq.s32.totalorder %s22, 1
    %p127 = por %p125, %p126
    %p129 = scmp.ne.s32.totalorder %s114, %s128
    %p130 = scmp.eq.s32.totalorder %s22, 0
    %p131 = por %p129, %p130
    %s133 = sadd.s32 %s132, 1
    %p136 = scmp.eq.s32.totalorder %s16, 1
    %p137 = scmp.ne.s32.totalorder %s132, %s134
    %p138 = scmp.eq.s32.totalorder %s16, 0
    %p139 = por %p137, %p138
    %p140 = scmp.ne.s32.totalorder %s132, %s134
    %p141 = scmp.eq.s32.totalorder %s21, 1
    %p142 = por %p140, %p141
    %p143 = scmp.ne.s32.totalorder %s134, %s135
    %p144 = scmp.eq.s32.totalorder %s21, 0
    %p145 = por %p143, %p144
    %p146 = scmp.ne.s32.totalorder %s134, %s135
    %p147 = scmp.eq.s32.totalorder %s22, 1
    %p148 = por %p146, %p147
    %p150 = scmp.ne.s32.totalorder %s135, %s149
    %p151 = scmp.eq.s32.totalorder %s22, 0
    %p152 = por %p150, %p151
    %s154 = sadd.s32 %s153, 1
    %p157 = scmp.eq.s32.totalorder %s16, 1
    %p158 = scmp.ne.s32.totalorder %s153, %s155
    %p159 = scmp.eq.s32.totalorder %s16, 0
    %p160 = por %p158, %p159
    %p161 = scmp.ne.s32.totalorder %s153, %s155
    %p162 = scmp.eq.s32.totalorder %s21, 1
    %p163 = por %p161, %p162
    %p164 = scmp.ne.s32.totalorder %s155, %s156
    %p165 = scmp.eq.s32.totalorder %s21, 0
    %p166 = por %p164, %p165
    %p167 = scmp.ne.s32.totalorder %s155, %s156
    %p168 = scmp.eq.s32.totalorder %s22, 1
    %p169 = por %p167, %p168
    %p171 = scmp.ne.s32.totalorder %s156, %s170
    %p172 = scmp.eq.s32.totalorder %s22, 0
    %p173 = por %p171, %p172
    %s175 = sadd.s32 %s174, 1
    %p178 = scmp.eq.s32.totalorder %s16, 1
    %p179 = scmp.ne.s32.totalorder %s174, %s176
    %p180 = scmp.eq.s32.totalorder %s16, 0
    %p181 = por %p179, %p180
    %p182 = scmp.ne.s32.totalorder %s174, %s176
    %p183 = scmp.eq.s32.totalorder %s21, 1
    %p184 = por %p182, %p183
    %p185 = scmp.ne.s32.totalorder %s176, %s177
    %p186 = scmp.eq.s32.totalorder %s21, 0
    %p187 = por %p185, %p186
    %p188 = scmp.ne.s32.totalorder %s176, %s177
    %p189 = scmp.eq.s32.totalorder %s22, 1
    %p190 = por %p188, %p189
    %p192 = scmp.ne.s32.totalorder %s177, %s191
    %p193 = scmp.eq.s32.totalorder %s22, 0
    %p194 = por %p192, %p193
    %s196 = sadd.s32 %s195, 1
    %p199 = scmp.eq.s32.totalorder %s16, 1
    %p200 = scmp.ne.s32.totalorder %s195, %s197
    %p201 = scmp.eq.s32.totalorder %s16, 0
    %p202 = por %p200, %p201
    %p203 = scmp.ne.s32.totalorder %s195, %s197
    %p204 = scmp.eq.s32.totalorder %s21, 1
    %p205 = por %p203, %p204
    %p206 = scmp.ne.s32.totalorder %s197, %s198
    %p207 = scmp.eq.s32.totalorder %s21, 0
    %p208 = por %p206, %p207
    %p209 = scmp.ne.s32.totalorder %s197, %s198
    %p210 = scmp.eq.s32.totalorder %s22, 1
    %p211 = por %p209, %p210
    %p213 = scmp.ne.s32.totalorder %s198, %s212
    %p214 = scmp.eq.s32.totalorder %s22, 0
    %p215 = por %p213, %p214
    %s217 = sadd.s32 %s216, 1
    %p220 = scmp.eq.s32.totalorder %s16, 1
    %p221 = scmp.ne.s32.totalorder %s216, %s218
    %p222 = scmp.eq.s32.totalorder %s16, 0
    %p223 = por %p221, %p222
    %p224 = scmp.ne.s32.totalorder %s216, %s218
    %p225 = scmp.eq.s32.totalorder %s21, 1
    %p226 = por %p224, %p225
    %p227 = scmp.ne.s32.totalorder %s218, %s219
    %p228 = scmp.eq.s32.totalorder %s21, 0
    %p229 = por %p227, %p228
    %p230 = scmp.ne.s32.totalorder %s218, %s219
    %p231 = scmp.eq.s32.totalorder %s22, 1
    %p232 = por %p230, %p231
    %p234 = scmp.ne.s32.totalorder %s219, %s233
    %p235 = scmp.eq.s32.totalorder %s22, 0
    %p236 = por %p234, %p235
    %s238 = sadd.s32 %s237, 1
    %p241 = scmp.eq.s32.totalorder %s16, 1
    %p242 = scmp.ne.s32.totalorder %s237, %s239
    %p243 = scmp.eq.s32.totalorder %s16, 0
    %p244 = por %p242, %p243
    %p245 = scmp.ne.s32.totalorder %s237, %s239
    %p246 = scmp.eq.s32.totalorder %s21, 1
    %p247 = por %p245, %p246
    %p248 = scmp.ne.s32.totalorder %s239, %s240
    %p249 = scmp.eq.s32.totalorder %s21, 0
    %p250 = por %p248, %p249
    %p251 = scmp.ne.s32.totalorder %s239, %s240
    %p252 = scmp.eq.s32.totalorder %s22, 1
    %p253 = por %p251, %p252
    %p255 = scmp.ne.s32.totalorder %s240, %s254
    %p256 = scmp.eq.s32.totalorder %s22, 0
    %p257 = por %p255, %p256
    %s258 = ssub.s32 %s23, %s35
    %s259 = ssub.s32 %s24, %s31
    %s260 = sor.u32 %s258, %s259
    %p261 = scmp.eq.s32.totalorder %s260, 0
    %s263 = sadd.s32 %s262, 1
    %s264 = scalar_select %p261, %s262, %s263
    %p267 = pneg %p261
    %p268 = scmp.eq.s32.totalorder %s16, 1
    %p269 = por %p267, %p268
    %p270 = scmp.ne.s32.totalorder %s262, %s265
    %p271 = scmp.eq.s32.totalorder %s16, 0
    %p272 = por %p270, %p271
    %p273 = scmp.ne.s32.totalorder %s262, %s265
    %p274 = scmp.eq.s32.totalorder %s21, 1
    %p275 = por %p273, %p274
    %p276 = scmp.ne.s32.totalorder %s265, %s266
    %p277 = scmp.eq.s32.totalorder %s21, 0
    %p278 = por %p276, %p277
    %p279 = scmp.ne.s32.totalorder %s265, %s266
    %p280 = scmp.eq.s32.totalorder %s22, 1
    %p281 = por %p279, %p280
    %p283 = scmp.ne.s32.totalorder %s266, %s282
    %p284 = scmp.eq.s32.totalorder %s22, 0
    %p285 = por %p283, %p284
    %p286 = scmp.le.s32.totalorder 1, %s16
    %p287 = scmp.lt.s32.totalorder %s16, 3
    %p288 = pnand %p286, %p287
    %p289 = pneg %p288
    // Predicated region
    $region9: #{sra_forward.1} parent=5 // pred_check
      _
    $region10: #{sra_forward.1} parent=5 // pred_check_branch
      %291 = sbr.rel (%p288) target = $region12
    $region11: #{sra_forward.1} parent=5 // pred_region
      %s292 = ssub.s32 %s16, 1
      // Predicated region
      $region13: #{sra_forward.1} parent=11 // pred_check
        %p293 = pneg %p103
      $region14: #{sra_forward.1} parent=11 // pred_check_branch
        %295 = sbr.rel (%p293) target = $region16
      $region15: #{sra_forward.1} parent=11 // pred_region
        _
      $region16: #{sra_forward.1} parent=11 // pred_fallthru
        _
      // Predicated region
      $region17: #{sra_forward.1} parent=11 // pred_check
        %p296 = pneg %p124
      $region18: #{sra_forward.1} parent=11 // pred_check_branch
        %298 = sbr.rel (%p296) target = $region20
      $region19: #{sra_forward.1} parent=11 // pred_region
        _
      $region20: #{sra_forward.1} parent=11 // pred_fallthru
        _
      // Predicated region
      $region21: #{sra_forward.1} parent=11 // pred_check
        %p299 = pneg %p145
      $region22: #{sra_forward.1} parent=11 // pred_check_branch
        %301 = sbr.rel (%p299) target = $region24
      $region23: #{sra_forward.1} parent=11 // pred_region
        _
      $region24: #{sra_forward.1} parent=11 // pred_fallthru
        _
      // Predicated region
      $region25: #{sra_forward.1} parent=11 // pred_check
        %p302 = pneg %p166
      $region26: #{sra_forward.1} parent=11 // pred_check_branch
        %304 = sbr.rel (%p302) target = $region28
      $region27: #{sra_forward.1} parent=11 // pred_region
        _
      $region28: #{sra_forward.1} parent=11 // pred_fallthru
        _
      // Predicated region
      $region29: #{sra_forward.1} parent=11 // pred_check
        %p305 = pneg %p187
      $region30: #{sra_forward.1} parent=11 // pred_check_branch
        %307 = sbr.rel (%p305) target = $region32
      $region31: #{sra_forward.1} parent=11 // pred_region
        _
      $region32: #{sra_forward.1} parent=11 // pred_fallthru
        _
      // Predicated region
      $region33: #{sra_forward.1} parent=11 // pred_check
        %p308 = pneg %p208
      $region34: #{sra_forward.1} parent=11 // pred_check_branch
        %310 = sbr.rel (%p308) target = $region36
      $region35: #{sra_forward.1} parent=11 // pred_region
        _
      $region36: #{sra_forward.1} parent=11 // pred_fallthru
        _
      // Predicated region
      $region37: #{sra_forward.1} parent=11 // pred_check
        %p311 = pneg %p229
      $region38: #{sra_forward.1} parent=11 // pred_check_branch
        %313 = sbr.rel (%p311) target = $region40
      $region39: #{sra_forward.1} parent=11 // pred_region
        _
      $region40: #{sra_forward.1} parent=11 // pred_fallthru
        _
      // Predicated region
      $region41: #{sra_forward.1} parent=11 // pred_check
        %p314 = pneg %p250
      $region42: #{sra_forward.1} parent=11 // pred_check_branch
        %316 = sbr.rel (%p314) target = $region44
      $region43: #{sra_forward.1} parent=11 // pred_region
        _
      $region44: #{sra_forward.1} parent=11 // pred_fallthru
        _
    $region12: #{sra_forward.1} parent=5 // pred_fallthru
      _
    %p317 = scmp.lt.s32.totalorder %s16, 2
    // Predicated region
    $region45: #{sra_forward.1} parent=5 // pred_check
      %p318 = pneg %p317
    $region46: #{sra_forward.1} parent=5 // pred_check_branch
      %320 = sbr.rel (%p318) target = $region48
    $region47: #{sra_forward.1} parent=5 // pred_region
      // Predicated region
      $region49: #{sra_forward.1} parent=47 // pred_check
        %p321 = pneg %p48
      $region50: #{sra_forward.1} parent=47 // pred_check_branch
        %323 = sbr.rel (%p321) target = $region52
      $region51: #{sra_forward.1} parent=47 // pred_region
        %p324 = scmp.lt.s32.totalorder %s23, 1
        %s325 = scalar_select %p324, %s23, 1
        %s326 = smul.addr %s325, 8
        %s327 = smul.addr %s326, 4
        %s328 = scalar_lea.vmem %s0, %s327
      $region52: #{sra_forward.1} parent=47 // pred_fallthru
        _
      // Predicated region
      $region53: #{sra_forward.1} parent=47 // pred_check
        %p329 = pneg %p76
      $region54: #{sra_forward.1} parent=47 // pred_check_branch
        %331 = sbr.rel (%p329) target = $region56
      $region55: #{sra_forward.1} parent=47 // pred_region
        %s332 = smul.u32 32, %s24
        %p333 = scmp.lt.s32.totalorder %s23, 1
        %s334 = scalar_select %p333, %s23, 1
        %p335 = scmp.lt.s32.totalorder %s332, 31
        %s336 = scalar_select %p335, %s332, 31
        %s337 = smul.addr %s334, 32
        %s338 = sadd.s32 %s336, %s337
        %s339 = smul.addr %s338, 4
        %s340 = scalar_lea.vmem %s1, %s339
        %s341 = smul.u32 32, %s24
      $region56: #{sra_forward.1} parent=47 // pred_fallthru
        _
    $region48: #{sra_forward.1} parent=5 // pred_fallthru
      _
    %p342 = scmp.le.s32.totalorder 1, %s16
    %p343 = scmp.lt.s32.totalorder %s16, 3
    %p344 = pnand %p342, %p343
    %p345 = pneg %p344
    // Predicated region
    $region57: #{sra_forward.1} parent=5 // pred_check
      _
    $region58: #{sra_forward.1} parent=5 // pred_check_branch
      %347 = sbr.rel (%p344) target = $region60
    $region59: #{sra_forward.1} parent=5 // pred_region
      %s348 = ssub.s32 %s16, 1
      %p349 = scmp.lt.s32.totalorder %s25, 1
      %s350 = scalar_select %p349, %s25, 1
      %s351 = smul.addr %s350, 8
      %s352 = smul.addr %s351, 4
      %s353 = scalar_lea.vmem %s0, %s352
      %p354 = pneg %p54
      %p355 = pneg %p51
      %s356 = smul.u32 32, %s26
      %p357 = scmp.lt.s32.totalorder %s25, 1
      %s358 = scalar_select %p357, %s25, 1
      %p359 = scmp.lt.s32.totalorder %s356, 31
      %s360 = scalar_select %p359, %s356, 31
      %s361 = smul.addr %s358, 32
      %s362 = sadd.s32 %s360, %s361
      %s363 = smul.addr %s362, 4
      %s364 = scalar_lea.vmem %s1, %s363
      %p365 = pneg %p82
      %p366 = pneg %p79
      %p367 = pneg %p103
      %p368 = pneg %p100
      %p369 = pneg %p124
      %p370 = pneg %p121
      %p371 = pneg %p145
      %p372 = pneg %p142
      %p373 = pneg %p166
      %p374 = pneg %p163
      %p375 = pneg %p187
      %p376 = pneg %p184
      %p377 = pneg %p208
      %p378 = pneg %p205
      %p379 = pneg %p229
      %p380 = pneg %p226
      %p381 = pneg %p250
      %p382 = pneg %p247
      %p383 = pneg %p278
      %p384 = pneg %p275
      %s385 = smul.u32 2, %s26
      %p386 = scmp.lt.s32.totalorder %s25, 1
      %s387 = scalar_select %p386, %s25, 1
      %p388 = scmp.lt.s32.totalorder %s385, 1
      %s389 = scalar_select %p388, %s385, 1
      %s390 = smul.addr %s387, 8
      %s391 = sadd.s32 %s389, %s390
      %s392 = smul.addr %s391, 8
      %s393 = scalar_lea.vmem %s10, %s392
      %p394 = scmp.lt.s32.totalorder %s25, 1
      %s395 = scalar_select %p394, %s25, 1
      %s396 = smul.addr %s395, 8
      %s397 = smul.addr %s396, 4
      %s398 = scalar_lea.vmem %s0, %s397
      %s399 = smul.u32 32, %s26
      %p400 = scmp.lt.s32.totalorder %s25, 1
      %s401 = scalar_select %p400, %s25, 1
      %p402 = scmp.lt.s32.totalorder %s399, 31
      %s403 = scalar_select %p402, %s399, 31
      %s404 = smul.addr %s401, 32
      %s405 = sadd.s32 %s403, %s404
      %s406 = smul.addr %s405, 4
      %s407 = scalar_lea.vmem %s1, %s406
      %s408 = smul.u32 32, %s26
      %s409 = smul.u32 2, %s26
      %p410 = scmp.lt.s32.totalorder %s25, 1
      %s411 = scalar_select %p410, %s25, 1
      %p412 = scmp.lt.s32.totalorder %s409, 1
      %s413 = scalar_select %p412, %s409, 1
      %s414 = smul.addr %s411, 8
      %s415 = sadd.s32 %s413, %s414
      %s416 = smul.addr %s415, 8
      %s417 = scalar_lea.vmem %s10, %s416
      %s418 = smul.u32 2, %s26
      %p420 = scmp.eq.s32.totalorder %s26, 0
      // Predicated region
      $region61: #{sra_forward.1} parent=59 // pred_check
        %p421 = pneg %p420
      $region62: #{sra_forward.1} parent=59 // pred_check_branch
        %423 = sbr.rel (%p421) target = $region64
      $region63: #{sra_forward.1} parent=59 // pred_region
        %v424 = vld [vmem:[%s398] sm:$0xf]
        %v425 = vld [vmem:[%s398 + $0x4] sm:$0xf]
        %v426 = vld [vmem:[%s398 + $0x8] sm:$0xf]
        %v427 = vld [vmem:[%s398 + $0xc] sm:$0xf]
        %v428 = vld [vmem:[%s398 + $0x10] sm:$0xf]
        %v429 = vld [vmem:[%s398 + $0x14] sm:$0xf]
        %v430 = vld [vmem:[%s398 + $0x18] sm:$0xf]
        %v431 = vld [vmem:[%s398 + $0x1c] sm:$0xf]
        %v432 = vld [vmem:[%s2] sm:$0xf]
        %v433 = vld [vmem:[%s2 + $0x4] sm:$0xf]
        %v434 = vld [vmem:[%s2 + $0x8] sm:$0xf]
        %v435 = vld [vmem:[%s2 + $0xc] sm:$0xf]
        %v436 = vld [vmem:[%s2 + $0x10] sm:$0xf]
        %v437 = vld [vmem:[%s2 + $0x14] sm:$0xf]
        %v438 = vld [vmem:[%s2 + $0x18] sm:$0xf]
        %v439 = vld [vmem:[%s2 + $0x1c] sm:$0xf]
        %v440 = vld [vmem:[%s2 + $0x20] sm:$0xf]
        %v441 = vld [vmem:[%s2 + $0x24] sm:$0xf]
        %v442 = vld [vmem:[%s2 + $0x28] sm:$0xf]
        %v443 = vld [vmem:[%s2 + $0x2c] sm:$0xf]
        %v444 = vld [vmem:[%s2 + $0x30] sm:$0xf]
        %v445 = vld [vmem:[%s2 + $0x34] sm:$0xf]
        %v446 = vld [vmem:[%s2 + $0x38] sm:$0xf]
        %v447 = vld [vmem:[%s2 + $0x3c] sm:$0xf]
        %v448 = vld [vmem:[%s3] sm:$0x1]
        %v450 = vlaneseq
        %v451 = vshrl.u32 %v450, 7
        %v452 = vsub.s32 0, %v451
        %v453 = vrot.slane %v448, %v452
        %v463 = vunpack.c.l.b16 %v424
        %v464 = vunpack.c.l.b16 %v425
        %v465 = vunpack.c.l.b16 %v426
        %v466 = vunpack.c.l.b16 %v427
        %v467 = vunpack.c.l.b16 %v428
        %v468 = vunpack.c.l.b16 %v429
        %v469 = vunpack.c.l.b16 %v430
        %v470 = vunpack.c.l.b16 %v431
        %v471 = vpack.c.b16 %v464, %v463
        %v472 = vpack.c.b16 %v466, %v465
        %v473 = vpack.c.b16 %v468, %v467
        %v474 = vpack.c.b16 %v470, %v469
        %v495 = vunpack.c.l.b16 %v432
        %v496 = vunpack.c.l.b16 %v433
        %v497 = vunpack.c.l.b16 %v434
        %v498 = vunpack.c.l.b16 %v435
        %v499 = vunpack.c.l.b16 %v436
        %v500 = vunpack.c.l.b16 %v437
        %v501 = vunpack.c.l.b16 %v438
        %v502 = vunpack.c.l.b16 %v439
        %v503 = vunpack.c.l.b16 %v440
        %v504 = vunpack.c.l.b16 %v441
        %v505 = vunpack.c.l.b16 %v442
        %v506 = vunpack.c.l.b16 %v443
        %v507 = vunpack.c.l.b16 %v444
        %v508 = vunpack.c.l.b16 %v445
        %v509 = vunpack.c.l.b16 %v446
        %v510 = vunpack.c.l.b16 %v447
        %v511 = vpack.c.b16 %v496, %v495
        %v512 = vpack.c.b16 %v498, %v497
        %v513 = vpack.c.b16 %v500, %v499
        %v514 = vpack.c.b16 %v502, %v501
        %v515 = vpack.c.b16 %v504, %v503
        %v516 = vpack.c.b16 %v506, %v505
        %v517 = vpack.c.b16 %v508, %v507
        %v518 = vpack.c.b16 %v510, %v509
        %527 = vmatprep.subr.bf16.mxu0 0
        %528 = vmatpush1.bf16.msra.mxu0 %v518
        %529 = vmatprep.subr.bf16.mxu0 0
        %530 = vmatpush1.bf16.msra.mxu0 %v517
        %531 = vmatprep.subr.bf16.mxu0 0
        %532 = vmatpush1.bf16.msra.mxu0 %v516
        %533 = vmatprep.subr.bf16.mxu0 0
        %534 = vmatpush1.bf16.msra.mxu0 %v515
        %535 = vmatprep.subr.bf16.mxu0 0
        %536 = vmatpush1.bf16.msra.mxu0 %v514
        %537 = vmatprep.subr.bf16.mxu0 0
        %538 = vmatpush1.bf16.msra.mxu0 %v513
        %539 = vmatprep.subr.bf16.mxu0 0
        %540 = vmatpush1.bf16.msra.mxu0 %v512
        %541 = vmatprep.subr.bf16.mxu0 0
        %542 = vmatpush1.bf16.msra.mxu0 %v511
        %543 = vmatprep.subr.bf16.mxu0 0
        %544 = vmatpush2.bf16.msra.mxu0 0
        %545 = vmatprep.subr.bf16.mxu0 0
        %546 = vmatpush2.bf16.msra.mxu0 0
        %547 = vmatprep.subr.bf16.mxu0 0
        %548 = vmatpush2.bf16.msra.mxu0 0
        %549 = vmatprep.subr.bf16.mxu0 0
        %550 = vmatpush2.bf16.msra.mxu0 0
        %551 = vmatprep.subr.bf16.mxu0 0
        %552 = vmatpush2.bf16.msra.mxu0 0
        %553 = vmatprep.subr.bf16.mxu0 0
        %554 = vmatpush2.bf16.msra.mxu0 0
        %555 = vmatprep.subr.bf16.mxu0 0
        %556 = vmatpush2.bf16.msra.mxu0 0
        %557 = vmatprep.subr.bf16.mxu0 0
        %558 = vmatpush2.bf16.msra.mxu0 0
        %559 = vmatprep.mubr.bf16.mxu0 0
        %560 = vmatmul.mubr.bf16.gmra.mxu0 %v471
        %v561 = vpop.f32.mrf.mxu0
        %v562 = vadd.f32 %v453, %v561
        %v563 = vpop.f32.mrf.mxu0
        %v564 = vpop.f32.mrf.mxu0
        %v565 = vadd.f32 %v453, %v564
        %v566 = vpop.f32.mrf.mxu0
        %567 = vmatprep.mubr.bf16.mxu0 0
        %568 = vmatmul.mubr.bf16.gmra.mxu0 %v472
        %v569 = vpop.f32.mrf.mxu0
        %v570 = vadd.f32 %v453, %v569
        %v571 = vpop.f32.mrf.mxu0
        %v572 = vpop.f32.mrf.mxu0
        %v573 = vadd.f32 %v453, %v572
        %v574 = vpop.f32.mrf.mxu0
        %575 = vmatprep.mubr.bf16.mxu0 0
        %576 = vmatmul.mubr.bf16.gmra.mxu0 %v473
        %v577 = vpop.f32.mrf.mxu0
        %v578 = vadd.f32 %v453, %v577
        %v579 = vpop.f32.mrf.mxu0
        %v580 = vpop.f32.mrf.mxu0
        %v581 = vadd.f32 %v453, %v580
        %v582 = vpop.f32.mrf.mxu0
        %583 = vmatprep.mubr.bf16.mxu0 0
        %584 = vmatmul.mubr.bf16.gmra.mxu0 %v474
        %v585 = vpop.f32.mrf.mxu0
        %v586 = vadd.f32 %v453, %v585
        %v587 = vpop.f32.mrf.mxu0
        %v588 = vpop.f32.mrf.mxu0
        %v589 = vadd.f32 %v453, %v588
        %v590 = vpop.f32.mrf.mxu0
        %591 = vdwg.mxu0
        %vm592 = vcmask 261120
        %v593 = vsel %vm592, %v562, 0.0
        %594 = vadd.xlane.f32.xlu0 %v593
        %v595 = vpop.xlane.xlu0 %594
        %v596 = vsel %vm592, %v565, 0.0
        %597 = vadd.xlane.f32.xlu0 %v596
        %v598 = vpop.xlane.xlu0 %597
        %v599 = vsel %vm592, %v570, 0.0
        %600 = vadd.xlane.f32.xlu0 %v599
        %v601 = vpop.xlane.xlu0 %600
        %v602 = vsel %vm592, %v573, 0.0
        %603 = vadd.xlane.f32.xlu0 %v602
        %v604 = vpop.xlane.xlu0 %603
        %v605 = vsel %vm592, %v578, 0.0
        %606 = vadd.xlane.f32.xlu0 %v605
        %v607 = vpop.xlane.xlu0 %606
        %v608 = vsel %vm592, %v581, 0.0
        %609 = vadd.xlane.f32.xlu0 %v608
        %v610 = vpop.xlane.xlu0 %609
        %v611 = vsel %vm592, %v586, 0.0
        %612 = vadd.xlane.f32.xlu0 %v611
        %v613 = vpop.xlane.xlu0 %612
        %v614 = vsel %vm592, %v589, 0.0
        %615 = vadd.xlane.f32.xlu0 %v614
        %v616 = vpop.xlane.xlu0 %615
        %v617 = vadd.f32 %v595, %v598
        %v618 = vadd.f32 %v617, %v601
        %v619 = vadd.f32 %v618, %v604
        %v620 = vadd.f32 %v619, %v607
        %v621 = vadd.f32 %v620, %v610
        %v622 = vadd.f32 %v621, %v613
        %v623 = vadd.f32 %v622, %v616
        %v624 = vrot.slane %v623, 4
        %v625 = vadd.f32 %v623, %v624
        %v626 = vrot.slane %v625, 2
        %v627 = vadd.f32 %v625, %v626
        %v628 = vrot.slane %v627, 1
        %v629 = vadd.f32 %v627, %v628
        %v630 = vmul.f32 %v562, %v562
        %v631 = vmul.f32 %v565, %v565
        %v632 = vmul.f32 %v570, %v570
        %v633 = vmul.f32 %v573, %v573
        %v634 = vmul.f32 %v578, %v578
        %v635 = vmul.f32 %v581, %v581
        %v636 = vmul.f32 %v586, %v586
        %v637 = vmul.f32 %v589, %v589
        %v638 = vsel %vm592, %v630, 0.0
        %639 = vadd.xlane.f32.xlu0 %v638
        %v640 = vpop.xlane.xlu0 %639
        %v641 = vsel %vm592, %v631, 0.0
        %642 = vadd.xlane.f32.xlu0 %v641
        %v643 = vpop.xlane.xlu0 %642
        %v644 = vsel %vm592, %v632, 0.0
        %645 = vadd.xlane.f32.xlu0 %v644
        %v646 = vpop.xlane.xlu0 %645
        %v647 = vsel %vm592, %v633, 0.0
        %648 = vadd.xlane.f32.xlu0 %v647
        %v649 = vpop.xlane.xlu0 %648
        %v650 = vsel %vm592, %v634, 0.0
        %651 = vadd.xlane.f32.xlu0 %v650
        %v652 = vpop.xlane.xlu0 %651
        %v653 = vsel %vm592, %v635, 0.0
        %654 = vadd.xlane.f32.xlu0 %v653
        %v655 = vpop.xlane.xlu0 %654
        %v656 = vsel %vm592, %v636, 0.0
        %657 = vadd.xlane.f32.xlu0 %v656
        %v658 = vpop.xlane.xlu0 %657
        %v659 = vsel %vm592, %v637, 0.0
        %660 = vadd.xlane.f32.xlu0 %v659
        %v661 = vpop.xlane.xlu0 %660
        %v662 = vadd.f32 %v640, %v643
        %v663 = vadd.f32 %v662, %v646
        %v664 = vadd.f32 %v663, %v649
        %v665 = vadd.f32 %v664, %v652
        %v666 = vadd.f32 %v665, %v655
        %v667 = vadd.f32 %v666, %v658
        %v668 = vadd.f32 %v667, %v661
        %v669 = vrot.slane %v668, 4
        %v670 = vadd.f32 %v668, %v669
        %v671 = vrot.slane %v670, 2
        %v672 = vadd.f32 %v670, %v671
        %v673 = vrot.slane %v672, 1
        %v674 = vadd.f32 %v672, %v673
        %v675 = vmul.f32 %v629, 0.00048828125
        %v676 = vmul.f32 %v674, 0.00048828125
        %v677 = vmul.f32 %v675, %v675
        %v678 = vsub.f32 %v676, %v677
        %v679 = vsub.f32 %v562, %v675
        %v680 = vsub.f32 %v565, %v675
        %v681 = vsub.f32 %v570, %v675
        %v682 = vsub.f32 %v573, %v675
        %v683 = vsub.f32 %v578, %v675
        %v684 = vsub.f32 %v581, %v675
        %v685 = vsub.f32 %v586, %v675
        %v686 = vsub.f32 %v589, %v675
        %v687 = vadd.f32 %v678, 1e-05
        %v688 = vrsqrt.pop %v687
        %v689 = vmul.f32 %v679, %v688
        %v690 = vmul.f32 %v680, %v688
        %v691 = vmul.f32 %v681, %v688
        %v692 = vmul.f32 %v682, %v688
        %v693 = vmul.f32 %v683, %v688
        %v694 = vmul.f32 %v684, %v688
        %v695 = vmul.f32 %v685, %v688
        %v696 = vmul.f32 %v686, %v688
        %v697 = vpack.c.bf16 %v690, %v689
        %v698 = vpack.c.bf16 %v692, %v691
        %v699 = vpack.c.bf16 %v694, %v693
        %v700 = vpack.c.bf16 %v696, %v695
        %v701 = vld [vmem:[%s4] sm:$0xf]
        %v702 = vld [vmem:[%s4 + $0x4] sm:$0xf]
        %v703 = vld [vmem:[%s4 + $0x8] sm:$0xf]
        %v704 = vld [vmem:[%s4 + $0xc] sm:$0xf]
        %v705 = vld [vmem:[%s5] sm:$0x1]
        %v707 = vlaneseq
        %v708 = vshrl.u32 %v707, 7
        %v709 = vsub.s32 0, %v708
        %v710 = vrot.slane %v705, %v709
        %v716 = vunpack.c.l.b16 %v701
        %v717 = vunpack.c.l.b16 %v702
        %v718 = vunpack.c.l.b16 %v703
        %v719 = vunpack.c.l.b16 %v704
        %v720 = vpack.c.b16 %v717, %v716
        %v721 = vpack.c.b16 %v719, %v718
        %v725 = vsel %vm592, %v697, 0
        %v728 = vsel %vm592, %v698, 0
        %v731 = vsel %vm592, %v699, 0
        %v734 = vsel %vm592, %v700, 0
        %736 = vmatprep.subr.bf16.mxu0 0
        %737 = vmatpush1.bf16.msra.mxu0 0
        %738 = vmatprep.subr.bf16.mxu0 0
        %739 = vmatpush1.bf16.msra.mxu0 0
        %740 = vmatprep.subr.bf16.mxu0 0
        %741 = vmatpush1.bf16.msra.mxu0 0
        %742 = vmatprep.subr.bf16.mxu0 0
        %743 = vmatpush1.bf16.msra.mxu0 0
        %744 = vmatprep.subr.bf16.mxu0 0
        %745 = vmatpush1.bf16.msra.mxu0 0
        %746 = vmatprep.subr.bf16.mxu0 0
        %747 = vmatpush1.bf16.msra.mxu0 0
        %748 = vmatprep.subr.bf16.mxu0 0
        %749 = vmatpush1.bf16.msra.mxu0 %v721
        %750 = vmatprep.subr.bf16.mxu0 0
        %751 = vmatpush1.bf16.msra.mxu0 %v720
        %752 = vmatprep.subr.bf16.mxu0 0
        %753 = vmatpush2.bf16.msra.mxu0 0
        %754 = vmatprep.subr.bf16.mxu0 0
        %755 = vmatpush2.bf16.msra.mxu0 0
        %756 = vmatprep.subr.bf16.mxu0 0
        %757 = vmatpush2.bf16.msra.mxu0 0
        %758 = vmatprep.subr.bf16.mxu0 0
        %759 = vmatpush2.bf16.msra.mxu0 0
        %760 = vmatprep.subr.bf16.mxu0 0
        %761 = vmatpush2.bf16.msra.mxu0 0
        %762 = vmatprep.subr.bf16.mxu0 0
        %763 = vmatpush2.bf16.msra.mxu0 0
        %764 = vmatprep.subr.bf16.mxu0 0
        %765 = vmatpush2.bf16.msra.mxu0 0
        %766 = vmatprep.subr.bf16.mxu0 0
        %767 = vmatpush2.bf16.msra.mxu0 0
        %768 = vmatprep.mubr.bf16.mxu0 0
        %769 = vmatmul.mubr.bf16.gmra.mxu0 %v725
        %v770 = vpop.f32.mrf.mxu0
        %v771 = vadd.f32 %v710, %v770
        %v772 = vpop.f32.mrf.mxu0
        %v773 = vpop.f32.mrf.mxu0
        %v774 = vadd.f32 %v710, %v773
        %v775 = vpop.f32.mrf.mxu0
        %776 = vmatprep.mubr.bf16.mxu0 0
        %777 = vmatmul.mubr.bf16.gmra.mxu0 %v728
        %v778 = vpop.f32.mrf.mxu0
        %v779 = vadd.f32 %v710, %v778
        %v780 = vpop.f32.mrf.mxu0
        %v781 = vpop.f32.mrf.mxu0
        %v782 = vadd.f32 %v710, %v781
        %v783 = vpop.f32.mrf.mxu0
        %784 = vmatprep.mubr.bf16.mxu0 0
        %785 = vmatmul.mubr.bf16.gmra.mxu0 %v731
        %v786 = vpop.f32.mrf.mxu0
        %v787 = vadd.f32 %v710, %v786
        %v788 = vpop.f32.mrf.mxu0
        %v789 = vpop.f32.mrf.mxu0
        %v790 = vadd.f32 %v710, %v789
        %v791 = vpop.f32.mrf.mxu0
        %792 = vmatprep.mubr.bf16.mxu0 0
        %793 = vmatmul.mubr.bf16.gmra.mxu0 %v734
        %v794 = vpop.f32.mrf.mxu0
        %v795 = vadd.f32 %v710, %v794
        %v796 = vpop.f32.mrf.mxu0
        %v797 = vpop.f32.mrf.mxu0
        %v798 = vadd.f32 %v710, %v797
        %v799 = vpop.f32.mrf.mxu0
        %800 = vdwg.mxu0
        %v801 = vpack.c.bf16 %v774, %v771
        %v802 = vpack.c.bf16 %v782, %v779
        %v803 = vpack.c.bf16 %v790, %v787
        %v804 = vpack.c.bf16 %v798, %v795
        %v809 = vunpack.c.l.b16 %v801
        %v810 = vunpack.c.h.b16 %v801
        %v811 = vunpack.c.l.b16 %v802
        %v812 = vunpack.c.h.b16 %v802
        %v813 = vunpack.c.l.b16 %v803
        %v814 = vunpack.c.h.b16 %v803
        %v815 = vunpack.c.l.b16 %v804
        %v816 = vunpack.c.h.b16 %v804
        %v817 = vpack.c.b16 %v809, %v809
        %v818 = vpack.c.b16 %v810, %v810
        %v819 = vpack.c.b16 %v811, %v811
        %v820 = vpack.c.b16 %v812, %v812
        %v821 = vpack.c.b16 %v813, %v813
        %v822 = vpack.c.b16 %v814, %v814
        %v823 = vpack.c.b16 %v815, %v815
        %v824 = vpack.c.b16 %v816, %v816
        %vm833 = vcmask 519168
        %834 = vst.msk [vmem:[#allocation2] sm:$0xf] %vm833, %v817
        %835 = vst.msk [vmem:[#allocation2 + $0x4] sm:$0xf] %vm833, %v818
        %836 = vst.msk [vmem:[#allocation2 + $0x8] sm:$0xf] %vm833, %v819
        %837 = vst.msk [vmem:[#allocation2 + $0xc] sm:$0xf] %vm833, %v820
        %838 = vst.msk [vmem:[#allocation2 + $0x10] sm:$0xf] %vm833, %v821
        %839 = vst.msk [vmem:[#allocation2 + $0x14] sm:$0xf] %vm833, %v822
        %840 = vst.msk [vmem:[#allocation2 + $0x18] sm:$0xf] %vm833, %v823
        %841 = vst.msk [vmem:[#allocation2 + $0x1c] sm:$0xf] %vm833, %v824
      $region64: #{sra_forward.1} parent=59 // pred_fallthru
        _
      %v842 = vld [vmem:[%s407] sm:$0xf]
      %v843 = vld [vmem:[%s407 + $0x4] sm:$0xf]
      %v844 = vld [vmem:[%s407 + $0x8] sm:$0xf]
      %v845 = vld [vmem:[%s407 + $0xc] sm:$0xf]
      %v846 = vld [vmem:[%s407 + $0x10] sm:$0xf]
      %v847 = vld [vmem:[%s407 + $0x14] sm:$0xf]
      %v848 = vld [vmem:[%s407 + $0x18] sm:$0xf]
      %v849 = vld [vmem:[%s407 + $0x1c] sm:$0xf]
      %v850 = vld [vmem:[%s407 + $0x20] sm:$0xf]
      %v851 = vld [vmem:[%s407 + $0x24] sm:$0xf]
      %v852 = vld [vmem:[%s407 + $0x28] sm:$0xf]
      %v853 = vld [vmem:[%s407 + $0x2c] sm:$0xf]
      %v854 = vld [vmem:[%s407 + $0x30] sm:$0xf]
      %v855 = vld [vmem:[%s407 + $0x34] sm:$0xf]
      %v856 = vld [vmem:[%s407 + $0x38] sm:$0xf]
      %v857 = vld [vmem:[%s407 + $0x3c] sm:$0xf]
      %v858 = vld [vmem:[%s407 + $0x40] sm:$0xf]
      %v859 = vld [vmem:[%s407 + $0x44] sm:$0xf]
      %v860 = vld [vmem:[%s407 + $0x48] sm:$0xf]
      %v861 = vld [vmem:[%s407 + $0x4c] sm:$0xf]
      %v862 = vld [vmem:[%s407 + $0x50] sm:$0xf]
      %v863 = vld [vmem:[%s407 + $0x54] sm:$0xf]
      %v864 = vld [vmem:[%s407 + $0x58] sm:$0xf]
      %v865 = vld [vmem:[%s407 + $0x5c] sm:$0xf]
      %v866 = vld [vmem:[%s407 + $0x60] sm:$0xf]
      %v867 = vld [vmem:[%s407 + $0x64] sm:$0xf]
      %v868 = vld [vmem:[%s407 + $0x68] sm:$0xf]
      %v869 = vld [vmem:[%s407 + $0x6c] sm:$0xf]
      %v870 = vld [vmem:[%s407 + $0x70] sm:$0xf]
      %v871 = vld [vmem:[%s407 + $0x74] sm:$0xf]
      %v872 = vld [vmem:[%s407 + $0x78] sm:$0xf]
      %v873 = vld [vmem:[%s407 + $0x7c] sm:$0xf]
      %v874 = vld [vmem:[%s6] sm:$0xf]
      %v875 = vld [vmem:[%s6 + $0x4] sm:$0xf]
      %v876 = vld [vmem:[%s6 + $0x8] sm:$0xf]
      %v877 = vld [vmem:[%s6 + $0xc] sm:$0xf]
      %v878 = vld [vmem:[%s7] sm:$0x1]
      %v880 = vlaneseq
      %v881 = vshrl.u32 %v880, 7
      %v882 = vsub.s32 0, %v881
      %v883 = vrot.slane %v878, %v882
      %v917 = vunpack.c.l.b16 %v842
      %v918 = vunpack.c.l.b16 %v843
      %v919 = vunpack.c.l.b16 %v844
      %v920 = vunpack.c.l.b16 %v845
      %v921 = vunpack.c.l.b16 %v846
      %v922 = vunpack.c.l.b16 %v847
      %v923 = vunpack.c.l.b16 %v848
      %v924 = vunpack.c.l.b16 %v849
      %v925 = vunpack.c.l.b16 %v850
      %v926 = vunpack.c.l.b16 %v851
      %v927 = vunpack.c.l.b16 %v852
      %v928 = vunpack.c.l.b16 %v853
      %v929 = vunpack.c.l.b16 %v854
      %v930 = vunpack.c.l.b16 %v855
      %v931 = vunpack.c.l.b16 %v856
      %v932 = vunpack.c.l.b16 %v857
      %v933 = vunpack.c.l.b16 %v858
      %v934 = vunpack.c.l.b16 %v859
      %v935 = vunpack.c.l.b16 %v860
      %v936 = vunpack.c.l.b16 %v861
      %v937 = vunpack.c.l.b16 %v862
      %v938 = vunpack.c.l.b16 %v863
      %v939 = vunpack.c.l.b16 %v864
      %v940 = vunpack.c.l.b16 %v865
      %v941 = vunpack.c.l.b16 %v866
      %v942 = vunpack.c.l.b16 %v867
      %v943 = vunpack.c.l.b16 %v868
      %v944 = vunpack.c.l.b16 %v869
      %v945 = vunpack.c.l.b16 %v870
      %v946 = vunpack.c.l.b16 %v871
      %v947 = vunpack.c.l.b16 %v872
      %v948 = vunpack.c.l.b16 %v873
      %v949 = vpack.c.b16 %v918, %v917
      %v950 = vpack.c.b16 %v920, %v919
      %v951 = vpack.c.b16 %v922, %v921
      %v952 = vpack.c.b16 %v924, %v923
      %v953 = vpack.c.b16 %v926, %v925
      %v954 = vpack.c.b16 %v928, %v927
      %v955 = vpack.c.b16 %v930, %v929
      %v956 = vpack.c.b16 %v932, %v931
      %v957 = vpack.c.b16 %v934, %v933
      %v958 = vpack.c.b16 %v936, %v935
      %v959 = vpack.c.b16 %v938, %v937
      %v960 = vpack.c.b16 %v940, %v939
      %v961 = vpack.c.b16 %v942, %v941
      %v962 = vpack.c.b16 %v944, %v943
      %v963 = vpack.c.b16 %v946, %v945
      %v964 = vpack.c.b16 %v948, %v947
      %v969 = vunpack.c.l.b16 %v874
      %v970 = vunpack.c.l.b16 %v875
      %v971 = vunpack.c.l.b16 %v876
      %v972 = vunpack.c.l.b16 %v877
      %v973 = vpack.c.b16 %v970, %v969
      %v974 = vpack.c.b16 %v972, %v971
      %vm977 = vcmask 261120
      %v979 = vsel %vm977, %v949, 0
      %v982 = vsel %vm977, %v950, 0
      %v985 = vsel %vm977, %v951, 0
      %v988 = vsel %vm977, %v952, 0
      %v991 = vsel %vm977, %v953, 0
      %v994 = vsel %vm977, %v954, 0
      %v997 = vsel %vm977, %v955, 0
      %v1000 = vsel %vm977, %v956, 0
      %v1003 = vsel %vm977, %v957, 0
      %v1006 = vsel %vm977, %v958, 0
      %v1009 = vsel %vm977, %v959, 0
      %v1012 = vsel %vm977, %v960, 0
      %v1015 = vsel %vm977, %v961, 0
      %v1018 = vsel %vm977, %v962, 0
      %v1021 = vsel %vm977, %v963, 0
      %v1024 = vsel %vm977, %v964, 0
      %1026 = vmatprep.subr.bf16.mxu0 0
      %1027 = vmatpush1.bf16.msra.mxu0 0
      %1028 = vmatprep.subr.bf16.mxu0 0
      %1029 = vmatpush1.bf16.msra.mxu0 0
      %1030 = vmatprep.subr.bf16.mxu0 0
      %1031 = vmatpush1.bf16.msra.mxu0 0
      %1032 = vmatprep.subr.bf16.mxu0 0
      %1033 = vmatpush1.bf16.msra.mxu0 0
      %1034 = vmatprep.subr.bf16.mxu0 0
      %1035 = vmatpush1.bf16.msra.mxu0 0
      %1036 = vmatprep.subr.bf16.mxu0 0
      %1037 = vmatpush1.bf16.msra.mxu0 0
      %1038 = vmatprep.subr.bf16.mxu0 0
      %1039 = vmatpush1.bf16.msra.mxu0 %v974
      %1040 = vmatprep.subr.bf16.mxu0 0
      %1041 = vmatpush1.bf16.msra.mxu0 %v973
      %1042 = vmatprep.subr.bf16.mxu0 0
      %1043 = vmatpush2.bf16.msra.mxu0 0
      %1044 = vmatprep.subr.bf16.mxu0 0
      %1045 = vmatpush2.bf16.msra.mxu0 0
      %1046 = vmatprep.subr.bf16.mxu0 0
      %1047 = vmatpush2.bf16.msra.mxu0 0
      %1048 = vmatprep.subr.bf16.mxu0 0
      %1049 = vmatpush2.bf16.msra.mxu0 0
      %1050 = vmatprep.subr.bf16.mxu0 0
      %1051 = vmatpush2.bf16.msra.mxu0 0
      %1052 = vmatprep.subr.bf16.mxu0 0
      %1053 = vmatpush2.bf16.msra.mxu0 0
      %1054 = vmatprep.subr.bf16.mxu0 0
      %1055 = vmatpush2.bf16.msra.mxu0 0
      %1056 = vmatprep.subr.bf16.mxu0 0
      %1057 = vmatpush2.bf16.msra.mxu0 0
      %1058 = vmatprep.mubr.bf16.mxu0 0
      %1059 = vmatmul.mubr.bf16.gmra.mxu0 %v979
      %v1060 = vpop.f32.mrf.mxu0
      %v1061 = vadd.f32 %v883, %v1060
      %v1062 = vpop.f32.mrf.mxu0
      %v1063 = vpop.f32.mrf.mxu0
      %v1064 = vadd.f32 %v883, %v1063
      %v1065 = vpop.f32.mrf.mxu0
      %1066 = vmatprep.mubr.bf16.mxu0 0
      %1067 = vmatmul.mubr.bf16.gmra.mxu0 %v982
      %v1068 = vpop.f32.mrf.mxu0
      %v1069 = vadd.f32 %v883, %v1068
      %v1070 = vpop.f32.mrf.mxu0
      %v1071 = vpop.f32.mrf.mxu0
      %v1072 = vadd.f32 %v883, %v1071
      %v1073 = vpop.f32.mrf.mxu0
      %1074 = vmatprep.mubr.bf16.mxu0 0
      %1075 = vmatmul.mubr.bf16.gmra.mxu0 %v985
      %v1076 = vpop.f32.mrf.mxu0
      %v1077 = vadd.f32 %v883, %v1076
      %v1078 = vpop.f32.mrf.mxu0
      %v1079 = vpop.f32.mrf.mxu0
      %v1080 = vadd.f32 %v883, %v1079
      %v1081 = vpop.f32.mrf.mxu0
      %1082 = vmatprep.mubr.bf16.mxu0 0
      %1083 = vmatmul.mubr.bf16.gmra.mxu0 %v988
      %v1084 = vpop.f32.mrf.mxu0
      %v1085 = vadd.f32 %v883, %v1084
      %v1086 = vpop.f32.mrf.mxu0
      %v1087 = vpop.f32.mrf.mxu0
      %v1088 = vadd.f32 %v883, %v1087
      %v1089 = vpop.f32.mrf.mxu0
      %1090 = vmatprep.mubr.bf16.mxu0 0
      %1091 = vmatmul.mubr.bf16.gmra.mxu0 %v991
      %v1092 = vpop.f32.mrf.mxu0
      %v1093 = vadd.f32 %v883, %v1092
      %v1094 = vpop.f32.mrf.mxu0
      %v1095 = vpop.f32.mrf.mxu0
      %v1096 = vadd.f32 %v883, %v1095
      %v1097 = vpop.f32.mrf.mxu0
      %1098 = vmatprep.mubr.bf16.mxu0 0
      %1099 = vmatmul.mubr.bf16.gmra.mxu0 %v994
      %v1100 = vpop.f32.mrf.mxu0
      %v1101 = vadd.f32 %v883, %v1100
      %v1102 = vpop.f32.mrf.mxu0
      %v1103 = vpop.f32.mrf.mxu0
      %v1104 = vadd.f32 %v883, %v1103
      %v1105 = vpop.f32.mrf.mxu0
      %1106 = vmatprep.mubr.bf16.mxu0 0
      %1107 = vmatmul.mubr.bf16.gmra.mxu0 %v997
      %v1108 = vpop.f32.mrf.mxu0
      %v1109 = vadd.f32 %v883, %v1108
      %v1110 = vpop.f32.mrf.mxu0
      %v1111 = vpop.f32.mrf.mxu0
      %v1112 = vadd.f32 %v883, %v1111
      %v1113 = vpop.f32.mrf.mxu0
      %1114 = vmatprep.mubr.bf16.mxu0 0
      %1115 = vmatmul.mubr.bf16.gmra.mxu0 %v1000
      %v1116 = vpop.f32.mrf.mxu0
      %v1117 = vadd.f32 %v883, %v1116
      %v1118 = vpop.f32.mrf.mxu0
      %v1119 = vpop.f32.mrf.mxu0
      %v1120 = vadd.f32 %v883, %v1119
      %v1121 = vpop.f32.mrf.mxu0
      %1122 = vmatprep.mubr.bf16.mxu0 0
      %1123 = vmatmul.mubr.bf16.gmra.mxu0 %v1003
      %v1124 = vpop.f32.mrf.mxu0
      %v1125 = vadd.f32 %v883, %v1124
      %v1126 = vpop.f32.mrf.mxu0
      %v1127 = vpop.f32.mrf.mxu0
      %v1128 = vadd.f32 %v883, %v1127
      %v1129 = vpop.f32.mrf.mxu0
      %1130 = vmatprep.mubr.bf16.mxu0 0
      %1131 = vmatmul.mubr.bf16.gmra.mxu0 %v1006
      %v1132 = vpop.f32.mrf.mxu0
      %v1133 = vadd.f32 %v883, %v1132
      %v1134 = vpop.f32.mrf.mxu0
      %v1135 = vpop.f32.mrf.mxu0
      %v1136 = vadd.f32 %v883, %v1135
      %v1137 = vpop.f32.mrf.mxu0
      %1138 = vmatprep.mubr.bf16.mxu0 0
      %1139 = vmatmul.mubr.bf16.gmra.mxu0 %v1009
      %v1140 = vpop.f32.mrf.mxu0
      %v1141 = vadd.f32 %v883, %v1140
      %v1142 = vpop.f32.mrf.mxu0
      %v1143 = vpop.f32.mrf.mxu0
      %v1144 = vadd.f32 %v883, %v1143
      %v1145 = vpop.f32.mrf.mxu0
      %1146 = vmatprep.mubr.bf16.mxu0 0
      %1147 = vmatmul.mubr.bf16.gmra.mxu0 %v1012
      %v1148 = vpop.f32.mrf.mxu0
      %v1149 = vadd.f32 %v883, %v1148
      %v1150 = vpop.f32.mrf.mxu0
      %v1151 = vpop.f32.mrf.mxu0
      %v1152 = vadd.f32 %v883, %v1151
      %v1153 = vpop.f32.mrf.mxu0
      %1154 = vmatprep.mubr.bf16.mxu0 0
      %1155 = vmatmul.mubr.bf16.gmra.mxu0 %v1015
      %v1156 = vpop.f32.mrf.mxu0
      %v1157 = vadd.f32 %v883, %v1156
      %v1158 = vpop.f32.mrf.mxu0
      %v1159 = vpop.f32.mrf.mxu0
      %v1160 = vadd.f32 %v883, %v1159
      %v1161 = vpop.f32.mrf.mxu0
      %1162 = vmatprep.mubr.bf16.mxu0 0
      %1163 = vmatmul.mubr.bf16.gmra.mxu0 %v1018
      %v1164 = vpop.f32.mrf.mxu0
      %v1165 = vadd.f32 %v883, %v1164
      %v1166 = vpop.f32.mrf.mxu0
      %v1167 = vpop.f32.mrf.mxu0
      %v1168 = vadd.f32 %v883, %v1167
      %v1169 = vpop.f32.mrf.mxu0
      %1170 = vmatprep.mubr.bf16.mxu0 0
      %1171 = vmatmul.mubr.bf16.gmra.mxu0 %v1021
      %v1172 = vpop.f32.mrf.mxu0
      %v1173 = vadd.f32 %v883, %v1172
      %v1174 = vpop.f32.mrf.mxu0
      %v1175 = vpop.f32.mrf.mxu0
      %v1176 = vadd.f32 %v883, %v1175
      %v1177 = vpop.f32.mrf.mxu0
      %1178 = vmatprep.mubr.bf16.mxu0 0
      %1179 = vmatmul.mubr.bf16.gmra.mxu0 %v1024
      %v1180 = vpop.f32.mrf.mxu0
      %v1181 = vadd.f32 %v883, %v1180
      %v1182 = vpop.f32.mrf.mxu0
      %v1183 = vpop.f32.mrf.mxu0
      %v1184 = vadd.f32 %v883, %v1183
      %v1185 = vpop.f32.mrf.mxu0
      %1186 = vdwg.mxu0
      %v1187 = vpack.c.bf16 %v1064, %v1061
      %v1188 = vpack.c.bf16 %v1072, %v1069
      %v1189 = vpack.c.bf16 %v1080, %v1077
      %v1190 = vpack.c.bf16 %v1088, %v1085
      %v1191 = vpack.c.bf16 %v1096, %v1093
      %v1192 = vpack.c.bf16 %v1104, %v1101
      %v1193 = vpack.c.bf16 %v1112, %v1109
      %v1194 = vpack.c.bf16 %v1120, %v1117
      %v1195 = vpack.c.bf16 %v1128, %v1125
      %v1196 = vpack.c.bf16 %v1136, %v1133
      %v1197 = vpack.c.bf16 %v1144, %v1141
      %v1198 = vpack.c.bf16 %v1152, %v1149
      %v1199 = vpack.c.bf16 %v1160, %v1157
      %v1200 = vpack.c.bf16 %v1168, %v1165
      %v1201 = vpack.c.bf16 %v1176, %v1173
      %v1202 = vpack.c.bf16 %v1184, %v1181
      %v1203 = vld [vmem:[#allocation2] sm:$0xf]
      %v1204 = vld [vmem:[#allocation2 + $0x4] sm:$0xf]
      %v1205 = vld [vmem:[#allocation2 + $0x8] sm:$0xf]
      %v1206 = vld [vmem:[#allocation2 + $0xc] sm:$0xf]
      %v1207 = vld [vmem:[#allocation2 + $0x10] sm:$0xf]
      %v1208 = vld [vmem:[#allocation2 + $0x14] sm:$0xf]
      %v1209 = vld [vmem:[#allocation2 + $0x18] sm:$0xf]
      %v1210 = vld [vmem:[#allocation2 + $0x1c] sm:$0xf]
      %v1219 = vunpack.c.l.b16 %v1203
      %v1220 = vunpack.c.l.b16 %v1204
      %v1221 = vunpack.c.l.b16 %v1205
      %v1222 = vunpack.c.l.b16 %v1206
      %v1223 = vunpack.c.l.b16 %v1207
      %v1224 = vunpack.c.l.b16 %v1208
      %v1225 = vunpack.c.l.b16 %v1209
      %v1226 = vunpack.c.l.b16 %v1210
      %v1227 = vpack.c.b16 %v1220, %v1219
      %v1228 = vpack.c.b16 %v1222, %v1221
      %v1229 = vpack.c.b16 %v1224, %v1223
      %v1230 = vpack.c.b16 %v1226, %v1225
      %vm1231 = vcmask 31744
      %v1233 = vsel %vm1231, %v1187, 0
      %v1236 = vsel %vm1231, %v1188, 0
      %v1239 = vsel %vm1231, %v1189, 0
      %v1242 = vsel %vm1231, %v1190, 0
      %v1245 = vsel %vm1231, %v1191, 0
      %v1248 = vsel %vm1231, %v1192, 0
      %v1251 = vsel %vm1231, %v1193, 0
      %v1254 = vsel %vm1231, %v1194, 0
      %v1257 = vsel %vm1231, %v1195, 0
      %v1260 = vsel %vm1231, %v1196, 0
      %v1263 = vsel %vm1231, %v1197, 0
      %v1266 = vsel %vm1231, %v1198, 0
      %v1269 = vsel %vm1231, %v1199, 0
      %v1272 = vsel %vm1231, %v1200, 0
      %v1275 = vsel %vm1231, %v1201, 0
      %v1278 = vsel %vm1231, %v1202, 0
      %v1281 = vsel %vm1231, %v1227, 0
      %v1284 = vsel %vm1231, %v1228, 0
      %v1287 = vsel %vm1231, %v1229, 0
      %v1290 = vsel %vm1231, %v1230, 0
      %1292 = vmatprep.subr.bf16.mxu0 0
      %1293 = vmatpush1.bf16.xpose.msra.mxu0 0
      %1294 = vmatprep.subr.bf16.mxu0 0
      %1295 = vmatpush1.bf16.xpose.msra.mxu0 0
      %1296 = vmatprep.subr.bf16.mxu0 0
      %1297 = vmatpush1.bf16.xpose.msra.mxu0 0
      %1298 = vmatprep.subr.bf16.mxu0 0
      %1299 = vmatpush1.bf16.xpose.msra.mxu0 0
      %1300 = vmatprep.subr.bf16.mxu0 0
      %1301 = vmatpush1.bf16.xpose.msra.mxu0 %v1290
      %1302 = vmatprep.subr.bf16.mxu0 0
      %1303 = vmatpush1.bf16.xpose.msra.mxu0 %v1287
      %1304 = vmatprep.subr.bf16.mxu0 0
      %1305 = vmatpush1.bf16.xpose.msra.mxu0 %v1284
      %1306 = vmatprep.subr.bf16.mxu0 0
      %1307 = vmatpush1.bf16.xpose.msra.mxu0 %v1281
      %1308 = vmatprep.subr.bf16.mxu0 0
      %1309 = vmatpush2.bf16.xpose.msra.mxu0 0
      %1310 = vmatprep.subr.bf16.mxu0 0
      %1311 = vmatpush2.bf16.xpose.msra.mxu0 0
      %1312 = vmatprep.subr.bf16.mxu0 0
      %1313 = vmatpush2.bf16.xpose.msra.mxu0 0
      %1314 = vmatprep.subr.bf16.mxu0 0
      %1315 = vmatpush2.bf16.xpose.msra.mxu0 0
      %1316 = vmatprep.subr.bf16.mxu0 0
      %1317 = vmatpush2.bf16.xpose.msra.mxu0 0
      %1318 = vmatprep.subr.bf16.mxu0 0
      %1319 = vmatpush2.bf16.xpose.msra.mxu0 0
      %1320 = vmatprep.subr.bf16.mxu0 0
      %1321 = vmatpush2.bf16.xpose.msra.mxu0 0
      %1322 = vmatprep.subr.bf16.mxu0 0
      %1323 = vmatpush2.bf16.xpose.msra.mxu0 0
      %1324 = vmatprep.mubr.bf16.mxu0 0
      %1325 = vmatmul.mubr.bf16.gmra.mxu0 %v1233
      %v1326 = vpop.f32.mrf.mxu0
      %v1327 = vadd.f32 0.0, %v1326
      %v1328 = vpop.f32.mrf.mxu0
      %v1329 = vpop.f32.mrf.mxu0
      %v1330 = vadd.f32 0.0, %v1329
      %v1331 = vpop.f32.mrf.mxu0
      %1332 = vmatprep.mubr.bf16.mxu0 0
      %1333 = vmatmul.mubr.bf16.gmra.mxu0 %v1236
      %v1334 = vpop.f32.mrf.mxu0
      %v1335 = vadd.f32 0.0, %v1334
      %v1336 = vpop.f32.mrf.mxu0
      %v1337 = vpop.f32.mrf.mxu0
      %v1338 = vadd.f32 0.0, %v1337
      %v1339 = vpop.f32.mrf.mxu0
      %1340 = vmatprep.mubr.bf16.mxu0 0
      %1341 = vmatmul.mubr.bf16.gmra.mxu0 %v1239
      %v1342 = vpop.f32.mrf.mxu0
      %v1343 = vadd.f32 0.0, %v1342
      %v1344 = vpop.f32.mrf.mxu0
      %v1345 = vpop.f32.mrf.mxu0
      %v1346 = vadd.f32 0.0, %v1345
      %v1347 = vpop.f32.mrf.mxu0
      %1348 = vmatprep.mubr.bf16.mxu0 0
      %1349 = vmatmul.mubr.bf16.gmra.mxu0 %v1242
      %v1350 = vpop.f32.mrf.mxu0
      %v1351 = vadd.f32 0.0, %v1350
      %v1352 = vpop.f32.mrf.mxu0
      %v1353 = vpop.f32.mrf.mxu0
      %v1354 = vadd.f32 0.0, %v1353
      %v1355 = vpop.f32.mrf.mxu0
      %1356 = vmatprep.mubr.bf16.mxu0 0
      %1357 = vmatmul.mubr.bf16.gmra.mxu0 %v1245
      %v1358 = vpop.f32.mrf.mxu0
      %v1359 = vadd.f32 0.0, %v1358
      %v1360 = vpop.f32.mrf.mxu0
      %v1361 = vpop.f32.mrf.mxu0
      %v1362 = vadd.f32 0.0, %v1361
      %v1363 = vpop.f32.mrf.mxu0
      %1364 = vmatprep.mubr.bf16.mxu0 0
      %1365 = vmatmul.mubr.bf16.gmra.mxu0 %v1248
      %v1366 = vpop.f32.mrf.mxu0
      %v1367 = vadd.f32 0.0, %v1366
      %v1368 = vpop.f32.mrf.mxu0
      %v1369 = vpop.f32.mrf.mxu0
      %v1370 = vadd.f32 0.0, %v1369
      %v1371 = vpop.f32.mrf.mxu0
      %1372 = vmatprep.mubr.bf16.mxu0 0
      %1373 = vmatmul.mubr.bf16.gmra.mxu0 %v1251
      %v1374 = vpop.f32.mrf.mxu0
      %v1375 = vadd.f32 0.0, %v1374
      %v1376 = vpop.f32.mrf.mxu0
      %v1377 = vpop.f32.mrf.mxu0
      %v1378 = vadd.f32 0.0, %v1377
      %v1379 = vpop.f32.mrf.mxu0
      %1380 = vmatprep.mubr.bf16.mxu0 0
      %1381 = vmatmul.mubr.bf16.gmra.mxu0 %v1254
      %v1382 = vpop.f32.mrf.mxu0
      %v1383 = vadd.f32 0.0, %v1382
      %v1384 = vpop.f32.mrf.mxu0
      %v1385 = vpop.f32.mrf.mxu0
      %v1386 = vadd.f32 0.0, %v1385
      %v1387 = vpop.f32.mrf.mxu0
      %1388 = vmatprep.mubr.bf16.mxu0 0
      %1389 = vmatmul.mubr.bf16.gmra.mxu0 %v1257
      %v1390 = vpop.f32.mrf.mxu0
      %v1391 = vadd.f32 0.0, %v1390
      %v1392 = vpop.f32.mrf.mxu0
      %v1393 = vpop.f32.mrf.mxu0
      %v1394 = vadd.f32 0.0, %v1393
      %v1395 = vpop.f32.mrf.mxu0
      %1396 = vmatprep.mubr.bf16.mxu0 0
      %1397 = vmatmul.mubr.bf16.gmra.mxu0 %v1260
      %v1398 = vpop.f32.mrf.mxu0
      %v1399 = vadd.f32 0.0, %v1398
      %v1400 = vpop.f32.mrf.mxu0
      %v1401 = vpop.f32.mrf.mxu0
      %v1402 = vadd.f32 0.0, %v1401
      %v1403 = vpop.f32.mrf.mxu0
      %1404 = vmatprep.mubr.bf16.mxu0 0
      %1405 = vmatmul.mubr.bf16.gmra.mxu0 %v1263
      %v1406 = vpop.f32.mrf.mxu0
      %v1407 = vadd.f32 0.0, %v1406
      %v1408 = vpop.f32.mrf.mxu0
      %v1409 = vpop.f32.mrf.mxu0
      %v1410 = vadd.f32 0.0, %v1409
      %v1411 = vpop.f32.mrf.mxu0
      %1412 = vmatprep.mubr.bf16.mxu0 0
      %1413 = vmatmul.mubr.bf16.gmra.mxu0 %v1266
      %v1414 = vpop.f32.mrf.mxu0
      %v1415 = vadd.f32 0.0, %v1414
      %v1416 = vpop.f32.mrf.mxu0
      %v1417 = vpop.f32.mrf.mxu0
      %v1418 = vadd.f32 0.0, %v1417
      %v1419 = vpop.f32.mrf.mxu0
      %1420 = vmatprep.mubr.bf16.mxu0 0
      %1421 = vmatmul.mubr.bf16.gmra.mxu0 %v1269
      %v1422 = vpop.f32.mrf.mxu0
      %v1423 = vadd.f32 0.0, %v1422
      %v1424 = vpop.f32.mrf.mxu0
      %v1425 = vpop.f32.mrf.mxu0
      %v1426 = vadd.f32 0.0, %v1425
      %v1427 = vpop.f32.mrf.mxu0
      %1428 = vmatprep.mubr.bf16.mxu0 0
      %1429 = vmatmul.mubr.bf16.gmra.mxu0 %v1272
      %v1430 = vpop.f32.mrf.mxu0
      %v1431 = vadd.f32 0.0, %v1430
      %v1432 = vpop.f32.mrf.mxu0
      %v1433 = vpop.f32.mrf.mxu0
      %v1434 = vadd.f32 0.0, %v1433
      %v1435 = vpop.f32.mrf.mxu0
      %1436 = vmatprep.mubr.bf16.mxu0 0
      %1437 = vmatmul.mubr.bf16.gmra.mxu0 %v1275
      %v1438 = vpop.f32.mrf.mxu0
      %v1439 = vadd.f32 0.0, %v1438
      %v1440 = vpop.f32.mrf.mxu0
      %v1441 = vpop.f32.mrf.mxu0
      %v1442 = vadd.f32 0.0, %v1441
      %v1443 = vpop.f32.mrf.mxu0
      %1444 = vmatprep.mubr.bf16.mxu0 0
      %1445 = vmatmul.mubr.bf16.gmra.mxu0 %v1278
      %v1446 = vpop.f32.mrf.mxu0
      %v1447 = vadd.f32 0.0, %v1446
      %v1448 = vpop.f32.mrf.mxu0
      %v1449 = vpop.f32.mrf.mxu0
      %v1450 = vadd.f32 0.0, %v1449
      %v1451 = vpop.f32.mrf.mxu0
      %1452 = vdwg.mxu0
      %vm1453 = vcmask 523264
      %v1454 = vsel %vm1453, %v1327, -inf
      %1455 = vmax.xlane.f32.xlu0 %v1454
      %v1456 = vpop.xlane.xlu0 %1455
      %v1457 = vsel %vm1453, %v1330, -inf
      %1458 = vmax.xlane.f32.xlu0 %v1457
      %v1459 = vpop.xlane.xlu0 %1458
      %v1460 = vsel %vm1453, %v1335, -inf
      %1461 = vmax.xlane.f32.xlu0 %v1460
      %v1462 = vpop.xlane.xlu0 %1461
      %v1463 = vsel %vm1453, %v1338, -inf
      %1464 = vmax.xlane.f32.xlu0 %v1463
      %v1465 = vpop.xlane.xlu0 %1464
      %v1466 = vsel %vm1453, %v1343, -inf
      %1467 = vmax.xlane.f32.xlu0 %v1466
      %v1468 = vpop.xlane.xlu0 %1467
      %v1469 = vsel %vm1453, %v1346, -inf
      %1470 = vmax.xlane.f32.xlu0 %v1469
      %v1471 = vpop.xlane.xlu0 %1470
      %v1472 = vsel %vm1453, %v1351, -inf
      %1473 = vmax.xlane.f32.xlu0 %v1472
      %v1474 = vpop.xlane.xlu0 %1473
      %v1475 = vsel %vm1453, %v1354, -inf
      %1476 = vmax.xlane.f32.xlu0 %v1475
      %v1477 = vpop.xlane.xlu0 %1476
      %v1478 = vsel %vm1453, %v1359, -inf
      %1479 = vmax.xlane.f32.xlu0 %v1478
      %v1480 = vpop.xlane.xlu0 %1479
      %v1481 = vsel %vm1453, %v1362, -inf
      %1482 = vmax.xlane.f32.xlu0 %v1481
      %v1483 = vpop.xlane.xlu0 %1482
      %v1484 = vsel %vm1453, %v1367, -inf
      %1485 = vmax.xlane.f32.xlu0 %v1484
      %v1486 = vpop.xlane.xlu0 %1485
      %v1487 = vsel %vm1453, %v1370, -inf
      %1488 = vmax.xlane.f32.xlu0 %v1487
      %v1489 = vpop.xlane.xlu0 %1488
      %v1490 = vsel %vm1453, %v1375, -inf
      %1491 = vmax.xlane.f32.xlu0 %v1490
      %v1492 = vpop.xlane.xlu0 %1491
      %v1493 = vsel %vm1453, %v1378, -inf
      %1494 = vmax.xlane.f32.xlu0 %v1493
      %v1495 = vpop.xlane.xlu0 %1494
      %v1496 = vsel %vm1453, %v1383, -inf
      %1497 = vmax.xlane.f32.xlu0 %v1496
      %v1498 = vpop.xlane.xlu0 %1497
      %v1499 = vsel %vm1453, %v1386, -inf
      %1500 = vmax.xlane.f32.xlu0 %v1499
      %v1501 = vpop.xlane.xlu0 %1500
      %v1502 = vsel %vm1453, %v1391, -inf
      %1503 = vmax.xlane.f32.xlu0 %v1502
      %v1504 = vpop.xlane.xlu0 %1503
      %v1505 = vsel %vm1453, %v1394, -inf
      %1506 = vmax.xlane.f32.xlu0 %v1505
      %v1507 = vpop.xlane.xlu0 %1506
      %v1508 = vsel %vm1453, %v1399, -inf
      %1509 = vmax.xlane.f32.xlu0 %v1508
      %v1510 = vpop.xlane.xlu0 %1509
      %v1511 = vsel %vm1453, %v1402, -inf
      %1512 = vmax.xlane.f32.xlu0 %v1511
      %v1513 = vpop.xlane.xlu0 %1512
      %v1514 = vsel %vm1453, %v1407, -inf
      %1515 = vmax.xlane.f32.xlu0 %v1514
      %v1516 = vpop.xlane.xlu0 %1515
      %v1517 = vsel %vm1453, %v1410, -inf
      %1518 = vmax.xlane.f32.xlu0 %v1517
      %v1519 = vpop.xlane.xlu0 %1518
      %v1520 = vsel %vm1453, %v1415, -inf
      %1521 = vmax.xlane.f32.xlu0 %v1520
      %v1522 = vpop.xlane.xlu0 %1521
      %v1523 = vsel %vm1453, %v1418, -inf
      %1524 = vmax.xlane.f32.xlu0 %v1523
      %v1525 = vpop.xlane.xlu0 %1524
      %v1526 = vsel %vm1453, %v1423, -inf
      %1527 = vmax.xlane.f32.xlu0 %v1526
      %v1528 = vpop.xlane.xlu0 %1527
      %v1529 = vsel %vm1453, %v1426, -inf
      %1530 = vmax.xlane.f32.xlu0 %v1529
      %v1531 = vpop.xlane.xlu0 %1530
      %v1532 = vsel %vm1453, %v1431, -inf
      %1533 = vmax.xlane.f32.xlu0 %v1532
      %v1534 = vpop.xlane.xlu0 %1533
      %v1535 = vsel %vm1453, %v1434, -inf
      %1536 = vmax.xlane.f32.xlu0 %v1535
      %v1537 = vpop.xlane.xlu0 %1536
      %v1538 = vsel %vm1453, %v1439, -inf
      %1539 = vmax.xlane.f32.xlu0 %v1538
      %v1540 = vpop.xlane.xlu0 %1539
      %v1541 = vsel %vm1453, %v1442, -inf
      %1542 = vmax.xlane.f32.xlu0 %v1541
      %v1543 = vpop.xlane.xlu0 %1542
      %v1544 = vsel %vm1453, %v1447, -inf
      %1545 = vmax.xlane.f32.xlu0 %v1544
      %v1546 = vpop.xlane.xlu0 %1545
      %v1547 = vsel %vm1453, %v1450, -inf
      %1548 = vmax.xlane.f32.xlu0 %v1547
      %v1549 = vpop.xlane.xlu0 %1548
      %v1550 = vsub.f32 %v1327, %v1456
      %v1551 = vsub.f32 %v1330, %v1459
      %v1552 = vsub.f32 %v1335, %v1462
      %v1553 = vsub.f32 %v1338, %v1465
      %v1554 = vsub.f32 %v1343, %v1468
      %v1555 = vsub.f32 %v1346, %v1471
      %v1556 = vsub.f32 %v1351, %v1474
      %v1557 = vsub.f32 %v1354, %v1477
      %v1558 = vsub.f32 %v1359, %v1480
      %v1559 = vsub.f32 %v1362, %v1483
      %v1560 = vsub.f32 %v1367, %v1486
      %v1561 = vsub.f32 %v1370, %v1489
      %v1562 = vsub.f32 %v1375, %v1492
      %v1563 = vsub.f32 %v1378, %v1495
      %v1564 = vsub.f32 %v1383, %v1498
      %v1565 = vsub.f32 %v1386, %v1501
      %v1566 = vsub.f32 %v1391, %v1504
      %v1567 = vsub.f32 %v1394, %v1507
      %v1568 = vsub.f32 %v1399, %v1510
      %v1569 = vsub.f32 %v1402, %v1513
      %v1570 = vsub.f32 %v1407, %v1516
      %v1571 = vsub.f32 %v1410, %v1519
      %v1572 = vsub.f32 %v1415, %v1522
      %v1573 = vsub.f32 %v1418, %v1525
      %v1574 = vsub.f32 %v1423, %v1528
      %v1575 = vsub.f32 %v1426, %v1531
      %v1576 = vsub.f32 %v1431, %v1534
      %v1577 = vsub.f32 %v1434, %v1537
      %v1578 = vsub.f32 %v1439, %v1540
      %v1579 = vsub.f32 %v1442, %v1543
      %v1580 = vsub.f32 %v1447, %v1546
      %v1581 = vsub.f32 %v1450, %v1549
      %v1582 = vmul.f32 %v1550, 1.442695
      %v1583 = vpow.pop %v1582
      %v1584 = vmul.f32 %v1551, 1.442695
      %v1585 = vpow.pop %v1584
      %v1586 = vmul.f32 %v1552, 1.442695
      %v1587 = vpow.pop %v1586
      %v1588 = vmul.f32 %v1553, 1.442695
      %v1589 = vpow.pop %v1588
      %v1590 = vmul.f32 %v1554, 1.442695
      %v1591 = vpow.pop %v1590
      %v1592 = vmul.f32 %v1555, 1.442695
      %v1593 = vpow.pop %v1592
      %v1594 = vmul.f32 %v1556, 1.442695
      %v1595 = vpow.pop %v1594
      %v1596 = vmul.f32 %v1557, 1.442695
      %v1597 = vpow.pop %v1596
      %v1598 = vmul.f32 %v1558, 1.442695
      %v1599 = vpow.pop %v1598
      %v1600 = vmul.f32 %v1559, 1.442695
      %v1601 = vpow.pop %v1600
      %v1602 = vmul.f32 %v1560, 1.442695
      %v1603 = vpow.pop %v1602
      %v1604 = vmul.f32 %v1561, 1.442695
      %v1605 = vpow.pop %v1604
      %v1606 = vmul.f32 %v1562, 1.442695
      %v1607 = vpow.pop %v1606
      %v1608 = vmul.f32 %v1563, 1.442695
      %v1609 = vpow.pop %v1608
      %v1610 = vmul.f32 %v1564, 1.442695
      %v1611 = vpow.pop %v1610
      %v1612 = vmul.f32 %v1565, 1.442695
      %v1613 = vpow.pop %v1612
      %v1614 = vmul.f32 %v1566, 1.442695
      %v1615 = vpow.pop %v1614
      %v1616 = vmul.f32 %v1567, 1.442695
      %v1617 = vpow.pop %v1616
      %v1618 = vmul.f32 %v1568, 1.442695
      %v1619 = vpow.pop %v1618
      %v1620 = vmul.f32 %v1569, 1.442695
      %v1621 = vpow.pop %v1620
      %v1622 = vmul.f32 %v1570, 1.442695
      %v1623 = vpow.pop %v1622
      %v1624 = vmul.f32 %v1571, 1.442695
      %v1625 = vpow.pop %v1624
      %v1626 = vmul.f32 %v1572, 1.442695
      %v1627 = vpow.pop %v1626
      %v1628 = vmul.f32 %v1573, 1.442695
      %v1629 = vpow.pop %v1628
      %v1630 = vmul.f32 %v1574, 1.442695
      %v1631 = vpow.pop %v1630
      %v1632 = vmul.f32 %v1575, 1.442695
      %v1633 = vpow.pop %v1632
      %v1634 = vmul.f32 %v1576, 1.442695
      %v1635 = vpow.pop %v1634
      %v1636 = vmul.f32 %v1577, 1.442695
      %v1637 = vpow.pop %v1636
      %v1638 = vmul.f32 %v1578, 1.442695
      %v1639 = vpow.pop %v1638
      %v1640 = vmul.f32 %v1579, 1.442695
      %v1641 = vpow.pop %v1640
      %v1642 = vmul.f32 %v1580, 1.442695
      %v1643 = vpow.pop %v1642
      %v1644 = vmul.f32 %v1581, 1.442695
      %v1645 = vpow.pop %v1644
      %v1646 = vsel %vm1453, %v1583, 0.0
      %1647 = vadd.xlane.f32.xlu0 %v1646
      %v1648 = vpop.xlane.xlu0 %1647
      %v1649 = vsel %vm1453, %v1585, 0.0
      %1650 = vadd.xlane.f32.xlu0 %v1649
      %v1651 = vpop.xlane.xlu0 %1650
      %v1652 = vsel %vm1453, %v1587, 0.0
      %1653 = vadd.xlane.f32.xlu0 %v1652
      %v1654 = vpop.xlane.xlu0 %1653
      %v1655 = vsel %vm1453, %v1589, 0.0
      %1656 = vadd.xlane.f32.xlu0 %v1655
      %v1657 = vpop.xlane.xlu0 %1656
      %v1658 = vsel %vm1453, %v1591, 0.0
      %1659 = vadd.xlane.f32.xlu0 %v1658
      %v1660 = vpop.xlane.xlu0 %1659
      %v1661 = vsel %vm1453, %v1593, 0.0
      %1662 = vadd.xlane.f32.xlu0 %v1661
      %v1663 = vpop.xlane.xlu0 %1662
      %v1664 = vsel %vm1453, %v1595, 0.0
      %1665 = vadd.xlane.f32.xlu0 %v1664
      %v1666 = vpop.xlane.xlu0 %1665
      %v1667 = vsel %vm1453, %v1597, 0.0
      %1668 = vadd.xlane.f32.xlu0 %v1667
      %v1669 = vpop.xlane.xlu0 %1668
      %v1670 = vsel %vm1453, %v1599, 0.0
      %1671 = vadd.xlane.f32.xlu0 %v1670
      %v1672 = vpop.xlane.xlu0 %1671
      %v1673 = vsel %vm1453, %v1601, 0.0
      %1674 = vadd.xlane.f32.xlu0 %v1673
      %v1675 = vpop.xlane.xlu0 %1674
      %v1676 = vsel %vm1453, %v1603, 0.0
      %1677 = vadd.xlane.f32.xlu0 %v1676
      %v1678 = vpop.xlane.xlu0 %1677
      %v1679 = vsel %vm1453, %v1605, 0.0
      %1680 = vadd.xlane.f32.xlu0 %v1679
      %v1681 = vpop.xlane.xlu0 %1680
      %v1682 = vsel %vm1453, %v1607, 0.0
      %1683 = vadd.xlane.f32.xlu0 %v1682
      %v1684 = vpop.xlane.xlu0 %1683
      %v1685 = vsel %vm1453, %v1609, 0.0
      %1686 = vadd.xlane.f32.xlu0 %v1685
      %v1687 = vpop.xlane.xlu0 %1686
      %v1688 = vsel %vm1453, %v1611, 0.0
      %1689 = vadd.xlane.f32.xlu0 %v1688
      %v1690 = vpop.xlane.xlu0 %1689
      %v1691 = vsel %vm1453, %v1613, 0.0
      %1692 = vadd.xlane.f32.xlu0 %v1691
      %v1693 = vpop.xlane.xlu0 %1692
      %v1694 = vsel %vm1453, %v1615, 0.0
      %1695 = vadd.xlane.f32.xlu0 %v1694
      %v1696 = vpop.xlane.xlu0 %1695
      %v1697 = vsel %vm1453, %v1617, 0.0
      %1698 = vadd.xlane.f32.xlu0 %v1697
      %v1699 = vpop.xlane.xlu0 %1698
      %v1700 = vsel %vm1453, %v1619, 0.0
      %1701 = vadd.xlane.f32.xlu0 %v1700
      %v1702 = vpop.xlane.xlu0 %1701
      %v1703 = vsel %vm1453, %v1621, 0.0
      %1704 = vadd.xlane.f32.xlu0 %v1703
      %v1705 = vpop.xlane.xlu0 %1704
      %v1706 = vsel %vm1453, %v1623, 0.0
      %1707 = vadd.xlane.f32.xlu0 %v1706
      %v1708 = vpop.xlane.xlu0 %1707
      %v1709 = vsel %vm1453, %v1625, 0.0
      %1710 = vadd.xlane.f32.xlu0 %v1709
      %v1711 = vpop.xlane.xlu0 %1710
      %v1712 = vsel %vm1453, %v1627, 0.0
      %1713 = vadd.xlane.f32.xlu0 %v1712
      %v1714 = vpop.xlane.xlu0 %1713
      %v1715 = vsel %vm1453, %v1629, 0.0
      %1716 = vadd.xlane.f32.xlu0 %v1715
      %v1717 = vpop.xlane.xlu0 %1716
      %v1718 = vsel %vm1453, %v1631, 0.0
      %1719 = vadd.xlane.f32.xlu0 %v1718
      %v1720 = vpop.xlane.xlu0 %1719
      %v1721 = vsel %vm1453, %v1633, 0.0
      %1722 = vadd.xlane.f32.xlu0 %v1721
      %v1723 = vpop.xlane.xlu0 %1722
      %v1724 = vsel %vm1453, %v1635, 0.0
      %1725 = vadd.xlane.f32.xlu0 %v1724
      %v1726 = vpop.xlane.xlu0 %1725
      %v1727 = vsel %vm1453, %v1637, 0.0
      %1728 = vadd.xlane.f32.xlu0 %v1727
      %v1729 = vpop.xlane.xlu0 %1728
      %v1730 = vsel %vm1453, %v1639, 0.0
      %1731 = vadd.xlane.f32.xlu0 %v1730
      %v1732 = vpop.xlane.xlu0 %1731
      %v1733 = vsel %vm1453, %v1641, 0.0
      %1734 = vadd.xlane.f32.xlu0 %v1733
      %v1735 = vpop.xlane.xlu0 %1734
      %v1736 = vsel %vm1453, %v1643, 0.0
      %1737 = vadd.xlane.f32.xlu0 %v1736
      %v1738 = vpop.xlane.xlu0 %1737
      %v1739 = vsel %vm1453, %v1645, 0.0
      %1740 = vadd.xlane.f32.xlu0 %v1739
      %v1741 = vpop.xlane.xlu0 %1740
      %v1742 = vrcp.pop %v1648
      %v1743 = vrcp.pop %v1651
      %v1744 = vrcp.pop %v1654
      %v1745 = vrcp.pop %v1657
      %v1746 = vrcp.pop %v1660
      %v1747 = vrcp.pop %v1663
      %v1748 = vrcp.pop %v1666
      %v1749 = vrcp.pop %v1669
      %v1750 = vrcp.pop %v1672
      %v1751 = vrcp.pop %v1675
      %v1752 = vrcp.pop %v1678
      %v1753 = vrcp.pop %v1681
      %v1754 = vrcp.pop %v1684
      %v1755 = vrcp.pop %v1687
      %v1756 = vrcp.pop %v1690
      %v1757 = vrcp.pop %v1693
      %v1758 = vrcp.pop %v1696
      %v1759 = vrcp.pop %v1699
      %v1760 = vrcp.pop %v1702
      %v1761 = vrcp.pop %v1705
      %v1762 = vrcp.pop %v1708
      %v1763 = vrcp.pop %v1711
      %v1764 = vrcp.pop %v1714
      %v1765 = vrcp.pop %v1717
      %v1766 = vrcp.pop %v1720
      %v1767 = vrcp.pop %v1723
      %v1768 = vrcp.pop %v1726
      %v1769 = vrcp.pop %v1729
      %v1770 = vrcp.pop %v1732
      %v1771 = vrcp.pop %v1735
      %v1772 = vrcp.pop %v1738
      %v1773 = vrcp.pop %v1741
      %v1774 = vmul.f32 %v1583, %v1742
      %v1775 = vmul.f32 %v1585, %v1743
      %v1776 = vmul.f32 %v1587, %v1744
      %v1777 = vmul.f32 %v1589, %v1745
      %v1778 = vmul.f32 %v1591, %v1746
      %v1779 = vmul.f32 %v1593, %v1747
      %v1780 = vmul.f32 %v1595, %v1748
      %v1781 = vmul.f32 %v1597, %v1749
      %v1782 = vmul.f32 %v1599, %v1750
      %v1783 = vmul.f32 %v1601, %v1751
      %v1784 = vmul.f32 %v1603, %v1752
      %v1785 = vmul.f32 %v1605, %v1753
      %v1786 = vmul.f32 %v1607, %v1754
      %v1787 = vmul.f32 %v1609, %v1755
      %v1788 = vmul.f32 %v1611, %v1756
      %v1789 = vmul.f32 %v1613, %v1757
      %v1790 = vmul.f32 %v1615, %v1758
      %v1791 = vmul.f32 %v1617, %v1759
      %v1792 = vmul.f32 %v1619, %v1760
      %v1793 = vmul.f32 %v1621, %v1761
      %v1794 = vmul.f32 %v1623, %v1762
      %v1795 = vmul.f32 %v1625, %v1763
      %v1796 = vmul.f32 %v1627, %v1764
      %v1797 = vmul.f32 %v1629, %v1765
      %v1798 = vmul.f32 %v1631, %v1766
      %v1799 = vmul.f32 %v1633, %v1767
      %v1800 = vmul.f32 %v1635, %v1768
      %v1801 = vmul.f32 %v1637, %v1769
      %v1802 = vmul.f32 %v1639, %v1770
      %v1803 = vmul.f32 %v1641, %v1771
      %v1804 = vmul.f32 %v1643, %v1772
      %v1805 = vmul.f32 %v1645, %v1773
      %v1806 = vpack.c.bf16 %v1775, %v1774
      %v1807 = vpack.c.bf16 %v1777, %v1776
      %v1808 = vpack.c.bf16 %v1779, %v1778
      %v1809 = vpack.c.bf16 %v1781, %v1780
      %v1810 = vpack.c.bf16 %v1783, %v1782
      %v1811 = vpack.c.bf16 %v1785, %v1784
      %v1812 = vpack.c.bf16 %v1787, %v1786
      %v1813 = vpack.c.bf16 %v1789, %v1788
      %v1814 = vpack.c.bf16 %v1791, %v1790
      %v1815 = vpack.c.bf16 %v1793, %v1792
      %v1816 = vpack.c.bf16 %v1795, %v1794
      %v1817 = vpack.c.bf16 %v1797, %v1796
      %v1818 = vpack.c.bf16 %v1799, %v1798
      %v1819 = vpack.c.bf16 %v1801, %v1800
      %v1820 = vpack.c.bf16 %v1803, %v1802
      %v1821 = vpack.c.bf16 %v1805, %v1804
      %1822 = vrot.lane.b32.xlu0 %v1227, 96
      %v1823 = vpop.permute.xlu0 %1822
      %1824 = vrot.lane.b32.xlu0 %v1228, 96
      %v1825 = vpop.permute.xlu0 %1824
      %1826 = vrot.lane.b32.xlu0 %v1229, 96
      %v1827 = vpop.permute.xlu0 %1826
      %1828 = vrot.lane.b32.xlu0 %v1230, 96
      %v1829 = vpop.permute.xlu0 %1828
      %v1835 = vsel %vm1453, %v1806, 0
      %v1838 = vsel %vm1453, %v1807, 0
      %v1841 = vsel %vm1453, %v1808, 0
      %v1844 = vsel %vm1453, %v1809, 0
      %v1847 = vsel %vm1453, %v1810, 0
      %v1850 = vsel %vm1453, %v1811, 0
      %v1853 = vsel %vm1453, %v1812, 0
      %v1856 = vsel %vm1453, %v1813, 0
      %v1859 = vsel %vm1453, %v1814, 0
      %v1862 = vsel %vm1453, %v1815, 0
      %v1865 = vsel %vm1453, %v1816, 0
      %v1868 = vsel %vm1453, %v1817, 0
      %v1871 = vsel %vm1453, %v1818, 0
      %v1874 = vsel %vm1453, %v1819, 0
      %v1877 = vsel %vm1453, %v1820, 0
      %v1880 = vsel %vm1453, %v1821, 0
      %1882 = vmatprep.subr.bf16.mxu0 0
      %1883 = vmatpush1.bf16.msra.mxu0 0
      %1884 = vmatprep.subr.bf16.mxu0 0
      %1885 = vmatpush1.bf16.msra.mxu0 0
      %1886 = vmatprep.subr.bf16.mxu0 0
      %1887 = vmatpush1.bf16.msra.mxu0 0
      %1888 = vmatprep.subr.bf16.mxu0 0
      %1889 = vmatpush1.bf16.msra.mxu0 0
      %1890 = vmatprep.subr.bf16.mxu0 0
      %1891 = vmatpush1.bf16.msra.mxu0 %v1829
      %1892 = vmatprep.subr.bf16.mxu0 0
      %1893 = vmatpush1.bf16.msra.mxu0 %v1827
      %1894 = vmatprep.subr.bf16.mxu0 0
      %1895 = vmatpush1.bf16.msra.mxu0 %v1825
      %1896 = vmatprep.subr.bf16.mxu0 0
      %1897 = vmatpush1.bf16.msra.mxu0 %v1823
      %1898 = vmatprep.subr.bf16.mxu0 0
      %1899 = vmatpush2.bf16.msra.mxu0 0
      %1900 = vmatprep.subr.bf16.mxu0 0
      %1901 = vmatpush2.bf16.msra.mxu0 0
      %1902 = vmatprep.subr.bf16.mxu0 0
      %1903 = vmatpush2.bf16.msra.mxu0 0
      %1904 = vmatprep.subr.bf16.mxu0 0
      %1905 = vmatpush2.bf16.msra.mxu0 0
      %1906 = vmatprep.subr.bf16.mxu0 0
      %1907 = vmatpush2.bf16.msra.mxu0 0
      %1908 = vmatprep.subr.bf16.mxu0 0
      %1909 = vmatpush2.bf16.msra.mxu0 0
      %1910 = vmatprep.subr.bf16.mxu0 0
      %1911 = vmatpush2.bf16.msra.mxu0 0
      %1912 = vmatprep.subr.bf16.mxu0 0
      %1913 = vmatpush2.bf16.msra.mxu0 0
      %1914 = vmatprep.mubr.bf16.mxu0 0
      %1915 = vmatmul.mubr.bf16.gmra.mxu0 %v1835
      %v1916 = vpop.f32.mrf.mxu0
      %v1917 = vadd.f32 0.0, %v1916
      %v1918 = vpop.f32.mrf.mxu0
      %v1919 = vpop.f32.mrf.mxu0
      %v1920 = vadd.f32 0.0, %v1919
      %v1921 = vpop.f32.mrf.mxu0
      %1922 = vmatprep.mubr.bf16.mxu0 0
      %1923 = vmatmul.mubr.bf16.gmra.mxu0 %v1838
      %v1924 = vpop.f32.mrf.mxu0
      %v1925 = vadd.f32 0.0, %v1924
      %v1926 = vpop.f32.mrf.mxu0
      %v1927 = vpop.f32.mrf.mxu0
      %v1928 = vadd.f32 0.0, %v1927
      %v1929 = vpop.f32.mrf.mxu0
      %1930 = vmatprep.mubr.bf16.mxu0 0
      %1931 = vmatmul.mubr.bf16.gmra.mxu0 %v1841
      %v1932 = vpop.f32.mrf.mxu0
      %v1933 = vadd.f32 0.0, %v1932
      %v1934 = vpop.f32.mrf.mxu0
      %v1935 = vpop.f32.mrf.mxu0
      %v1936 = vadd.f32 0.0, %v1935
      %v1937 = vpop.f32.mrf.mxu0
      %1938 = vmatprep.mubr.bf16.mxu0 0
      %1939 = vmatmul.mubr.bf16.gmra.mxu0 %v1844
      %v1940 = vpop.f32.mrf.mxu0
      %v1941 = vadd.f32 0.0, %v1940
      %v1942 = vpop.f32.mrf.mxu0
      %v1943 = vpop.f32.mrf.mxu0
      %v1944 = vadd.f32 0.0, %v1943
      %v1945 = vpop.f32.mrf.mxu0
      %1946 = vmatprep.mubr.bf16.mxu0 0
      %1947 = vmatmul.mubr.bf16.gmra.mxu0 %v1847
      %v1948 = vpop.f32.mrf.mxu0
      %v1949 = vadd.f32 0.0, %v1948
      %v1950 = vpop.f32.mrf.mxu0
      %v1951 = vpop.f32.mrf.mxu0
      %v1952 = vadd.f32 0.0, %v1951
      %v1953 = vpop.f32.mrf.mxu0
      %1954 = vmatprep.mubr.bf16.mxu0 0
      %1955 = vmatmul.mubr.bf16.gmra.mxu0 %v1850
      %v1956 = vpop.f32.mrf.mxu0
      %v1957 = vadd.f32 0.0, %v1956
      %v1958 = vpop.f32.mrf.mxu0
      %v1959 = vpop.f32.mrf.mxu0
      %v1960 = vadd.f32 0.0, %v1959
      %v1961 = vpop.f32.mrf.mxu0
      %1962 = vmatprep.mubr.bf16.mxu0 0
      %1963 = vmatmul.mubr.bf16.gmra.mxu0 %v1853
      %v1964 = vpop.f32.mrf.mxu0
      %v1965 = vadd.f32 0.0, %v1964
      %v1966 = vpop.f32.mrf.mxu0
      %v1967 = vpop.f32.mrf.mxu0
      %v1968 = vadd.f32 0.0, %v1967
      %v1969 = vpop.f32.mrf.mxu0
      %1970 = vmatprep.mubr.bf16.mxu0 0
      %1971 = vmatmul.mubr.bf16.gmra.mxu0 %v1856
      %v1972 = vpop.f32.mrf.mxu0
      %v1973 = vadd.f32 0.0, %v1972
      %v1974 = vpop.f32.mrf.mxu0
      %v1975 = vpop.f32.mrf.mxu0
      %v1976 = vadd.f32 0.0, %v1975
      %v1977 = vpop.f32.mrf.mxu0
      %1978 = vmatprep.mubr.bf16.mxu0 0
      %1979 = vmatmul.mubr.bf16.gmra.mxu0 %v1859
      %v1980 = vpop.f32.mrf.mxu0
      %v1981 = vadd.f32 0.0, %v1980
      %v1982 = vpop.f32.mrf.mxu0
      %v1983 = vpop.f32.mrf.mxu0
      %v1984 = vadd.f32 0.0, %v1983
      %v1985 = vpop.f32.mrf.mxu0
      %1986 = vmatprep.mubr.bf16.mxu0 0
      %1987 = vmatmul.mubr.bf16.gmra.mxu0 %v1862
      %v1988 = vpop.f32.mrf.mxu0
      %v1989 = vadd.f32 0.0, %v1988
      %v1990 = vpop.f32.mrf.mxu0
      %v1991 = vpop.f32.mrf.mxu0
      %v1992 = vadd.f32 0.0, %v1991
      %v1993 = vpop.f32.mrf.mxu0
      %1994 = vmatprep.mubr.bf16.mxu0 0
      %1995 = vmatmul.mubr.bf16.gmra.mxu0 %v1865
      %v1996 = vpop.f32.mrf.mxu0
      %v1997 = vadd.f32 0.0, %v1996
      %v1998 = vpop.f32.mrf.mxu0
      %v1999 = vpop.f32.mrf.mxu0
      %v2000 = vadd.f32 0.0, %v1999
      %v2001 = vpop.f32.mrf.mxu0
      %2002 = vmatprep.mubr.bf16.mxu0 0
      %2003 = vmatmul.mubr.bf16.gmra.mxu0 %v1868
      %v2004 = vpop.f32.mrf.mxu0
      %v2005 = vadd.f32 0.0, %v2004
      %v2006 = vpop.f32.mrf.mxu0
      %v2007 = vpop.f32.mrf.mxu0
      %v2008 = vadd.f32 0.0, %v2007
      %v2009 = vpop.f32.mrf.mxu0
      %2010 = vmatprep.mubr.bf16.mxu0 0
      %2011 = vmatmul.mubr.bf16.gmra.mxu0 %v1871
      %v2012 = vpop.f32.mrf.mxu0
      %v2013 = vadd.f32 0.0, %v2012
      %v2014 = vpop.f32.mrf.mxu0
      %v2015 = vpop.f32.mrf.mxu0
      %v2016 = vadd.f32 0.0, %v2015
      %v2017 = vpop.f32.mrf.mxu0
      %2018 = vmatprep.mubr.bf16.mxu0 0
      %2019 = vmatmul.mubr.bf16.gmra.mxu0 %v1874
      %v2020 = vpop.f32.mrf.mxu0
      %v2021 = vadd.f32 0.0, %v2020
      %v2022 = vpop.f32.mrf.mxu0
      %v2023 = vpop.f32.mrf.mxu0
      %v2024 = vadd.f32 0.0, %v2023
      %v2025 = vpop.f32.mrf.mxu0
      %2026 = vmatprep.mubr.bf16.mxu0 0
      %2027 = vmatmul.mubr.bf16.gmra.mxu0 %v1877
      %v2028 = vpop.f32.mrf.mxu0
      %v2029 = vadd.f32 0.0, %v2028
      %v2030 = vpop.f32.mrf.mxu0
      %v2031 = vpop.f32.mrf.mxu0
      %v2032 = vadd.f32 0.0, %v2031
      %v2033 = vpop.f32.mrf.mxu0
      %2034 = vmatprep.mubr.bf16.mxu0 0
      %2035 = vmatmul.mubr.bf16.gmra.mxu0 %v1880
      %v2036 = vpop.f32.mrf.mxu0
      %v2037 = vadd.f32 0.0, %v2036
      %v2038 = vpop.f32.mrf.mxu0
      %v2039 = vpop.f32.mrf.mxu0
      %v2040 = vadd.f32 0.0, %v2039
      %v2041 = vpop.f32.mrf.mxu0
      %2042 = vdwg.mxu0
      %2043 = vst.msk [vmem:[#allocation3] sm:$0xff] %vm1231, %v1917
      %2044 = vst.msk [vmem:[#allocation3 + $0x8] sm:$0xff] %vm1231, %v1920
      %2045 = vst.msk [vmem:[#allocation3 + $0x10] sm:$0xff] %vm1231, %v1925
      %2046 = vst.msk [vmem:[#allocation3 + $0x18] sm:$0xff] %vm1231, %v1928
      %2047 = vst.msk [vmem:[#allocation3 + $0x20] sm:$0xff] %vm1231, %v1933
      %2048 = vst.msk [vmem:[#allocation3 + $0x28] sm:$0xff] %vm1231, %v1936
      %2049 = vst.msk [vmem:[#allocation3 + $0x30] sm:$0xff] %vm1231, %v1941
      %2050 = vst.msk [vmem:[#allocation3 + $0x38] sm:$0xff] %vm1231, %v1944
      %2051 = vst.msk [vmem:[#allocation3 + $0x40] sm:$0xff] %vm1231, %v1949
      %2052 = vst.msk [vmem:[#allocation3 + $0x48] sm:$0xff] %vm1231, %v1952
      %2053 = vst.msk [vmem:[#allocation3 + $0x50] sm:$0xff] %vm1231, %v1957
      %2054 = vst.msk [vmem:[#allocation3 + $0x58] sm:$0xff] %vm1231, %v1960
      %2055 = vst.msk [vmem:[#allocation3 + $0x60] sm:$0xff] %vm1231, %v1965
      %2056 = vst.msk [vmem:[#allocation3 + $0x68] sm:$0xff] %vm1231, %v1968
      %2057 = vst.msk [vmem:[#allocation3 + $0x70] sm:$0xff] %vm1231, %v1973
      %2058 = vst.msk [vmem:[#allocation3 + $0x78] sm:$0xff] %vm1231, %v1976
      %2059 = vst.msk [vmem:[#allocation3 + $0x80] sm:$0xff] %vm1231, %v1981
      %2060 = vst.msk [vmem:[#allocation3 + $0x88] sm:$0xff] %vm1231, %v1984
      %2061 = vst.msk [vmem:[#allocation3 + $0x90] sm:$0xff] %vm1231, %v1989
      %2062 = vst.msk [vmem:[#allocation3 + $0x98] sm:$0xff] %vm1231, %v1992
      %2063 = vst.msk [vmem:[#allocation3 + $0xa0] sm:$0xff] %vm1231, %v1997
      %2064 = vst.msk [vmem:[#allocation3 + $0xa8] sm:$0xff] %vm1231, %v2000
      %2065 = vst.msk [vmem:[#allocation3 + $0xb0] sm:$0xff] %vm1231, %v2005
      %2066 = vst.msk [vmem:[#allocation3 + $0xb8] sm:$0xff] %vm1231, %v2008
      %2067 = vst.msk [vmem:[#allocation3 + $0xc0] sm:$0xff] %vm1231, %v2013
      %2068 = vst.msk [vmem:[#allocation3 + $0xc8] sm:$0xff] %vm1231, %v2016
      %2069 = vst.msk [vmem:[#allocation3 + $0xd0] sm:$0xff] %vm1231, %v2021
      %2070 = vst.msk [vmem:[#allocation3 + $0xd8] sm:$0xff] %vm1231, %v2024
      %2071 = vst.msk [vmem:[#allocation3 + $0xe0] sm:$0xff] %vm1231, %v2029
      %2072 = vst.msk [vmem:[#allocation3 + $0xe8] sm:$0xff] %vm1231, %v2032
      %2073 = vst.msk [vmem:[#allocation3 + $0xf0] sm:$0xff] %vm1231, %v2037
      %2074 = vst.msk [vmem:[#allocation3 + $0xf8] sm:$0xff] %vm1231, %v2040
      %v2075 = vld [vmem:[#allocation2] sm:$0xf]
      %v2076 = vld [vmem:[#allocation2 + $0x4] sm:$0xf]
      %v2077 = vld [vmem:[#allocation2 + $0x8] sm:$0xf]
      %v2078 = vld [vmem:[#allocation2 + $0xc] sm:$0xf]
      %v2079 = vld [vmem:[#allocation2 + $0x10] sm:$0xf]
      %v2080 = vld [vmem:[#allocation2 + $0x14] sm:$0xf]
      %v2081 = vld [vmem:[#allocation2 + $0x18] sm:$0xf]
      %v2082 = vld [vmem:[#allocation2 + $0x1c] sm:$0xf]
      %2099 = vrot.lane.b32.xlu0 %v1187, 124
      %v2100 = vpop.permute.xlu0 %2099
      %2101 = vrot.lane.b32.xlu0 %v1188, 124
      %v2102 = vpop.permute.xlu0 %2101
      %2103 = vrot.lane.b32.xlu0 %v1189, 124
      %v2104 = vpop.permute.xlu0 %2103
      %2105 = vrot.lane.b32.xlu0 %v1190, 124
      %v2106 = vpop.permute.xlu0 %2105
      %2107 = vrot.lane.b32.xlu0 %v1191, 124
      %v2108 = vpop.permute.xlu0 %2107
      %2109 = vrot.lane.b32.xlu0 %v1192, 124
      %v2110 = vpop.permute.xlu0 %2109
      %2111 = vrot.lane.b32.xlu0 %v1193, 124
      %v2112 = vpop.permute.xlu0 %2111
      %2113 = vrot.lane.b32.xlu0 %v1194, 124
      %v2114 = vpop.permute.xlu0 %2113
      %2115 = vrot.lane.b32.xlu0 %v1195, 124
      %v2116 = vpop.permute.xlu0 %2115
      %2117 = vrot.lane.b32.xlu0 %v1196, 124
      %v2118 = vpop.permute.xlu0 %2117
      %2119 = vrot.lane.b32.xlu0 %v1197, 124
      %v2120 = vpop.permute.xlu0 %2119
      %2121 = vrot.lane.b32.xlu0 %v1198, 124
      %v2122 = vpop.permute.xlu0 %2121
      %2123 = vrot.lane.b32.xlu0 %v1199, 124
      %v2124 = vpop.permute.xlu0 %2123
      %2125 = vrot.lane.b32.xlu0 %v1200, 124
      %v2126 = vpop.permute.xlu0 %2125
      %2127 = vrot.lane.b32.xlu0 %v1201, 124
      %v2128 = vpop.permute.xlu0 %2127
      %2129 = vrot.lane.b32.xlu0 %v1202, 124
      %v2130 = vpop.permute.xlu0 %2129
      %v2139 = vunpack.c.l.b16 %v2075
      %v2140 = vunpack.c.l.b16 %v2076
      %v2141 = vunpack.c.l.b16 %v2077
      %v2142 = vunpack.c.l.b16 %v2078
      %v2143 = vunpack.c.l.b16 %v2079
      %v2144 = vunpack.c.l.b16 %v2080
      %v2145 = vunpack.c.l.b16 %v2081
      %v2146 = vunpack.c.l.b16 %v2082
      %v2147 = vpack.c.b16 %v2140, %v2139
      %v2148 = vpack.c.b16 %v2142, %v2141
      %v2149 = vpack.c.b16 %v2144, %v2143
      %v2150 = vpack.c.b16 %v2146, %v2145
      %2151 = vrot.lane.b32.xlu0 %v2147, 124
      %v2152 = vpop.permute.xlu0 %2151
      %2153 = vrot.lane.b32.xlu0 %v2148, 124
      %v2154 = vpop.permute.xlu0 %2153
      %2155 = vrot.lane.b32.xlu0 %v2149, 124
      %v2156 = vpop.permute.xlu0 %2155
      %2157 = vrot.lane.b32.xlu0 %v2150, 124
      %v2158 = vpop.permute.xlu0 %2157
      %v2160 = vsel %vm1231, %v2100, 0
      %v2163 = vsel %vm1231, %v2102, 0
      %v2166 = vsel %vm1231, %v2104, 0
      %v2169 = vsel %vm1231, %v2106, 0
      %v2172 = vsel %vm1231, %v2108, 0
      %v2175 = vsel %vm1231, %v2110, 0
      %v2178 = vsel %vm1231, %v2112, 0
      %v2181 = vsel %vm1231, %v2114, 0
      %v2184 = vsel %vm1231, %v2116, 0
      %v2187 = vsel %vm1231, %v2118, 0
      %v2190 = vsel %vm1231, %v2120, 0
      %v2193 = vsel %vm1231, %v2122, 0
      %v2196 = vsel %vm1231, %v2124, 0
      %v2199 = vsel %vm1231, %v2126, 0
      %v2202 = vsel %vm1231, %v2128, 0
      %v2205 = vsel %vm1231, %v2130, 0
      %v2208 = vsel %vm1231, %v2152, 0
      %v2211 = vsel %vm1231, %v2154, 0
      %v2214 = vsel %vm1231, %v2156, 0
      %v2217 = vsel %vm1231, %v2158, 0
      %2219 = vmatprep.subr.bf16.mxu0 0
      %2220 = vmatpush1.bf16.xpose.msra.mxu0 0
      %2221 = vmatprep.subr.bf16.mxu0 0
      %2222 = vmatpush1.bf16.xpose.msra.mxu0 0
      %2223 = vmatprep.subr.bf16.mxu0 0
      %2224 = vmatpush1.bf16.xpose.msra.mxu0 0
      %2225 = vmatprep.subr.bf16.mxu0 0
      %2226 = vmatpush1.bf16.xpose.msra.mxu0 0
      %2227 = vmatprep.subr.bf16.mxu0 0
      %2228 = vmatpush1.bf16.xpose.msra.mxu0 %v2217
      %2229 = vmatprep.subr.bf16.mxu0 0
      %2230 = vmatpush1.bf16.xpose.msra.mxu0 %v2214
      %2231 = vmatprep.subr.bf16.mxu0 0
      %2232 = vmatpush1.bf16.xpose.msra.mxu0 %v2211
      %2233 = vmatprep.subr.bf16.mxu0 0
      %2234 = vmatpush1.bf16.xpose.msra.mxu0 %v2208
      %2235 = vmatprep.subr.bf16.mxu0 0
      %2236 = vmatpush2.bf16.xpose.msra.mxu0 0
      %2237 = vmatprep.subr.bf16.mxu0 0
      %2238 = vmatpush2.bf16.xpose.msra.mxu0 0
      %2239 = vmatprep.subr.bf16.mxu0 0
      %2240 = vmatpush2.bf16.xpose.msra.mxu0 0
      %2241 = vmatprep.subr.bf16.mxu0 0
      %2242 = vmatpush2.bf16.xpose.msra.mxu0 0
      %2243 = vmatprep.subr.bf16.mxu0 0
      %2244 = vmatpush2.bf16.xpose.msra.mxu0 0
      %2245 = vmatprep.subr.bf16.mxu0 0
      %2246 = vmatpush2.bf16.xpose.msra.mxu0 0
      %2247 = vmatprep.subr.bf16.mxu0 0
      %2248 = vmatpush2.bf16.xpose.msra.mxu0 0
      %2249 = vmatprep.subr.bf16.mxu0 0
      %2250 = vmatpush2.bf16.xpose.msra.mxu0 0
      %2251 = vmatprep.mubr.bf16.mxu0 0
      %2252 = vmatmul.mubr.bf16.gmra.mxu0 %v2160
      %v2253 = vpop.f32.mrf.mxu0
      %v2254 = vadd.f32 0.0, %v2253
      %v2255 = vpop.f32.mrf.mxu0
      %v2256 = vpop.f32.mrf.mxu0
      %v2257 = vadd.f32 0.0, %v2256
      %v2258 = vpop.f32.mrf.mxu0
      %2259 = vmatprep.mubr.bf16.mxu0 0
      %2260 = vmatmul.mubr.bf16.gmra.mxu0 %v2163
      %v2261 = vpop.f32.mrf.mxu0
      %v2262 = vadd.f32 0.0, %v2261
      %v2263 = vpop.f32.mrf.mxu0
      %v2264 = vpop.f32.mrf.mxu0
      %v2265 = vadd.f32 0.0, %v2264
      %v2266 = vpop.f32.mrf.mxu0
      %2267 = vmatprep.mubr.bf16.mxu0 0
      %2268 = vmatmul.mubr.bf16.gmra.mxu0 %v2166
      %v2269 = vpop.f32.mrf.mxu0
      %v2270 = vadd.f32 0.0, %v2269
      %v2271 = vpop.f32.mrf.mxu0
      %v2272 = vpop.f32.mrf.mxu0
      %v2273 = vadd.f32 0.0, %v2272
      %v2274 = vpop.f32.mrf.mxu0
      %2275 = vmatprep.mubr.bf16.mxu0 0
      %2276 = vmatmul.mubr.bf16.gmra.mxu0 %v2169
      %v2277 = vpop.f32.mrf.mxu0
      %v2278 = vadd.f32 0.0, %v2277
      %v2279 = vpop.f32.mrf.mxu0
      %v2280 = vpop.f32.mrf.mxu0
      %v2281 = vadd.f32 0.0, %v2280
      %v2282 = vpop.f32.mrf.mxu0
      %2283 = vmatprep.mubr.bf16.mxu0 0
      %2284 = vmatmul.mubr.bf16.gmra.mxu0 %v2172
      %v2285 = vpop.f32.mrf.mxu0
      %v2286 = vadd.f32 0.0, %v2285
      %v2287 = vpop.f32.mrf.mxu0
      %v2288 = vpop.f32.mrf.mxu0
      %v2289 = vadd.f32 0.0, %v2288
      %v2290 = vpop.f32.mrf.mxu0
      %2291 = vmatprep.mubr.bf16.mxu0 0
      %2292 = vmatmul.mubr.bf16.gmra.mxu0 %v2175
      %v2293 = vpop.f32.mrf.mxu0
      %v2294 = vadd.f32 0.0, %v2293
      %v2295 = vpop.f32.mrf.mxu0
      %v2296 = vpop.f32.mrf.mxu0
      %v2297 = vadd.f32 0.0, %v2296
      %v2298 = vpop.f32.mrf.mxu0
      %2299 = vmatprep.mubr.bf16.mxu0 0
      %2300 = vmatmul.mubr.bf16.gmra.mxu0 %v2178
      %v2301 = vpop.f32.mrf.mxu0
      %v2302 = vadd.f32 0.0, %v2301
      %v2303 = vpop.f32.mrf.mxu0
      %v2304 = vpop.f32.mrf.mxu0
      %v2305 = vadd.f32 0.0, %v2304
      %v2306 = vpop.f32.mrf.mxu0
      %2307 = vmatprep.mubr.bf16.mxu0 0
      %2308 = vmatmul.mubr.bf16.gmra.mxu0 %v2181
      %v2309 = vpop.f32.mrf.mxu0
      %v2310 = vadd.f32 0.0, %v2309
      %v2311 = vpop.f32.mrf.mxu0
      %v2312 = vpop.f32.mrf.mxu0
      %v2313 = vadd.f32 0.0, %v2312
      %v2314 = vpop.f32.mrf.mxu0
      %2315 = vmatprep.mubr.bf16.mxu0 0
      %2316 = vmatmul.mubr.bf16.gmra.mxu0 %v2184
      %v2317 = vpop.f32.mrf.mxu0
      %v2318 = vadd.f32 0.0, %v2317
      %v2319 = vpop.f32.mrf.mxu0
      %v2320 = vpop.f32.mrf.mxu0
      %v2321 = vadd.f32 0.0, %v2320
      %v2322 = vpop.f32.mrf.mxu0
      %2323 = vmatprep.mubr.bf16.mxu0 0
      %2324 = vmatmul.mubr.bf16.gmra.mxu0 %v2187
      %v2325 = vpop.f32.mrf.mxu0
      %v2326 = vadd.f32 0.0, %v2325
      %v2327 = vpop.f32.mrf.mxu0
      %v2328 = vpop.f32.mrf.mxu0
      %v2329 = vadd.f32 0.0, %v2328
      %v2330 = vpop.f32.mrf.mxu0
      %2331 = vmatprep.mubr.bf16.mxu0 0
      %2332 = vmatmul.mubr.bf16.gmra.mxu0 %v2190
      %v2333 = vpop.f32.mrf.mxu0
      %v2334 = vadd.f32 0.0, %v2333
      %v2335 = vpop.f32.mrf.mxu0
      %v2336 = vpop.f32.mrf.mxu0
      %v2337 = vadd.f32 0.0, %v2336
      %v2338 = vpop.f32.mrf.mxu0
      %2339 = vmatprep.mubr.bf16.mxu0 0
      %2340 = vmatmul.mubr.bf16.gmra.mxu0 %v2193
      %v2341 = vpop.f32.mrf.mxu0
      %v2342 = vadd.f32 0.0, %v2341
      %v2343 = vpop.f32.mrf.mxu0
      %v2344 = vpop.f32.mrf.mxu0
      %v2345 = vadd.f32 0.0, %v2344
      %v2346 = vpop.f32.mrf.mxu0
      %2347 = vmatprep.mubr.bf16.mxu0 0
      %2348 = vmatmul.mubr.bf16.gmra.mxu0 %v2196
      %v2349 = vpop.f32.mrf.mxu0
      %v2350 = vadd.f32 0.0, %v2349
      %v2351 = vpop.f32.mrf.mxu0
      %v2352 = vpop.f32.mrf.mxu0
      %v2353 = vadd.f32 0.0, %v2352
      %v2354 = vpop.f32.mrf.mxu0
      %2355 = vmatprep.mubr.bf16.mxu0 0
      %2356 = vmatmul.mubr.bf16.gmra.mxu0 %v2199
      %v2357 = vpop.f32.mrf.mxu0
      %v2358 = vadd.f32 0.0, %v2357
      %v2359 = vpop.f32.mrf.mxu0
      %v2360 = vpop.f32.mrf.mxu0
      %v2361 = vadd.f32 0.0, %v2360
      %v2362 = vpop.f32.mrf.mxu0
      %2363 = vmatprep.mubr.bf16.mxu0 0
      %2364 = vmatmul.mubr.bf16.gmra.mxu0 %v2202
      %v2365 = vpop.f32.mrf.mxu0
      %v2366 = vadd.f32 0.0, %v2365
      %v2367 = vpop.f32.mrf.mxu0
      %v2368 = vpop.f32.mrf.mxu0
      %v2369 = vadd.f32 0.0, %v2368
      %v2370 = vpop.f32.mrf.mxu0
      %2371 = vmatprep.mubr.bf16.mxu0 0
      %2372 = vmatmul.mubr.bf16.gmra.mxu0 %v2205
      %v2373 = vpop.f32.mrf.mxu0
      %v2374 = vadd.f32 0.0, %v2373
      %v2375 = vpop.f32.mrf.mxu0
      %v2376 = vpop.f32.mrf.mxu0
      %v2377 = vadd.f32 0.0, %v2376
      %v2378 = vpop.f32.mrf.mxu0
      %2379 = vdwg.mxu0
      %v2380 = vsel %vm1453, %v2254, -inf
      %2381 = vmax.xlane.f32.xlu0 %v2380
      %v2382 = vpop.xlane.xlu0 %2381
      %v2383 = vsel %vm1453, %v2257, -inf
      %2384 = vmax.xlane.f32.xlu0 %v2383
      %v2385 = vpop.xlane.xlu0 %2384
      %v2386 = vsel %vm1453, %v2262, -inf
      %2387 = vmax.xlane.f32.xlu0 %v2386
      %v2388 = vpop.xlane.xlu0 %2387
      %v2389 = vsel %vm1453, %v2265, -inf
      %2390 = vmax.xlane.f32.xlu0 %v2389
      %v2391 = vpop.xlane.xlu0 %2390
      %v2392 = vsel %vm1453, %v2270, -inf
      %2393 = vmax.xlane.f32.xlu0 %v2392
      %v2394 = vpop.xlane.xlu0 %2393
      %v2395 = vsel %vm1453, %v2273, -inf
      %2396 = vmax.xlane.f32.xlu0 %v2395
      %v2397 = vpop.xlane.xlu0 %2396
      %v2398 = vsel %vm1453, %v2278, -inf
      %2399 = vmax.xlane.f32.xlu0 %v2398
      %v2400 = vpop.xlane.xlu0 %2399
      %v2401 = vsel %vm1453, %v2281, -inf
      %2402 = vmax.xlane.f32.xlu0 %v2401
      %v2403 = vpop.xlane.xlu0 %2402
      %v2404 = vsel %vm1453, %v2286, -inf
      %2405 = vmax.xlane.f32.xlu0 %v2404
      %v2406 = vpop.xlane.xlu0 %2405
      %v2407 = vsel %vm1453, %v2289, -inf
      %2408 = vmax.xlane.f32.xlu0 %v2407
      %v2409 = vpop.xlane.xlu0 %2408
      %v2410 = vsel %vm1453, %v2294, -inf
      %2411 = vmax.xlane.f32.xlu0 %v2410
      %v2412 = vpop.xlane.xlu0 %2411
      %v2413 = vsel %vm1453, %v2297, -inf
      %2414 = vmax.xlane.f32.xlu0 %v2413
      %v2415 = vpop.xlane.xlu0 %2414
      %v2416 = vsel %vm1453, %v2302, -inf
      %2417 = vmax.xlane.f32.xlu0 %v2416
      %v2418 = vpop.xlane.xlu0 %2417
      %v2419 = vsel %vm1453, %v2305, -inf
      %2420 = vmax.xlane.f32.xlu0 %v2419
      %v2421 = vpop.xlane.xlu0 %2420
      %v2422 = vsel %vm1453, %v2310, -inf
      %2423 = vmax.xlane.f32.xlu0 %v2422
      %v2424 = vpop.xlane.xlu0 %2423
      %v2425 = vsel %vm1453, %v2313, -inf
      %2426 = vmax.xlane.f32.xlu0 %v2425
      %v2427 = vpop.xlane.xlu0 %2426
      %v2428 = vsel %vm1453, %v2318, -inf
      %2429 = vmax.xlane.f32.xlu0 %v2428
      %v2430 = vpop.xlane.xlu0 %2429
      %v2431 = vsel %vm1453, %v2321, -inf
      %2432 = vmax.xlane.f32.xlu0 %v2431
      %v2433 = vpop.xlane.xlu0 %2432
      %v2434 = vsel %vm1453, %v2326, -inf
      %2435 = vmax.xlane.f32.xlu0 %v2434
      %v2436 = vpop.xlane.xlu0 %2435
      %v2437 = vsel %vm1453, %v2329, -inf
      %2438 = vmax.xlane.f32.xlu0 %v2437
      %v2439 = vpop.xlane.xlu0 %2438
      %v2440 = vsel %vm1453, %v2334, -inf
      %2441 = vmax.xlane.f32.xlu0 %v2440
      %v2442 = vpop.xlane.xlu0 %2441
      %v2443 = vsel %vm1453, %v2337, -inf
      %2444 = vmax.xlane.f32.xlu0 %v2443
      %v2445 = vpop.xlane.xlu0 %2444
      %v2446 = vsel %vm1453, %v2342, -inf
      %2447 = vmax.xlane.f32.xlu0 %v2446
      %v2448 = vpop.xlane.xlu0 %2447
      %v2449 = vsel %vm1453, %v2345, -inf
      %2450 = vmax.xlane.f32.xlu0 %v2449
      %v2451 = vpop.xlane.xlu0 %2450
      %v2452 = vsel %vm1453, %v2350, -inf
      %2453 = vmax.xlane.f32.xlu0 %v2452
      %v2454 = vpop.xlane.xlu0 %2453
      %v2455 = vsel %vm1453, %v2353, -inf
      %2456 = vmax.xlane.f32.xlu0 %v2455
      %v2457 = vpop.xlane.xlu0 %2456
      %v2458 = vsel %vm1453, %v2358, -inf
      %2459 = vmax.xlane.f32.xlu0 %v2458
      %v2460 = vpop.xlane.xlu0 %2459
      %v2461 = vsel %vm1453, %v2361, -inf
      %2462 = vmax.xlane.f32.xlu0 %v2461
      %v2463 = vpop.xlane.xlu0 %2462
      %v2464 = vsel %vm1453, %v2366, -inf
      %2465 = vmax.xlane.f32.xlu0 %v2464
      %v2466 = vpop.xlane.xlu0 %2465
      %v2467 = vsel %vm1453, %v2369, -inf
      %2468 = vmax.xlane.f32.xlu0 %v2467
      %v2469 = vpop.xlane.xlu0 %2468
      %v2470 = vsel %vm1453, %v2374, -inf
      %2471 = vmax.xlane.f32.xlu0 %v2470
      %v2472 = vpop.xlane.xlu0 %2471
      %v2473 = vsel %vm1453, %v2377, -inf
      %2474 = vmax.xlane.f32.xlu0 %v2473
      %v2475 = vpop.xlane.xlu0 %2474
      %v2476 = vsub.f32 %v2254, %v2382
      %v2477 = vsub.f32 %v2257, %v2385
      %v2478 = vsub.f32 %v2262, %v2388
      %v2479 = vsub.f32 %v2265, %v2391
      %v2480 = vsub.f32 %v2270, %v2394
      %v2481 = vsub.f32 %v2273, %v2397
      %v2482 = vsub.f32 %v2278, %v2400
      %v2483 = vsub.f32 %v2281, %v2403
      %v2484 = vsub.f32 %v2286, %v2406
      %v2485 = vsub.f32 %v2289, %v2409
      %v2486 = vsub.f32 %v2294, %v2412
      %v2487 = vsub.f32 %v2297, %v2415
      %v2488 = vsub.f32 %v2302, %v2418
      %v2489 = vsub.f32 %v2305, %v2421
      %v2490 = vsub.f32 %v2310, %v2424
      %v2491 = vsub.f32 %v2313, %v2427
      %v2492 = vsub.f32 %v2318, %v2430
      %v2493 = vsub.f32 %v2321, %v2433
      %v2494 = vsub.f32 %v2326, %v2436
      %v2495 = vsub.f32 %v2329, %v2439
      %v2496 = vsub.f32 %v2334, %v2442
      %v2497 = vsub.f32 %v2337, %v2445
      %v2498 = vsub.f32 %v2342, %v2448
      %v2499 = vsub.f32 %v2345, %v2451
      %v2500 = vsub.f32 %v2350, %v2454
      %v2501 = vsub.f32 %v2353, %v2457
      %v2502 = vsub.f32 %v2358, %v2460
      %v2503 = vsub.f32 %v2361, %v2463
      %v2504 = vsub.f32 %v2366, %v2466
      %v2505 = vsub.f32 %v2369, %v2469
      %v2506 = vsub.f32 %v2374, %v2472
      %v2507 = vsub.f32 %v2377, %v2475
      %v2508 = vmul.f32 %v2476, 1.442695
      %v2509 = vpow.pop %v2508
      %v2510 = vmul.f32 %v2477, 1.442695
      %v2511 = vpow.pop %v2510
      %v2512 = vmul.f32 %v2478, 1.442695
      %v2513 = vpow.pop %v2512
      %v2514 = vmul.f32 %v2479, 1.442695
      %v2515 = vpow.pop %v2514
      %v2516 = vmul.f32 %v2480, 1.442695
      %v2517 = vpow.pop %v2516
      %v2518 = vmul.f32 %v2481, 1.442695
      %v2519 = vpow.pop %v2518
      %v2520 = vmul.f32 %v2482, 1.442695
      %v2521 = vpow.pop %v2520
      %v2522 = vmul.f32 %v2483, 1.442695
      %v2523 = vpow.pop %v2522
      %v2524 = vmul.f32 %v2484, 1.442695
      %v2525 = vpow.pop %v2524
      %v2526 = vmul.f32 %v2485, 1.442695
      %v2527 = vpow.pop %v2526
      %v2528 = vmul.f32 %v2486, 1.442695
      %v2529 = vpow.pop %v2528
      %v2530 = vmul.f32 %v2487, 1.442695
      %v2531 = vpow.pop %v2530
      %v2532 = vmul.f32 %v2488, 1.442695
      %v2533 = vpow.pop %v2532
      %v2534 = vmul.f32 %v2489, 1.442695
      %v2535 = vpow.pop %v2534
      %v2536 = vmul.f32 %v2490, 1.442695
      %v2537 = vpow.pop %v2536
      %v2538 = vmul.f32 %v2491, 1.442695
      %v2539 = vpow.pop %v2538
      %v2540 = vmul.f32 %v2492, 1.442695
      %v2541 = vpow.pop %v2540
      %v2542 = vmul.f32 %v2493, 1.442695
      %v2543 = vpow.pop %v2542
      %v2544 = vmul.f32 %v2494, 1.442695
      %v2545 = vpow.pop %v2544
      %v2546 = vmul.f32 %v2495, 1.442695
      %v2547 = vpow.pop %v2546
      %v2548 = vmul.f32 %v2496, 1.442695
      %v2549 = vpow.pop %v2548
      %v2550 = vmul.f32 %v2497, 1.442695
      %v2551 = vpow.pop %v2550
      %v2552 = vmul.f32 %v2498, 1.442695
      %v2553 = vpow.pop %v2552
      %v2554 = vmul.f32 %v2499, 1.442695
      %v2555 = vpow.pop %v2554
      %v2556 = vmul.f32 %v2500, 1.442695
      %v2557 = vpow.pop %v2556
      %v2558 = vmul.f32 %v2501, 1.442695
      %v2559 = vpow.pop %v2558
      %v2560 = vmul.f32 %v2502, 1.442695
      %v2561 = vpow.pop %v2560
      %v2562 = vmul.f32 %v2503, 1.442695
      %v2563 = vpow.pop %v2562
      %v2564 = vmul.f32 %v2504, 1.442695
      %v2565 = vpow.pop %v2564
      %v2566 = vmul.f32 %v2505, 1.442695
      %v2567 = vpow.pop %v2566
      %v2568 = vmul.f32 %v2506, 1.442695
      %v2569 = vpow.pop %v2568
      %v2570 = vmul.f32 %v2507, 1.442695
      %v2571 = vpow.pop %v2570
      %v2572 = vsel %vm1453, %v2509, 0.0
      %2573 = vadd.xlane.f32.xlu0 %v2572
      %v2574 = vpop.xlane.xlu0 %2573
      %v2575 = vsel %vm1453, %v2511, 0.0
      %2576 = vadd.xlane.f32.xlu0 %v2575
      %v2577 = vpop.xlane.xlu0 %2576
      %v2578 = vsel %vm1453, %v2513, 0.0
      %2579 = vadd.xlane.f32.xlu0 %v2578
      %v2580 = vpop.xlane.xlu0 %2579
      %v2581 = vsel %vm1453, %v2515, 0.0
      %2582 = vadd.xlane.f32.xlu0 %v2581
      %v2583 = vpop.xlane.xlu0 %2582
      %v2584 = vsel %vm1453, %v2517, 0.0
      %2585 = vadd.xlane.f32.xlu0 %v2584
      %v2586 = vpop.xlane.xlu0 %2585
      %v2587 = vsel %vm1453, %v2519, 0.0
      %2588 = vadd.xlane.f32.xlu0 %v2587
      %v2589 = vpop.xlane.xlu0 %2588
      %v2590 = vsel %vm1453, %v2521, 0.0
      %2591 = vadd.xlane.f32.xlu0 %v2590
      %v2592 = vpop.xlane.xlu0 %2591
      %v2593 = vsel %vm1453, %v2523, 0.0
      %2594 = vadd.xlane.f32.xlu0 %v2593
      %v2595 = vpop.xlane.xlu0 %2594
      %v2596 = vsel %vm1453, %v2525, 0.0
      %2597 = vadd.xlane.f32.xlu0 %v2596
      %v2598 = vpop.xlane.xlu0 %2597
      %v2599 = vsel %vm1453, %v2527, 0.0
      %2600 = vadd.xlane.f32.xlu0 %v2599
      %v2601 = vpop.xlane.xlu0 %2600
      %v2602 = vsel %vm1453, %v2529, 0.0
      %2603 = vadd.xlane.f32.xlu0 %v2602
      %v2604 = vpop.xlane.xlu0 %2603
      %v2605 = vsel %vm1453, %v2531, 0.0
      %2606 = vadd.xlane.f32.xlu0 %v2605
      %v2607 = vpop.xlane.xlu0 %2606
      %v2608 = vsel %vm1453, %v2533, 0.0
      %2609 = vadd.xlane.f32.xlu0 %v2608
      %v2610 = vpop.xlane.xlu0 %2609
      %v2611 = vsel %vm1453, %v2535, 0.0
      %2612 = vadd.xlane.f32.xlu0 %v2611
      %v2613 = vpop.xlane.xlu0 %2612
      %v2614 = vsel %vm1453, %v2537, 0.0
      %2615 = vadd.xlane.f32.xlu0 %v2614
      %v2616 = vpop.xlane.xlu0 %2615
      %v2617 = vsel %vm1453, %v2539, 0.0
      %2618 = vadd.xlane.f32.xlu0 %v2617
      %v2619 = vpop.xlane.xlu0 %2618
      %v2620 = vsel %vm1453, %v2541, 0.0
      %2621 = vadd.xlane.f32.xlu0 %v2620
      %v2622 = vpop.xlane.xlu0 %2621
      %v2623 = vsel %vm1453, %v2543, 0.0
      %2624 = vadd.xlane.f32.xlu0 %v2623
      %v2625 = vpop.xlane.xlu0 %2624
      %v2626 = vsel %vm1453, %v2545, 0.0
      %2627 = vadd.xlane.f32.xlu0 %v2626
      %v2628 = vpop.xlane.xlu0 %2627
      %v2629 = vsel %vm1453, %v2547, 0.0
      %2630 = vadd.xlane.f32.xlu0 %v2629
      %v2631 = vpop.xlane.xlu0 %2630
      %v2632 = vsel %vm1453, %v2549, 0.0
      %2633 = vadd.xlane.f32.xlu0 %v2632
      %v2634 = vpop.xlane.xlu0 %2633
      %v2635 = vsel %vm1453, %v2551, 0.0
      %2636 = vadd.xlane.f32.xlu0 %v2635
      %v2637 = vpop.xlane.xlu0 %2636
      %v2638 = vsel %vm1453, %v2553, 0.0
      %2639 = vadd.xlane.f32.xlu0 %v2638
      %v2640 = vpop.xlane.xlu0 %2639
      %v2641 = vsel %vm1453, %v2555, 0.0
      %2642 = vadd.xlane.f32.xlu0 %v2641
      %v2643 = vpop.xlane.xlu0 %2642
      %v2644 = vsel %vm1453, %v2557, 0.0
      %2645 = vadd.xlane.f32.xlu0 %v2644
      %v2646 = vpop.xlane.xlu0 %2645
      %v2647 = vsel %vm1453, %v2559, 0.0
      %2648 = vadd.xlane.f32.xlu0 %v2647
      %v2649 = vpop.xlane.xlu0 %2648
      %v2650 = vsel %vm1453, %v2561, 0.0
      %2651 = vadd.xlane.f32.xlu0 %v2650
      %v2652 = vpop.xlane.xlu0 %2651
      %v2653 = vsel %vm1453, %v2563, 0.0
      %2654 = vadd.xlane.f32.xlu0 %v2653
      %v2655 = vpop.xlane.xlu0 %2654
      %v2656 = vsel %vm1453, %v2565, 0.0
      %2657 = vadd.xlane.f32.xlu0 %v2656
      %v2658 = vpop.xlane.xlu0 %2657
      %v2659 = vsel %vm1453, %v2567, 0.0
      %2660 = vadd.xlane.f32.xlu0 %v2659
      %v2661 = vpop.xlane.xlu0 %2660
      %v2662 = vsel %vm1453, %v2569, 0.0
      %2663 = vadd.xlane.f32.xlu0 %v2662
      %v2664 = vpop.xlane.xlu0 %2663
      %v2665 = vsel %vm1453, %v2571, 0.0
      %2666 = vadd.xlane.f32.xlu0 %v2665
      %v2667 = vpop.xlane.xlu0 %2666
      %v2668 = vrcp.pop %v2574
      %v2669 = vrcp.pop %v2577
      %v2670 = vrcp.pop %v2580
      %v2671 = vrcp.pop %v2583
      %v2672 = vrcp.pop %v2586
      %v2673 = vrcp.pop %v2589
      %v2674 = vrcp.pop %v2592
      %v2675 = vrcp.pop %v2595
      %v2676 = vrcp.pop %v2598
      %v2677 = vrcp.pop %v2601
      %v2678 = vrcp.pop %v2604
      %v2679 = vrcp.pop %v2607
      %v2680 = vrcp.pop %v2610
      %v2681 = vrcp.pop %v2613
      %v2682 = vrcp.pop %v2616
      %v2683 = vrcp.pop %v2619
      %v2684 = vrcp.pop %v2622
      %v2685 = vrcp.pop %v2625
      %v2686 = vrcp.pop %v2628
      %v2687 = vrcp.pop %v2631
      %v2688 = vrcp.pop %v2634
      %v2689 = vrcp.pop %v2637
      %v2690 = vrcp.pop %v2640
      %v2691 = vrcp.pop %v2643
      %v2692 = vrcp.pop %v2646
      %v2693 = vrcp.pop %v2649
      %v2694 = vrcp.pop %v2652
      %v2695 = vrcp.pop %v2655
      %v2696 = vrcp.pop %v2658
      %v2697 = vrcp.pop %v2661
      %v2698 = vrcp.pop %v2664
      %v2699 = vrcp.pop %v2667
      %v2700 = vmul.f32 %v2509, %v2668
      %v2701 = vmul.f32 %v2511, %v2669
      %v2702 = vmul.f32 %v2513, %v2670
      %v2703 = vmul.f32 %v2515, %v2671
      %v2704 = vmul.f32 %v2517, %v2672
      %v2705 = vmul.f32 %v2519, %v2673
      %v2706 = vmul.f32 %v2521, %v2674
      %v2707 = vmul.f32 %v2523, %v2675
      %v2708 = vmul.f32 %v2525, %v2676
      %v2709 = vmul.f32 %v2527, %v2677
      %v2710 = vmul.f32 %v2529, %v2678
      %v2711 = vmul.f32 %v2531, %v2679
      %v2712 = vmul.f32 %v2533, %v2680
      %v2713 = vmul.f32 %v2535, %v2681
      %v2714 = vmul.f32 %v2537, %v2682
      %v2715 = vmul.f32 %v2539, %v2683
      %v2716 = vmul.f32 %v2541, %v2684
      %v2717 = vmul.f32 %v2543, %v2685
      %v2718 = vmul.f32 %v2545, %v2686
      %v2719 = vmul.f32 %v2547, %v2687
      %v2720 = vmul.f32 %v2549, %v2688
      %v2721 = vmul.f32 %v2551, %v2689
      %v2722 = vmul.f32 %v2553, %v2690
      %v2723 = vmul.f32 %v2555, %v2691
      %v2724 = vmul.f32 %v2557, %v2692
      %v2725 = vmul.f32 %v2559, %v2693
      %v2726 = vmul.f32 %v2561, %v2694
      %v2727 = vmul.f32 %v2563, %v2695
      %v2728 = vmul.f32 %v2565, %v2696
      %v2729 = vmul.f32 %v2567, %v2697
      %v2730 = vmul.f32 %v2569, %v2698
      %v2731 = vmul.f32 %v2571, %v2699
      %v2732 = vpack.c.bf16 %v2701, %v2700
      %v2733 = vpack.c.bf16 %v2703, %v2702
      %v2734 = vpack.c.bf16 %v2705, %v2704
      %v2735 = vpack.c.bf16 %v2707, %v2706
      %v2736 = vpack.c.bf16 %v2709, %v2708
      %v2737 = vpack.c.bf16 %v2711, %v2710
      %v2738 = vpack.c.bf16 %v2713, %v2712
      %v2739 = vpack.c.bf16 %v2715, %v2714
      %v2740 = vpack.c.bf16 %v2717, %v2716
      %v2741 = vpack.c.bf16 %v2719, %v2718
      %v2742 = vpack.c.bf16 %v2721, %v2720
      %v2743 = vpack.c.bf16 %v2723, %v2722
      %v2744 = vpack.c.bf16 %v2725, %v2724
      %v2745 = vpack.c.bf16 %v2727, %v2726
      %v2746 = vpack.c.bf16 %v2729, %v2728
      %v2747 = vpack.c.bf16 %v2731, %v2730
      %2748 = vrot.lane.b32.xlu0 %v2147, 92
      %v2749 = vpop.permute.xlu0 %2748
      %2750 = vrot.lane.b32.xlu0 %v2148, 92
      %v2751 = vpop.permute.xlu0 %2750
      %2752 = vrot.lane.b32.xlu0 %v2149, 92
      %v2753 = vpop.permute.xlu0 %2752
      %2754 = vrot.lane.b32.xlu0 %v2150, 92
      %v2755 = vpop.permute.xlu0 %2754
      %v2761 = vsel %vm1453, %v2732, 0
      %v2764 = vsel %vm1453, %v2733, 0
      %v2767 = vsel %vm1453, %v2734, 0
      %v2770 = vsel %vm1453, %v2735, 0
      %v2773 = vsel %vm1453, %v2736, 0
      %v2776 = vsel %vm1453, %v2737, 0
      %v2779 = vsel %vm1453, %v2738, 0
      %v2782 = vsel %vm1453, %v2739, 0
      %v2785 = vsel %vm1453, %v2740, 0
      %v2788 = vsel %vm1453, %v2741, 0
      %v2791 = vsel %vm1453, %v2742, 0
      %v2794 = vsel %vm1453, %v2743, 0
      %v2797 = vsel %vm1453, %v2744, 0
      %v2800 = vsel %vm1453, %v2745, 0
      %v2803 = vsel %vm1453, %v2746, 0
      %v2806 = vsel %vm1453, %v2747, 0
      %2808 = vmatprep.subr.bf16.mxu0 0
      %2809 = vmatpush1.bf16.msra.mxu0 0
      %2810 = vmatprep.subr.bf16.mxu0 0
      %2811 = vmatpush1.bf16.msra.mxu0 0
      %2812 = vmatprep.subr.bf16.mxu0 0
      %2813 = vmatpush1.bf16.msra.mxu0 0
      %2814 = vmatprep.subr.bf16.mxu0 0
      %2815 = vmatpush1.bf16.msra.mxu0 0
      %2816 = vmatprep.subr.bf16.mxu0 0
      %2817 = vmatpush1.bf16.msra.mxu0 %v2755
      %2818 = vmatprep.subr.bf16.mxu0 0
      %2819 = vmatpush1.bf16.msra.mxu0 %v2753
      %2820 = vmatprep.subr.bf16.mxu0 0
      %2821 = vmatpush1.bf16.msra.mxu0 %v2751
      %2822 = vmatprep.subr.bf16.mxu0 0
      %2823 = vmatpush1.bf16.msra.mxu0 %v2749
      %2824 = vmatprep.subr.bf16.mxu0 0
      %2825 = vmatpush2.bf16.msra.mxu0 0
      %2826 = vmatprep.subr.bf16.mxu0 0
      %2827 = vmatpush2.bf16.msra.mxu0 0
      %2828 = vmatprep.subr.bf16.mxu0 0
      %2829 = vmatpush2.bf16.msra.mxu0 0
      %2830 = vmatprep.subr.bf16.mxu0 0
      %2831 = vmatpush2.bf16.msra.mxu0 0
      %2832 = vmatprep.subr.bf16.mxu0 0
      %2833 = vmatpush2.bf16.msra.mxu0 0
      %2834 = vmatprep.subr.bf16.mxu0 0
      %2835 = vmatpush2.bf16.msra.mxu0 0
      %2836 = vmatprep.subr.bf16.mxu0 0
      %2837 = vmatpush2.bf16.msra.mxu0 0
      %2838 = vmatprep.subr.bf16.mxu0 0
      %2839 = vmatpush2.bf16.msra.mxu0 0
      %2840 = vmatprep.mubr.bf16.mxu0 0
      %2841 = vmatmul.mubr.bf16.gmra.mxu0 %v2761
      %v2842 = vpop.f32.mrf.mxu0
      %v2843 = vadd.f32 0.0, %v2842
      %v2844 = vpop.f32.mrf.mxu0
      %v2845 = vpop.f32.mrf.mxu0
      %v2846 = vadd.f32 0.0, %v2845
      %v2847 = vpop.f32.mrf.mxu0
      %2848 = vmatprep.mubr.bf16.mxu0 0
      %2849 = vmatmul.mubr.bf16.gmra.mxu0 %v2764
      %v2850 = vpop.f32.mrf.mxu0
      %v2851 = vadd.f32 0.0, %v2850
      %v2852 = vpop.f32.mrf.mxu0
      %v2853 = vpop.f32.mrf.mxu0
      %v2854 = vadd.f32 0.0, %v2853
      %v2855 = vpop.f32.mrf.mxu0
      %2856 = vmatprep.mubr.bf16.mxu0 0
      %2857 = vmatmul.mubr.bf16.gmra.mxu0 %v2767
      %v2858 = vpop.f32.mrf.mxu0
      %v2859 = vadd.f32 0.0, %v2858
      %v2860 = vpop.f32.mrf.mxu0
      %v2861 = vpop.f32.mrf.mxu0
      %v2862 = vadd.f32 0.0, %v2861
      %v2863 = vpop.f32.mrf.mxu0
      %2864 = vmatprep.mubr.bf16.mxu0 0
      %2865 = vmatmul.mubr.bf16.gmra.mxu0 %v2770
      %v2866 = vpop.f32.mrf.mxu0
      %v2867 = vadd.f32 0.0, %v2866
      %v2868 = vpop.f32.mrf.mxu0
      %v2869 = vpop.f32.mrf.mxu0
      %v2870 = vadd.f32 0.0, %v2869
      %v2871 = vpop.f32.mrf.mxu0
      %2872 = vmatprep.mubr.bf16.mxu0 0
      %2873 = vmatmul.mubr.bf16.gmra.mxu0 %v2773
      %v2874 = vpop.f32.mrf.mxu0
      %v2875 = vadd.f32 0.0, %v2874
      %v2876 = vpop.f32.mrf.mxu0
      %v2877 = vpop.f32.mrf.mxu0
      %v2878 = vadd.f32 0.0, %v2877
      %v2879 = vpop.f32.mrf.mxu0
      %2880 = vmatprep.mubr.bf16.mxu0 0
      %2881 = vmatmul.mubr.bf16.gmra.mxu0 %v2776
      %v2882 = vpop.f32.mrf.mxu0
      %v2883 = vadd.f32 0.0, %v2882
      %v2884 = vpop.f32.mrf.mxu0
      %v2885 = vpop.f32.mrf.mxu0
      %v2886 = vadd.f32 0.0, %v2885
      %v2887 = vpop.f32.mrf.mxu0
      %2888 = vmatprep.mubr.bf16.mxu0 0
      %2889 = vmatmul.mubr.bf16.gmra.mxu0 %v2779
      %v2890 = vpop.f32.mrf.mxu0
      %v2891 = vadd.f32 0.0, %v2890
      %v2892 = vpop.f32.mrf.mxu0
      %v2893 = vpop.f32.mrf.mxu0
      %v2894 = vadd.f32 0.0, %v2893
      %v2895 = vpop.f32.mrf.mxu0
      %2896 = vmatprep.mubr.bf16.mxu0 0
      %2897 = vmatmul.mubr.bf16.gmra.mxu0 %v2782
      %v2898 = vpop.f32.mrf.mxu0
      %v2899 = vadd.f32 0.0, %v2898
      %v2900 = vpop.f32.mrf.mxu0
      %v2901 = vpop.f32.mrf.mxu0
      %v2902 = vadd.f32 0.0, %v2901
      %v2903 = vpop.f32.mrf.mxu0
      %2904 = vmatprep.mubr.bf16.mxu0 0
      %2905 = vmatmul.mubr.bf16.gmra.mxu0 %v2785
      %v2906 = vpop.f32.mrf.mxu0
      %v2907 = vadd.f32 0.0, %v2906
      %v2908 = vpop.f32.mrf.mxu0
      %v2909 = vpop.f32.mrf.mxu0
      %v2910 = vadd.f32 0.0, %v2909
      %v2911 = vpop.f32.mrf.mxu0
      %2912 = vmatprep.mubr.bf16.mxu0 0
      %2913 = vmatmul.mubr.bf16.gmra.mxu0 %v2788
      %v2914 = vpop.f32.mrf.mxu0
      %v2915 = vadd.f32 0.0, %v2914
      %v2916 = vpop.f32.mrf.mxu0
      %v2917 = vpop.f32.mrf.mxu0
      %v2918 = vadd.f32 0.0, %v2917
      %v2919 = vpop.f32.mrf.mxu0
      %2920 = vmatprep.mubr.bf16.mxu0 0
      %2921 = vmatmul.mubr.bf16.gmra.mxu0 %v2791
      %v2922 = vpop.f32.mrf.mxu0
      %v2923 = vadd.f32 0.0, %v2922
      %v2924 = vpop.f32.mrf.mxu0
      %v2925 = vpop.f32.mrf.mxu0
      %v2926 = vadd.f32 0.0, %v2925
      %v2927 = vpop.f32.mrf.mxu0
      %2928 = vmatprep.mubr.bf16.mxu0 0
      %2929 = vmatmul.mubr.bf16.gmra.mxu0 %v2794
      %v2930 = vpop.f32.mrf.mxu0
      %v2931 = vadd.f32 0.0, %v2930
      %v2932 = vpop.f32.mrf.mxu0
      %v2933 = vpop.f32.mrf.mxu0
      %v2934 = vadd.f32 0.0, %v2933
      %v2935 = vpop.f32.mrf.mxu0
      %2936 = vmatprep.mubr.bf16.mxu0 0
      %2937 = vmatmul.mubr.bf16.gmra.mxu0 %v2797
      %v2938 = vpop.f32.mrf.mxu0
      %v2939 = vadd.f32 0.0, %v2938
      %v2940 = vpop.f32.mrf.mxu0
      %v2941 = vpop.f32.mrf.mxu0
      %v2942 = vadd.f32 0.0, %v2941
      %v2943 = vpop.f32.mrf.mxu0
      %2944 = vmatprep.mubr.bf16.mxu0 0
      %2945 = vmatmul.mubr.bf16.gmra.mxu0 %v2800
      %v2946 = vpop.f32.mrf.mxu0
      %v2947 = vadd.f32 0.0, %v2946
      %v2948 = vpop.f32.mrf.mxu0
      %v2949 = vpop.f32.mrf.mxu0
      %v2950 = vadd.f32 0.0, %v2949
      %v2951 = vpop.f32.mrf.mxu0
      %2952 = vmatprep.mubr.bf16.mxu0 0
      %2953 = vmatmul.mubr.bf16.gmra.mxu0 %v2803
      %v2954 = vpop.f32.mrf.mxu0
      %v2955 = vadd.f32 0.0, %v2954
      %v2956 = vpop.f32.mrf.mxu0
      %v2957 = vpop.f32.mrf.mxu0
      %v2958 = vadd.f32 0.0, %v2957
      %v2959 = vpop.f32.mrf.mxu0
      %2960 = vmatprep.mubr.bf16.mxu0 0
      %2961 = vmatmul.mubr.bf16.gmra.mxu0 %v2806
      %v2962 = vpop.f32.mrf.mxu0
      %v2963 = vadd.f32 0.0, %v2962
      %v2964 = vpop.f32.mrf.mxu0
      %v2965 = vpop.f32.mrf.mxu0
      %v2966 = vadd.f32 0.0, %v2965
      %v2967 = vpop.f32.mrf.mxu0
      %2968 = vdwg.mxu0
      %3001 = vrot.lane.b32.xlu0 %v2843, 4
      %v3002 = vpop.permute.xlu0 %3001
      %3003 = vrot.lane.b32.xlu0 %v2846, 4
      %v3004 = vpop.permute.xlu0 %3003
      %3005 = vrot.lane.b32.xlu0 %v2851, 4
      %v3006 = vpop.permute.xlu0 %3005
      %3007 = vrot.lane.b32.xlu0 %v2854, 4
      %v3008 = vpop.permute.xlu0 %3007
      %3009 = vrot.lane.b32.xlu0 %v2859, 4
      %v3010 = vpop.permute.xlu0 %3009
      %3011 = vrot.lane.b32.xlu0 %v2862, 4
      %v3012 = vpop.permute.xlu0 %3011
      %3013 = vrot.lane.b32.xlu0 %v2867, 4
      %v3014 = vpop.permute.xlu0 %3013
      %3015 = vrot.lane.b32.xlu0 %v2870, 4
      %v3016 = vpop.permute.xlu0 %3015
      %3017 = vrot.lane.b32.xlu0 %v2875, 4
      %v3018 = vpop.permute.xlu0 %3017
      %3019 = vrot.lane.b32.xlu0 %v2878, 4
      %v3020 = vpop.permute.xlu0 %3019
      %3021 = vrot.lane.b32.xlu0 %v2883, 4
      %v3022 = vpop.permute.xlu0 %3021
      %3023 = vrot.lane.b32.xlu0 %v2886, 4
      %v3024 = vpop.permute.xlu0 %3023
      %3025 = vrot.lane.b32.xlu0 %v2891, 4
      %v3026 = vpop.permute.xlu0 %3025
      %3027 = vrot.lane.b32.xlu0 %v2894, 4
      %v3028 = vpop.permute.xlu0 %3027
      %3029 = vrot.lane.b32.xlu0 %v2899, 4
      %v3030 = vpop.permute.xlu0 %3029
      %3031 = vrot.lane.b32.xlu0 %v2902, 4
      %v3032 = vpop.permute.xlu0 %3031
      %3033 = vrot.lane.b32.xlu0 %v2907, 4
      %v3034 = vpop.permute.xlu0 %3033
      %3035 = vrot.lane.b32.xlu0 %v2910, 4
      %v3036 = vpop.permute.xlu0 %3035
      %3037 = vrot.lane.b32.xlu0 %v2915, 4
      %v3038 = vpop.permute.xlu0 %3037
      %3039 = vrot.lane.b32.xlu0 %v2918, 4
      %v3040 = vpop.permute.xlu0 %3039
      %3041 = vrot.lane.b32.xlu0 %v2923, 4
      %v3042 = vpop.permute.xlu0 %3041
      %3043 = vrot.lane.b32.xlu0 %v2926, 4
      %v3044 = vpop.permute.xlu0 %3043
      %3045 = vrot.lane.b32.xlu0 %v2931, 4
      %v3046 = vpop.permute.xlu0 %3045
      %3047 = vrot.lane.b32.xlu0 %v2934, 4
      %v3048 = vpop.permute.xlu0 %3047
      %3049 = vrot.lane.b32.xlu0 %v2939, 4
      %v3050 = vpop.permute.xlu0 %3049
      %3051 = vrot.lane.b32.xlu0 %v2942, 4
      %v3052 = vpop.permute.xlu0 %3051
      %3053 = vrot.lane.b32.xlu0 %v2947, 4
      %v3054 = vpop.permute.xlu0 %3053
      %3055 = vrot.lane.b32.xlu0 %v2950, 4
      %v3056 = vpop.permute.xlu0 %3055
      %3057 = vrot.lane.b32.xlu0 %v2955, 4
      %v3058 = vpop.permute.xlu0 %3057
      %3059 = vrot.lane.b32.xlu0 %v2958, 4
      %v3060 = vpop.permute.xlu0 %3059
      %3061 = vrot.lane.b32.xlu0 %v2963, 4
      %v3062 = vpop.permute.xlu0 %3061
      %3063 = vrot.lane.b32.xlu0 %v2966, 4
      %v3064 = vpop.permute.xlu0 %3063
      %vm3097 = vcmask 64544
      %3098 = vst.msk [vmem:[#allocation3] sm:$0xff] %vm3097, %v3002
      %3099 = vst.msk [vmem:[#allocation3 + $0x8] sm:$0xff] %vm3097, %v3004
      %3100 = vst.msk [vmem:[#allocation3 + $0x10] sm:$0xff] %vm3097, %v3006
      %3101 = vst.msk [vmem:[#allocation3 + $0x18] sm:$0xff] %vm3097, %v3008
      %3102 = vst.msk [vmem:[#allocation3 + $0x20] sm:$0xff] %vm3097, %v3010
      %3103 = vst.msk [vmem:[#allocation3 + $0x28] sm:$0xff] %vm3097, %v3012
      %3104 = vst.msk [vmem:[#allocation3 + $0x30] sm:$0xff] %vm3097, %v3014
      %3105 = vst.msk [vmem:[#allocation3 + $0x38] sm:$0xff] %vm3097, %v3016
      %3106 = vst.msk [vmem:[#allocation3 + $0x40] sm:$0xff] %vm3097, %v3018
      %3107 = vst.msk [vmem:[#allocation3 + $0x48] sm:$0xff] %vm3097, %v3020
      %3108 = vst.msk [vmem:[#allocation3 + $0x50] sm:$0xff] %vm3097, %v3022
      %3109 = vst.msk [vmem:[#allocation3 + $0x58] sm:$0xff] %vm3097, %v3024
      %3110 = vst.msk [vmem:[#allocation3 + $0x60] sm:$0xff] %vm3097, %v3026
      %3111 = vst.msk [vmem:[#allocation3 + $0x68] sm:$0xff] %vm3097, %v3028
      %3112 = vst.msk [vmem:[#allocation3 + $0x70] sm:$0xff] %vm3097, %v3030
      %3113 = vst.msk [vmem:[#allocation3 + $0x78] sm:$0xff] %vm3097, %v3032
      %3114 = vst.msk [vmem:[#allocation3 + $0x80] sm:$0xff] %vm3097, %v3034
      %3115 = vst.msk [vmem:[#allocation3 + $0x88] sm:$0xff] %vm3097, %v3036
      %3116 = vst.msk [vmem:[#allocation3 + $0x90] sm:$0xff] %vm3097, %v3038
      %3117 = vst.msk [vmem:[#allocation3 + $0x98] sm:$0xff] %vm3097, %v3040
      %3118 = vst.msk [vmem:[#allocation3 + $0xa0] sm:$0xff] %vm3097, %v3042
      %3119 = vst.msk [vmem:[#allocation3 + $0xa8] sm:$0xff] %vm3097, %v3044
      %3120 = vst.msk [vmem:[#allocation3 + $0xb0] sm:$0xff] %vm3097, %v3046
      %3121 = vst.msk [vmem:[#allocation3 + $0xb8] sm:$0xff] %vm3097, %v3048
      %3122 = vst.msk [vmem:[#allocation3 + $0xc0] sm:$0xff] %vm3097, %v3050
      %3123 = vst.msk [vmem:[#allocation3 + $0xc8] sm:$0xff] %vm3097, %v3052
      %3124 = vst.msk [vmem:[#allocation3 + $0xd0] sm:$0xff] %vm3097, %v3054
      %3125 = vst.msk [vmem:[#allocation3 + $0xd8] sm:$0xff] %vm3097, %v3056
      %3126 = vst.msk [vmem:[#allocation3 + $0xe0] sm:$0xff] %vm3097, %v3058
      %3127 = vst.msk [vmem:[#allocation3 + $0xe8] sm:$0xff] %vm3097, %v3060
      %3128 = vst.msk [vmem:[#allocation3 + $0xf0] sm:$0xff] %vm3097, %v3062
      %3129 = vst.msk [vmem:[#allocation3 + $0xf8] sm:$0xff] %vm3097, %v3064
      %v3130 = vld [vmem:[#allocation2] sm:$0xf]
      %v3131 = vld [vmem:[#allocation2 + $0x4] sm:$0xf]
      %v3132 = vld [vmem:[#allocation2 + $0x8] sm:$0xf]
      %v3133 = vld [vmem:[#allocation2 + $0xc] sm:$0xf]
      %v3134 = vld [vmem:[#allocation2 + $0x10] sm:$0xf]
      %v3135 = vld [vmem:[#allocation2 + $0x14] sm:$0xf]
      %v3136 = vld [vmem:[#allocation2 + $0x18] sm:$0xf]
      %v3137 = vld [vmem:[#allocation2 + $0x1c] sm:$0xf]
      %3138 = vrot.lane.b32.xlu0 %v1187, 120
      %v3139 = vpop.permute.xlu0 %3138
      %3140 = vrot.lane.b32.xlu0 %v1188, 120
      %v3141 = vpop.permute.xlu0 %3140
      %3142 = vrot.lane.b32.xlu0 %v1189, 120
      %v3143 = vpop.permute.xlu0 %3142
      %3144 = vrot.lane.b32.xlu0 %v1190, 120
      %v3145 = vpop.permute.xlu0 %3144
      %3146 = vrot.lane.b32.xlu0 %v1191, 120
      %v3147 = vpop.permute.xlu0 %3146
      %3148 = vrot.lane.b32.xlu0 %v1192, 120
      %v3149 = vpop.permute.xlu0 %3148
      %3150 = vrot.lane.b32.xlu0 %v1193, 120
      %v3151 = vpop.permute.xlu0 %3150
      %3152 = vrot.lane.b32.xlu0 %v1194, 120
      %v3153 = vpop.permute.xlu0 %3152
      %3154 = vrot.lane.b32.xlu0 %v1195, 120
      %v3155 = vpop.permute.xlu0 %3154
      %3156 = vrot.lane.b32.xlu0 %v1196, 120
      %v3157 = vpop.permute.xlu0 %3156
      %3158 = vrot.lane.b32.xlu0 %v1197, 120
      %v3159 = vpop.permute.xlu0 %3158
      %3160 = vrot.lane.b32.xlu0 %v1198, 120
      %v3161 = vpop.permute.xlu0 %3160
      %3162 = vrot.lane.b32.xlu0 %v1199, 120
      %v3163 = vpop.permute.xlu0 %3162
      %3164 = vrot.lane.b32.xlu0 %v1200, 120
      %v3165 = vpop.permute.xlu0 %3164
      %3166 = vrot.lane.b32.xlu0 %v1201, 120
      %v3167 = vpop.permute.xlu0 %3166
      %3168 = vrot.lane.b32.xlu0 %v1202, 120
      %v3169 = vpop.permute.xlu0 %3168
      %v3178 = vunpack.c.l.b16 %v3130
      %v3179 = vunpack.c.l.b16 %v3131
      %v3180 = vunpack.c.l.b16 %v3132
      %v3181 = vunpack.c.l.b16 %v3133
      %v3182 = vunpack.c.l.b16 %v3134
      %v3183 = vunpack.c.l.b16 %v3135
      %v3184 = vunpack.c.l.b16 %v3136
      %v3185 = vunpack.c.l.b16 %v3137
      %v3186 = vpack.c.b16 %v3179, %v3178
      %v3187 = vpack.c.b16 %v3181, %v3180
      %v3188 = vpack.c.b16 %v3183, %v3182
      %v3189 = vpack.c.b16 %v3185, %v3184
      %3190 = vrot.lane.b32.xlu0 %v3186, 120
      %v3191 = vpop.permute.xlu0 %3190
      %3192 = vrot.lane.b32.xlu0 %v3187, 120
      %v3193 = vpop.permute.xlu0 %3192
      %3194 = vrot.lane.b32.xlu0 %v3188, 120
      %v3195 = vpop.permute.xlu0 %3194
      %3196 = vrot.lane.b32.xlu0 %v3189, 120
      %v3197 = vpop.permute.xlu0 %3196
      %v3199 = vsel %vm1231, %v3139, 0
      %v3202 = vsel %vm1231, %v3141, 0
      %v3205 = vsel %vm1231, %v3143, 0
      %v3208 = vsel %vm1231, %v3145, 0
      %v3211 = vsel %vm1231, %v3147, 0
      %v3214 = vsel %vm1231, %v3149, 0
      %v3217 = vsel %vm1231, %v3151, 0
      %v3220 = vsel %vm1231, %v3153, 0
      %v3223 = vsel %vm1231, %v3155, 0
      %v3226 = vsel %vm1231, %v3157, 0
      %v3229 = vsel %vm1231, %v3159, 0
      %v3232 = vsel %vm1231, %v3161, 0
      %v3235 = vsel %vm1231, %v3163, 0
      %v3238 = vsel %vm1231, %v3165, 0
      %v3241 = vsel %vm1231, %v3167, 0
      %v3244 = vsel %vm1231, %v3169, 0
      %v3247 = vsel %vm1231, %v3191, 0
      %v3250 = vsel %vm1231, %v3193, 0
      %v3253 = vsel %vm1231, %v3195, 0
      %v3256 = vsel %vm1231, %v3197, 0
      %3258 = vmatprep.subr.bf16.mxu0 0
      %3259 = vmatpush1.bf16.xpose.msra.mxu0 0
      %3260 = vmatprep.subr.bf16.mxu0 0
      %3261 = vmatpush1.bf16.xpose.msra.mxu0 0
      %3262 = vmatprep.subr.bf16.mxu0 0
      %3263 = vmatpush1.bf16.xpose.msra.mxu0 0
      %3264 = vmatprep.subr.bf16.mxu0 0
      %3265 = vmatpush1.bf16.xpose.msra.mxu0 0
      %3266 = vmatprep.subr.bf16.mxu0 0
      %3267 = vmatpush1.bf16.xpose.msra.mxu0 %v3256
      %3268 = vmatprep.subr.bf16.mxu0 0
      %3269 = vmatpush1.bf16.xpose.msra.mxu0 %v3253
      %3270 = vmatprep.subr.bf16.mxu0 0
      %3271 = vmatpush1.bf16.xpose.msra.mxu0 %v3250
      %3272 = vmatprep.subr.bf16.mxu0 0
      %3273 = vmatpush1.bf16.xpose.msra.mxu0 %v3247
      %3274 = vmatprep.subr.bf16.mxu0 0
      %3275 = vmatpush2.bf16.xpose.msra.mxu0 0
      %3276 = vmatprep.subr.bf16.mxu0 0
      %3277 = vmatpush2.bf16.xpose.msra.mxu0 0
      %3278 = vmatprep.subr.bf16.mxu0 0
      %3279 = vmatpush2.bf16.xpose.msra.mxu0 0
      %3280 = vmatprep.subr.bf16.mxu0 0
      %3281 = vmatpush2.bf16.xpose.msra.mxu0 0
      %3282 = vmatprep.subr.bf16.mxu0 0
      %3283 = vmatpush2.bf16.xpose.msra.mxu0 0
      %3284 = vmatprep.subr.bf16.mxu0 0
      %3285 = vmatpush2.bf16.xpose.msra.mxu0 0
      %3286 = vmatprep.subr.bf16.mxu0 0
      %3287 = vmatpush2.bf16.xpose.msra.mxu0 0
      %3288 = vmatprep.subr.bf16.mxu0 0
      %3289 = vmatpush2.bf16.xpose.msra.mxu0 0
      %3290 = vmatprep.mubr.bf16.mxu0 0
      %3291 = vmatmul.mubr.bf16.gmra.mxu0 %v3199
      %v3292 = vpop.f32.mrf.mxu0
      %v3293 = vadd.f32 0.0, %v3292
      %v3294 = vpop.f32.mrf.mxu0
      %v3295 = vpop.f32.mrf.mxu0
      %v3296 = vadd.f32 0.0, %v3295
      %v3297 = vpop.f32.mrf.mxu0
      %3298 = vmatprep.mubr.bf16.mxu0 0
      %3299 = vmatmul.mubr.bf16.gmra.mxu0 %v3202
      %v3300 = vpop.f32.mrf.mxu0
      %v3301 = vadd.f32 0.0, %v3300
      %v3302 = vpop.f32.mrf.mxu0
      %v3303 = vpop.f32.mrf.mxu0
      %v3304 = vadd.f32 0.0, %v3303
      %v3305 = vpop.f32.mrf.mxu0
      %3306 = vmatprep.mubr.bf16.mxu0 0
      %3307 = vmatmul.mubr.bf16.gmra.mxu0 %v3205
      %v3308 = vpop.f32.mrf.mxu0
      %v3309 = vadd.f32 0.0, %v3308
      %v3310 = vpop.f32.mrf.mxu0
      %v3311 = vpop.f32.mrf.mxu0
      %v3312 = vadd.f32 0.0, %v3311
      %v3313 = vpop.f32.mrf.mxu0
      %3314 = vmatprep.mubr.bf16.mxu0 0
      %3315 = vmatmul.mubr.bf16.gmra.mxu0 %v3208
      %v3316 = vpop.f32.mrf.mxu0
      %v3317 = vadd.f32 0.0, %v3316
      %v3318 = vpop.f32.mrf.mxu0
      %v3319 = vpop.f32.mrf.mxu0
      %v3320 = vadd.f32 0.0, %v3319
      %v3321 = vpop.f32.mrf.mxu0
      %3322 = vmatprep.mubr.bf16.mxu0 0
      %3323 = vmatmul.mubr.bf16.gmra.mxu0 %v3211
      %v3324 = vpop.f32.mrf.mxu0
      %v3325 = vadd.f32 0.0, %v3324
      %v3326 = vpop.f32.mrf.mxu0
      %v3327 = vpop.f32.mrf.mxu0
      %v3328 = vadd.f32 0.0, %v3327
      %v3329 = vpop.f32.mrf.mxu0
      %3330 = vmatprep.mubr.bf16.mxu0 0
      %3331 = vmatmul.mubr.bf16.gmra.mxu0 %v3214
      %v3332 = vpop.f32.mrf.mxu0
      %v3333 = vadd.f32 0.0, %v3332
      %v3334 = vpop.f32.mrf.mxu0
      %v3335 = vpop.f32.mrf.mxu0
      %v3336 = vadd.f32 0.0, %v3335
      %v3337 = vpop.f32.mrf.mxu0
      %3338 = vmatprep.mubr.bf16.mxu0 0
      %3339 = vmatmul.mubr.bf16.gmra.mxu0 %v3217
      %v3340 = vpop.f32.mrf.mxu0
      %v3341 = vadd.f32 0.0, %v3340
      %v3342 = vpop.f32.mrf.mxu0
      %v3343 = vpop.f32.mrf.mxu0
      %v3344 = vadd.f32 0.0, %v3343
      %v3345 = vpop.f32.mrf.mxu0
      %3346 = vmatprep.mubr.bf16.mxu0 0
      %3347 = vmatmul.mubr.bf16.gmra.mxu0 %v3220
      %v3348 = vpop.f32.mrf.mxu0
      %v3349 = vadd.f32 0.0, %v3348
      %v3350 = vpop.f32.mrf.mxu0
      %v3351 = vpop.f32.mrf.mxu0
      %v3352 = vadd.f32 0.0, %v3351
      %v3353 = vpop.f32.mrf.mxu0
      %3354 = vmatprep.mubr.bf16.mxu0 0
      %3355 = vmatmul.mubr.bf16.gmra.mxu0 %v3223
      %v3356 = vpop.f32.mrf.mxu0
      %v3357 = vadd.f32 0.0, %v3356
      %v3358 = vpop.f32.mrf.mxu0
      %v3359 = vpop.f32.mrf.mxu0
      %v3360 = vadd.f32 0.0, %v3359
      %v3361 = vpop.f32.mrf.mxu0
      %3362 = vmatprep.mubr.bf16.mxu0 0
      %3363 = vmatmul.mubr.bf16.gmra.mxu0 %v3226
      %v3364 = vpop.f32.mrf.mxu0
      %v3365 = vadd.f32 0.0, %v3364
      %v3366 = vpop.f32.mrf.mxu0
      %v3367 = vpop.f32.mrf.mxu0
      %v3368 = vadd.f32 0.0, %v3367
      %v3369 = vpop.f32.mrf.mxu0
      %3370 = vmatprep.mubr.bf16.mxu0 0
      %3371 = vmatmul.mubr.bf16.gmra.mxu0 %v3229
      %v3372 = vpop.f32.mrf.mxu0
      %v3373 = vadd.f32 0.0, %v3372
      %v3374 = vpop.f32.mrf.mxu0
      %v3375 = vpop.f32.mrf.mxu0
      %v3376 = vadd.f32 0.0, %v3375
      %v3377 = vpop.f32.mrf.mxu0
      %3378 = vmatprep.mubr.bf16.mxu0 0
      %3379 = vmatmul.mubr.bf16.gmra.mxu0 %v3232
      %v3380 = vpop.f32.mrf.mxu0
      %v3381 = vadd.f32 0.0, %v3380
      %v3382 = vpop.f32.mrf.mxu0
      %v3383 = vpop.f32.mrf.mxu0
      %v3384 = vadd.f32 0.0, %v3383
      %v3385 = vpop.f32.mrf.mxu0
      %3386 = vmatprep.mubr.bf16.mxu0 0
      %3387 = vmatmul.mubr.bf16.gmra.mxu0 %v3235
      %v3388 = vpop.f32.mrf.mxu0
      %v3389 = vadd.f32 0.0, %v3388
      %v3390 = vpop.f32.mrf.mxu0
      %v3391 = vpop.f32.mrf.mxu0
      %v3392 = vadd.f32 0.0, %v3391
      %v3393 = vpop.f32.mrf.mxu0
      %3394 = vmatprep.mubr.bf16.mxu0 0
      %3395 = vmatmul.mubr.bf16.gmra.mxu0 %v3238
      %v3396 = vpop.f32.mrf.mxu0
      %v3397 = vadd.f32 0.0, %v3396
      %v3398 = vpop.f32.mrf.mxu0
      %v3399 = vpop.f32.mrf.mxu0
      %v3400 = vadd.f32 0.0, %v3399
      %v3401 = vpop.f32.mrf.mxu0
      %3402 = vmatprep.mubr.bf16.mxu0 0
      %3403 = vmatmul.mubr.bf16.gmra.mxu0 %v3241
      %v3404 = vpop.f32.mrf.mxu0
      %v3405 = vadd.f32 0.0, %v3404
      %v3406 = vpop.f32.mrf.mxu0
      %v3407 = vpop.f32.mrf.mxu0
      %v3408 = vadd.f32 0.0, %v3407
      %v3409 = vpop.f32.mrf.mxu0
      %3410 = vmatprep.mubr.bf16.mxu0 0
      %3411 = vmatmul.mubr.bf16.gmra.mxu0 %v3244
      %v3412 = vpop.f32.mrf.mxu0
      %v3413 = vadd.f32 0.0, %v3412
      %v3414 = vpop.f32.mrf.mxu0
      %v3415 = vpop.f32.mrf.mxu0
      %v3416 = vadd.f32 0.0, %v3415
      %v3417 = vpop.f32.mrf.mxu0
      %3418 = vdwg.mxu0
      %v3419 = vsel %vm1453, %v3293, -inf
      %3420 = vmax.xlane.f32.xlu0 %v3419
      %v3421 = vpop.xlane.xlu0 %3420
      %v3422 = vsel %vm1453, %v3296, -inf
      %3423 = vmax.xlane.f32.xlu0 %v3422
      %v3424 = vpop.xlane.xlu0 %3423
      %v3425 = vsel %vm1453, %v3301, -inf
      %3426 = vmax.xlane.f32.xlu0 %v3425
      %v3427 = vpop.xlane.xlu0 %3426
      %v3428 = vsel %vm1453, %v3304, -inf
      %3429 = vmax.xlane.f32.xlu0 %v3428
      %v3430 = vpop.xlane.xlu0 %3429
      %v3431 = vsel %vm1453, %v3309, -inf
      %3432 = vmax.xlane.f32.xlu0 %v3431
      %v3433 = vpop.xlane.xlu0 %3432
      %v3434 = vsel %vm1453, %v3312, -inf
      %3435 = vmax.xlane.f32.xlu0 %v3434
      %v3436 = vpop.xlane.xlu0 %3435
      %v3437 = vsel %vm1453, %v3317, -inf
      %3438 = vmax.xlane.f32.xlu0 %v3437
      %v3439 = vpop.xlane.xlu0 %3438
      %v3440 = vsel %vm1453, %v3320, -inf
      %3441 = vmax.xlane.f32.xlu0 %v3440
      %v3442 = vpop.xlane.xlu0 %3441
      %v3443 = vsel %vm1453, %v3325, -inf
      %3444 = vmax.xlane.f32.xlu0 %v3443
      %v3445 = vpop.xlane.xlu0 %3444
      %v3446 = vsel %vm1453, %v3328, -inf
      %3447 = vmax.xlane.f32.xlu0 %v3446
      %v3448 = vpop.xlane.xlu0 %3447
      %v3449 = vsel %vm1453, %v3333, -inf
      %3450 = vmax.xlane.f32.xlu0 %v3449
      %v3451 = vpop.xlane.xlu0 %3450
      %v3452 = vsel %vm1453, %v3336, -inf
      %3453 = vmax.xlane.f32.xlu0 %v3452
      %v3454 = vpop.xlane.xlu0 %3453
      %v3455 = vsel %vm1453, %v3341, -inf
      %3456 = vmax.xlane.f32.xlu0 %v3455
      %v3457 = vpop.xlane.xlu0 %3456
      %v3458 = vsel %vm1453, %v3344, -inf
      %3459 = vmax.xlane.f32.xlu0 %v3458
      %v3460 = vpop.xlane.xlu0 %3459
      %v3461 = vsel %vm1453, %v3349, -inf
      %3462 = vmax.xlane.f32.xlu0 %v3461
      %v3463 = vpop.xlane.xlu0 %3462
      %v3464 = vsel %vm1453, %v3352, -inf
      %3465 = vmax.xlane.f32.xlu0 %v3464
      %v3466 = vpop.xlane.xlu0 %3465
      %v3467 = vsel %vm1453, %v3357, -inf
      %3468 = vmax.xlane.f32.xlu0 %v3467
      %v3469 = vpop.xlane.xlu0 %3468
      %v3470 = vsel %vm1453, %v3360, -inf
      %3471 = vmax.xlane.f32.xlu0 %v3470
      %v3472 = vpop.xlane.xlu0 %3471
      %v3473 = vsel %vm1453, %v3365, -inf
      %3474 = vmax.xlane.f32.xlu0 %v3473
      %v3475 = vpop.xlane.xlu0 %3474
      %v3476 = vsel %vm1453, %v3368, -inf
      %3477 = vmax.xlane.f32.xlu0 %v3476
      %v3478 = vpop.xlane.xlu0 %3477
      %v3479 = vsel %vm1453, %v3373, -inf
      %3480 = vmax.xlane.f32.xlu0 %v3479
      %v3481 = vpop.xlane.xlu0 %3480
      %v3482 = vsel %vm1453, %v3376, -inf
      %3483 = vmax.xlane.f32.xlu0 %v3482
      %v3484 = vpop.xlane.xlu0 %3483
      %v3485 = vsel %vm1453, %v3381, -inf
      %3486 = vmax.xlane.f32.xlu0 %v3485
      %v3487 = vpop.xlane.xlu0 %3486
      %v3488 = vsel %vm1453, %v3384, -inf
      %3489 = vmax.xlane.f32.xlu0 %v3488
      %v3490 = vpop.xlane.xlu0 %3489
      %v3491 = vsel %vm1453, %v3389, -inf
      %3492 = vmax.xlane.f32.xlu0 %v3491
      %v3493 = vpop.xlane.xlu0 %3492
      %v3494 = vsel %vm1453, %v3392, -inf
      %3495 = vmax.xlane.f32.xlu0 %v3494
      %v3496 = vpop.xlane.xlu0 %3495
      %v3497 = vsel %vm1453, %v3397, -inf
      %3498 = vmax.xlane.f32.xlu0 %v3497
      %v3499 = vpop.xlane.xlu0 %3498
      %v3500 = vsel %vm1453, %v3400, -inf
      %3501 = vmax.xlane.f32.xlu0 %v3500
      %v3502 = vpop.xlane.xlu0 %3501
      %v3503 = vsel %vm1453, %v3405, -inf
      %3504 = vmax.xlane.f32.xlu0 %v3503
      %v3505 = vpop.xlane.xlu0 %3504
      %v3506 = vsel %vm1453, %v3408, -inf
      %3507 = vmax.xlane.f32.xlu0 %v3506
      %v3508 = vpop.xlane.xlu0 %3507
      %v3509 = vsel %vm1453, %v3413, -inf
      %3510 = vmax.xlane.f32.xlu0 %v3509
      %v3511 = vpop.xlane.xlu0 %3510
      %v3512 = vsel %vm1453, %v3416, -inf
      %3513 = vmax.xlane.f32.xlu0 %v3512
      %v3514 = vpop.xlane.xlu0 %3513
      %v3515 = vsub.f32 %v3293, %v3421
      %v3516 = vsub.f32 %v3296, %v3424
      %v3517 = vsub.f32 %v3301, %v3427
      %v3518 = vsub.f32 %v3304, %v3430
      %v3519 = vsub.f32 %v3309, %v3433
      %v3520 = vsub.f32 %v3312, %v3436
      %v3521 = vsub.f32 %v3317, %v3439
      %v3522 = vsub.f32 %v3320, %v3442
      %v3523 = vsub.f32 %v3325, %v3445
      %v3524 = vsub.f32 %v3328, %v3448
      %v3525 = vsub.f32 %v3333, %v3451
      %v3526 = vsub.f32 %v3336, %v3454
      %v3527 = vsub.f32 %v3341, %v3457
      %v3528 = vsub.f32 %v3344, %v3460
      %v3529 = vsub.f32 %v3349, %v3463
      %v3530 = vsub.f32 %v3352, %v3466
      %v3531 = vsub.f32 %v3357, %v3469
      %v3532 = vsub.f32 %v3360, %v3472
      %v3533 = vsub.f32 %v3365, %v3475
      %v3534 = vsub.f32 %v3368, %v3478
      %v3535 = vsub.f32 %v3373, %v3481
      %v3536 = vsub.f32 %v3376, %v3484
      %v3537 = vsub.f32 %v3381, %v3487
      %v3538 = vsub.f32 %v3384, %v3490
      %v3539 = vsub.f32 %v3389, %v3493
      %v3540 = vsub.f32 %v3392, %v3496
      %v3541 = vsub.f32 %v3397, %v3499
      %v3542 = vsub.f32 %v3400, %v3502
      %v3543 = vsub.f32 %v3405, %v3505
      %v3544 = vsub.f32 %v3408, %v3508
      %v3545 = vsub.f32 %v3413, %v3511
      %v3546 = vsub.f32 %v3416, %v3514
      %v3547 = vmul.f32 %v3515, 1.442695
      %v3548 = vpow.pop %v3547
      %v3549 = vmul.f32 %v3516, 1.442695
      %v3550 = vpow.pop %v3549
      %v3551 = vmul.f32 %v3517, 1.442695
      %v3552 = vpow.pop %v3551
      %v3553 = vmul.f32 %v3518, 1.442695
      %v3554 = vpow.pop %v3553
      %v3555 = vmul.f32 %v3519, 1.442695
      %v3556 = vpow.pop %v3555
      %v3557 = vmul.f32 %v3520, 1.442695
      %v3558 = vpow.pop %v3557
      %v3559 = vmul.f32 %v3521, 1.442695
      %v3560 = vpow.pop %v3559
      %v3561 = vmul.f32 %v3522, 1.442695
      %v3562 = vpow.pop %v3561
      %v3563 = vmul.f32 %v3523, 1.442695
      %v3564 = vpow.pop %v3563
      %v3565 = vmul.f32 %v3524, 1.442695
      %v3566 = vpow.pop %v3565
      %v3567 = vmul.f32 %v3525, 1.442695
      %v3568 = vpow.pop %v3567
      %v3569 = vmul.f32 %v3526, 1.442695
      %v3570 = vpow.pop %v3569
      %v3571 = vmul.f32 %v3527, 1.442695
      %v3572 = vpow.pop %v3571
      %v3573 = vmul.f32 %v3528, 1.442695
      %v3574 = vpow.pop %v3573
      %v3575 = vmul.f32 %v3529, 1.442695
      %v3576 = vpow.pop %v3575
      %v3577 = vmul.f32 %v3530, 1.442695
      %v3578 = vpow.pop %v3577
      %v3579 = vmul.f32 %v3531, 1.442695
      %v3580 = vpow.pop %v3579
      %v3581 = vmul.f32 %v3532, 1.442695
      %v3582 = vpow.pop %v3581
      %v3583 = vmul.f32 %v3533, 1.442695
      %v3584 = vpow.pop %v3583
      %v3585 = vmul.f32 %v3534, 1.442695
      %v3586 = vpow.pop %v3585
      %v3587 = vmul.f32 %v3535, 1.442695
      %v3588 = vpow.pop %v3587
      %v3589 = vmul.f32 %v3536, 1.442695
      %v3590 = vpow.pop %v3589
      %v3591 = vmul.f32 %v3537, 1.442695
      %v3592 = vpow.pop %v3591
      %v3593 = vmul.f32 %v3538, 1.442695
      %v3594 = vpow.pop %v3593
      %v3595 = vmul.f32 %v3539, 1.442695
      %v3596 = vpow.pop %v3595
      %v3597 = vmul.f32 %v3540, 1.442695
      %v3598 = vpow.pop %v3597
      %v3599 = vmul.f32 %v3541, 1.442695
      %v3600 = vpow.pop %v3599
      %v3601 = vmul.f32 %v3542, 1.442695
      %v3602 = vpow.pop %v3601
      %v3603 = vmul.f32 %v3543, 1.442695
      %v3604 = vpow.pop %v3603
      %v3605 = vmul.f32 %v3544, 1.442695
      %v3606 = vpow.pop %v3605
      %v3607 = vmul.f32 %v3545, 1.442695
      %v3608 = vpow.pop %v3607
      %v3609 = vmul.f32 %v3546, 1.442695
      %v3610 = vpow.pop %v3609
      %v3611 = vsel %vm1453, %v3548, 0.0
      %3612 = vadd.xlane.f32.xlu0 %v3611
      %v3613 = vpop.xlane.xlu0 %3612
      %v3614 = vsel %vm1453, %v3550, 0.0
      %3615 = vadd.xlane.f32.xlu0 %v3614
      %v3616 = vpop.xlane.xlu0 %3615
      %v3617 = vsel %vm1453, %v3552, 0.0
      %3618 = vadd.xlane.f32.xlu0 %v3617
      %v3619 = vpop.xlane.xlu0 %3618
      %v3620 = vsel %vm1453, %v3554, 0.0
      %3621 = vadd.xlane.f32.xlu0 %v3620
      %v3622 = vpop.xlane.xlu0 %3621
      %v3623 = vsel %vm1453, %v3556, 0.0
      %3624 = vadd.xlane.f32.xlu0 %v3623
      %v3625 = vpop.xlane.xlu0 %3624
      %v3626 = vsel %vm1453, %v3558, 0.0
      %3627 = vadd.xlane.f32.xlu0 %v3626
      %v3628 = vpop.xlane.xlu0 %3627
      %v3629 = vsel %vm1453, %v3560, 0.0
      %3630 = vadd.xlane.f32.xlu0 %v3629
      %v3631 = vpop.xlane.xlu0 %3630
      %v3632 = vsel %vm1453, %v3562, 0.0
      %3633 = vadd.xlane.f32.xlu0 %v3632
      %v3634 = vpop.xlane.xlu0 %3633
      %v3635 = vsel %vm1453, %v3564, 0.0
      %3636 = vadd.xlane.f32.xlu0 %v3635
      %v3637 = vpop.xlane.xlu0 %3636
      %v3638 = vsel %vm1453, %v3566, 0.0
      %3639 = vadd.xlane.f32.xlu0 %v3638
      %v3640 = vpop.xlane.xlu0 %3639
      %v3641 = vsel %vm1453, %v3568, 0.0
      %3642 = vadd.xlane.f32.xlu0 %v3641
      %v3643 = vpop.xlane.xlu0 %3642
      %v3644 = vsel %vm1453, %v3570, 0.0
      %3645 = vadd.xlane.f32.xlu0 %v3644
      %v3646 = vpop.xlane.xlu0 %3645
      %v3647 = vsel %vm1453, %v3572, 0.0
      %3648 = vadd.xlane.f32.xlu0 %v3647
      %v3649 = vpop.xlane.xlu0 %3648
      %v3650 = vsel %vm1453, %v3574, 0.0
      %3651 = vadd.xlane.f32.xlu0 %v3650
      %v3652 = vpop.xlane.xlu0 %3651
      %v3653 = vsel %vm1453, %v3576, 0.0
      %3654 = vadd.xlane.f32.xlu0 %v3653
      %v3655 = vpop.xlane.xlu0 %3654
      %v3656 = vsel %vm1453, %v3578, 0.0
      %3657 = vadd.xlane.f32.xlu0 %v3656
      %v3658 = vpop.xlane.xlu0 %3657
      %v3659 = vsel %vm1453, %v3580, 0.0
      %3660 = vadd.xlane.f32.xlu0 %v3659
      %v3661 = vpop.xlane.xlu0 %3660
      %v3662 = vsel %vm1453, %v3582, 0.0
      %3663 = vadd.xlane.f32.xlu0 %v3662
      %v3664 = vpop.xlane.xlu0 %3663
      %v3665 = vsel %vm1453, %v3584, 0.0
      %3666 = vadd.xlane.f32.xlu0 %v3665
      %v3667 = vpop.xlane.xlu0 %3666
      %v3668 = vsel %vm1453, %v3586, 0.0
      %3669 = vadd.xlane.f32.xlu0 %v3668
      %v3670 = vpop.xlane.xlu0 %3669
      %v3671 = vsel %vm1453, %v3588, 0.0
      %3672 = vadd.xlane.f32.xlu0 %v3671
      %v3673 = vpop.xlane.xlu0 %3672
      %v3674 = vsel %vm1453, %v3590, 0.0
      %3675 = vadd.xlane.f32.xlu0 %v3674
      %v3676 = vpop.xlane.xlu0 %3675
      %v3677 = vsel %vm1453, %v3592, 0.0
      %3678 = vadd.xlane.f32.xlu0 %v3677
      %v3679 = vpop.xlane.xlu0 %3678
      %v3680 = vsel %vm1453, %v3594, 0.0
      %3681 = vadd.xlane.f32.xlu0 %v3680
      %v3682 = vpop.xlane.xlu0 %3681
      %v3683 = vsel %vm1453, %v3596, 0.0
      %3684 = vadd.xlane.f32.xlu0 %v3683
      %v3685 = vpop.xlane.xlu0 %3684
      %v3686 = vsel %vm1453, %v3598, 0.0
      %3687 = vadd.xlane.f32.xlu0 %v3686
      %v3688 = vpop.xlane.xlu0 %3687
      %v3689 = vsel %vm1453, %v3600, 0.0
      %3690 = vadd.xlane.f32.xlu0 %v3689
      %v3691 = vpop.xlane.xlu0 %3690
      %v3692 = vsel %vm1453, %v3602, 0.0
      %3693 = vadd.xlane.f32.xlu0 %v3692
      %v3694 = vpop.xlane.xlu0 %3693
      %v3695 = vsel %vm1453, %v3604, 0.0
      %3696 = vadd.xlane.f32.xlu0 %v3695
      %v3697 = vpop.xlane.xlu0 %3696
      %v3698 = vsel %vm1453, %v3606, 0.0
      %3699 = vadd.xlane.f32.xlu0 %v3698
      %v3700 = vpop.xlane.xlu0 %3699
      %v3701 = vsel %vm1453, %v3608, 0.0
      %3702 = vadd.xlane.f32.xlu0 %v3701
      %v3703 = vpop.xlane.xlu0 %3702
      %v3704 = vsel %vm1453, %v3610, 0.0
      %3705 = vadd.xlane.f32.xlu0 %v3704
      %v3706 = vpop.xlane.xlu0 %3705
      %v3707 = vrcp.pop %v3613
      %v3708 = vrcp.pop %v3616
      %v3709 = vrcp.pop %v3619
      %v3710 = vrcp.pop %v3622
      %v3711 = vrcp.pop %v3625
      %v3712 = vrcp.pop %v3628
      %v3713 = vrcp.pop %v3631
      %v3714 = vrcp.pop %v3634
      %v3715 = vrcp.pop %v3637
      %v3716 = vrcp.pop %v3640
      %v3717 = vrcp.pop %v3643
      %v3718 = vrcp.pop %v3646
      %v3719 = vrcp.pop %v3649
      %v3720 = vrcp.pop %v3652
      %v3721 = vrcp.pop %v3655
      %v3722 = vrcp.pop %v3658
      %v3723 = vrcp.pop %v3661
      %v3724 = vrcp.pop %v3664
      %v3725 = vrcp.pop %v3667
      %v3726 = vrcp.pop %v3670
      %v3727 = vrcp.pop %v3673
      %v3728 = vrcp.pop %v3676
      %v3729 = vrcp.pop %v3679
      %v3730 = vrcp.pop %v3682
      %v3731 = vrcp.pop %v3685
      %v3732 = vrcp.pop %v3688
      %v3733 = vrcp.pop %v3691
      %v3734 = vrcp.pop %v3694
      %v3735 = vrcp.pop %v3697
      %v3736 = vrcp.pop %v3700
      %v3737 = vrcp.pop %v3703
      %v3738 = vrcp.pop %v3706
      %v3739 = vmul.f32 %v3548, %v3707
      %v3740 = vmul.f32 %v3550, %v3708
      %v3741 = vmul.f32 %v3552, %v3709
      %v3742 = vmul.f32 %v3554, %v3710
      %v3743 = vmul.f32 %v3556, %v3711
      %v3744 = vmul.f32 %v3558, %v3712
      %v3745 = vmul.f32 %v3560, %v3713
      %v3746 = vmul.f32 %v3562, %v3714
      %v3747 = vmul.f32 %v3564, %v3715
      %v3748 = vmul.f32 %v3566, %v3716
      %v3749 = vmul.f32 %v3568, %v3717
      %v3750 = vmul.f32 %v3570, %v3718
      %v3751 = vmul.f32 %v3572, %v3719
      %v3752 = vmul.f32 %v3574, %v3720
      %v3753 = vmul.f32 %v3576, %v3721
      %v3754 = vmul.f32 %v3578, %v3722
      %v3755 = vmul.f32 %v3580, %v3723
      %v3756 = vmul.f32 %v3582, %v3724
      %v3757 = vmul.f32 %v3584, %v3725
      %v3758 = vmul.f32 %v3586, %v3726
      %v3759 = vmul.f32 %v3588, %v3727
      %v3760 = vmul.f32 %v3590, %v3728
      %v3761 = vmul.f32 %v3592, %v3729
      %v3762 = vmul.f32 %v3594, %v3730
      %v3763 = vmul.f32 %v3596, %v3731
      %v3764 = vmul.f32 %v3598, %v3732
      %v3765 = vmul.f32 %v3600, %v3733
      %v3766 = vmul.f32 %v3602, %v3734
      %v3767 = vmul.f32 %v3604, %v3735
      %v3768 = vmul.f32 %v3606, %v3736
      %v3769 = vmul.f32 %v3608, %v3737
      %v3770 = vmul.f32 %v3610, %v3738
      %v3771 = vpack.c.bf16 %v3740, %v3739
      %v3772 = vpack.c.bf16 %v3742, %v3741
      %v3773 = vpack.c.bf16 %v3744, %v3743
      %v3774 = vpack.c.bf16 %v3746, %v3745
      %v3775 = vpack.c.bf16 %v3748, %v3747
      %v3776 = vpack.c.bf16 %v3750, %v3749
      %v3777 = vpack.c.bf16 %v3752, %v3751
      %v3778 = vpack.c.bf16 %v3754, %v3753
      %v3779 = vpack.c.bf16 %v3756, %v3755
      %v3780 = vpack.c.bf16 %v3758, %v3757
      %v3781 = vpack.c.bf16 %v3760, %v3759
      %v3782 = vpack.c.bf16 %v3762, %v3761
      %v3783 = vpack.c.bf16 %v3764, %v3763
      %v3784 = vpack.c.bf16 %v3766, %v3765
      %v3785 = vpack.c.bf16 %v3768, %v3767
      %v3786 = vpack.c.bf16 %v3770, %v3769
      %3787 = vrot.lane.b32.xlu0 %v3186, 88
      %v3788 = vpop.permute.xlu0 %3787
      %3789 = vrot.lane.b32.xlu0 %v3187, 88
      %v3790 = vpop.permute.xlu0 %3789
      %3791 = vrot.lane.b32.xlu0 %v3188, 88
      %v3792 = vpop.permute.xlu0 %3791
      %3793 = vrot.lane.b32.xlu0 %v3189, 88
      %v3794 = vpop.permute.xlu0 %3793
      %v3800 = vsel %vm1453, %v3771, 0
      %v3803 = vsel %vm1453, %v3772, 0
      %v3806 = vsel %vm1453, %v3773, 0
      %v3809 = vsel %vm1453, %v3774, 0
      %v3812 = vsel %vm1453, %v3775, 0
      %v3815 = vsel %vm1453, %v3776, 0
      %v3818 = vsel %vm1453, %v3777, 0
      %v3821 = vsel %vm1453, %v3778, 0
      %v3824 = vsel %vm1453, %v3779, 0
      %v3827 = vsel %vm1453, %v3780, 0
      %v3830 = vsel %vm1453, %v3781, 0
      %v3833 = vsel %vm1453, %v3782, 0
      %v3836 = vsel %vm1453, %v3783, 0
      %v3839 = vsel %vm1453, %v3784, 0
      %v3842 = vsel %vm1453, %v3785, 0
      %v3845 = vsel %vm1453, %v3786, 0
      %3847 = vmatprep.subr.bf16.mxu0 0
      %3848 = vmatpush1.bf16.msra.mxu0 0
      %3849 = vmatprep.subr.bf16.mxu0 0
      %3850 = vmatpush1.bf16.msra.mxu0 0
      %3851 = vmatprep.subr.bf16.mxu0 0
      %3852 = vmatpush1.bf16.msra.mxu0 0
      %3853 = vmatprep.subr.bf16.mxu0 0
      %3854 = vmatpush1.bf16.msra.mxu0 0
      %3855 = vmatprep.subr.bf16.mxu0 0
      %3856 = vmatpush1.bf16.msra.mxu0 %v3794
      %3857 = vmatprep.subr.bf16.mxu0 0
      %3858 = vmatpush1.bf16.msra.mxu0 %v3792
      %3859 = vmatprep.subr.bf16.mxu0 0
      %3860 = vmatpush1.bf16.msra.mxu0 %v3790
      %3861 = vmatprep.subr.bf16.mxu0 0
      %3862 = vmatpush1.bf16.msra.mxu0 %v3788
      %3863 = vmatprep.subr.bf16.mxu0 0
      %3864 = vmatpush2.bf16.msra.mxu0 0
      %3865 = vmatprep.subr.bf16.mxu0 0
      %3866 = vmatpush2.bf16.msra.mxu0 0
      %3867 = vmatprep.subr.bf16.mxu0 0
      %3868 = vmatpush2.bf16.msra.mxu0 0
      %3869 = vmatprep.subr.bf16.mxu0 0
      %3870 = vmatpush2.bf16.msra.mxu0 0
      %3871 = vmatprep.subr.bf16.mxu0 0
      %3872 = vmatpush2.bf16.msra.mxu0 0
      %3873 = vmatprep.subr.bf16.mxu0 0
      %3874 = vmatpush2.bf16.msra.mxu0 0
      %3875 = vmatprep.subr.bf16.mxu0 0
      %3876 = vmatpush2.bf16.msra.mxu0 0
      %3877 = vmatprep.subr.bf16.mxu0 0
      %3878 = vmatpush2.bf16.msra.mxu0 0
      %3879 = vmatprep.mubr.bf16.mxu0 0
      %3880 = vmatmul.mubr.bf16.gmra.mxu0 %v3800
      %v3881 = vpop.f32.mrf.mxu0
      %v3882 = vadd.f32 0.0, %v3881
      %v3883 = vpop.f32.mrf.mxu0
      %v3884 = vpop.f32.mrf.mxu0
      %v3885 = vadd.f32 0.0, %v3884
      %v3886 = vpop.f32.mrf.mxu0
      %3887 = vmatprep.mubr.bf16.mxu0 0
      %3888 = vmatmul.mubr.bf16.gmra.mxu0 %v3803
      %v3889 = vpop.f32.mrf.mxu0
      %v3890 = vadd.f32 0.0, %v3889
      %v3891 = vpop.f32.mrf.mxu0
      %v3892 = vpop.f32.mrf.mxu0
      %v3893 = vadd.f32 0.0, %v3892
      %v3894 = vpop.f32.mrf.mxu0
      %3895 = vmatprep.mubr.bf16.mxu0 0
      %3896 = vmatmul.mubr.bf16.gmra.mxu0 %v3806
      %v3897 = vpop.f32.mrf.mxu0
      %v3898 = vadd.f32 0.0, %v3897
      %v3899 = vpop.f32.mrf.mxu0
      %v3900 = vpop.f32.mrf.mxu0
      %v3901 = vadd.f32 0.0, %v3900
      %v3902 = vpop.f32.mrf.mxu0
      %3903 = vmatprep.mubr.bf16.mxu0 0
      %3904 = vmatmul.mubr.bf16.gmra.mxu0 %v3809
      %v3905 = vpop.f32.mrf.mxu0
      %v3906 = vadd.f32 0.0, %v3905
      %v3907 = vpop.f32.mrf.mxu0
      %v3908 = vpop.f32.mrf.mxu0
      %v3909 = vadd.f32 0.0, %v3908
      %v3910 = vpop.f32.mrf.mxu0
      %3911 = vmatprep.mubr.bf16.mxu0 0
      %3912 = vmatmul.mubr.bf16.gmra.mxu0 %v3812
      %v3913 = vpop.f32.mrf.mxu0
      %v3914 = vadd.f32 0.0, %v3913
      %v3915 = vpop.f32.mrf.mxu0
      %v3916 = vpop.f32.mrf.mxu0
      %v3917 = vadd.f32 0.0, %v3916
      %v3918 = vpop.f32.mrf.mxu0
      %3919 = vmatprep.mubr.bf16.mxu0 0
      %3920 = vmatmul.mubr.bf16.gmra.mxu0 %v3815
      %v3921 = vpop.f32.mrf.mxu0
      %v3922 = vadd.f32 0.0, %v3921
      %v3923 = vpop.f32.mrf.mxu0
      %v3924 = vpop.f32.mrf.mxu0
      %v3925 = vadd.f32 0.0, %v3924
      %v3926 = vpop.f32.mrf.mxu0
      %3927 = vmatprep.mubr.bf16.mxu0 0
      %3928 = vmatmul.mubr.bf16.gmra.mxu0 %v3818
      %v3929 = vpop.f32.mrf.mxu0
      %v3930 = vadd.f32 0.0, %v3929
      %v3931 = vpop.f32.mrf.mxu0
      %v3932 = vpop.f32.mrf.mxu0
      %v3933 = vadd.f32 0.0, %v3932
      %v3934 = vpop.f32.mrf.mxu0
      %3935 = vmatprep.mubr.bf16.mxu0 0
      %3936 = vmatmul.mubr.bf16.gmra.mxu0 %v3821
      %v3937 = vpop.f32.mrf.mxu0
      %v3938 = vadd.f32 0.0, %v3937
      %v3939 = vpop.f32.mrf.mxu0
      %v3940 = vpop.f32.mrf.mxu0
      %v3941 = vadd.f32 0.0, %v3940
      %v3942 = vpop.f32.mrf.mxu0
      %3943 = vmatprep.mubr.bf16.mxu0 0
      %3944 = vmatmul.mubr.bf16.gmra.mxu0 %v3824
      %v3945 = vpop.f32.mrf.mxu0
      %v3946 = vadd.f32 0.0, %v3945
      %v3947 = vpop.f32.mrf.mxu0
      %v3948 = vpop.f32.mrf.mxu0
      %v3949 = vadd.f32 0.0, %v3948
      %v3950 = vpop.f32.mrf.mxu0
      %3951 = vmatprep.mubr.bf16.mxu0 0
      %3952 = vmatmul.mubr.bf16.gmra.mxu0 %v3827
      %v3953 = vpop.f32.mrf.mxu0
      %v3954 = vadd.f32 0.0, %v3953
      %v3955 = vpop.f32.mrf.mxu0
      %v3956 = vpop.f32.mrf.mxu0
      %v3957 = vadd.f32 0.0, %v3956
      %v3958 = vpop.f32.mrf.mxu0
      %3959 = vmatprep.mubr.bf16.mxu0 0
      %3960 = vmatmul.mubr.bf16.gmra.mxu0 %v3830
      %v3961 = vpop.f32.mrf.mxu0
      %v3962 = vadd.f32 0.0, %v3961
      %v3963 = vpop.f32.mrf.mxu0
      %v3964 = vpop.f32.mrf.mxu0
      %v3965 = vadd.f32 0.0, %v3964
      %v3966 = vpop.f32.mrf.mxu0
      %3967 = vmatprep.mubr.bf16.mxu0 0
      %3968 = vmatmul.mubr.bf16.gmra.mxu0 %v3833
      %v3969 = vpop.f32.mrf.mxu0
      %v3970 = vadd.f32 0.0, %v3969
      %v3971 = vpop.f32.mrf.mxu0
      %v3972 = vpop.f32.mrf.mxu0
      %v3973 = vadd.f32 0.0, %v3972
      %v3974 = vpop.f32.mrf.mxu0
      %3975 = vmatprep.mubr.bf16.mxu0 0
      %3976 = vmatmul.mubr.bf16.gmra.mxu0 %v3836
      %v3977 = vpop.f32.mrf.mxu0
      %v3978 = vadd.f32 0.0, %v3977
      %v3979 = vpop.f32.mrf.mxu0
      %v3980 = vpop.f32.mrf.mxu0
      %v3981 = vadd.f32 0.0, %v3980
      %v3982 = vpop.f32.mrf.mxu0
      %3983 = vmatprep.mubr.bf16.mxu0 0
      %3984 = vmatmul.mubr.bf16.gmra.mxu0 %v3839
      %v3985 = vpop.f32.mrf.mxu0
      %v3986 = vadd.f32 0.0, %v3985
      %v3987 = vpop.f32.mrf.mxu0
      %v3988 = vpop.f32.mrf.mxu0
      %v3989 = vadd.f32 0.0, %v3988
      %v3990 = vpop.f32.mrf.mxu0
      %3991 = vmatprep.mubr.bf16.mxu0 0
      %3992 = vmatmul.mubr.bf16.gmra.mxu0 %v3842
      %v3993 = vpop.f32.mrf.mxu0
      %v3994 = vadd.f32 0.0, %v3993
      %v3995 = vpop.f32.mrf.mxu0
      %v3996 = vpop.f32.mrf.mxu0
      %v3997 = vadd.f32 0.0, %v3996
      %v3998 = vpop.f32.mrf.mxu0
      %3999 = vmatprep.mubr.bf16.mxu0 0
      %4000 = vmatmul.mubr.bf16.gmra.mxu0 %v3845
      %v4001 = vpop.f32.mrf.mxu0
      %v4002 = vadd.f32 0.0, %v4001
      %v4003 = vpop.f32.mrf.mxu0
      %v4004 = vpop.f32.mrf.mxu0
      %v4005 = vadd.f32 0.0, %v4004
      %v4006 = vpop.f32.mrf.mxu0
      %4007 = vdwg.mxu0
      %4040 = vrot.lane.b32.xlu0 %v3882, 8
      %v4041 = vpop.permute.xlu0 %4040
      %4042 = vrot.lane.b32.xlu0 %v3885, 8
      %v4043 = vpop.permute.xlu0 %4042
      %4044 = vrot.lane.b32.xlu0 %v3890, 8
      %v4045 = vpop.permute.xlu0 %4044
      %4046 = vrot.lane.b32.xlu0 %v3893, 8
      %v4047 = vpop.permute.xlu0 %4046
      %4048 = vrot.lane.b32.xlu0 %v3898, 8
      %v4049 = vpop.permute.xlu0 %4048
      %4050 = vrot.lane.b32.xlu0 %v3901, 8
      %v4051 = vpop.permute.xlu0 %4050
      %4052 = vrot.lane.b32.xlu0 %v3906, 8
      %v4053 = vpop.permute.xlu0 %4052
      %4054 = vrot.lane.b32.xlu0 %v3909, 8
      %v4055 = vpop.permute.xlu0 %4054
      %4056 = vrot.lane.b32.xlu0 %v3914, 8
      %v4057 = vpop.permute.xlu0 %4056
      %4058 = vrot.lane.b32.xlu0 %v3917, 8
      %v4059 = vpop.permute.xlu0 %4058
      %4060 = vrot.lane.b32.xlu0 %v3922, 8
      %v4061 = vpop.permute.xlu0 %4060
      %4062 = vrot.lane.b32.xlu0 %v3925, 8
      %v4063 = vpop.permute.xlu0 %4062
      %4064 = vrot.lane.b32.xlu0 %v3930, 8
      %v4065 = vpop.permute.xlu0 %4064
      %4066 = vrot.lane.b32.xlu0 %v3933, 8
      %v4067 = vpop.permute.xlu0 %4066
      %4068 = vrot.lane.b32.xlu0 %v3938, 8
      %v4069 = vpop.permute.xlu0 %4068
      %4070 = vrot.lane.b32.xlu0 %v3941, 8
      %v4071 = vpop.permute.xlu0 %4070
      %4072 = vrot.lane.b32.xlu0 %v3946, 8
      %v4073 = vpop.permute.xlu0 %4072
      %4074 = vrot.lane.b32.xlu0 %v3949, 8
      %v4075 = vpop.permute.xlu0 %4074
      %4076 = vrot.lane.b32.xlu0 %v3954, 8
      %v4077 = vpop.permute.xlu0 %4076
      %4078 = vrot.lane.b32.xlu0 %v3957, 8
      %v4079 = vpop.permute.xlu0 %4078
      %4080 = vrot.lane.b32.xlu0 %v3962, 8
      %v4081 = vpop.permute.xlu0 %4080
      %4082 = vrot.lane.b32.xlu0 %v3965, 8
      %v4083 = vpop.permute.xlu0 %4082
      %4084 = vrot.lane.b32.xlu0 %v3970, 8
      %v4085 = vpop.permute.xlu0 %4084
      %4086 = vrot.lane.b32.xlu0 %v3973, 8
      %v4087 = vpop.permute.xlu0 %4086
      %4088 = vrot.lane.b32.xlu0 %v3978, 8
      %v4089 = vpop.permute.xlu0 %4088
      %4090 = vrot.lane.b32.xlu0 %v3981, 8
      %v4091 = vpop.permute.xlu0 %4090
      %4092 = vrot.lane.b32.xlu0 %v3986, 8
      %v4093 = vpop.permute.xlu0 %4092
      %4094 = vrot.lane.b32.xlu0 %v3989, 8
      %v4095 = vpop.permute.xlu0 %4094
      %4096 = vrot.lane.b32.xlu0 %v3994, 8
      %v4097 = vpop.permute.xlu0 %4096
      %4098 = vrot.lane.b32.xlu0 %v3997, 8
      %v4099 = vpop.permute.xlu0 %4098
      %4100 = vrot.lane.b32.xlu0 %v4002, 8
      %v4101 = vpop.permute.xlu0 %4100
      %4102 = vrot.lane.b32.xlu0 %v4005, 8
      %v4103 = vpop.permute.xlu0 %4102
      %vm4136 = vcmask 97344
      %4137 = vst.msk [vmem:[#allocation3] sm:$0xff] %vm4136, %v4041
      %4138 = vst.msk [vmem:[#allocation3 + $0x8] sm:$0xff] %vm4136, %v4043
      %4139 = vst.msk [vmem:[#allocation3 + $0x10] sm:$0xff] %vm4136, %v4045
      %4140 = vst.msk [vmem:[#allocation3 + $0x18] sm:$0xff] %vm4136, %v4047
      %4141 = vst.msk [vmem:[#allocation3 + $0x20] sm:$0xff] %vm4136, %v4049
      %4142 = vst.msk [vmem:[#allocation3 + $0x28] sm:$0xff] %vm4136, %v4051
      %4143 = vst.msk [vmem:[#allocation3 + $0x30] sm:$0xff] %vm4136, %v4053
      %4144 = vst.msk [vmem:[#allocation3 + $0x38] sm:$0xff] %vm4136, %v4055
      %4145 = vst.msk [vmem:[#allocation3 + $0x40] sm:$0xff] %vm4136, %v4057
      %4146 = vst.msk [vmem:[#allocation3 + $0x48] sm:$0xff] %vm4136, %v4059
      %4147 = vst.msk [vmem:[#allocation3 + $0x50] sm:$0xff] %vm4136, %v4061
      %4148 = vst.msk [vmem:[#allocation3 + $0x58] sm:$0xff] %vm4136, %v4063
      %4149 = vst.msk [vmem:[#allocation3 + $0x60] sm:$0xff] %vm4136, %v4065
      %4150 = vst.msk [vmem:[#allocation3 + $0x68] sm:$0xff] %vm4136, %v4067
      %4151 = vst.msk [vmem:[#allocation3 + $0x70] sm:$0xff] %vm4136, %v4069
      %4152 = vst.msk [vmem:[#allocation3 + $0x78] sm:$0xff] %vm4136, %v4071
      %4153 = vst.msk [vmem:[#allocation3 + $0x80] sm:$0xff] %vm4136, %v4073
      %4154 = vst.msk [vmem:[#allocation3 + $0x88] sm:$0xff] %vm4136, %v4075
      %4155 = vst.msk [vmem:[#allocation3 + $0x90] sm:$0xff] %vm4136, %v4077
      %4156 = vst.msk [vmem:[#allocation3 + $0x98] sm:$0xff] %vm4136, %v4079
      %4157 = vst.msk [vmem:[#allocation3 + $0xa0] sm:$0xff] %vm4136, %v4081
      %4158 = vst.msk [vmem:[#allocation3 + $0xa8] sm:$0xff] %vm4136, %v4083
      %4159 = vst.msk [vmem:[#allocation3 + $0xb0] sm:$0xff] %vm4136, %v4085
      %4160 = vst.msk [vmem:[#allocation3 + $0xb8] sm:$0xff] %vm4136, %v4087
      %4161 = vst.msk [vmem:[#allocation3 + $0xc0] sm:$0xff] %vm4136, %v4089
      %4162 = vst.msk [vmem:[#allocation3 + $0xc8] sm:$0xff] %vm4136, %v4091
      %4163 = vst.msk [vmem:[#allocation3 + $0xd0] sm:$0xff] %vm4136, %v4093
      %4164 = vst.msk [vmem:[#allocation3 + $0xd8] sm:$0xff] %vm4136, %v4095
      %4165 = vst.msk [vmem:[#allocation3 + $0xe0] sm:$0xff] %vm4136, %v4097
      %4166 = vst.msk [vmem:[#allocation3 + $0xe8] sm:$0xff] %vm4136, %v4099
      %4167 = vst.msk [vmem:[#allocation3 + $0xf0] sm:$0xff] %vm4136, %v4101
      %4168 = vst.msk [vmem:[#allocation3 + $0xf8] sm:$0xff] %vm4136, %v4103
      %v4169 = vld [vmem:[#allocation2] sm:$0xf]
      %v4170 = vld [vmem:[#allocation2 + $0x4] sm:$0xf]
      %v4171 = vld [vmem:[#allocation2 + $0x8] sm:$0xf]
      %v4172 = vld [vmem:[#allocation2 + $0xc] sm:$0xf]
      %v4173 = vld [vmem:[#allocation2 + $0x10] sm:$0xf]
      %v4174 = vld [vmem:[#allocation2 + $0x14] sm:$0xf]
      %v4175 = vld [vmem:[#allocation2 + $0x18] sm:$0xf]
      %v4176 = vld [vmem:[#allocation2 + $0x1c] sm:$0xf]
      %4177 = vrot.lane.b32.xlu0 %v1187, 116
      %v4178 = vpop.permute.xlu0 %4177
      %4179 = vrot.lane.b32.xlu0 %v1188, 116
      %v4180 = vpop.permute.xlu0 %4179
      %4181 = vrot.lane.b32.xlu0 %v1189, 116
      %v4182 = vpop.permute.xlu0 %4181
      %4183 = vrot.lane.b32.xlu0 %v1190, 116
      %v4184 = vpop.permute.xlu0 %4183
      %4185 = vrot.lane.b32.xlu0 %v1191, 116
      %v4186 = vpop.permute.xlu0 %4185
      %4187 = vrot.lane.b32.xlu0 %v1192, 116
      %v4188 = vpop.permute.xlu0 %4187
      %4189 = vrot.lane.b32.xlu0 %v1193, 116
      %v4190 = vpop.permute.xlu0 %4189
      %4191 = vrot.lane.b32.xlu0 %v1194, 116
      %v4192 = vpop.permute.xlu0 %4191
      %4193 = vrot.lane.b32.xlu0 %v1195, 116
      %v4194 = vpop.permute.xlu0 %4193
      %4195 = vrot.lane.b32.xlu0 %v1196, 116
      %v4196 = vpop.permute.xlu0 %4195
      %4197 = vrot.lane.b32.xlu0 %v1197, 116
      %v4198 = vpop.permute.xlu0 %4197
      %4199 = vrot.lane.b32.xlu0 %v1198, 116
      %v4200 = vpop.permute.xlu0 %4199
      %4201 = vrot.lane.b32.xlu0 %v1199, 116
      %v4202 = vpop.permute.xlu0 %4201
      %4203 = vrot.lane.b32.xlu0 %v1200, 116
      %v4204 = vpop.permute.xlu0 %4203
      %4205 = vrot.lane.b32.xlu0 %v1201, 116
      %v4206 = vpop.permute.xlu0 %4205
      %4207 = vrot.lane.b32.xlu0 %v1202, 116
      %v4208 = vpop.permute.xlu0 %4207
      %v4217 = vunpack.c.l.b16 %v4169
      %v4218 = vunpack.c.l.b16 %v4170
      %v4219 = vunpack.c.l.b16 %v4171
      %v4220 = vunpack.c.l.b16 %v4172
      %v4221 = vunpack.c.l.b16 %v4173
      %v4222 = vunpack.c.l.b16 %v4174
      %v4223 = vunpack.c.l.b16 %v4175
      %v4224 = vunpack.c.l.b16 %v4176
      %v4225 = vpack.c.b16 %v4218, %v4217
      %v4226 = vpack.c.b16 %v4220, %v4219
      %v4227 = vpack.c.b16 %v4222, %v4221
      %v4228 = vpack.c.b16 %v4224, %v4223
      %4229 = vrot.lane.b32.xlu0 %v4225, 116
      %v4230 = vpop.permute.xlu0 %4229
      %4231 = vrot.lane.b32.xlu0 %v4226, 116
      %v4232 = vpop.permute.xlu0 %4231
      %4233 = vrot.lane.b32.xlu0 %v4227, 116
      %v4234 = vpop.permute.xlu0 %4233
      %4235 = vrot.lane.b32.xlu0 %v4228, 116
      %v4236 = vpop.permute.xlu0 %4235
      %v4238 = vsel %vm1231, %v4178, 0
      %v4241 = vsel %vm1231, %v4180, 0
      %v4244 = vsel %vm1231, %v4182, 0
      %v4247 = vsel %vm1231, %v4184, 0
      %v4250 = vsel %vm1231, %v4186, 0
      %v4253 = vsel %vm1231, %v4188, 0
      %v4256 = vsel %vm1231, %v4190, 0
      %v4259 = vsel %vm1231, %v4192, 0
      %v4262 = vsel %vm1231, %v4194, 0
      %v4265 = vsel %vm1231, %v4196, 0
      %v4268 = vsel %vm1231, %v4198, 0
      %v4271 = vsel %vm1231, %v4200, 0
      %v4274 = vsel %vm1231, %v4202, 0
      %v4277 = vsel %vm1231, %v4204, 0
      %v4280 = vsel %vm1231, %v4206, 0
      %v4283 = vsel %vm1231, %v4208, 0
      %v4286 = vsel %vm1231, %v4230, 0
      %v4289 = vsel %vm1231, %v4232, 0
      %v4292 = vsel %vm1231, %v4234, 0
      %v4295 = vsel %vm1231, %v4236, 0
      %4297 = vmatprep.subr.bf16.mxu0 0
      %4298 = vmatpush1.bf16.xpose.msra.mxu0 0
      %4299 = vmatprep.subr.bf16.mxu0 0
      %4300 = vmatpush1.bf16.xpose.msra.mxu0 0
      %4301 = vmatprep.subr.bf16.mxu0 0
      %4302 = vmatpush1.bf16.xpose.msra.mxu0 0
      %4303 = vmatprep.subr.bf16.mxu0 0
      %4304 = vmatpush1.bf16.xpose.msra.mxu0 0
      %4305 = vmatprep.subr.bf16.mxu0 0
      %4306 = vmatpush1.bf16.xpose.msra.mxu0 %v4295
      %4307 = vmatprep.subr.bf16.mxu0 0
      %4308 = vmatpush1.bf16.xpose.msra.mxu0 %v4292
      %4309 = vmatprep.subr.bf16.mxu0 0
      %4310 = vmatpush1.bf16.xpose.msra.mxu0 %v4289
      %4311 = vmatprep.subr.bf16.mxu0 0
      %4312 = vmatpush1.bf16.xpose.msra.mxu0 %v4286
      %4313 = vmatprep.subr.bf16.mxu0 0
      %4314 = vmatpush2.bf16.xpose.msra.mxu0 0
      %4315 = vmatprep.subr.bf16.mxu0 0
      %4316 = vmatpush2.bf16.xpose.msra.mxu0 0
      %4317 = vmatprep.subr.bf16.mxu0 0
      %4318 = vmatpush2.bf16.xpose.msra.mxu0 0
      %4319 = vmatprep.subr.bf16.mxu0 0
      %4320 = vmatpush2.bf16.xpose.msra.mxu0 0
      %4321 = vmatprep.subr.bf16.mxu0 0
      %4322 = vmatpush2.bf16.xpose.msra.mxu0 0
      %4323 = vmatprep.subr.bf16.mxu0 0
      %4324 = vmatpush2.bf16.xpose.msra.mxu0 0
      %4325 = vmatprep.subr.bf16.mxu0 0
      %4326 = vmatpush2.bf16.xpose.msra.mxu0 0
      %4327 = vmatprep.subr.bf16.mxu0 0
      %4328 = vmatpush2.bf16.xpose.msra.mxu0 0
      %4329 = vmatprep.mubr.bf16.mxu0 0
      %4330 = vmatmul.mubr.bf16.gmra.mxu0 %v4238
      %v4331 = vpop.f32.mrf.mxu0
      %v4332 = vadd.f32 0.0, %v4331
      %v4333 = vpop.f32.mrf.mxu0
      %v4334 = vpop.f32.mrf.mxu0
      %v4335 = vadd.f32 0.0, %v4334
      %v4336 = vpop.f32.mrf.mxu0
      %4337 = vmatprep.mubr.bf16.mxu0 0
      %4338 = vmatmul.mubr.bf16.gmra.mxu0 %v4241
      %v4339 = vpop.f32.mrf.mxu0
      %v4340 = vadd.f32 0.0, %v4339
      %v4341 = vpop.f32.mrf.mxu0
      %v4342 = vpop.f32.mrf.mxu0
      %v4343 = vadd.f32 0.0, %v4342
      %v4344 = vpop.f32.mrf.mxu0
      %4345 = vmatprep.mubr.bf16.mxu0 0
      %4346 = vmatmul.mubr.bf16.gmra.mxu0 %v4244
      %v4347 = vpop.f32.mrf.mxu0
      %v4348 = vadd.f32 0.0, %v4347
      %v4349 = vpop.f32.mrf.mxu0
      %v4350 = vpop.f32.mrf.mxu0
      %v4351 = vadd.f32 0.0, %v4350
      %v4352 = vpop.f32.mrf.mxu0
      %4353 = vmatprep.mubr.bf16.mxu0 0
      %4354 = vmatmul.mubr.bf16.gmra.mxu0 %v4247
      %v4355 = vpop.f32.mrf.mxu0
      %v4356 = vadd.f32 0.0, %v4355
      %v4357 = vpop.f32.mrf.mxu0
      %v4358 = vpop.f32.mrf.mxu0
      %v4359 = vadd.f32 0.0, %v4358
      %v4360 = vpop.f32.mrf.mxu0
      %4361 = vmatprep.mubr.bf16.mxu0 0
      %4362 = vmatmul.mubr.bf16.gmra.mxu0 %v4250
      %v4363 = vpop.f32.mrf.mxu0
      %v4364 = vadd.f32 0.0, %v4363
      %v4365 = vpop.f32.mrf.mxu0
      %v4366 = vpop.f32.mrf.mxu0
      %v4367 = vadd.f32 0.0, %v4366
      %v4368 = vpop.f32.mrf.mxu0
      %4369 = vmatprep.mubr.bf16.mxu0 0
      %4370 = vmatmul.mubr.bf16.gmra.mxu0 %v4253
      %v4371 = vpop.f32.mrf.mxu0
      %v4372 = vadd.f32 0.0, %v4371
      %v4373 = vpop.f32.mrf.mxu0
      %v4374 = vpop.f32.mrf.mxu0
      %v4375 = vadd.f32 0.0, %v4374
      %v4376 = vpop.f32.mrf.mxu0
      %4377 = vmatprep.mubr.bf16.mxu0 0
      %4378 = vmatmul.mubr.bf16.gmra.mxu0 %v4256
      %v4379 = vpop.f32.mrf.mxu0
      %v4380 = vadd.f32 0.0, %v4379
      %v4381 = vpop.f32.mrf.mxu0
      %v4382 = vpop.f32.mrf.mxu0
      %v4383 = vadd.f32 0.0, %v4382
      %v4384 = vpop.f32.mrf.mxu0
      %4385 = vmatprep.mubr.bf16.mxu0 0
      %4386 = vmatmul.mubr.bf16.gmra.mxu0 %v4259
      %v4387 = vpop.f32.mrf.mxu0
      %v4388 = vadd.f32 0.0, %v4387
      %v4389 = vpop.f32.mrf.mxu0
      %v4390 = vpop.f32.mrf.mxu0
      %v4391 = vadd.f32 0.0, %v4390
      %v4392 = vpop.f32.mrf.mxu0
      %4393 = vmatprep.mubr.bf16.mxu0 0
      %4394 = vmatmul.mubr.bf16.gmra.mxu0 %v4262
      %v4395 = vpop.f32.mrf.mxu0
      %v4396 = vadd.f32 0.0, %v4395
      %v4397 = vpop.f32.mrf.mxu0
      %v4398 = vpop.f32.mrf.mxu0
      %v4399 = vadd.f32 0.0, %v4398
      %v4400 = vpop.f32.mrf.mxu0
      %4401 = vmatprep.mubr.bf16.mxu0 0
      %4402 = vmatmul.mubr.bf16.gmra.mxu0 %v4265
      %v4403 = vpop.f32.mrf.mxu0
      %v4404 = vadd.f32 0.0, %v4403
      %v4405 = vpop.f32.mrf.mxu0
      %v4406 = vpop.f32.mrf.mxu0
      %v4407 = vadd.f32 0.0, %v4406
      %v4408 = vpop.f32.mrf.mxu0
      %4409 = vmatprep.mubr.bf16.mxu0 0
      %4410 = vmatmul.mubr.bf16.gmra.mxu0 %v4268
      %v4411 = vpop.f32.mrf.mxu0
      %v4412 = vadd.f32 0.0, %v4411
      %v4413 = vpop.f32.mrf.mxu0
      %v4414 = vpop.f32.mrf.mxu0
      %v4415 = vadd.f32 0.0, %v4414
      %v4416 = vpop.f32.mrf.mxu0
      %4417 = vmatprep.mubr.bf16.mxu0 0
      %4418 = vmatmul.mubr.bf16.gmra.mxu0 %v4271
      %v4419 = vpop.f32.mrf.mxu0
      %v4420 = vadd.f32 0.0, %v4419
      %v4421 = vpop.f32.mrf.mxu0
      %v4422 = vpop.f32.mrf.mxu0
      %v4423 = vadd.f32 0.0, %v4422
      %v4424 = vpop.f32.mrf.mxu0
      %4425 = vmatprep.mubr.bf16.mxu0 0
      %4426 = vmatmul.mubr.bf16.gmra.mxu0 %v4274
      %v4427 = vpop.f32.mrf.mxu0
      %v4428 = vadd.f32 0.0, %v4427
      %v4429 = vpop.f32.mrf.mxu0
      %v4430 = vpop.f32.mrf.mxu0
      %v4431 = vadd.f32 0.0, %v4430
      %v4432 = vpop.f32.mrf.mxu0
      %4433 = vmatprep.mubr.bf16.mxu0 0
      %4434 = vmatmul.mubr.bf16.gmra.mxu0 %v4277
      %v4435 = vpop.f32.mrf.mxu0
      %v4436 = vadd.f32 0.0, %v4435
      %v4437 = vpop.f32.mrf.mxu0
      %v4438 = vpop.f32.mrf.mxu0
      %v4439 = vadd.f32 0.0, %v4438
      %v4440 = vpop.f32.mrf.mxu0
      %4441 = vmatprep.mubr.bf16.mxu0 0
      %4442 = vmatmul.mubr.bf16.gmra.mxu0 %v4280
      %v4443 = vpop.f32.mrf.mxu0
      %v4444 = vadd.f32 0.0, %v4443
      %v4445 = vpop.f32.mrf.mxu0
      %v4446 = vpop.f32.mrf.mxu0
      %v4447 = vadd.f32 0.0, %v4446
      %v4448 = vpop.f32.mrf.mxu0
      %4449 = vmatprep.mubr.bf16.mxu0 0
      %4450 = vmatmul.mubr.bf16.gmra.mxu0 %v4283
      %v4451 = vpop.f32.mrf.mxu0
      %v4452 = vadd.f32 0.0, %v4451
      %v4453 = vpop.f32.mrf.mxu0
      %v4454 = vpop.f32.mrf.mxu0
      %v4455 = vadd.f32 0.0, %v4454
      %v4456 = vpop.f32.mrf.mxu0
      %4457 = vdwg.mxu0
      %v4458 = vsel %vm1453, %v4332, -inf
      %4459 = vmax.xlane.f32.xlu0 %v4458
      %v4460 = vpop.xlane.xlu0 %4459
      %v4461 = vsel %vm1453, %v4335, -inf
      %4462 = vmax.xlane.f32.xlu0 %v4461
      %v4463 = vpop.xlane.xlu0 %4462
      %v4464 = vsel %vm1453, %v4340, -inf
      %4465 = vmax.xlane.f32.xlu0 %v4464
      %v4466 = vpop.xlane.xlu0 %4465
      %v4467 = vsel %vm1453, %v4343, -inf
      %4468 = vmax.xlane.f32.xlu0 %v4467
      %v4469 = vpop.xlane.xlu0 %4468
      %v4470 = vsel %vm1453, %v4348, -inf
      %4471 = vmax.xlane.f32.xlu0 %v4470
      %v4472 = vpop.xlane.xlu0 %4471
      %v4473 = vsel %vm1453, %v4351, -inf
      %4474 = vmax.xlane.f32.xlu0 %v4473
      %v4475 = vpop.xlane.xlu0 %4474
      %v4476 = vsel %vm1453, %v4356, -inf
      %4477 = vmax.xlane.f32.xlu0 %v4476
      %v4478 = vpop.xlane.xlu0 %4477
      %v4479 = vsel %vm1453, %v4359, -inf
      %4480 = vmax.xlane.f32.xlu0 %v4479
      %v4481 = vpop.xlane.xlu0 %4480
      %v4482 = vsel %vm1453, %v4364, -inf
      %4483 = vmax.xlane.f32.xlu0 %v4482
      %v4484 = vpop.xlane.xlu0 %4483
      %v4485 = vsel %vm1453, %v4367, -inf
      %4486 = vmax.xlane.f32.xlu0 %v4485
      %v4487 = vpop.xlane.xlu0 %4486
      %v4488 = vsel %vm1453, %v4372, -inf
      %4489 = vmax.xlane.f32.xlu0 %v4488
      %v4490 = vpop.xlane.xlu0 %4489
      %v4491 = vsel %vm1453, %v4375, -inf
      %4492 = vmax.xlane.f32.xlu0 %v4491
      %v4493 = vpop.xlane.xlu0 %4492
      %v4494 = vsel %vm1453, %v4380, -inf
      %4495 = vmax.xlane.f32.xlu0 %v4494
      %v4496 = vpop.xlane.xlu0 %4495
      %v4497 = vsel %vm1453, %v4383, -inf
      %4498 = vmax.xlane.f32.xlu0 %v4497
      %v4499 = vpop.xlane.xlu0 %4498
      %v4500 = vsel %vm1453, %v4388, -inf
      %4501 = vmax.xlane.f32.xlu0 %v4500
      %v4502 = vpop.xlane.xlu0 %4501
      %v4503 = vsel %vm1453, %v4391, -inf
      %4504 = vmax.xlane.f32.xlu0 %v4503
      %v4505 = vpop.xlane.xlu0 %4504
      %v4506 = vsel %vm1453, %v4396, -inf
      %4507 = vmax.xlane.f32.xlu0 %v4506
      %v4508 = vpop.xlane.xlu0 %4507
      %v4509 = vsel %vm1453, %v4399, -inf
      %4510 = vmax.xlane.f32.xlu0 %v4509
      %v4511 = vpop.xlane.xlu0 %4510
      %v4512 = vsel %vm1453, %v4404, -inf
      %4513 = vmax.xlane.f32.xlu0 %v4512
      %v4514 = vpop.xlane.xlu0 %4513
      %v4515 = vsel %vm1453, %v4407, -inf
      %4516 = vmax.xlane.f32.xlu0 %v4515
      %v4517 = vpop.xlane.xlu0 %4516
      %v4518 = vsel %vm1453, %v4412, -inf
      %4519 = vmax.xlane.f32.xlu0 %v4518
      %v4520 = vpop.xlane.xlu0 %4519
      %v4521 = vsel %vm1453, %v4415, -inf
      %4522 = vmax.xlane.f32.xlu0 %v4521
      %v4523 = vpop.xlane.xlu0 %4522
      %v4524 = vsel %vm1453, %v4420, -inf
      %4525 = vmax.xlane.f32.xlu0 %v4524
      %v4526 = vpop.xlane.xlu0 %4525
      %v4527 = vsel %vm1453, %v4423, -inf
      %4528 = vmax.xlane.f32.xlu0 %v4527
      %v4529 = vpop.xlane.xlu0 %4528
      %v4530 = vsel %vm1453, %v4428, -inf
      %4531 = vmax.xlane.f32.xlu0 %v4530
      %v4532 = vpop.xlane.xlu0 %4531
      %v4533 = vsel %vm1453, %v4431, -inf
      %4534 = vmax.xlane.f32.xlu0 %v4533
      %v4535 = vpop.xlane.xlu0 %4534
      %v4536 = vsel %vm1453, %v4436, -inf
      %4537 = vmax.xlane.f32.xlu0 %v4536
      %v4538 = vpop.xlane.xlu0 %4537
      %v4539 = vsel %vm1453, %v4439, -inf
      %4540 = vmax.xlane.f32.xlu0 %v4539
      %v4541 = vpop.xlane.xlu0 %4540
      %v4542 = vsel %vm1453, %v4444, -inf
      %4543 = vmax.xlane.f32.xlu0 %v4542
      %v4544 = vpop.xlane.xlu0 %4543
      %v4545 = vsel %vm1453, %v4447, -inf
      %4546 = vmax.xlane.f32.xlu0 %v4545
      %v4547 = vpop.xlane.xlu0 %4546
      %v4548 = vsel %vm1453, %v4452, -inf
      %4549 = vmax.xlane.f32.xlu0 %v4548
      %v4550 = vpop.xlane.xlu0 %4549
      %v4551 = vsel %vm1453, %v4455, -inf
      %4552 = vmax.xlane.f32.xlu0 %v4551
      %v4553 = vpop.xlane.xlu0 %4552
      %v4554 = vsub.f32 %v4332, %v4460
      %v4555 = vsub.f32 %v4335, %v4463
      %v4556 = vsub.f32 %v4340, %v4466
      %v4557 = vsub.f32 %v4343, %v4469
      %v4558 = vsub.f32 %v4348, %v4472
      %v4559 = vsub.f32 %v4351, %v4475
      %v4560 = vsub.f32 %v4356, %v4478
      %v4561 = vsub.f32 %v4359, %v4481
      %v4562 = vsub.f32 %v4364, %v4484
      %v4563 = vsub.f32 %v4367, %v4487
      %v4564 = vsub.f32 %v4372, %v4490
      %v4565 = vsub.f32 %v4375, %v4493
      %v4566 = vsub.f32 %v4380, %v4496
      %v4567 = vsub.f32 %v4383, %v4499
      %v4568 = vsub.f32 %v4388, %v4502
      %v4569 = vsub.f32 %v4391, %v4505
      %v4570 = vsub.f32 %v4396, %v4508
      %v4571 = vsub.f32 %v4399, %v4511
      %v4572 = vsub.f32 %v4404, %v4514
      %v4573 = vsub.f32 %v4407, %v4517
      %v4574 = vsub.f32 %v4412, %v4520
      %v4575 = vsub.f32 %v4415, %v4523
      %v4576 = vsub.f32 %v4420, %v4526
      %v4577 = vsub.f32 %v4423, %v4529
      %v4578 = vsub.f32 %v4428, %v4532
      %v4579 = vsub.f32 %v4431, %v4535
      %v4580 = vsub.f32 %v4436, %v4538
      %v4581 = vsub.f32 %v4439, %v4541
      %v4582 = vsub.f32 %v4444, %v4544
      %v4583 = vsub.f32 %v4447, %v4547
      %v4584 = vsub.f32 %v4452, %v4550
      %v4585 = vsub.f32 %v4455, %v4553
      %v4586 = vmul.f32 %v4554, 1.442695
      %v4587 = vpow.pop %v4586
      %v4588 = vmul.f32 %v4555, 1.442695
      %v4589 = vpow.pop %v4588
      %v4590 = vmul.f32 %v4556, 1.442695
      %v4591 = vpow.pop %v4590
      %v4592 = vmul.f32 %v4557, 1.442695
      %v4593 = vpow.pop %v4592
      %v4594 = vmul.f32 %v4558, 1.442695
      %v4595 = vpow.pop %v4594
      %v4596 = vmul.f32 %v4559, 1.442695
      %v4597 = vpow.pop %v4596
      %v4598 = vmul.f32 %v4560, 1.442695
      %v4599 = vpow.pop %v4598
      %v4600 = vmul.f32 %v4561, 1.442695
      %v4601 = vpow.pop %v4600
      %v4602 = vmul.f32 %v4562, 1.442695
      %v4603 = vpow.pop %v4602
      %v4604 = vmul.f32 %v4563, 1.442695
      %v4605 = vpow.pop %v4604
      %v4606 = vmul.f32 %v4564, 1.442695
      %v4607 = vpow.pop %v4606
      %v4608 = vmul.f32 %v4565, 1.442695
      %v4609 = vpow.pop %v4608
      %v4610 = vmul.f32 %v4566, 1.442695
      %v4611 = vpow.pop %v4610
      %v4612 = vmul.f32 %v4567, 1.442695
      %v4613 = vpow.pop %v4612
      %v4614 = vmul.f32 %v4568, 1.442695
      %v4615 = vpow.pop %v4614
      %v4616 = vmul.f32 %v4569, 1.442695
      %v4617 = vpow.pop %v4616
      %v4618 = vmul.f32 %v4570, 1.442695
      %v4619 = vpow.pop %v4618
      %v4620 = vmul.f32 %v4571, 1.442695
      %v4621 = vpow.pop %v4620
      %v4622 = vmul.f32 %v4572, 1.442695
      %v4623 = vpow.pop %v4622
      %v4624 = vmul.f32 %v4573, 1.442695
      %v4625 = vpow.pop %v4624
      %v4626 = vmul.f32 %v4574, 1.442695
      %v4627 = vpow.pop %v4626
      %v4628 = vmul.f32 %v4575, 1.442695
      %v4629 = vpow.pop %v4628
      %v4630 = vmul.f32 %v4576, 1.442695
      %v4631 = vpow.pop %v4630
      %v4632 = vmul.f32 %v4577, 1.442695
      %v4633 = vpow.pop %v4632
      %v4634 = vmul.f32 %v4578, 1.442695
      %v4635 = vpow.pop %v4634
      %v4636 = vmul.f32 %v4579, 1.442695
      %v4637 = vpow.pop %v4636
      %v4638 = vmul.f32 %v4580, 1.442695
      %v4639 = vpow.pop %v4638
      %v4640 = vmul.f32 %v4581, 1.442695
      %v4641 = vpow.pop %v4640
      %v4642 = vmul.f32 %v4582, 1.442695
      %v4643 = vpow.pop %v4642
      %v4644 = vmul.f32 %v4583, 1.442695
      %v4645 = vpow.pop %v4644
      %v4646 = vmul.f32 %v4584, 1.442695
      %v4647 = vpow.pop %v4646
      %v4648 = vmul.f32 %v4585, 1.442695
      %v4649 = vpow.pop %v4648
      %v4650 = vsel %vm1453, %v4587, 0.0
      %4651 = vadd.xlane.f32.xlu0 %v4650
      %v4652 = vpop.xlane.xlu0 %4651
      %v4653 = vsel %vm1453, %v4589, 0.0
      %4654 = vadd.xlane.f32.xlu0 %v4653
      %v4655 = vpop.xlane.xlu0 %4654
      %v4656 = vsel %vm1453, %v4591, 0.0
      %4657 = vadd.xlane.f32.xlu0 %v4656
      %v4658 = vpop.xlane.xlu0 %4657
      %v4659 = vsel %vm1453, %v4593, 0.0
      %4660 = vadd.xlane.f32.xlu0 %v4659
      %v4661 = vpop.xlane.xlu0 %4660
      %v4662 = vsel %vm1453, %v4595, 0.0
      %4663 = vadd.xlane.f32.xlu0 %v4662
      %v4664 = vpop.xlane.xlu0 %4663
      %v4665 = vsel %vm1453, %v4597, 0.0
      %4666 = vadd.xlane.f32.xlu0 %v4665
      %v4667 = vpop.xlane.xlu0 %4666
      %v4668 = vsel %vm1453, %v4599, 0.0
      %4669 = vadd.xlane.f32.xlu0 %v4668
      %v4670 = vpop.xlane.xlu0 %4669
      %v4671 = vsel %vm1453, %v4601, 0.0
      %4672 = vadd.xlane.f32.xlu0 %v4671
      %v4673 = vpop.xlane.xlu0 %4672
      %v4674 = vsel %vm1453, %v4603, 0.0
      %4675 = vadd.xlane.f32.xlu0 %v4674
      %v4676 = vpop.xlane.xlu0 %4675
      %v4677 = vsel %vm1453, %v4605, 0.0
      %4678 = vadd.xlane.f32.xlu0 %v4677
      %v4679 = vpop.xlane.xlu0 %4678
      %v4680 = vsel %vm1453, %v4607, 0.0
      %4681 = vadd.xlane.f32.xlu0 %v4680
      %v4682 = vpop.xlane.xlu0 %4681
      %v4683 = vsel %vm1453, %v4609, 0.0
      %4684 = vadd.xlane.f32.xlu0 %v4683
      %v4685 = vpop.xlane.xlu0 %4684
      %v4686 = vsel %vm1453, %v4611, 0.0
      %4687 = vadd.xlane.f32.xlu0 %v4686
      %v4688 = vpop.xlane.xlu0 %4687
      %v4689 = vsel %vm1453, %v4613, 0.0
      %4690 = vadd.xlane.f32.xlu0 %v4689
      %v4691 = vpop.xlane.xlu0 %4690
      %v4692 = vsel %vm1453, %v4615, 0.0
      %4693 = vadd.xlane.f32.xlu0 %v4692
      %v4694 = vpop.xlane.xlu0 %4693
      %v4695 = vsel %vm1453, %v4617, 0.0
      %4696 = vadd.xlane.f32.xlu0 %v4695
      %v4697 = vpop.xlane.xlu0 %4696
      %v4698 = vsel %vm1453, %v4619, 0.0
      %4699 = vadd.xlane.f32.xlu0 %v4698
      %v4700 = vpop.xlane.xlu0 %4699
      %v4701 = vsel %vm1453, %v4621, 0.0
      %4702 = vadd.xlane.f32.xlu0 %v4701
      %v4703 = vpop.xlane.xlu0 %4702
      %v4704 = vsel %vm1453, %v4623, 0.0
      %4705 = vadd.xlane.f32.xlu0 %v4704
      %v4706 = vpop.xlane.xlu0 %4705
      %v4707 = vsel %vm1453, %v4625, 0.0
      %4708 = vadd.xlane.f32.xlu0 %v4707
      %v4709 = vpop.xlane.xlu0 %4708
      %v4710 = vsel %vm1453, %v4627, 0.0
      %4711 = vadd.xlane.f32.xlu0 %v4710
      %v4712 = vpop.xlane.xlu0 %4711
      %v4713 = vsel %vm1453, %v4629, 0.0
      %4714 = vadd.xlane.f32.xlu0 %v4713
      %v4715 = vpop.xlane.xlu0 %4714
      %v4716 = vsel %vm1453, %v4631, 0.0
      %4717 = vadd.xlane.f32.xlu0 %v4716
      %v4718 = vpop.xlane.xlu0 %4717
      %v4719 = vsel %vm1453, %v4633, 0.0
      %4720 = vadd.xlane.f32.xlu0 %v4719
      %v4721 = vpop.xlane.xlu0 %4720
      %v4722 = vsel %vm1453, %v4635, 0.0
      %4723 = vadd.xlane.f32.xlu0 %v4722
      %v4724 = vpop.xlane.xlu0 %4723
      %v4725 = vsel %vm1453, %v4637, 0.0
      %4726 = vadd.xlane.f32.xlu0 %v4725
      %v4727 = vpop.xlane.xlu0 %4726
      %v4728 = vsel %vm1453, %v4639, 0.0
      %4729 = vadd.xlane.f32.xlu0 %v4728
      %v4730 = vpop.xlane.xlu0 %4729
      %v4731 = vsel %vm1453, %v4641, 0.0
      %4732 = vadd.xlane.f32.xlu0 %v4731
      %v4733 = vpop.xlane.xlu0 %4732
      %v4734 = vsel %vm1453, %v4643, 0.0
      %4735 = vadd.xlane.f32.xlu0 %v4734
      %v4736 = vpop.xlane.xlu0 %4735
      %v4737 = vsel %vm1453, %v4645, 0.0
      %4738 = vadd.xlane.f32.xlu0 %v4737
      %v4739 = vpop.xlane.xlu0 %4738
      %v4740 = vsel %vm1453, %v4647, 0.0
      %4741 = vadd.xlane.f32.xlu0 %v4740
      %v4742 = vpop.xlane.xlu0 %4741
      %v4743 = vsel %vm1453, %v4649, 0.0
      %4744 = vadd.xlane.f32.xlu0 %v4743
      %v4745 = vpop.xlane.xlu0 %4744
      %v4746 = vrcp.pop %v4652
      %v4747 = vrcp.pop %v4655
      %v4748 = vrcp.pop %v4658
      %v4749 = vrcp.pop %v4661
      %v4750 = vrcp.pop %v4664
      %v4751 = vrcp.pop %v4667
      %v4752 = vrcp.pop %v4670
      %v4753 = vrcp.pop %v4673
      %v4754 = vrcp.pop %v4676
      %v4755 = vrcp.pop %v4679
      %v4756 = vrcp.pop %v4682
      %v4757 = vrcp.pop %v4685
      %v4758 = vrcp.pop %v4688
      %v4759 = vrcp.pop %v4691
      %v4760 = vrcp.pop %v4694
      %v4761 = vrcp.pop %v4697
      %v4762 = vrcp.pop %v4700
      %v4763 = vrcp.pop %v4703
      %v4764 = vrcp.pop %v4706
      %v4765 = vrcp.pop %v4709
      %v4766 = vrcp.pop %v4712
      %v4767 = vrcp.pop %v4715
      %v4768 = vrcp.pop %v4718
      %v4769 = vrcp.pop %v4721
      %v4770 = vrcp.pop %v4724
      %v4771 = vrcp.pop %v4727
      %v4772 = vrcp.pop %v4730
      %v4773 = vrcp.pop %v4733
      %v4774 = vrcp.pop %v4736
      %v4775 = vrcp.pop %v4739
      %v4776 = vrcp.pop %v4742
      %v4777 = vrcp.pop %v4745
      %v4778 = vmul.f32 %v4587, %v4746
      %v4779 = vmul.f32 %v4589, %v4747
      %v4780 = vmul.f32 %v4591, %v4748
      %v4781 = vmul.f32 %v4593, %v4749
      %v4782 = vmul.f32 %v4595, %v4750
      %v4783 = vmul.f32 %v4597, %v4751
      %v4784 = vmul.f32 %v4599, %v4752
      %v4785 = vmul.f32 %v4601, %v4753
      %v4786 = vmul.f32 %v4603, %v4754
      %v4787 = vmul.f32 %v4605, %v4755
      %v4788 = vmul.f32 %v4607, %v4756
      %v4789 = vmul.f32 %v4609, %v4757
      %v4790 = vmul.f32 %v4611, %v4758
      %v4791 = vmul.f32 %v4613, %v4759
      %v4792 = vmul.f32 %v4615, %v4760
      %v4793 = vmul.f32 %v4617, %v4761
      %v4794 = vmul.f32 %v4619, %v4762
      %v4795 = vmul.f32 %v4621, %v4763
      %v4796 = vmul.f32 %v4623, %v4764
      %v4797 = vmul.f32 %v4625, %v4765
      %v4798 = vmul.f32 %v4627, %v4766
      %v4799 = vmul.f32 %v4629, %v4767
      %v4800 = vmul.f32 %v4631, %v4768
      %v4801 = vmul.f32 %v4633, %v4769
      %v4802 = vmul.f32 %v4635, %v4770
      %v4803 = vmul.f32 %v4637, %v4771
      %v4804 = vmul.f32 %v4639, %v4772
      %v4805 = vmul.f32 %v4641, %v4773
      %v4806 = vmul.f32 %v4643, %v4774
      %v4807 = vmul.f32 %v4645, %v4775
      %v4808 = vmul.f32 %v4647, %v4776
      %v4809 = vmul.f32 %v4649, %v4777
      %v4810 = vpack.c.bf16 %v4779, %v4778
      %v4811 = vpack.c.bf16 %v4781, %v4780
      %v4812 = vpack.c.bf16 %v4783, %v4782
      %v4813 = vpack.c.bf16 %v4785, %v4784
      %v4814 = vpack.c.bf16 %v4787, %v4786
      %v4815 = vpack.c.bf16 %v4789, %v4788
      %v4816 = vpack.c.bf16 %v4791, %v4790
      %v4817 = vpack.c.bf16 %v4793, %v4792
      %v4818 = vpack.c.bf16 %v4795, %v4794
      %v4819 = vpack.c.bf16 %v4797, %v4796
      %v4820 = vpack.c.bf16 %v4799, %v4798
      %v4821 = vpack.c.bf16 %v4801, %v4800
      %v4822 = vpack.c.bf16 %v4803, %v4802
      %v4823 = vpack.c.bf16 %v4805, %v4804
      %v4824 = vpack.c.bf16 %v4807, %v4806
      %v4825 = vpack.c.bf16 %v4809, %v4808
      %4826 = vrot.lane.b32.xlu0 %v4225, 84
      %v4827 = vpop.permute.xlu0 %4826
      %4828 = vrot.lane.b32.xlu0 %v4226, 84
      %v4829 = vpop.permute.xlu0 %4828
      %4830 = vrot.lane.b32.xlu0 %v4227, 84
      %v4831 = vpop.permute.xlu0 %4830
      %4832 = vrot.lane.b32.xlu0 %v4228, 84
      %v4833 = vpop.permute.xlu0 %4832
      %v4839 = vsel %vm1453, %v4810, 0
      %v4842 = vsel %vm1453, %v4811, 0
      %v4845 = vsel %vm1453, %v4812, 0
      %v4848 = vsel %vm1453, %v4813, 0
      %v4851 = vsel %vm1453, %v4814, 0
      %v4854 = vsel %vm1453, %v4815, 0
      %v4857 = vsel %vm1453, %v4816, 0
      %v4860 = vsel %vm1453, %v4817, 0
      %v4863 = vsel %vm1453, %v4818, 0
      %v4866 = vsel %vm1453, %v4819, 0
      %v4869 = vsel %vm1453, %v4820, 0
      %v4872 = vsel %vm1453, %v4821, 0
      %v4875 = vsel %vm1453, %v4822, 0
      %v4878 = vsel %vm1453, %v4823, 0
      %v4881 = vsel %vm1453, %v4824, 0
      %v4884 = vsel %vm1453, %v4825, 0
      %4886 = vmatprep.subr.bf16.mxu0 0
      %4887 = vmatpush1.bf16.msra.mxu0 0
      %4888 = vmatprep.subr.bf16.mxu0 0
      %4889 = vmatpush1.bf16.msra.mxu0 0
      %4890 = vmatprep.subr.bf16.mxu0 0
      %4891 = vmatpush1.bf16.msra.mxu0 0
      %4892 = vmatprep.subr.bf16.mxu0 0
      %4893 = vmatpush1.bf16.msra.mxu0 0
      %4894 = vmatprep.subr.bf16.mxu0 0
      %4895 = vmatpush1.bf16.msra.mxu0 %v4833
      %4896 = vmatprep.subr.bf16.mxu0 0
      %4897 = vmatpush1.bf16.msra.mxu0 %v4831
      %4898 = vmatprep.subr.bf16.mxu0 0
      %4899 = vmatpush1.bf16.msra.mxu0 %v4829
      %4900 = vmatprep.subr.bf16.mxu0 0
      %4901 = vmatpush1.bf16.msra.mxu0 %v4827
      %4902 = vmatprep.subr.bf16.mxu0 0
      %4903 = vmatpush2.bf16.msra.mxu0 0
      %4904 = vmatprep.subr.bf16.mxu0 0
      %4905 = vmatpush2.bf16.msra.mxu0 0
      %4906 = vmatprep.subr.bf16.mxu0 0
      %4907 = vmatpush2.bf16.msra.mxu0 0
      %4908 = vmatprep.subr.bf16.mxu0 0
      %4909 = vmatpush2.bf16.msra.mxu0 0
      %4910 = vmatprep.subr.bf16.mxu0 0
      %4911 = vmatpush2.bf16.msra.mxu0 0
      %4912 = vmatprep.subr.bf16.mxu0 0
      %4913 = vmatpush2.bf16.msra.mxu0 0
      %4914 = vmatprep.subr.bf16.mxu0 0
      %4915 = vmatpush2.bf16.msra.mxu0 0
      %4916 = vmatprep.subr.bf16.mxu0 0
      %4917 = vmatpush2.bf16.msra.mxu0 0
      %4918 = vmatprep.mubr.bf16.mxu0 0
      %4919 = vmatmul.mubr.bf16.gmra.mxu0 %v4839
      %v4920 = vpop.f32.mrf.mxu0
      %v4921 = vadd.f32 0.0, %v4920
      %v4922 = vpop.f32.mrf.mxu0
      %v4923 = vpop.f32.mrf.mxu0
      %v4924 = vadd.f32 0.0, %v4923
      %v4925 = vpop.f32.mrf.mxu0
      %4926 = vmatprep.mubr.bf16.mxu0 0
      %4927 = vmatmul.mubr.bf16.gmra.mxu0 %v4842
      %v4928 = vpop.f32.mrf.mxu0
      %v4929 = vadd.f32 0.0, %v4928
      %v4930 = vpop.f32.mrf.mxu0
      %v4931 = vpop.f32.mrf.mxu0
      %v4932 = vadd.f32 0.0, %v4931
      %v4933 = vpop.f32.mrf.mxu0
      %4934 = vmatprep.mubr.bf16.mxu0 0
      %4935 = vmatmul.mubr.bf16.gmra.mxu0 %v4845
      %v4936 = vpop.f32.mrf.mxu0
      %v4937 = vadd.f32 0.0, %v4936
      %v4938 = vpop.f32.mrf.mxu0
      %v4939 = vpop.f32.mrf.mxu0
      %v4940 = vadd.f32 0.0, %v4939
      %v4941 = vpop.f32.mrf.mxu0
      %4942 = vmatprep.mubr.bf16.mxu0 0
      %4943 = vmatmul.mubr.bf16.gmra.mxu0 %v4848
      %v4944 = vpop.f32.mrf.mxu0
      %v4945 = vadd.f32 0.0, %v4944
      %v4946 = vpop.f32.mrf.mxu0
      %v4947 = vpop.f32.mrf.mxu0
      %v4948 = vadd.f32 0.0, %v4947
      %v4949 = vpop.f32.mrf.mxu0
      %4950 = vmatprep.mubr.bf16.mxu0 0
      %4951 = vmatmul.mubr.bf16.gmra.mxu0 %v4851
      %v4952 = vpop.f32.mrf.mxu0
      %v4953 = vadd.f32 0.0, %v4952
      %v4954 = vpop.f32.mrf.mxu0
      %v4955 = vpop.f32.mrf.mxu0
      %v4956 = vadd.f32 0.0, %v4955
      %v4957 = vpop.f32.mrf.mxu0
      %4958 = vmatprep.mubr.bf16.mxu0 0
      %4959 = vmatmul.mubr.bf16.gmra.mxu0 %v4854
      %v4960 = vpop.f32.mrf.mxu0
      %v4961 = vadd.f32 0.0, %v4960
      %v4962 = vpop.f32.mrf.mxu0
      %v4963 = vpop.f32.mrf.mxu0
      %v4964 = vadd.f32 0.0, %v4963
      %v4965 = vpop.f32.mrf.mxu0
      %4966 = vmatprep.mubr.bf16.mxu0 0
      %4967 = vmatmul.mubr.bf16.gmra.mxu0 %v4857
      %v4968 = vpop.f32.mrf.mxu0
      %v4969 = vadd.f32 0.0, %v4968
      %v4970 = vpop.f32.mrf.mxu0
      %v4971 = vpop.f32.mrf.mxu0
      %v4972 = vadd.f32 0.0, %v4971
      %v4973 = vpop.f32.mrf.mxu0
      %4974 = vmatprep.mubr.bf16.mxu0 0
      %4975 = vmatmul.mubr.bf16.gmra.mxu0 %v4860
      %v4976 = vpop.f32.mrf.mxu0
      %v4977 = vadd.f32 0.0, %v4976
      %v4978 = vpop.f32.mrf.mxu0
      %v4979 = vpop.f32.mrf.mxu0
      %v4980 = vadd.f32 0.0, %v4979
      %v4981 = vpop.f32.mrf.mxu0
      %4982 = vmatprep.mubr.bf16.mxu0 0
      %4983 = vmatmul.mubr.bf16.gmra.mxu0 %v4863
      %v4984 = vpop.f32.mrf.mxu0
      %v4985 = vadd.f32 0.0, %v4984
      %v4986 = vpop.f32.mrf.mxu0
      %v4987 = vpop.f32.mrf.mxu0
      %v4988 = vadd.f32 0.0, %v4987
      %v4989 = vpop.f32.mrf.mxu0
      %4990 = vmatprep.mubr.bf16.mxu0 0
      %4991 = vmatmul.mubr.bf16.gmra.mxu0 %v4866
      %v4992 = vpop.f32.mrf.mxu0
      %v4993 = vadd.f32 0.0, %v4992
      %v4994 = vpop.f32.mrf.mxu0
      %v4995 = vpop.f32.mrf.mxu0
      %v4996 = vadd.f32 0.0, %v4995
      %v4997 = vpop.f32.mrf.mxu0
      %4998 = vmatprep.mubr.bf16.mxu0 0
      %4999 = vmatmul.mubr.bf16.gmra.mxu0 %v4869
      %v5000 = vpop.f32.mrf.mxu0
      %v5001 = vadd.f32 0.0, %v5000
      %v5002 = vpop.f32.mrf.mxu0
      %v5003 = vpop.f32.mrf.mxu0
      %v5004 = vadd.f32 0.0, %v5003
      %v5005 = vpop.f32.mrf.mxu0
      %5006 = vmatprep.mubr.bf16.mxu0 0
      %5007 = vmatmul.mubr.bf16.gmra.mxu0 %v4872
      %v5008 = vpop.f32.mrf.mxu0
      %v5009 = vadd.f32 0.0, %v5008
      %v5010 = vpop.f32.mrf.mxu0
      %v5011 = vpop.f32.mrf.mxu0
      %v5012 = vadd.f32 0.0, %v5011
      %v5013 = vpop.f32.mrf.mxu0
      %5014 = vmatprep.mubr.bf16.mxu0 0
      %5015 = vmatmul.mubr.bf16.gmra.mxu0 %v4875
      %v5016 = vpop.f32.mrf.mxu0
      %v5017 = vadd.f32 0.0, %v5016
      %v5018 = vpop.f32.mrf.mxu0
      %v5019 = vpop.f32.mrf.mxu0
      %v5020 = vadd.f32 0.0, %v5019
      %v5021 = vpop.f32.mrf.mxu0
      %5022 = vmatprep.mubr.bf16.mxu0 0
      %5023 = vmatmul.mubr.bf16.gmra.mxu0 %v4878
      %v5024 = vpop.f32.mrf.mxu0
      %v5025 = vadd.f32 0.0, %v5024
      %v5026 = vpop.f32.mrf.mxu0
      %v5027 = vpop.f32.mrf.mxu0
      %v5028 = vadd.f32 0.0, %v5027
      %v5029 = vpop.f32.mrf.mxu0
      %5030 = vmatprep.mubr.bf16.mxu0 0
      %5031 = vmatmul.mubr.bf16.gmra.mxu0 %v4881
      %v5032 = vpop.f32.mrf.mxu0
      %v5033 = vadd.f32 0.0, %v5032
      %v5034 = vpop.f32.mrf.mxu0
      %v5035 = vpop.f32.mrf.mxu0
      %v5036 = vadd.f32 0.0, %v5035
      %v5037 = vpop.f32.mrf.mxu0
      %5038 = vmatprep.mubr.bf16.mxu0 0
      %5039 = vmatmul.mubr.bf16.gmra.mxu0 %v4884
      %v5040 = vpop.f32.mrf.mxu0
      %v5041 = vadd.f32 0.0, %v5040
      %v5042 = vpop.f32.mrf.mxu0
      %v5043 = vpop.f32.mrf.mxu0
      %v5044 = vadd.f32 0.0, %v5043
      %v5045 = vpop.f32.mrf.mxu0
      %5046 = vdwg.mxu0
      %5079 = vrot.lane.b32.xlu0 %v4921, 12
      %v5080 = vpop.permute.xlu0 %5079
      %5081 = vrot.lane.b32.xlu0 %v4924, 12
      %v5082 = vpop.permute.xlu0 %5081
      %5083 = vrot.lane.b32.xlu0 %v4929, 12
      %v5084 = vpop.permute.xlu0 %5083
      %5085 = vrot.lane.b32.xlu0 %v4932, 12
      %v5086 = vpop.permute.xlu0 %5085
      %5087 = vrot.lane.b32.xlu0 %v4937, 12
      %v5088 = vpop.permute.xlu0 %5087
      %5089 = vrot.lane.b32.xlu0 %v4940, 12
      %v5090 = vpop.permute.xlu0 %5089
      %5091 = vrot.lane.b32.xlu0 %v4945, 12
      %v5092 = vpop.permute.xlu0 %5091
      %5093 = vrot.lane.b32.xlu0 %v4948, 12
      %v5094 = vpop.permute.xlu0 %5093
      %5095 = vrot.lane.b32.xlu0 %v4953, 12
      %v5096 = vpop.permute.xlu0 %5095
      %5097 = vrot.lane.b32.xlu0 %v4956, 12
      %v5098 = vpop.permute.xlu0 %5097
      %5099 = vrot.lane.b32.xlu0 %v4961, 12
      %v5100 = vpop.permute.xlu0 %5099
      %5101 = vrot.lane.b32.xlu0 %v4964, 12
      %v5102 = vpop.permute.xlu0 %5101
      %5103 = vrot.lane.b32.xlu0 %v4969, 12
      %v5104 = vpop.permute.xlu0 %5103
      %5105 = vrot.lane.b32.xlu0 %v4972, 12
      %v5106 = vpop.permute.xlu0 %5105
      %5107 = vrot.lane.b32.xlu0 %v4977, 12
      %v5108 = vpop.permute.xlu0 %5107
      %5109 = vrot.lane.b32.xlu0 %v4980, 12
      %v5110 = vpop.permute.xlu0 %5109
      %5111 = vrot.lane.b32.xlu0 %v4985, 12
      %v5112 = vpop.permute.xlu0 %5111
      %5113 = vrot.lane.b32.xlu0 %v4988, 12
      %v5114 = vpop.permute.xlu0 %5113
      %5115 = vrot.lane.b32.xlu0 %v4993, 12
      %v5116 = vpop.permute.xlu0 %5115
      %5117 = vrot.lane.b32.xlu0 %v4996, 12
      %v5118 = vpop.permute.xlu0 %5117
      %5119 = vrot.lane.b32.xlu0 %v5001, 12
      %v5120 = vpop.permute.xlu0 %5119
      %5121 = vrot.lane.b32.xlu0 %v5004, 12
      %v5122 = vpop.permute.xlu0 %5121
      %5123 = vrot.lane.b32.xlu0 %v5009, 12
      %v5124 = vpop.permute.xlu0 %5123
      %5125 = vrot.lane.b32.xlu0 %v5012, 12
      %v5126 = vpop.permute.xlu0 %5125
      %5127 = vrot.lane.b32.xlu0 %v5017, 12
      %v5128 = vpop.permute.xlu0 %5127
      %5129 = vrot.lane.b32.xlu0 %v5020, 12
      %v5130 = vpop.permute.xlu0 %5129
      %5131 = vrot.lane.b32.xlu0 %v5025, 12
      %v5132 = vpop.permute.xlu0 %5131
      %5133 = vrot.lane.b32.xlu0 %v5028, 12
      %v5134 = vpop.permute.xlu0 %5133
      %5135 = vrot.lane.b32.xlu0 %v5033, 12
      %v5136 = vpop.permute.xlu0 %5135
      %5137 = vrot.lane.b32.xlu0 %v5036, 12
      %v5138 = vpop.permute.xlu0 %5137
      %5139 = vrot.lane.b32.xlu0 %v5041, 12
      %v5140 = vpop.permute.xlu0 %5139
      %5141 = vrot.lane.b32.xlu0 %v5044, 12
      %v5142 = vpop.permute.xlu0 %5141
      %vm5175 = vcmask 130144
      %5176 = vst.msk [vmem:[#allocation3] sm:$0xff] %vm5175, %v5080
      %5177 = vst.msk [vmem:[#allocation3 + $0x8] sm:$0xff] %vm5175, %v5082
      %5178 = vst.msk [vmem:[#allocation3 + $0x10] sm:$0xff] %vm5175, %v5084
      %5179 = vst.msk [vmem:[#allocation3 + $0x18] sm:$0xff] %vm5175, %v5086
      %5180 = vst.msk [vmem:[#allocation3 + $0x20] sm:$0xff] %vm5175, %v5088
      %5181 = vst.msk [vmem:[#allocation3 + $0x28] sm:$0xff] %vm5175, %v5090
      %5182 = vst.msk [vmem:[#allocation3 + $0x30] sm:$0xff] %vm5175, %v5092
      %5183 = vst.msk [vmem:[#allocation3 + $0x38] sm:$0xff] %vm5175, %v5094
      %5184 = vst.msk [vmem:[#allocation3 + $0x40] sm:$0xff] %vm5175, %v5096
      %5185 = vst.msk [vmem:[#allocation3 + $0x48] sm:$0xff] %vm5175, %v5098
      %5186 = vst.msk [vmem:[#allocation3 + $0x50] sm:$0xff] %vm5175, %v5100
      %5187 = vst.msk [vmem:[#allocation3 + $0x58] sm:$0xff] %vm5175, %v5102
      %5188 = vst.msk [vmem:[#allocation3 + $0x60] sm:$0xff] %vm5175, %v5104
      %5189 = vst.msk [vmem:[#allocation3 + $0x68] sm:$0xff] %vm5175, %v5106
      %5190 = vst.msk [vmem:[#allocation3 + $0x70] sm:$0xff] %vm5175, %v5108
      %5191 = vst.msk [vmem:[#allocation3 + $0x78] sm:$0xff] %vm5175, %v5110
      %5192 = vst.msk [vmem:[#allocation3 + $0x80] sm:$0xff] %vm5175, %v5112
      %5193 = vst.msk [vmem:[#allocation3 + $0x88] sm:$0xff] %vm5175, %v5114
      %5194 = vst.msk [vmem:[#allocation3 + $0x90] sm:$0xff] %vm5175, %v5116
      %5195 = vst.msk [vmem:[#allocation3 + $0x98] sm:$0xff] %vm5175, %v5118
      %5196 = vst.msk [vmem:[#allocation3 + $0xa0] sm:$0xff] %vm5175, %v5120
      %5197 = vst.msk [vmem:[#allocation3 + $0xa8] sm:$0xff] %vm5175, %v5122
      %5198 = vst.msk [vmem:[#allocation3 + $0xb0] sm:$0xff] %vm5175, %v5124
      %5199 = vst.msk [vmem:[#allocation3 + $0xb8] sm:$0xff] %vm5175, %v5126
      %5200 = vst.msk [vmem:[#allocation3 + $0xc0] sm:$0xff] %vm5175, %v5128
      %5201 = vst.msk [vmem:[#allocation3 + $0xc8] sm:$0xff] %vm5175, %v5130
      %5202 = vst.msk [vmem:[#allocation3 + $0xd0] sm:$0xff] %vm5175, %v5132
      %5203 = vst.msk [vmem:[#allocation3 + $0xd8] sm:$0xff] %vm5175, %v5134
      %5204 = vst.msk [vmem:[#allocation3 + $0xe0] sm:$0xff] %vm5175, %v5136
      %5205 = vst.msk [vmem:[#allocation3 + $0xe8] sm:$0xff] %vm5175, %v5138
      %5206 = vst.msk [vmem:[#allocation3 + $0xf0] sm:$0xff] %vm5175, %v5140
      %5207 = vst.msk [vmem:[#allocation3 + $0xf8] sm:$0xff] %vm5175, %v5142
      %v5208 = vld [vmem:[#allocation2] sm:$0xf]
      %v5209 = vld [vmem:[#allocation2 + $0x4] sm:$0xf]
      %v5210 = vld [vmem:[#allocation2 + $0x8] sm:$0xf]
      %v5211 = vld [vmem:[#allocation2 + $0xc] sm:$0xf]
      %v5212 = vld [vmem:[#allocation2 + $0x10] sm:$0xf]
      %v5213 = vld [vmem:[#allocation2 + $0x14] sm:$0xf]
      %v5214 = vld [vmem:[#allocation2 + $0x18] sm:$0xf]
      %v5215 = vld [vmem:[#allocation2 + $0x1c] sm:$0xf]
      %5216 = vrot.lane.b32.xlu0 %v1187, 112
      %v5217 = vpop.permute.xlu0 %5216
      %5218 = vrot.lane.b32.xlu0 %v1188, 112
      %v5219 = vpop.permute.xlu0 %5218
      %5220 = vrot.lane.b32.xlu0 %v1189, 112
      %v5221 = vpop.permute.xlu0 %5220
      %5222 = vrot.lane.b32.xlu0 %v1190, 112
      %v5223 = vpop.permute.xlu0 %5222
      %5224 = vrot.lane.b32.xlu0 %v1191, 112
      %v5225 = vpop.permute.xlu0 %5224
      %5226 = vrot.lane.b32.xlu0 %v1192, 112
      %v5227 = vpop.permute.xlu0 %5226
      %5228 = vrot.lane.b32.xlu0 %v1193, 112
      %v5229 = vpop.permute.xlu0 %5228
      %5230 = vrot.lane.b32.xlu0 %v1194, 112
      %v5231 = vpop.permute.xlu0 %5230
      %5232 = vrot.lane.b32.xlu0 %v1195, 112
      %v5233 = vpop.permute.xlu0 %5232
      %5234 = vrot.lane.b32.xlu0 %v1196, 112
      %v5235 = vpop.permute.xlu0 %5234
      %5236 = vrot.lane.b32.xlu0 %v1197, 112
      %v5237 = vpop.permute.xlu0 %5236
      %5238 = vrot.lane.b32.xlu0 %v1198, 112
      %v5239 = vpop.permute.xlu0 %5238
      %5240 = vrot.lane.b32.xlu0 %v1199, 112
      %v5241 = vpop.permute.xlu0 %5240
      %5242 = vrot.lane.b32.xlu0 %v1200, 112
      %v5243 = vpop.permute.xlu0 %5242
      %5244 = vrot.lane.b32.xlu0 %v1201, 112
      %v5245 = vpop.permute.xlu0 %5244
      %5246 = vrot.lane.b32.xlu0 %v1202, 112
      %v5247 = vpop.permute.xlu0 %5246
      %v5256 = vunpack.c.l.b16 %v5208
      %v5257 = vunpack.c.l.b16 %v5209
      %v5258 = vunpack.c.l.b16 %v5210
      %v5259 = vunpack.c.l.b16 %v5211
      %v5260 = vunpack.c.l.b16 %v5212
      %v5261 = vunpack.c.l.b16 %v5213
      %v5262 = vunpack.c.l.b16 %v5214
      %v5263 = vunpack.c.l.b16 %v5215
      %v5264 = vpack.c.b16 %v5257, %v5256
      %v5265 = vpack.c.b16 %v5259, %v5258
      %v5266 = vpack.c.b16 %v5261, %v5260
      %v5267 = vpack.c.b16 %v5263, %v5262
      %5268 = vrot.lane.b32.xlu0 %v5264, 112
      %v5269 = vpop.permute.xlu0 %5268
      %5270 = vrot.lane.b32.xlu0 %v5265, 112
      %v5271 = vpop.permute.xlu0 %5270
      %5272 = vrot.lane.b32.xlu0 %v5266, 112
      %v5273 = vpop.permute.xlu0 %5272
      %5274 = vrot.lane.b32.xlu0 %v5267, 112
      %v5275 = vpop.permute.xlu0 %5274
      %v5277 = vsel %vm1231, %v5217, 0
      %v5280 = vsel %vm1231, %v5219, 0
      %v5283 = vsel %vm1231, %v5221, 0
      %v5286 = vsel %vm1231, %v5223, 0
      %v5289 = vsel %vm1231, %v5225, 0
      %v5292 = vsel %vm1231, %v5227, 0
      %v5295 = vsel %vm1231, %v5229, 0
      %v5298 = vsel %vm1231, %v5231, 0
      %v5301 = vsel %vm1231, %v5233, 0
      %v5304 = vsel %vm1231, %v5235, 0
      %v5307 = vsel %vm1231, %v5237, 0
      %v5310 = vsel %vm1231, %v5239, 0
      %v5313 = vsel %vm1231, %v5241, 0
      %v5316 = vsel %vm1231, %v5243, 0
      %v5319 = vsel %vm1231, %v5245, 0
      %v5322 = vsel %vm1231, %v5247, 0
      %v5325 = vsel %vm1231, %v5269, 0
      %v5328 = vsel %vm1231, %v5271, 0
      %v5331 = vsel %vm1231, %v5273, 0
      %v5334 = vsel %vm1231, %v5275, 0
      %5336 = vmatprep.subr.bf16.mxu0 0
      %5337 = vmatpush1.bf16.xpose.msra.mxu0 0
      %5338 = vmatprep.subr.bf16.mxu0 0
      %5339 = vmatpush1.bf16.xpose.msra.mxu0 0
      %5340 = vmatprep.subr.bf16.mxu0 0
      %5341 = vmatpush1.bf16.xpose.msra.mxu0 0
      %5342 = vmatprep.subr.bf16.mxu0 0
      %5343 = vmatpush1.bf16.xpose.msra.mxu0 0
      %5344 = vmatprep.subr.bf16.mxu0 0
      %5345 = vmatpush1.bf16.xpose.msra.mxu0 %v5334
      %5346 = vmatprep.subr.bf16.mxu0 0
      %5347 = vmatpush1.bf16.xpose.msra.mxu0 %v5331
      %5348 = vmatprep.subr.bf16.mxu0 0
      %5349 = vmatpush1.bf16.xpose.msra.mxu0 %v5328
      %5350 = vmatprep.subr.bf16.mxu0 0
      %5351 = vmatpush1.bf16.xpose.msra.mxu0 %v5325
      %5352 = vmatprep.subr.bf16.mxu0 0
      %5353 = vmatpush2.bf16.xpose.msra.mxu0 0
      %5354 = vmatprep.subr.bf16.mxu0 0
      %5355 = vmatpush2.bf16.xpose.msra.mxu0 0
      %5356 = vmatprep.subr.bf16.mxu0 0
      %5357 = vmatpush2.bf16.xpose.msra.mxu0 0
      %5358 = vmatprep.subr.bf16.mxu0 0
      %5359 = vmatpush2.bf16.xpose.msra.mxu0 0
      %5360 = vmatprep.subr.bf16.mxu0 0
      %5361 = vmatpush2.bf16.xpose.msra.mxu0 0
      %5362 = vmatprep.subr.bf16.mxu0 0
      %5363 = vmatpush2.bf16.xpose.msra.mxu0 0
      %5364 = vmatprep.subr.bf16.mxu0 0
      %5365 = vmatpush2.bf16.xpose.msra.mxu0 0
      %5366 = vmatprep.subr.bf16.mxu0 0
      %5367 = vmatpush2.bf16.xpose.msra.mxu0 0
      %5368 = vmatprep.mubr.bf16.mxu0 0
      %5369 = vmatmul.mubr.bf16.gmra.mxu0 %v5277
      %v5370 = vpop.f32.mrf.mxu0
      %v5371 = vadd.f32 0.0, %v5370
      %v5372 = vpop.f32.mrf.mxu0
      %v5373 = vpop.f32.mrf.mxu0
      %v5374 = vadd.f32 0.0, %v5373
      %v5375 = vpop.f32.mrf.mxu0
      %5376 = vmatprep.mubr.bf16.mxu0 0
      %5377 = vmatmul.mubr.bf16.gmra.mxu0 %v5280
      %v5378 = vpop.f32.mrf.mxu0
      %v5379 = vadd.f32 0.0, %v5378
      %v5380 = vpop.f32.mrf.mxu0
      %v5381 = vpop.f32.mrf.mxu0
      %v5382 = vadd.f32 0.0, %v5381
      %v5383 = vpop.f32.mrf.mxu0
      %5384 = vmatprep.mubr.bf16.mxu0 0
      %5385 = vmatmul.mubr.bf16.gmra.mxu0 %v5283
      %v5386 = vpop.f32.mrf.mxu0
      %v5387 = vadd.f32 0.0, %v5386
      %v5388 = vpop.f32.mrf.mxu0
      %v5389 = vpop.f32.mrf.mxu0
      %v5390 = vadd.f32 0.0, %v5389
      %v5391 = vpop.f32.mrf.mxu0
      %5392 = vmatprep.mubr.bf16.mxu0 0
      %5393 = vmatmul.mubr.bf16.gmra.mxu0 %v5286
      %v5394 = vpop.f32.mrf.mxu0
      %v5395 = vadd.f32 0.0, %v5394
      %v5396 = vpop.f32.mrf.mxu0
      %v5397 = vpop.f32.mrf.mxu0
      %v5398 = vadd.f32 0.0, %v5397
      %v5399 = vpop.f32.mrf.mxu0
      %5400 = vmatprep.mubr.bf16.mxu0 0
      %5401 = vmatmul.mubr.bf16.gmra.mxu0 %v5289
      %v5402 = vpop.f32.mrf.mxu0
      %v5403 = vadd.f32 0.0, %v5402
      %v5404 = vpop.f32.mrf.mxu0
      %v5405 = vpop.f32.mrf.mxu0
      %v5406 = vadd.f32 0.0, %v5405
      %v5407 = vpop.f32.mrf.mxu0
      %5408 = vmatprep.mubr.bf16.mxu0 0
      %5409 = vmatmul.mubr.bf16.gmra.mxu0 %v5292
      %v5410 = vpop.f32.mrf.mxu0
      %v5411 = vadd.f32 0.0, %v5410
      %v5412 = vpop.f32.mrf.mxu0
      %v5413 = vpop.f32.mrf.mxu0
      %v5414 = vadd.f32 0.0, %v5413
      %v5415 = vpop.f32.mrf.mxu0
      %5416 = vmatprep.mubr.bf16.mxu0 0
      %5417 = vmatmul.mubr.bf16.gmra.mxu0 %v5295
      %v5418 = vpop.f32.mrf.mxu0
      %v5419 = vadd.f32 0.0, %v5418
      %v5420 = vpop.f32.mrf.mxu0
      %v5421 = vpop.f32.mrf.mxu0
      %v5422 = vadd.f32 0.0, %v5421
      %v5423 = vpop.f32.mrf.mxu0
      %5424 = vmatprep.mubr.bf16.mxu0 0
      %5425 = vmatmul.mubr.bf16.gmra.mxu0 %v5298
      %v5426 = vpop.f32.mrf.mxu0
      %v5427 = vadd.f32 0.0, %v5426
      %v5428 = vpop.f32.mrf.mxu0
      %v5429 = vpop.f32.mrf.mxu0
      %v5430 = vadd.f32 0.0, %v5429
      %v5431 = vpop.f32.mrf.mxu0
      %5432 = vmatprep.mubr.bf16.mxu0 0
      %5433 = vmatmul.mubr.bf16.gmra.mxu0 %v5301
      %v5434 = vpop.f32.mrf.mxu0
      %v5435 = vadd.f32 0.0, %v5434
      %v5436 = vpop.f32.mrf.mxu0
      %v5437 = vpop.f32.mrf.mxu0
      %v5438 = vadd.f32 0.0, %v5437
      %v5439 = vpop.f32.mrf.mxu0
      %5440 = vmatprep.mubr.bf16.mxu0 0
      %5441 = vmatmul.mubr.bf16.gmra.mxu0 %v5304
      %v5442 = vpop.f32.mrf.mxu0
      %v5443 = vadd.f32 0.0, %v5442
      %v5444 = vpop.f32.mrf.mxu0
      %v5445 = vpop.f32.mrf.mxu0
      %v5446 = vadd.f32 0.0, %v5445
      %v5447 = vpop.f32.mrf.mxu0
      %5448 = vmatprep.mubr.bf16.mxu0 0
      %5449 = vmatmul.mubr.bf16.gmra.mxu0 %v5307
      %v5450 = vpop.f32.mrf.mxu0
      %v5451 = vadd.f32 0.0, %v5450
      %v5452 = vpop.f32.mrf.mxu0
      %v5453 = vpop.f32.mrf.mxu0
      %v5454 = vadd.f32 0.0, %v5453
      %v5455 = vpop.f32.mrf.mxu0
      %5456 = vmatprep.mubr.bf16.mxu0 0
      %5457 = vmatmul.mubr.bf16.gmra.mxu0 %v5310
      %v5458 = vpop.f32.mrf.mxu0
      %v5459 = vadd.f32 0.0, %v5458
      %v5460 = vpop.f32.mrf.mxu0
      %v5461 = vpop.f32.mrf.mxu0
      %v5462 = vadd.f32 0.0, %v5461
      %v5463 = vpop.f32.mrf.mxu0
      %5464 = vmatprep.mubr.bf16.mxu0 0
      %5465 = vmatmul.mubr.bf16.gmra.mxu0 %v5313
      %v5466 = vpop.f32.mrf.mxu0
      %v5467 = vadd.f32 0.0, %v5466
      %v5468 = vpop.f32.mrf.mxu0
      %v5469 = vpop.f32.mrf.mxu0
      %v5470 = vadd.f32 0.0, %v5469
      %v5471 = vpop.f32.mrf.mxu0
      %5472 = vmatprep.mubr.bf16.mxu0 0
      %5473 = vmatmul.mubr.bf16.gmra.mxu0 %v5316
      %v5474 = vpop.f32.mrf.mxu0
      %v5475 = vadd.f32 0.0, %v5474
      %v5476 = vpop.f32.mrf.mxu0
      %v5477 = vpop.f32.mrf.mxu0
      %v5478 = vadd.f32 0.0, %v5477
      %v5479 = vpop.f32.mrf.mxu0
      %5480 = vmatprep.mubr.bf16.mxu0 0
      %5481 = vmatmul.mubr.bf16.gmra.mxu0 %v5319
      %v5482 = vpop.f32.mrf.mxu0
      %v5483 = vadd.f32 0.0, %v5482
      %v5484 = vpop.f32.mrf.mxu0
      %v5485 = vpop.f32.mrf.mxu0
      %v5486 = vadd.f32 0.0, %v5485
      %v5487 = vpop.f32.mrf.mxu0
      %5488 = vmatprep.mubr.bf16.mxu0 0
      %5489 = vmatmul.mubr.bf16.gmra.mxu0 %v5322
      %v5490 = vpop.f32.mrf.mxu0
      %v5491 = vadd.f32 0.0, %v5490
      %v5492 = vpop.f32.mrf.mxu0
      %v5493 = vpop.f32.mrf.mxu0
      %v5494 = vadd.f32 0.0, %v5493
      %v5495 = vpop.f32.mrf.mxu0
      %5496 = vdwg.mxu0
      %v5497 = vsel %vm1453, %v5371, -inf
      %5498 = vmax.xlane.f32.xlu0 %v5497
      %v5499 = vpop.xlane.xlu0 %5498
      %v5500 = vsel %vm1453, %v5374, -inf
      %5501 = vmax.xlane.f32.xlu0 %v5500
      %v5502 = vpop.xlane.xlu0 %5501
      %v5503 = vsel %vm1453, %v5379, -inf
      %5504 = vmax.xlane.f32.xlu0 %v5503
      %v5505 = vpop.xlane.xlu0 %5504
      %v5506 = vsel %vm1453, %v5382, -inf
      %5507 = vmax.xlane.f32.xlu0 %v5506
      %v5508 = vpop.xlane.xlu0 %5507
      %v5509 = vsel %vm1453, %v5387, -inf
      %5510 = vmax.xlane.f32.xlu0 %v5509
      %v5511 = vpop.xlane.xlu0 %5510
      %v5512 = vsel %vm1453, %v5390, -inf
      %5513 = vmax.xlane.f32.xlu0 %v5512
      %v5514 = vpop.xlane.xlu0 %5513
      %v5515 = vsel %vm1453, %v5395, -inf
      %5516 = vmax.xlane.f32.xlu0 %v5515
      %v5517 = vpop.xlane.xlu0 %5516
      %v5518 = vsel %vm1453, %v5398, -inf
      %5519 = vmax.xlane.f32.xlu0 %v5518
      %v5520 = vpop.xlane.xlu0 %5519
      %v5521 = vsel %vm1453, %v5403, -inf
      %5522 = vmax.xlane.f32.xlu0 %v5521
      %v5523 = vpop.xlane.xlu0 %5522
      %v5524 = vsel %vm1453, %v5406, -inf
      %5525 = vmax.xlane.f32.xlu0 %v5524
      %v5526 = vpop.xlane.xlu0 %5525
      %v5527 = vsel %vm1453, %v5411, -inf
      %5528 = vmax.xlane.f32.xlu0 %v5527
      %v5529 = vpop.xlane.xlu0 %5528
      %v5530 = vsel %vm1453, %v5414, -inf
      %5531 = vmax.xlane.f32.xlu0 %v5530
      %v5532 = vpop.xlane.xlu0 %5531
      %v5533 = vsel %vm1453, %v5419, -inf
      %5534 = vmax.xlane.f32.xlu0 %v5533
      %v5535 = vpop.xlane.xlu0 %5534
      %v5536 = vsel %vm1453, %v5422, -inf
      %5537 = vmax.xlane.f32.xlu0 %v5536
      %v5538 = vpop.xlane.xlu0 %5537
      %v5539 = vsel %vm1453, %v5427, -inf
      %5540 = vmax.xlane.f32.xlu0 %v5539
      %v5541 = vpop.xlane.xlu0 %5540
      %v5542 = vsel %vm1453, %v5430, -inf
      %5543 = vmax.xlane.f32.xlu0 %v5542
      %v5544 = vpop.xlane.xlu0 %5543
      %v5545 = vsel %vm1453, %v5435, -inf
      %5546 = vmax.xlane.f32.xlu0 %v5545
      %v5547 = vpop.xlane.xlu0 %5546
      %v5548 = vsel %vm1453, %v5438, -inf
      %5549 = vmax.xlane.f32.xlu0 %v5548
      %v5550 = vpop.xlane.xlu0 %5549
      %v5551 = vsel %vm1453, %v5443, -inf
      %5552 = vmax.xlane.f32.xlu0 %v5551
      %v5553 = vpop.xlane.xlu0 %5552
      %v5554 = vsel %vm1453, %v5446, -inf
      %5555 = vmax.xlane.f32.xlu0 %v5554
      %v5556 = vpop.xlane.xlu0 %5555
      %v5557 = vsel %vm1453, %v5451, -inf
      %5558 = vmax.xlane.f32.xlu0 %v5557
      %v5559 = vpop.xlane.xlu0 %5558
      %v5560 = vsel %vm1453, %v5454, -inf
      %5561 = vmax.xlane.f32.xlu0 %v5560
      %v5562 = vpop.xlane.xlu0 %5561
      %v5563 = vsel %vm1453, %v5459, -inf
      %5564 = vmax.xlane.f32.xlu0 %v5563
      %v5565 = vpop.xlane.xlu0 %5564
      %v5566 = vsel %vm1453, %v5462, -inf
      %5567 = vmax.xlane.f32.xlu0 %v5566
      %v5568 = vpop.xlane.xlu0 %5567
      %v5569 = vsel %vm1453, %v5467, -inf
      %5570 = vmax.xlane.f32.xlu0 %v5569
      %v5571 = vpop.xlane.xlu0 %5570
      %v5572 = vsel %vm1453, %v5470, -inf
      %5573 = vmax.xlane.f32.xlu0 %v5572
      %v5574 = vpop.xlane.xlu0 %5573
      %v5575 = vsel %vm1453, %v5475, -inf
      %5576 = vmax.xlane.f32.xlu0 %v5575
      %v5577 = vpop.xlane.xlu0 %5576
      %v5578 = vsel %vm1453, %v5478, -inf
      %5579 = vmax.xlane.f32.xlu0 %v5578
      %v5580 = vpop.xlane.xlu0 %5579
      %v5581 = vsel %vm1453, %v5483, -inf
      %5582 = vmax.xlane.f32.xlu0 %v5581
      %v5583 = vpop.xlane.xlu0 %5582
      %v5584 = vsel %vm1453, %v5486, -inf
      %5585 = vmax.xlane.f32.xlu0 %v5584
      %v5586 = vpop.xlane.xlu0 %5585
      %v5587 = vsel %vm1453, %v5491, -inf
      %5588 = vmax.xlane.f32.xlu0 %v5587
      %v5589 = vpop.xlane.xlu0 %5588
      %v5590 = vsel %vm1453, %v5494, -inf
      %5591 = vmax.xlane.f32.xlu0 %v5590
      %v5592 = vpop.xlane.xlu0 %5591
      %v5593 = vsub.f32 %v5371, %v5499
      %v5594 = vsub.f32 %v5374, %v5502
      %v5595 = vsub.f32 %v5379, %v5505
      %v5596 = vsub.f32 %v5382, %v5508
      %v5597 = vsub.f32 %v5387, %v5511
      %v5598 = vsub.f32 %v5390, %v5514
      %v5599 = vsub.f32 %v5395, %v5517
      %v5600 = vsub.f32 %v5398, %v5520
      %v5601 = vsub.f32 %v5403, %v5523
      %v5602 = vsub.f32 %v5406, %v5526
      %v5603 = vsub.f32 %v5411, %v5529
      %v5604 = vsub.f32 %v5414, %v5532
      %v5605 = vsub.f32 %v5419, %v5535
      %v5606 = vsub.f32 %v5422, %v5538
      %v5607 = vsub.f32 %v5427, %v5541
      %v5608 = vsub.f32 %v5430, %v5544
      %v5609 = vsub.f32 %v5435, %v5547
      %v5610 = vsub.f32 %v5438, %v5550
      %v5611 = vsub.f32 %v5443, %v5553
      %v5612 = vsub.f32 %v5446, %v5556
      %v5613 = vsub.f32 %v5451, %v5559
      %v5614 = vsub.f32 %v5454, %v5562
      %v5615 = vsub.f32 %v5459, %v5565
      %v5616 = vsub.f32 %v5462, %v5568
      %v5617 = vsub.f32 %v5467, %v5571
      %v5618 = vsub.f32 %v5470, %v5574
      %v5619 = vsub.f32 %v5475, %v5577
      %v5620 = vsub.f32 %v5478, %v5580
      %v5621 = vsub.f32 %v5483, %v5583
      %v5622 = vsub.f32 %v5486, %v5586
      %v5623 = vsub.f32 %v5491, %v5589
      %v5624 = vsub.f32 %v5494, %v5592
      %v5625 = vmul.f32 %v5593, 1.442695
      %v5626 = vpow.pop %v5625
      %v5627 = vmul.f32 %v5594, 1.442695
      %v5628 = vpow.pop %v5627
      %v5629 = vmul.f32 %v5595, 1.442695
      %v5630 = vpow.pop %v5629
      %v5631 = vmul.f32 %v5596, 1.442695
      %v5632 = vpow.pop %v5631
      %v5633 = vmul.f32 %v5597, 1.442695
      %v5634 = vpow.pop %v5633
      %v5635 = vmul.f32 %v5598, 1.442695
      %v5636 = vpow.pop %v5635
      %v5637 = vmul.f32 %v5599, 1.442695
      %v5638 = vpow.pop %v5637
      %v5639 = vmul.f32 %v5600, 1.442695
      %v5640 = vpow.pop %v5639
      %v5641 = vmul.f32 %v5601, 1.442695
      %v5642 = vpow.pop %v5641
      %v5643 = vmul.f32 %v5602, 1.442695
      %v5644 = vpow.pop %v5643
      %v5645 = vmul.f32 %v5603, 1.442695
      %v5646 = vpow.pop %v5645
      %v5647 = vmul.f32 %v5604, 1.442695
      %v5648 = vpow.pop %v5647
      %v5649 = vmul.f32 %v5605, 1.442695
      %v5650 = vpow.pop %v5649
      %v5651 = vmul.f32 %v5606, 1.442695
      %v5652 = vpow.pop %v5651
      %v5653 = vmul.f32 %v5607, 1.442695
      %v5654 = vpow.pop %v5653
      %v5655 = vmul.f32 %v5608, 1.442695
      %v5656 = vpow.pop %v5655
      %v5657 = vmul.f32 %v5609, 1.442695
      %v5658 = vpow.pop %v5657
      %v5659 = vmul.f32 %v5610, 1.442695
      %v5660 = vpow.pop %v5659
      %v5661 = vmul.f32 %v5611, 1.442695
      %v5662 = vpow.pop %v5661
      %v5663 = vmul.f32 %v5612, 1.442695
      %v5664 = vpow.pop %v5663
      %v5665 = vmul.f32 %v5613, 1.442695
      %v5666 = vpow.pop %v5665
      %v5667 = vmul.f32 %v5614, 1.442695
      %v5668 = vpow.pop %v5667
      %v5669 = vmul.f32 %v5615, 1.442695
      %v5670 = vpow.pop %v5669
      %v5671 = vmul.f32 %v5616, 1.442695
      %v5672 = vpow.pop %v5671
      %v5673 = vmul.f32 %v5617, 1.442695
      %v5674 = vpow.pop %v5673
      %v5675 = vmul.f32 %v5618, 1.442695
      %v5676 = vpow.pop %v5675
      %v5677 = vmul.f32 %v5619, 1.442695
      %v5678 = vpow.pop %v5677
      %v5679 = vmul.f32 %v5620, 1.442695
      %v5680 = vpow.pop %v5679
      %v5681 = vmul.f32 %v5621, 1.442695
      %v5682 = vpow.pop %v5681
      %v5683 = vmul.f32 %v5622, 1.442695
      %v5684 = vpow.pop %v5683
      %v5685 = vmul.f32 %v5623, 1.442695
      %v5686 = vpow.pop %v5685
      %v5687 = vmul.f32 %v5624, 1.442695
      %v5688 = vpow.pop %v5687
      %v5689 = vsel %vm1453, %v5626, 0.0
      %5690 = vadd.xlane.f32.xlu0 %v5689
      %v5691 = vpop.xlane.xlu0 %5690
      %v5692 = vsel %vm1453, %v5628, 0.0
      %5693 = vadd.xlane.f32.xlu0 %v5692
      %v5694 = vpop.xlane.xlu0 %5693
      %v5695 = vsel %vm1453, %v5630, 0.0
      %5696 = vadd.xlane.f32.xlu0 %v5695
      %v5697 = vpop.xlane.xlu0 %5696
      %v5698 = vsel %vm1453, %v5632, 0.0
      %5699 = vadd.xlane.f32.xlu0 %v5698
      %v5700 = vpop.xlane.xlu0 %5699
      %v5701 = vsel %vm1453, %v5634, 0.0
      %5702 = vadd.xlane.f32.xlu0 %v5701
      %v5703 = vpop.xlane.xlu0 %5702
      %v5704 = vsel %vm1453, %v5636, 0.0
      %5705 = vadd.xlane.f32.xlu0 %v5704
      %v5706 = vpop.xlane.xlu0 %5705
      %v5707 = vsel %vm1453, %v5638, 0.0
      %5708 = vadd.xlane.f32.xlu0 %v5707
      %v5709 = vpop.xlane.xlu0 %5708
      %v5710 = vsel %vm1453, %v5640, 0.0
      %5711 = vadd.xlane.f32.xlu0 %v5710
      %v5712 = vpop.xlane.xlu0 %5711
      %v5713 = vsel %vm1453, %v5642, 0.0
      %5714 = vadd.xlane.f32.xlu0 %v5713
      %v5715 = vpop.xlane.xlu0 %5714
      %v5716 = vsel %vm1453, %v5644, 0.0
      %5717 = vadd.xlane.f32.xlu0 %v5716
      %v5718 = vpop.xlane.xlu0 %5717
      %v5719 = vsel %vm1453, %v5646, 0.0
      %5720 = vadd.xlane.f32.xlu0 %v5719
      %v5721 = vpop.xlane.xlu0 %5720
      %v5722 = vsel %vm1453, %v5648, 0.0
      %5723 = vadd.xlane.f32.xlu0 %v5722
      %v5724 = vpop.xlane.xlu0 %5723
      %v5725 = vsel %vm1453, %v5650, 0.0
      %5726 = vadd.xlane.f32.xlu0 %v5725
      %v5727 = vpop.xlane.xlu0 %5726
      %v5728 = vsel %vm1453, %v5652, 0.0
      %5729 = vadd.xlane.f32.xlu0 %v5728
      %v5730 = vpop.xlane.xlu0 %5729
      %v5731 = vsel %vm1453, %v5654, 0.0
      %5732 = vadd.xlane.f32.xlu0 %v5731
      %v5733 = vpop.xlane.xlu0 %5732
      %v5734 = vsel %vm1453, %v5656, 0.0
      %5735 = vadd.xlane.f32.xlu0 %v5734
      %v5736 = vpop.xlane.xlu0 %5735
      %v5737 = vsel %vm1453, %v5658, 0.0
      %5738 = vadd.xlane.f32.xlu0 %v5737
      %v5739 = vpop.xlane.xlu0 %5738
      %v5740 = vsel %vm1453, %v5660, 0.0
      %5741 = vadd.xlane.f32.xlu0 %v5740
      %v5742 = vpop.xlane.xlu0 %5741
      %v5743 = vsel %vm1453, %v5662, 0.0
      %5744 = vadd.xlane.f32.xlu0 %v5743
      %v5745 = vpop.xlane.xlu0 %5744
      %v5746 = vsel %vm1453, %v5664, 0.0
      %5747 = vadd.xlane.f32.xlu0 %v5746
      %v5748 = vpop.xlane.xlu0 %5747
      %v5749 = vsel %vm1453, %v5666, 0.0
      %5750 = vadd.xlane.f32.xlu0 %v5749
      %v5751 = vpop.xlane.xlu0 %5750
      %v5752 = vsel %vm1453, %v5668, 0.0
      %5753 = vadd.xlane.f32.xlu0 %v5752
      %v5754 = vpop.xlane.xlu0 %5753
      %v5755 = vsel %vm1453, %v5670, 0.0
      %5756 = vadd.xlane.f32.xlu0 %v5755
      %v5757 = vpop.xlane.xlu0 %5756
      %v5758 = vsel %vm1453, %v5672, 0.0
      %5759 = vadd.xlane.f32.xlu0 %v5758
      %v5760 = vpop.xlane.xlu0 %5759
      %v5761 = vsel %vm1453, %v5674, 0.0
      %5762 = vadd.xlane.f32.xlu0 %v5761
      %v5763 = vpop.xlane.xlu0 %5762
      %v5764 = vsel %vm1453, %v5676, 0.0
      %5765 = vadd.xlane.f32.xlu0 %v5764
      %v5766 = vpop.xlane.xlu0 %5765
      %v5767 = vsel %vm1453, %v5678, 0.0
      %5768 = vadd.xlane.f32.xlu0 %v5767
      %v5769 = vpop.xlane.xlu0 %5768
      %v5770 = vsel %vm1453, %v5680, 0.0
      %5771 = vadd.xlane.f32.xlu0 %v5770
      %v5772 = vpop.xlane.xlu0 %5771
      %v5773 = vsel %vm1453, %v5682, 0.0
      %5774 = vadd.xlane.f32.xlu0 %v5773
      %v5775 = vpop.xlane.xlu0 %5774
      %v5776 = vsel %vm1453, %v5684, 0.0
      %5777 = vadd.xlane.f32.xlu0 %v5776
      %v5778 = vpop.xlane.xlu0 %5777
      %v5779 = vsel %vm1453, %v5686, 0.0
      %5780 = vadd.xlane.f32.xlu0 %v5779
      %v5781 = vpop.xlane.xlu0 %5780
      %v5782 = vsel %vm1453, %v5688, 0.0
      %5783 = vadd.xlane.f32.xlu0 %v5782
      %v5784 = vpop.xlane.xlu0 %5783
      %v5785 = vrcp.pop %v5691
      %v5786 = vrcp.pop %v5694
      %v5787 = vrcp.pop %v5697
      %v5788 = vrcp.pop %v5700
      %v5789 = vrcp.pop %v5703
      %v5790 = vrcp.pop %v5706
      %v5791 = vrcp.pop %v5709
      %v5792 = vrcp.pop %v5712
      %v5793 = vrcp.pop %v5715
      %v5794 = vrcp.pop %v5718
      %v5795 = vrcp.pop %v5721
      %v5796 = vrcp.pop %v5724
      %v5797 = vrcp.pop %v5727
      %v5798 = vrcp.pop %v5730
      %v5799 = vrcp.pop %v5733
      %v5800 = vrcp.pop %v5736
      %v5801 = vrcp.pop %v5739
      %v5802 = vrcp.pop %v5742
      %v5803 = vrcp.pop %v5745
      %v5804 = vrcp.pop %v5748
      %v5805 = vrcp.pop %v5751
      %v5806 = vrcp.pop %v5754
      %v5807 = vrcp.pop %v5757
      %v5808 = vrcp.pop %v5760
      %v5809 = vrcp.pop %v5763
      %v5810 = vrcp.pop %v5766
      %v5811 = vrcp.pop %v5769
      %v5812 = vrcp.pop %v5772
      %v5813 = vrcp.pop %v5775
      %v5814 = vrcp.pop %v5778
      %v5815 = vrcp.pop %v5781
      %v5816 = vrcp.pop %v5784
      %v5817 = vmul.f32 %v5626, %v5785
      %v5818 = vmul.f32 %v5628, %v5786
      %v5819 = vmul.f32 %v5630, %v5787
      %v5820 = vmul.f32 %v5632, %v5788
      %v5821 = vmul.f32 %v5634, %v5789
      %v5822 = vmul.f32 %v5636, %v5790
      %v5823 = vmul.f32 %v5638, %v5791
      %v5824 = vmul.f32 %v5640, %v5792
      %v5825 = vmul.f32 %v5642, %v5793
      %v5826 = vmul.f32 %v5644, %v5794
      %v5827 = vmul.f32 %v5646, %v5795
      %v5828 = vmul.f32 %v5648, %v5796
      %v5829 = vmul.f32 %v5650, %v5797
      %v5830 = vmul.f32 %v5652, %v5798
      %v5831 = vmul.f32 %v5654, %v5799
      %v5832 = vmul.f32 %v5656, %v5800
      %v5833 = vmul.f32 %v5658, %v5801
      %v5834 = vmul.f32 %v5660, %v5802
      %v5835 = vmul.f32 %v5662, %v5803
      %v5836 = vmul.f32 %v5664, %v5804
      %v5837 = vmul.f32 %v5666, %v5805
      %v5838 = vmul.f32 %v5668, %v5806
      %v5839 = vmul.f32 %v5670, %v5807
      %v5840 = vmul.f32 %v5672, %v5808
      %v5841 = vmul.f32 %v5674, %v5809
      %v5842 = vmul.f32 %v5676, %v5810
      %v5843 = vmul.f32 %v5678, %v5811
      %v5844 = vmul.f32 %v5680, %v5812
      %v5845 = vmul.f32 %v5682, %v5813
      %v5846 = vmul.f32 %v5684, %v5814
      %v5847 = vmul.f32 %v5686, %v5815
      %v5848 = vmul.f32 %v5688, %v5816
      %v5849 = vpack.c.bf16 %v5818, %v5817
      %v5850 = vpack.c.bf16 %v5820, %v5819
      %v5851 = vpack.c.bf16 %v5822, %v5821
      %v5852 = vpack.c.bf16 %v5824, %v5823
      %v5853 = vpack.c.bf16 %v5826, %v5825
      %v5854 = vpack.c.bf16 %v5828, %v5827
      %v5855 = vpack.c.bf16 %v5830, %v5829
      %v5856 = vpack.c.bf16 %v5832, %v5831
      %v5857 = vpack.c.bf16 %v5834, %v5833
      %v5858 = vpack.c.bf16 %v5836, %v5835
      %v5859 = vpack.c.bf16 %v5838, %v5837
      %v5860 = vpack.c.bf16 %v5840, %v5839
      %v5861 = vpack.c.bf16 %v5842, %v5841
      %v5862 = vpack.c.bf16 %v5844, %v5843
      %v5863 = vpack.c.bf16 %v5846, %v5845
      %v5864 = vpack.c.bf16 %v5848, %v5847
      %5865 = vrot.lane.b32.xlu0 %v5264, 80
      %v5866 = vpop.permute.xlu0 %5865
      %5867 = vrot.lane.b32.xlu0 %v5265, 80
      %v5868 = vpop.permute.xlu0 %5867
      %5869 = vrot.lane.b32.xlu0 %v5266, 80
      %v5870 = vpop.permute.xlu0 %5869
      %5871 = vrot.lane.b32.xlu0 %v5267, 80
      %v5872 = vpop.permute.xlu0 %5871
      %v5878 = vsel %vm1453, %v5849, 0
      %v5881 = vsel %vm1453, %v5850, 0
      %v5884 = vsel %vm1453, %v5851, 0
      %v5887 = vsel %vm1453, %v5852, 0
      %v5890 = vsel %vm1453, %v5853, 0
      %v5893 = vsel %vm1453, %v5854, 0
      %v5896 = vsel %vm1453, %v5855, 0
      %v5899 = vsel %vm1453, %v5856, 0
      %v5902 = vsel %vm1453, %v5857, 0
      %v5905 = vsel %vm1453, %v5858, 0
      %v5908 = vsel %vm1453, %v5859, 0
      %v5911 = vsel %vm1453, %v5860, 0
      %v5914 = vsel %vm1453, %v5861, 0
      %v5917 = vsel %vm1453, %v5862, 0
      %v5920 = vsel %vm1453, %v5863, 0
      %v5923 = vsel %vm1453, %v5864, 0
      %5925 = vmatprep.subr.bf16.mxu0 0
      %5926 = vmatpush1.bf16.msra.mxu0 0
      %5927 = vmatprep.subr.bf16.mxu0 0
      %5928 = vmatpush1.bf16.msra.mxu0 0
      %5929 = vmatprep.subr.bf16.mxu0 0
      %5930 = vmatpush1.bf16.msra.mxu0 0
      %5931 = vmatprep.subr.bf16.mxu0 0
      %5932 = vmatpush1.bf16.msra.mxu0 0
      %5933 = vmatprep.subr.bf16.mxu0 0
      %5934 = vmatpush1.bf16.msra.mxu0 %v5872
      %5935 = vmatprep.subr.bf16.mxu0 0
      %5936 = vmatpush1.bf16.msra.mxu0 %v5870
      %5937 = vmatprep.subr.bf16.mxu0 0
      %5938 = vmatpush1.bf16.msra.mxu0 %v5868
      %5939 = vmatprep.subr.bf16.mxu0 0
      %5940 = vmatpush1.bf16.msra.mxu0 %v5866
      %5941 = vmatprep.subr.bf16.mxu0 0
      %5942 = vmatpush2.bf16.msra.mxu0 0
      %5943 = vmatprep.subr.bf16.mxu0 0
      %5944 = vmatpush2.bf16.msra.mxu0 0
      %5945 = vmatprep.subr.bf16.mxu0 0
      %5946 = vmatpush2.bf16.msra.mxu0 0
      %5947 = vmatprep.subr.bf16.mxu0 0
      %5948 = vmatpush2.bf16.msra.mxu0 0
      %5949 = vmatprep.subr.bf16.mxu0 0
      %5950 = vmatpush2.bf16.msra.mxu0 0
      %5951 = vmatprep.subr.bf16.mxu0 0
      %5952 = vmatpush2.bf16.msra.mxu0 0
      %5953 = vmatprep.subr.bf16.mxu0 0
      %5954 = vmatpush2.bf16.msra.mxu0 0
      %5955 = vmatprep.subr.bf16.mxu0 0
      %5956 = vmatpush2.bf16.msra.mxu0 0
      %5957 = vmatprep.mubr.bf16.mxu0 0
      %5958 = vmatmul.mubr.bf16.gmra.mxu0 %v5878
      %v5959 = vpop.f32.mrf.mxu0
      %v5960 = vadd.f32 0.0, %v5959
      %v5961 = vpop.f32.mrf.mxu0
      %v5962 = vpop.f32.mrf.mxu0
      %v5963 = vadd.f32 0.0, %v5962
      %v5964 = vpop.f32.mrf.mxu0
      %5965 = vmatprep.mubr.bf16.mxu0 0
      %5966 = vmatmul.mubr.bf16.gmra.mxu0 %v5881
      %v5967 = vpop.f32.mrf.mxu0
      %v5968 = vadd.f32 0.0, %v5967
      %v5969 = vpop.f32.mrf.mxu0
      %v5970 = vpop.f32.mrf.mxu0
      %v5971 = vadd.f32 0.0, %v5970
      %v5972 = vpop.f32.mrf.mxu0
      %5973 = vmatprep.mubr.bf16.mxu0 0
      %5974 = vmatmul.mubr.bf16.gmra.mxu0 %v5884
      %v5975 = vpop.f32.mrf.mxu0
      %v5976 = vadd.f32 0.0, %v5975
      %v5977 = vpop.f32.mrf.mxu0
      %v5978 = vpop.f32.mrf.mxu0
      %v5979 = vadd.f32 0.0, %v5978
      %v5980 = vpop.f32.mrf.mxu0
      %5981 = vmatprep.mubr.bf16.mxu0 0
      %5982 = vmatmul.mubr.bf16.gmra.mxu0 %v5887
      %v5983 = vpop.f32.mrf.mxu0
      %v5984 = vadd.f32 0.0, %v5983
      %v5985 = vpop.f32.mrf.mxu0
      %v5986 = vpop.f32.mrf.mxu0
      %v5987 = vadd.f32 0.0, %v5986
      %v5988 = vpop.f32.mrf.mxu0
      %5989 = vmatprep.mubr.bf16.mxu0 0
      %5990 = vmatmul.mubr.bf16.gmra.mxu0 %v5890
      %v5991 = vpop.f32.mrf.mxu0
      %v5992 = vadd.f32 0.0, %v5991
      %v5993 = vpop.f32.mrf.mxu0
      %v5994 = vpop.f32.mrf.mxu0
      %v5995 = vadd.f32 0.0, %v5994
      %v5996 = vpop.f32.mrf.mxu0
      %5997 = vmatprep.mubr.bf16.mxu0 0
      %5998 = vmatmul.mubr.bf16.gmra.mxu0 %v5893
      %v5999 = vpop.f32.mrf.mxu0
      %v6000 = vadd.f32 0.0, %v5999
      %v6001 = vpop.f32.mrf.mxu0
      %v6002 = vpop.f32.mrf.mxu0
      %v6003 = vadd.f32 0.0, %v6002
      %v6004 = vpop.f32.mrf.mxu0
      %6005 = vmatprep.mubr.bf16.mxu0 0
      %6006 = vmatmul.mubr.bf16.gmra.mxu0 %v5896
      %v6007 = vpop.f32.mrf.mxu0
      %v6008 = vadd.f32 0.0, %v6007
      %v6009 = vpop.f32.mrf.mxu0
      %v6010 = vpop.f32.mrf.mxu0
      %v6011 = vadd.f32 0.0, %v6010
      %v6012 = vpop.f32.mrf.mxu0
      %6013 = vmatprep.mubr.bf16.mxu0 0
      %6014 = vmatmul.mubr.bf16.gmra.mxu0 %v5899
      %v6015 = vpop.f32.mrf.mxu0
      %v6016 = vadd.f32 0.0, %v6015
      %v6017 = vpop.f32.mrf.mxu0
      %v6018 = vpop.f32.mrf.mxu0
      %v6019 = vadd.f32 0.0, %v6018
      %v6020 = vpop.f32.mrf.mxu0
      %6021 = vmatprep.mubr.bf16.mxu0 0
      %6022 = vmatmul.mubr.bf16.gmra.mxu0 %v5902
      %v6023 = vpop.f32.mrf.mxu0
      %v6024 = vadd.f32 0.0, %v6023
      %v6025 = vpop.f32.mrf.mxu0
      %v6026 = vpop.f32.mrf.mxu0
      %v6027 = vadd.f32 0.0, %v6026
      %v6028 = vpop.f32.mrf.mxu0
      %6029 = vmatprep.mubr.bf16.mxu0 0
      %6030 = vmatmul.mubr.bf16.gmra.mxu0 %v5905
      %v6031 = vpop.f32.mrf.mxu0
      %v6032 = vadd.f32 0.0, %v6031
      %v6033 = vpop.f32.mrf.mxu0
      %v6034 = vpop.f32.mrf.mxu0
      %v6035 = vadd.f32 0.0, %v6034
      %v6036 = vpop.f32.mrf.mxu0
      %6037 = vmatprep.mubr.bf16.mxu0 0
      %6038 = vmatmul.mubr.bf16.gmra.mxu0 %v5908
      %v6039 = vpop.f32.mrf.mxu0
      %v6040 = vadd.f32 0.0, %v6039
      %v6041 = vpop.f32.mrf.mxu0
      %v6042 = vpop.f32.mrf.mxu0
      %v6043 = vadd.f32 0.0, %v6042
      %v6044 = vpop.f32.mrf.mxu0
      %6045 = vmatprep.mubr.bf16.mxu0 0
      %6046 = vmatmul.mubr.bf16.gmra.mxu0 %v5911
      %v6047 = vpop.f32.mrf.mxu0
      %v6048 = vadd.f32 0.0, %v6047
      %v6049 = vpop.f32.mrf.mxu0
      %v6050 = vpop.f32.mrf.mxu0
      %v6051 = vadd.f32 0.0, %v6050
      %v6052 = vpop.f32.mrf.mxu0
      %6053 = vmatprep.mubr.bf16.mxu0 0
      %6054 = vmatmul.mubr.bf16.gmra.mxu0 %v5914
      %v6055 = vpop.f32.mrf.mxu0
      %v6056 = vadd.f32 0.0, %v6055
      %v6057 = vpop.f32.mrf.mxu0
      %v6058 = vpop.f32.mrf.mxu0
      %v6059 = vadd.f32 0.0, %v6058
      %v6060 = vpop.f32.mrf.mxu0
      %6061 = vmatprep.mubr.bf16.mxu0 0
      %6062 = vmatmul.mubr.bf16.gmra.mxu0 %v5917
      %v6063 = vpop.f32.mrf.mxu0
      %v6064 = vadd.f32 0.0, %v6063
      %v6065 = vpop.f32.mrf.mxu0
      %v6066 = vpop.f32.mrf.mxu0
      %v6067 = vadd.f32 0.0, %v6066
      %v6068 = vpop.f32.mrf.mxu0
      %6069 = vmatprep.mubr.bf16.mxu0 0
      %6070 = vmatmul.mubr.bf16.gmra.mxu0 %v5920
      %v6071 = vpop.f32.mrf.mxu0
      %v6072 = vadd.f32 0.0, %v6071
      %v6073 = vpop.f32.mrf.mxu0
      %v6074 = vpop.f32.mrf.mxu0
      %v6075 = vadd.f32 0.0, %v6074
      %v6076 = vpop.f32.mrf.mxu0
      %6077 = vmatprep.mubr.bf16.mxu0 0
      %6078 = vmatmul.mubr.bf16.gmra.mxu0 %v5923
      %v6079 = vpop.f32.mrf.mxu0
      %v6080 = vadd.f32 0.0, %v6079
      %v6081 = vpop.f32.mrf.mxu0
      %v6082 = vpop.f32.mrf.mxu0
      %v6083 = vadd.f32 0.0, %v6082
      %v6084 = vpop.f32.mrf.mxu0
      %6085 = vdwg.mxu0
      %6118 = vrot.lane.b32.xlu0 %v5960, 16
      %v6119 = vpop.permute.xlu0 %6118
      %6120 = vrot.lane.b32.xlu0 %v5963, 16
      %v6121 = vpop.permute.xlu0 %6120
      %6122 = vrot.lane.b32.xlu0 %v5968, 16
      %v6123 = vpop.permute.xlu0 %6122
      %6124 = vrot.lane.b32.xlu0 %v5971, 16
      %v6125 = vpop.permute.xlu0 %6124
      %6126 = vrot.lane.b32.xlu0 %v5976, 16
      %v6127 = vpop.permute.xlu0 %6126
      %6128 = vrot.lane.b32.xlu0 %v5979, 16
      %v6129 = vpop.permute.xlu0 %6128
      %6130 = vrot.lane.b32.xlu0 %v5984, 16
      %v6131 = vpop.permute.xlu0 %6130
      %6132 = vrot.lane.b32.xlu0 %v5987, 16
      %v6133 = vpop.permute.xlu0 %6132
      %6134 = vrot.lane.b32.xlu0 %v5992, 16
      %v6135 = vpop.permute.xlu0 %6134
      %6136 = vrot.lane.b32.xlu0 %v5995, 16
      %v6137 = vpop.permute.xlu0 %6136
      %6138 = vrot.lane.b32.xlu0 %v6000, 16
      %v6139 = vpop.permute.xlu0 %6138
      %6140 = vrot.lane.b32.xlu0 %v6003, 16
      %v6141 = vpop.permute.xlu0 %6140
      %6142 = vrot.lane.b32.xlu0 %v6008, 16
      %v6143 = vpop.permute.xlu0 %6142
      %6144 = vrot.lane.b32.xlu0 %v6011, 16
      %v6145 = vpop.permute.xlu0 %6144
      %6146 = vrot.lane.b32.xlu0 %v6016, 16
      %v6147 = vpop.permute.xlu0 %6146
      %6148 = vrot.lane.b32.xlu0 %v6019, 16
      %v6149 = vpop.permute.xlu0 %6148
      %6150 = vrot.lane.b32.xlu0 %v6024, 16
      %v6151 = vpop.permute.xlu0 %6150
      %6152 = vrot.lane.b32.xlu0 %v6027, 16
      %v6153 = vpop.permute.xlu0 %6152
      %6154 = vrot.lane.b32.xlu0 %v6032, 16
      %v6155 = vpop.permute.xlu0 %6154
      %6156 = vrot.lane.b32.xlu0 %v6035, 16
      %v6157 = vpop.permute.xlu0 %6156
      %6158 = vrot.lane.b32.xlu0 %v6040, 16
      %v6159 = vpop.permute.xlu0 %6158
      %6160 = vrot.lane.b32.xlu0 %v6043, 16
      %v6161 = vpop.permute.xlu0 %6160
      %6162 = vrot.lane.b32.xlu0 %v6048, 16
      %v6163 = vpop.permute.xlu0 %6162
      %6164 = vrot.lane.b32.xlu0 %v6051, 16
      %v6165 = vpop.permute.xlu0 %6164
      %6166 = vrot.lane.b32.xlu0 %v6056, 16
      %v6167 = vpop.permute.xlu0 %6166
      %6168 = vrot.lane.b32.xlu0 %v6059, 16
      %v6169 = vpop.permute.xlu0 %6168
      %6170 = vrot.lane.b32.xlu0 %v6064, 16
      %v6171 = vpop.permute.xlu0 %6170
      %6172 = vrot.lane.b32.xlu0 %v6067, 16
      %v6173 = vpop.permute.xlu0 %6172
      %6174 = vrot.lane.b32.xlu0 %v6072, 16
      %v6175 = vpop.permute.xlu0 %6174
      %6176 = vrot.lane.b32.xlu0 %v6075, 16
      %v6177 = vpop.permute.xlu0 %6176
      %6178 = vrot.lane.b32.xlu0 %v6080, 16
      %v6179 = vpop.permute.xlu0 %6178
      %6180 = vrot.lane.b32.xlu0 %v6083, 16
      %v6181 = vpop.permute.xlu0 %6180
      %vm6214 = vcmask 162944
      %6215 = vst.msk [vmem:[#allocation3] sm:$0xff] %vm6214, %v6119
      %6216 = vst.msk [vmem:[#allocation3 + $0x8] sm:$0xff] %vm6214, %v6121
      %6217 = vst.msk [vmem:[#allocation3 + $0x10] sm:$0xff] %vm6214, %v6123
      %6218 = vst.msk [vmem:[#allocation3 + $0x18] sm:$0xff] %vm6214, %v6125
      %6219 = vst.msk [vmem:[#allocation3 + $0x20] sm:$0xff] %vm6214, %v6127
      %6220 = vst.msk [vmem:[#allocation3 + $0x28] sm:$0xff] %vm6214, %v6129
      %6221 = vst.msk [vmem:[#allocation3 + $0x30] sm:$0xff] %vm6214, %v6131
      %6222 = vst.msk [vmem:[#allocation3 + $0x38] sm:$0xff] %vm6214, %v6133
      %6223 = vst.msk [vmem:[#allocation3 + $0x40] sm:$0xff] %vm6214, %v6135
      %6224 = vst.msk [vmem:[#allocation3 + $0x48] sm:$0xff] %vm6214, %v6137
      %6225 = vst.msk [vmem:[#allocation3 + $0x50] sm:$0xff] %vm6214, %v6139
      %6226 = vst.msk [vmem:[#allocation3 + $0x58] sm:$0xff] %vm6214, %v6141
      %6227 = vst.msk [vmem:[#allocation3 + $0x60] sm:$0xff] %vm6214, %v6143
      %6228 = vst.msk [vmem:[#allocation3 + $0x68] sm:$0xff] %vm6214, %v6145
      %6229 = vst.msk [vmem:[#allocation3 + $0x70] sm:$0xff] %vm6214, %v6147
      %6230 = vst.msk [vmem:[#allocation3 + $0x78] sm:$0xff] %vm6214, %v6149
      %6231 = vst.msk [vmem:[#allocation3 + $0x80] sm:$0xff] %vm6214, %v6151
      %6232 = vst.msk [vmem:[#allocation3 + $0x88] sm:$0xff] %vm6214, %v6153
      %6233 = vst.msk [vmem:[#allocation3 + $0x90] sm:$0xff] %vm6214, %v6155
      %6234 = vst.msk [vmem:[#allocation3 + $0x98] sm:$0xff] %vm6214, %v6157
      %6235 = vst.msk [vmem:[#allocation3 + $0xa0] sm:$0xff] %vm6214, %v6159
      %6236 = vst.msk [vmem:[#allocation3 + $0xa8] sm:$0xff] %vm6214, %v6161
      %6237 = vst.msk [vmem:[#allocation3 + $0xb0] sm:$0xff] %vm6214, %v6163
      %6238 = vst.msk [vmem:[#allocation3 + $0xb8] sm:$0xff] %vm6214, %v6165
      %6239 = vst.msk [vmem:[#allocation3 + $0xc0] sm:$0xff] %vm6214, %v6167
      %6240 = vst.msk [vmem:[#allocation3 + $0xc8] sm:$0xff] %vm6214, %v6169
      %6241 = vst.msk [vmem:[#allocation3 + $0xd0] sm:$0xff] %vm6214, %v6171
      %6242 = vst.msk [vmem:[#allocation3 + $0xd8] sm:$0xff] %vm6214, %v6173
      %6243 = vst.msk [vmem:[#allocation3 + $0xe0] sm:$0xff] %vm6214, %v6175
      %6244 = vst.msk [vmem:[#allocation3 + $0xe8] sm:$0xff] %vm6214, %v6177
      %6245 = vst.msk [vmem:[#allocation3 + $0xf0] sm:$0xff] %vm6214, %v6179
      %6246 = vst.msk [vmem:[#allocation3 + $0xf8] sm:$0xff] %vm6214, %v6181
      %v6247 = vld [vmem:[#allocation2] sm:$0xf]
      %v6248 = vld [vmem:[#allocation2 + $0x4] sm:$0xf]
      %v6249 = vld [vmem:[#allocation2 + $0x8] sm:$0xf]
      %v6250 = vld [vmem:[#allocation2 + $0xc] sm:$0xf]
      %v6251 = vld [vmem:[#allocation2 + $0x10] sm:$0xf]
      %v6252 = vld [vmem:[#allocation2 + $0x14] sm:$0xf]
      %v6253 = vld [vmem:[#allocation2 + $0x18] sm:$0xf]
      %v6254 = vld [vmem:[#allocation2 + $0x1c] sm:$0xf]
      %6255 = vrot.lane.b32.xlu0 %v1187, 108
      %v6256 = vpop.permute.xlu0 %6255
      %6257 = vrot.lane.b32.xlu0 %v1188, 108
      %v6258 = vpop.permute.xlu0 %6257
      %6259 = vrot.lane.b32.xlu0 %v1189, 108
      %v6260 = vpop.permute.xlu0 %6259
      %6261 = vrot.lane.b32.xlu0 %v1190, 108
      %v6262 = vpop.permute.xlu0 %6261
      %6263 = vrot.lane.b32.xlu0 %v1191, 108
      %v6264 = vpop.permute.xlu0 %6263
      %6265 = vrot.lane.b32.xlu0 %v1192, 108
      %v6266 = vpop.permute.xlu0 %6265
      %6267 = vrot.lane.b32.xlu0 %v1193, 108
      %v6268 = vpop.permute.xlu0 %6267
      %6269 = vrot.lane.b32.xlu0 %v1194, 108
      %v6270 = vpop.permute.xlu0 %6269
      %6271 = vrot.lane.b32.xlu0 %v1195, 108
      %v6272 = vpop.permute.xlu0 %6271
      %6273 = vrot.lane.b32.xlu0 %v1196, 108
      %v6274 = vpop.permute.xlu0 %6273
      %6275 = vrot.lane.b32.xlu0 %v1197, 108
      %v6276 = vpop.permute.xlu0 %6275
      %6277 = vrot.lane.b32.xlu0 %v1198, 108
      %v6278 = vpop.permute.xlu0 %6277
      %6279 = vrot.lane.b32.xlu0 %v1199, 108
      %v6280 = vpop.permute.xlu0 %6279
      %6281 = vrot.lane.b32.xlu0 %v1200, 108
      %v6282 = vpop.permute.xlu0 %6281
      %6283 = vrot.lane.b32.xlu0 %v1201, 108
      %v6284 = vpop.permute.xlu0 %6283
      %6285 = vrot.lane.b32.xlu0 %v1202, 108
      %v6286 = vpop.permute.xlu0 %6285
      %v6295 = vunpack.c.l.b16 %v6247
      %v6296 = vunpack.c.l.b16 %v6248
      %v6297 = vunpack.c.l.b16 %v6249
      %v6298 = vunpack.c.l.b16 %v6250
      %v6299 = vunpack.c.l.b16 %v6251
      %v6300 = vunpack.c.l.b16 %v6252
      %v6301 = vunpack.c.l.b16 %v6253
      %v6302 = vunpack.c.l.b16 %v6254
      %v6303 = vpack.c.b16 %v6296, %v6295
      %v6304 = vpack.c.b16 %v6298, %v6297
      %v6305 = vpack.c.b16 %v6300, %v6299
      %v6306 = vpack.c.b16 %v6302, %v6301
      %6307 = vrot.lane.b32.xlu0 %v6303, 108
      %v6308 = vpop.permute.xlu0 %6307
      %6309 = vrot.lane.b32.xlu0 %v6304, 108
      %v6310 = vpop.permute.xlu0 %6309
      %6311 = vrot.lane.b32.xlu0 %v6305, 108
      %v6312 = vpop.permute.xlu0 %6311
      %6313 = vrot.lane.b32.xlu0 %v6306, 108
      %v6314 = vpop.permute.xlu0 %6313
      %v6316 = vsel %vm1231, %v6256, 0
      %v6319 = vsel %vm1231, %v6258, 0
      %v6322 = vsel %vm1231, %v6260, 0
      %v6325 = vsel %vm1231, %v6262, 0
      %v6328 = vsel %vm1231, %v6264, 0
      %v6331 = vsel %vm1231, %v6266, 0
      %v6334 = vsel %vm1231, %v6268, 0
      %v6337 = vsel %vm1231, %v6270, 0
      %v6340 = vsel %vm1231, %v6272, 0
      %v6343 = vsel %vm1231, %v6274, 0
      %v6346 = vsel %vm1231, %v6276, 0
      %v6349 = vsel %vm1231, %v6278, 0
      %v6352 = vsel %vm1231, %v6280, 0
      %v6355 = vsel %vm1231, %v6282, 0
      %v6358 = vsel %vm1231, %v6284, 0
      %v6361 = vsel %vm1231, %v6286, 0
      %v6364 = vsel %vm1231, %v6308, 0
      %v6367 = vsel %vm1231, %v6310, 0
      %v6370 = vsel %vm1231, %v6312, 0
      %v6373 = vsel %vm1231, %v6314, 0
      %6375 = vmatprep.subr.bf16.mxu0 0
      %6376 = vmatpush1.bf16.xpose.msra.mxu0 0
      %6377 = vmatprep.subr.bf16.mxu0 0
      %6378 = vmatpush1.bf16.xpose.msra.mxu0 0
      %6379 = vmatprep.subr.bf16.mxu0 0
      %6380 = vmatpush1.bf16.xpose.msra.mxu0 0
      %6381 = vmatprep.subr.bf16.mxu0 0
      %6382 = vmatpush1.bf16.xpose.msra.mxu0 0
      %6383 = vmatprep.subr.bf16.mxu0 0
      %6384 = vmatpush1.bf16.xpose.msra.mxu0 %v6373
      %6385 = vmatprep.subr.bf16.mxu0 0
      %6386 = vmatpush1.bf16.xpose.msra.mxu0 %v6370
      %6387 = vmatprep.subr.bf16.mxu0 0
      %6388 = vmatpush1.bf16.xpose.msra.mxu0 %v6367
      %6389 = vmatprep.subr.bf16.mxu0 0
      %6390 = vmatpush1.bf16.xpose.msra.mxu0 %v6364
      %6391 = vmatprep.subr.bf16.mxu0 0
      %6392 = vmatpush2.bf16.xpose.msra.mxu0 0
      %6393 = vmatprep.subr.bf16.mxu0 0
      %6394 = vmatpush2.bf16.xpose.msra.mxu0 0
      %6395 = vmatprep.subr.bf16.mxu0 0
      %6396 = vmatpush2.bf16.xpose.msra.mxu0 0
      %6397 = vmatprep.subr.bf16.mxu0 0
      %6398 = vmatpush2.bf16.xpose.msra.mxu0 0
      %6399 = vmatprep.subr.bf16.mxu0 0
      %6400 = vmatpush2.bf16.xpose.msra.mxu0 0
      %6401 = vmatprep.subr.bf16.mxu0 0
      %6402 = vmatpush2.bf16.xpose.msra.mxu0 0
      %6403 = vmatprep.subr.bf16.mxu0 0
      %6404 = vmatpush2.bf16.xpose.msra.mxu0 0
      %6405 = vmatprep.subr.bf16.mxu0 0
      %6406 = vmatpush2.bf16.xpose.msra.mxu0 0
      %6407 = vmatprep.mubr.bf16.mxu0 0
      %6408 = vmatmul.mubr.bf16.gmra.mxu0 %v6316
      %v6409 = vpop.f32.mrf.mxu0
      %v6410 = vadd.f32 0.0, %v6409
      %v6411 = vpop.f32.mrf.mxu0
      %v6412 = vpop.f32.mrf.mxu0
      %v6413 = vadd.f32 0.0, %v6412
      %v6414 = vpop.f32.mrf.mxu0
      %6415 = vmatprep.mubr.bf16.mxu0 0
      %6416 = vmatmul.mubr.bf16.gmra.mxu0 %v6319
      %v6417 = vpop.f32.mrf.mxu0
      %v6418 = vadd.f32 0.0, %v6417
      %v6419 = vpop.f32.mrf.mxu0
      %v6420 = vpop.f32.mrf.mxu0
      %v6421 = vadd.f32 0.0, %v6420
      %v6422 = vpop.f32.mrf.mxu0
      %6423 = vmatprep.mubr.bf16.mxu0 0
      %6424 = vmatmul.mubr.bf16.gmra.mxu0 %v6322
      %v6425 = vpop.f32.mrf.mxu0
      %v6426 = vadd.f32 0.0, %v6425
      %v6427 = vpop.f32.mrf.mxu0
      %v6428 = vpop.f32.mrf.mxu0
      %v6429 = vadd.f32 0.0, %v6428
      %v6430 = vpop.f32.mrf.mxu0
      %6431 = vmatprep.mubr.bf16.mxu0 0
      %6432 = vmatmul.mubr.bf16.gmra.mxu0 %v6325
      %v6433 = vpop.f32.mrf.mxu0
      %v6434 = vadd.f32 0.0, %v6433
      %v6435 = vpop.f32.mrf.mxu0
      %v6436 = vpop.f32.mrf.mxu0
      %v6437 = vadd.f32 0.0, %v6436
      %v6438 = vpop.f32.mrf.mxu0
      %6439 = vmatprep.mubr.bf16.mxu0 0
      %6440 = vmatmul.mubr.bf16.gmra.mxu0 %v6328
      %v6441 = vpop.f32.mrf.mxu0
      %v6442 = vadd.f32 0.0, %v6441
      %v6443 = vpop.f32.mrf.mxu0
      %v6444 = vpop.f32.mrf.mxu0
      %v6445 = vadd.f32 0.0, %v6444
      %v6446 = vpop.f32.mrf.mxu0
      %6447 = vmatprep.mubr.bf16.mxu0 0
      %6448 = vmatmul.mubr.bf16.gmra.mxu0 %v6331
      %v6449 = vpop.f32.mrf.mxu0
      %v6450 = vadd.f32 0.0, %v6449
      %v6451 = vpop.f32.mrf.mxu0
      %v6452 = vpop.f32.mrf.mxu0
      %v6453 = vadd.f32 0.0, %v6452
      %v6454 = vpop.f32.mrf.mxu0
      %6455 = vmatprep.mubr.bf16.mxu0 0
      %6456 = vmatmul.mubr.bf16.gmra.mxu0 %v6334
      %v6457 = vpop.f32.mrf.mxu0
      %v6458 = vadd.f32 0.0, %v6457
      %v6459 = vpop.f32.mrf.mxu0
      %v6460 = vpop.f32.mrf.mxu0
      %v6461 = vadd.f32 0.0, %v6460
      %v6462 = vpop.f32.mrf.mxu0
      %6463 = vmatprep.mubr.bf16.mxu0 0
      %6464 = vmatmul.mubr.bf16.gmra.mxu0 %v6337
      %v6465 = vpop.f32.mrf.mxu0
      %v6466 = vadd.f32 0.0, %v6465
      %v6467 = vpop.f32.mrf.mxu0
      %v6468 = vpop.f32.mrf.mxu0
      %v6469 = vadd.f32 0.0, %v6468
      %v6470 = vpop.f32.mrf.mxu0
      %6471 = vmatprep.mubr.bf16.mxu0 0
      %6472 = vmatmul.mubr.bf16.gmra.mxu0 %v6340
      %v6473 = vpop.f32.mrf.mxu0
      %v6474 = vadd.f32 0.0, %v6473
      %v6475 = vpop.f32.mrf.mxu0
      %v6476 = vpop.f32.mrf.mxu0
      %v6477 = vadd.f32 0.0, %v6476
      %v6478 = vpop.f32.mrf.mxu0
      %6479 = vmatprep.mubr.bf16.mxu0 0
      %6480 = vmatmul.mubr.bf16.gmra.mxu0 %v6343
      %v6481 = vpop.f32.mrf.mxu0
      %v6482 = vadd.f32 0.0, %v6481
      %v6483 = vpop.f32.mrf.mxu0
      %v6484 = vpop.f32.mrf.mxu0
      %v6485 = vadd.f32 0.0, %v6484
      %v6486 = vpop.f32.mrf.mxu0
      %6487 = vmatprep.mubr.bf16.mxu0 0
      %6488 = vmatmul.mubr.bf16.gmra.mxu0 %v6346
      %v6489 = vpop.f32.mrf.mxu0
      %v6490 = vadd.f32 0.0, %v6489
      %v6491 = vpop.f32.mrf.mxu0
      %v6492 = vpop.f32.mrf.mxu0
      %v6493 = vadd.f32 0.0, %v6492
      %v6494 = vpop.f32.mrf.mxu0
      %6495 = vmatprep.mubr.bf16.mxu0 0
      %6496 = vmatmul.mubr.bf16.gmra.mxu0 %v6349
      %v6497 = vpop.f32.mrf.mxu0
      %v6498 = vadd.f32 0.0, %v6497
      %v6499 = vpop.f32.mrf.mxu0
      %v6500 = vpop.f32.mrf.mxu0
      %v6501 = vadd.f32 0.0, %v6500
      %v6502 = vpop.f32.mrf.mxu0
      %6503 = vmatprep.mubr.bf16.mxu0 0
      %6504 = vmatmul.mubr.bf16.gmra.mxu0 %v6352
      %v6505 = vpop.f32.mrf.mxu0
      %v6506 = vadd.f32 0.0, %v6505
      %v6507 = vpop.f32.mrf.mxu0
      %v6508 = vpop.f32.mrf.mxu0
      %v6509 = vadd.f32 0.0, %v6508
      %v6510 = vpop.f32.mrf.mxu0
      %6511 = vmatprep.mubr.bf16.mxu0 0
      %6512 = vmatmul.mubr.bf16.gmra.mxu0 %v6355
      %v6513 = vpop.f32.mrf.mxu0
      %v6514 = vadd.f32 0.0, %v6513
      %v6515 = vpop.f32.mrf.mxu0
      %v6516 = vpop.f32.mrf.mxu0
      %v6517 = vadd.f32 0.0, %v6516
      %v6518 = vpop.f32.mrf.mxu0
      %6519 = vmatprep.mubr.bf16.mxu0 0
      %6520 = vmatmul.mubr.bf16.gmra.mxu0 %v6358
      %v6521 = vpop.f32.mrf.mxu0
      %v6522 = vadd.f32 0.0, %v6521
      %v6523 = vpop.f32.mrf.mxu0
      %v6524 = vpop.f32.mrf.mxu0
      %v6525 = vadd.f32 0.0, %v6524
      %v6526 = vpop.f32.mrf.mxu0
      %6527 = vmatprep.mubr.bf16.mxu0 0
      %6528 = vmatmul.mubr.bf16.gmra.mxu0 %v6361
      %v6529 = vpop.f32.mrf.mxu0
      %v6530 = vadd.f32 0.0, %v6529
      %v6531 = vpop.f32.mrf.mxu0
      %v6532 = vpop.f32.mrf.mxu0
      %v6533 = vadd.f32 0.0, %v6532
      %v6534 = vpop.f32.mrf.mxu0
      %6535 = vdwg.mxu0
      %v6536 = vsel %vm1453, %v6410, -inf
      %6537 = vmax.xlane.f32.xlu0 %v6536
      %v6538 = vpop.xlane.xlu0 %6537
      %v6539 = vsel %vm1453, %v6413, -inf
      %6540 = vmax.xlane.f32.xlu0 %v6539
      %v6541 = vpop.xlane.xlu0 %6540
      %v6542 = vsel %vm1453, %v6418, -inf
      %6543 = vmax.xlane.f32.xlu0 %v6542
      %v6544 = vpop.xlane.xlu0 %6543
      %v6545 = vsel %vm1453, %v6421, -inf
      %6546 = vmax.xlane.f32.xlu0 %v6545
      %v6547 = vpop.xlane.xlu0 %6546
      %v6548 = vsel %vm1453, %v6426, -inf
      %6549 = vmax.xlane.f32.xlu0 %v6548
      %v6550 = vpop.xlane.xlu0 %6549
      %v6551 = vsel %vm1453, %v6429, -inf
      %6552 = vmax.xlane.f32.xlu0 %v6551
      %v6553 = vpop.xlane.xlu0 %6552
      %v6554 = vsel %vm1453, %v6434, -inf
      %6555 = vmax.xlane.f32.xlu0 %v6554
      %v6556 = vpop.xlane.xlu0 %6555
      %v6557 = vsel %vm1453, %v6437, -inf
      %6558 = vmax.xlane.f32.xlu0 %v6557
      %v6559 = vpop.xlane.xlu0 %6558
      %v6560 = vsel %vm1453, %v6442, -inf
      %6561 = vmax.xlane.f32.xlu0 %v6560
      %v6562 = vpop.xlane.xlu0 %6561
      %v6563 = vsel %vm1453, %v6445, -inf
      %6564 = vmax.xlane.f32.xlu0 %v6563
      %v6565 = vpop.xlane.xlu0 %6564
      %v6566 = vsel %vm1453, %v6450, -inf
      %6567 = vmax.xlane.f32.xlu0 %v6566
      %v6568 = vpop.xlane.xlu0 %6567
      %v6569 = vsel %vm1453, %v6453, -inf
      %6570 = vmax.xlane.f32.xlu0 %v6569
      %v6571 = vpop.xlane.xlu0 %6570
      %v6572 = vsel %vm1453, %v6458, -inf
      %6573 = vmax.xlane.f32.xlu0 %v6572
      %v6574 = vpop.xlane.xlu0 %6573
      %v6575 = vsel %vm1453, %v6461, -inf
      %6576 = vmax.xlane.f32.xlu0 %v6575
      %v6577 = vpop.xlane.xlu0 %6576
      %v6578 = vsel %vm1453, %v6466, -inf
      %6579 = vmax.xlane.f32.xlu0 %v6578
      %v6580 = vpop.xlane.xlu0 %6579
      %v6581 = vsel %vm1453, %v6469, -inf
      %6582 = vmax.xlane.f32.xlu0 %v6581
      %v6583 = vpop.xlane.xlu0 %6582
      %v6584 = vsel %vm1453, %v6474, -inf
      %6585 = vmax.xlane.f32.xlu0 %v6584
      %v6586 = vpop.xlane.xlu0 %6585
      %v6587 = vsel %vm1453, %v6477, -inf
      %6588 = vmax.xlane.f32.xlu0 %v6587
      %v6589 = vpop.xlane.xlu0 %6588
      %v6590 = vsel %vm1453, %v6482, -inf
      %6591 = vmax.xlane.f32.xlu0 %v6590
      %v6592 = vpop.xlane.xlu0 %6591
      %v6593 = vsel %vm1453, %v6485, -inf
      %6594 = vmax.xlane.f32.xlu0 %v6593
      %v6595 = vpop.xlane.xlu0 %6594
      %v6596 = vsel %vm1453, %v6490, -inf
      %6597 = vmax.xlane.f32.xlu0 %v6596
      %v6598 = vpop.xlane.xlu0 %6597
      %v6599 = vsel %vm1453, %v6493, -inf
      %6600 = vmax.xlane.f32.xlu0 %v6599
      %v6601 = vpop.xlane.xlu0 %6600
      %v6602 = vsel %vm1453, %v6498, -inf
      %6603 = vmax.xlane.f32.xlu0 %v6602
      %v6604 = vpop.xlane.xlu0 %6603
      %v6605 = vsel %vm1453, %v6501, -inf
      %6606 = vmax.xlane.f32.xlu0 %v6605
      %v6607 = vpop.xlane.xlu0 %6606
      %v6608 = vsel %vm1453, %v6506, -inf
      %6609 = vmax.xlane.f32.xlu0 %v6608
      %v6610 = vpop.xlane.xlu0 %6609
      %v6611 = vsel %vm1453, %v6509, -inf
      %6612 = vmax.xlane.f32.xlu0 %v6611
      %v6613 = vpop.xlane.xlu0 %6612
      %v6614 = vsel %vm1453, %v6514, -inf
      %6615 = vmax.xlane.f32.xlu0 %v6614
      %v6616 = vpop.xlane.xlu0 %6615
      %v6617 = vsel %vm1453, %v6517, -inf
      %6618 = vmax.xlane.f32.xlu0 %v6617
      %v6619 = vpop.xlane.xlu0 %6618
      %v6620 = vsel %vm1453, %v6522, -inf
      %6621 = vmax.xlane.f32.xlu0 %v6620
      %v6622 = vpop.xlane.xlu0 %6621
      %v6623 = vsel %vm1453, %v6525, -inf
      %6624 = vmax.xlane.f32.xlu0 %v6623
      %v6625 = vpop.xlane.xlu0 %6624
      %v6626 = vsel %vm1453, %v6530, -inf
      %6627 = vmax.xlane.f32.xlu0 %v6626
      %v6628 = vpop.xlane.xlu0 %6627
      %v6629 = vsel %vm1453, %v6533, -inf
      %6630 = vmax.xlane.f32.xlu0 %v6629
      %v6631 = vpop.xlane.xlu0 %6630
      %v6632 = vsub.f32 %v6410, %v6538
      %v6633 = vsub.f32 %v6413, %v6541
      %v6634 = vsub.f32 %v6418, %v6544
      %v6635 = vsub.f32 %v6421, %v6547
      %v6636 = vsub.f32 %v6426, %v6550
      %v6637 = vsub.f32 %v6429, %v6553
      %v6638 = vsub.f32 %v6434, %v6556
      %v6639 = vsub.f32 %v6437, %v6559
      %v6640 = vsub.f32 %v6442, %v6562
      %v6641 = vsub.f32 %v6445, %v6565
      %v6642 = vsub.f32 %v6450, %v6568
      %v6643 = vsub.f32 %v6453, %v6571
      %v6644 = vsub.f32 %v6458, %v6574
      %v6645 = vsub.f32 %v6461, %v6577
      %v6646 = vsub.f32 %v6466, %v6580
      %v6647 = vsub.f32 %v6469, %v6583
      %v6648 = vsub.f32 %v6474, %v6586
      %v6649 = vsub.f32 %v6477, %v6589
      %v6650 = vsub.f32 %v6482, %v6592
      %v6651 = vsub.f32 %v6485, %v6595
      %v6652 = vsub.f32 %v6490, %v6598
      %v6653 = vsub.f32 %v6493, %v6601
      %v6654 = vsub.f32 %v6498, %v6604
      %v6655 = vsub.f32 %v6501, %v6607
      %v6656 = vsub.f32 %v6506, %v6610
      %v6657 = vsub.f32 %v6509, %v6613
      %v6658 = vsub.f32 %v6514, %v6616
      %v6659 = vsub.f32 %v6517, %v6619
      %v6660 = vsub.f32 %v6522, %v6622
      %v6661 = vsub.f32 %v6525, %v6625
      %v6662 = vsub.f32 %v6530, %v6628
      %v6663 = vsub.f32 %v6533, %v6631
      %v6664 = vmul.f32 %v6632, 1.442695
      %v6665 = vpow.pop %v6664
      %v6666 = vmul.f32 %v6633, 1.442695
      %v6667 = vpow.pop %v6666
      %v6668 = vmul.f32 %v6634, 1.442695
      %v6669 = vpow.pop %v6668
      %v6670 = vmul.f32 %v6635, 1.442695
      %v6671 = vpow.pop %v6670
      %v6672 = vmul.f32 %v6636, 1.442695
      %v6673 = vpow.pop %v6672
      %v6674 = vmul.f32 %v6637, 1.442695
      %v6675 = vpow.pop %v6674
      %v6676 = vmul.f32 %v6638, 1.442695
      %v6677 = vpow.pop %v6676
      %v6678 = vmul.f32 %v6639, 1.442695
      %v6679 = vpow.pop %v6678
      %v6680 = vmul.f32 %v6640, 1.442695
      %v6681 = vpow.pop %v6680
      %v6682 = vmul.f32 %v6641, 1.442695
      %v6683 = vpow.pop %v6682
      %v6684 = vmul.f32 %v6642, 1.442695
      %v6685 = vpow.pop %v6684
      %v6686 = vmul.f32 %v6643, 1.442695
      %v6687 = vpow.pop %v6686
      %v6688 = vmul.f32 %v6644, 1.442695
      %v6689 = vpow.pop %v6688
      %v6690 = vmul.f32 %v6645, 1.442695
      %v6691 = vpow.pop %v6690
      %v6692 = vmul.f32 %v6646, 1.442695
      %v6693 = vpow.pop %v6692
      %v6694 = vmul.f32 %v6647, 1.442695
      %v6695 = vpow.pop %v6694
      %v6696 = vmul.f32 %v6648, 1.442695
      %v6697 = vpow.pop %v6696
      %v6698 = vmul.f32 %v6649, 1.442695
      %v6699 = vpow.pop %v6698
      %v6700 = vmul.f32 %v6650, 1.442695
      %v6701 = vpow.pop %v6700
      %v6702 = vmul.f32 %v6651, 1.442695
      %v6703 = vpow.pop %v6702
      %v6704 = vmul.f32 %v6652, 1.442695
      %v6705 = vpow.pop %v6704
      %v6706 = vmul.f32 %v6653, 1.442695
      %v6707 = vpow.pop %v6706
      %v6708 = vmul.f32 %v6654, 1.442695
      %v6709 = vpow.pop %v6708
      %v6710 = vmul.f32 %v6655, 1.442695
      %v6711 = vpow.pop %v6710
      %v6712 = vmul.f32 %v6656, 1.442695
      %v6713 = vpow.pop %v6712
      %v6714 = vmul.f32 %v6657, 1.442695
      %v6715 = vpow.pop %v6714
      %v6716 = vmul.f32 %v6658, 1.442695
      %v6717 = vpow.pop %v6716
      %v6718 = vmul.f32 %v6659, 1.442695
      %v6719 = vpow.pop %v6718
      %v6720 = vmul.f32 %v6660, 1.442695
      %v6721 = vpow.pop %v6720
      %v6722 = vmul.f32 %v6661, 1.442695
      %v6723 = vpow.pop %v6722
      %v6724 = vmul.f32 %v6662, 1.442695
      %v6725 = vpow.pop %v6724
      %v6726 = vmul.f32 %v6663, 1.442695
      %v6727 = vpow.pop %v6726
      %v6728 = vsel %vm1453, %v6665, 0.0
      %6729 = vadd.xlane.f32.xlu0 %v6728
      %v6730 = vpop.xlane.xlu0 %6729
      %v6731 = vsel %vm1453, %v6667, 0.0
      %6732 = vadd.xlane.f32.xlu0 %v6731
      %v6733 = vpop.xlane.xlu0 %6732
      %v6734 = vsel %vm1453, %v6669, 0.0
      %6735 = vadd.xlane.f32.xlu0 %v6734
      %v6736 = vpop.xlane.xlu0 %6735
      %v6737 = vsel %vm1453, %v6671, 0.0
      %6738 = vadd.xlane.f32.xlu0 %v6737
      %v6739 = vpop.xlane.xlu0 %6738
      %v6740 = vsel %vm1453, %v6673, 0.0
      %6741 = vadd.xlane.f32.xlu0 %v6740
      %v6742 = vpop.xlane.xlu0 %6741
      %v6743 = vsel %vm1453, %v6675, 0.0
      %6744 = vadd.xlane.f32.xlu0 %v6743
      %v6745 = vpop.xlane.xlu0 %6744
      %v6746 = vsel %vm1453, %v6677, 0.0
      %6747 = vadd.xlane.f32.xlu0 %v6746
      %v6748 = vpop.xlane.xlu0 %6747
      %v6749 = vsel %vm1453, %v6679, 0.0
      %6750 = vadd.xlane.f32.xlu0 %v6749
      %v6751 = vpop.xlane.xlu0 %6750
      %v6752 = vsel %vm1453, %v6681, 0.0
      %6753 = vadd.xlane.f32.xlu0 %v6752
      %v6754 = vpop.xlane.xlu0 %6753
      %v6755 = vsel %vm1453, %v6683, 0.0
      %6756 = vadd.xlane.f32.xlu0 %v6755
      %v6757 = vpop.xlane.xlu0 %6756
      %v6758 = vsel %vm1453, %v6685, 0.0
      %6759 = vadd.xlane.f32.xlu0 %v6758
      %v6760 = vpop.xlane.xlu0 %6759
      %v6761 = vsel %vm1453, %v6687, 0.0
      %6762 = vadd.xlane.f32.xlu0 %v6761
      %v6763 = vpop.xlane.xlu0 %6762
      %v6764 = vsel %vm1453, %v6689, 0.0
      %6765 = vadd.xlane.f32.xlu0 %v6764
      %v6766 = vpop.xlane.xlu0 %6765
      %v6767 = vsel %vm1453, %v6691, 0.0
      %6768 = vadd.xlane.f32.xlu0 %v6767
      %v6769 = vpop.xlane.xlu0 %6768
      %v6770 = vsel %vm1453, %v6693, 0.0
      %6771 = vadd.xlane.f32.xlu0 %v6770
      %v6772 = vpop.xlane.xlu0 %6771
      %v6773 = vsel %vm1453, %v6695, 0.0
      %6774 = vadd.xlane.f32.xlu0 %v6773
      %v6775 = vpop.xlane.xlu0 %6774
      %v6776 = vsel %vm1453, %v6697, 0.0
      %6777 = vadd.xlane.f32.xlu0 %v6776
      %v6778 = vpop.xlane.xlu0 %6777
      %v6779 = vsel %vm1453, %v6699, 0.0
      %6780 = vadd.xlane.f32.xlu0 %v6779
      %v6781 = vpop.xlane.xlu0 %6780
      %v6782 = vsel %vm1453, %v6701, 0.0
      %6783 = vadd.xlane.f32.xlu0 %v6782
      %v6784 = vpop.xlane.xlu0 %6783
      %v6785 = vsel %vm1453, %v6703, 0.0
      %6786 = vadd.xlane.f32.xlu0 %v6785
      %v6787 = vpop.xlane.xlu0 %6786
      %v6788 = vsel %vm1453, %v6705, 0.0
      %6789 = vadd.xlane.f32.xlu0 %v6788
      %v6790 = vpop.xlane.xlu0 %6789
      %v6791 = vsel %vm1453, %v6707, 0.0
      %6792 = vadd.xlane.f32.xlu0 %v6791
      %v6793 = vpop.xlane.xlu0 %6792
      %v6794 = vsel %vm1453, %v6709, 0.0
      %6795 = vadd.xlane.f32.xlu0 %v6794
      %v6796 = vpop.xlane.xlu0 %6795
      %v6797 = vsel %vm1453, %v6711, 0.0
      %6798 = vadd.xlane.f32.xlu0 %v6797
      %v6799 = vpop.xlane.xlu0 %6798
      %v6800 = vsel %vm1453, %v6713, 0.0
      %6801 = vadd.xlane.f32.xlu0 %v6800
      %v6802 = vpop.xlane.xlu0 %6801
      %v6803 = vsel %vm1453, %v6715, 0.0
      %6804 = vadd.xlane.f32.xlu0 %v6803
      %v6805 = vpop.xlane.xlu0 %6804
      %v6806 = vsel %vm1453, %v6717, 0.0
      %6807 = vadd.xlane.f32.xlu0 %v6806
      %v6808 = vpop.xlane.xlu0 %6807
      %v6809 = vsel %vm1453, %v6719, 0.0
      %6810 = vadd.xlane.f32.xlu0 %v6809
      %v6811 = vpop.xlane.xlu0 %6810
      %v6812 = vsel %vm1453, %v6721, 0.0
      %6813 = vadd.xlane.f32.xlu0 %v6812
      %v6814 = vpop.xlane.xlu0 %6813
      %v6815 = vsel %vm1453, %v6723, 0.0
      %6816 = vadd.xlane.f32.xlu0 %v6815
      %v6817 = vpop.xlane.xlu0 %6816
      %v6818 = vsel %vm1453, %v6725, 0.0
      %6819 = vadd.xlane.f32.xlu0 %v6818
      %v6820 = vpop.xlane.xlu0 %6819
      %v6821 = vsel %vm1453, %v6727, 0.0
      %6822 = vadd.xlane.f32.xlu0 %v6821
      %v6823 = vpop.xlane.xlu0 %6822
      %v6824 = vrcp.pop %v6730
      %v6825 = vrcp.pop %v6733
      %v6826 = vrcp.pop %v6736
      %v6827 = vrcp.pop %v6739
      %v6828 = vrcp.pop %v6742
      %v6829 = vrcp.pop %v6745
      %v6830 = vrcp.pop %v6748
      %v6831 = vrcp.pop %v6751
      %v6832 = vrcp.pop %v6754
      %v6833 = vrcp.pop %v6757
      %v6834 = vrcp.pop %v6760
      %v6835 = vrcp.pop %v6763
      %v6836 = vrcp.pop %v6766
      %v6837 = vrcp.pop %v6769
      %v6838 = vrcp.pop %v6772
      %v6839 = vrcp.pop %v6775
      %v6840 = vrcp.pop %v6778
      %v6841 = vrcp.pop %v6781
      %v6842 = vrcp.pop %v6784
      %v6843 = vrcp.pop %v6787
      %v6844 = vrcp.pop %v6790
      %v6845 = vrcp.pop %v6793
      %v6846 = vrcp.pop %v6796
      %v6847 = vrcp.pop %v6799
      %v6848 = vrcp.pop %v6802
      %v6849 = vrcp.pop %v6805
      %v6850 = vrcp.pop %v6808
      %v6851 = vrcp.pop %v6811
      %v6852 = vrcp.pop %v6814
      %v6853 = vrcp.pop %v6817
      %v6854 = vrcp.pop %v6820
      %v6855 = vrcp.pop %v6823
      %v6856 = vmul.f32 %v6665, %v6824
      %v6857 = vmul.f32 %v6667, %v6825
      %v6858 = vmul.f32 %v6669, %v6826
      %v6859 = vmul.f32 %v6671, %v6827
      %v6860 = vmul.f32 %v6673, %v6828
      %v6861 = vmul.f32 %v6675, %v6829
      %v6862 = vmul.f32 %v6677, %v6830
      %v6863 = vmul.f32 %v6679, %v6831
      %v6864 = vmul.f32 %v6681, %v6832
      %v6865 = vmul.f32 %v6683, %v6833
      %v6866 = vmul.f32 %v6685, %v6834
      %v6867 = vmul.f32 %v6687, %v6835
      %v6868 = vmul.f32 %v6689, %v6836
      %v6869 = vmul.f32 %v6691, %v6837
      %v6870 = vmul.f32 %v6693, %v6838
      %v6871 = vmul.f32 %v6695, %v6839
      %v6872 = vmul.f32 %v6697, %v6840
      %v6873 = vmul.f32 %v6699, %v6841
      %v6874 = vmul.f32 %v6701, %v6842
      %v6875 = vmul.f32 %v6703, %v6843
      %v6876 = vmul.f32 %v6705, %v6844
      %v6877 = vmul.f32 %v6707, %v6845
      %v6878 = vmul.f32 %v6709, %v6846
      %v6879 = vmul.f32 %v6711, %v6847
      %v6880 = vmul.f32 %v6713, %v6848
      %v6881 = vmul.f32 %v6715, %v6849
      %v6882 = vmul.f32 %v6717, %v6850
      %v6883 = vmul.f32 %v6719, %v6851
      %v6884 = vmul.f32 %v6721, %v6852
      %v6885 = vmul.f32 %v6723, %v6853
      %v6886 = vmul.f32 %v6725, %v6854
      %v6887 = vmul.f32 %v6727, %v6855
      %v6888 = vpack.c.bf16 %v6857, %v6856
      %v6889 = vpack.c.bf16 %v6859, %v6858
      %v6890 = vpack.c.bf16 %v6861, %v6860
      %v6891 = vpack.c.bf16 %v6863, %v6862
      %v6892 = vpack.c.bf16 %v6865, %v6864
      %v6893 = vpack.c.bf16 %v6867, %v6866
      %v6894 = vpack.c.bf16 %v6869, %v6868
      %v6895 = vpack.c.bf16 %v6871, %v6870
      %v6896 = vpack.c.bf16 %v6873, %v6872
      %v6897 = vpack.c.bf16 %v6875, %v6874
      %v6898 = vpack.c.bf16 %v6877, %v6876
      %v6899 = vpack.c.bf16 %v6879, %v6878
      %v6900 = vpack.c.bf16 %v6881, %v6880
      %v6901 = vpack.c.bf16 %v6883, %v6882
      %v6902 = vpack.c.bf16 %v6885, %v6884
      %v6903 = vpack.c.bf16 %v6887, %v6886
      %6904 = vrot.lane.b32.xlu0 %v6303, 76
      %v6905 = vpop.permute.xlu0 %6904
      %6906 = vrot.lane.b32.xlu0 %v6304, 76
      %v6907 = vpop.permute.xlu0 %6906
      %6908 = vrot.lane.b32.xlu0 %v6305, 76
      %v6909 = vpop.permute.xlu0 %6908
      %6910 = vrot.lane.b32.xlu0 %v6306, 76
      %v6911 = vpop.permute.xlu0 %6910
      %v6917 = vsel %vm1453, %v6888, 0
      %v6920 = vsel %vm1453, %v6889, 0
      %v6923 = vsel %vm1453, %v6890, 0
      %v6926 = vsel %vm1453, %v6891, 0
      %v6929 = vsel %vm1453, %v6892, 0
      %v6932 = vsel %vm1453, %v6893, 0
      %v6935 = vsel %vm1453, %v6894, 0
      %v6938 = vsel %vm1453, %v6895, 0
      %v6941 = vsel %vm1453, %v6896, 0
      %v6944 = vsel %vm1453, %v6897, 0
      %v6947 = vsel %vm1453, %v6898, 0
      %v6950 = vsel %vm1453, %v6899, 0
      %v6953 = vsel %vm1453, %v6900, 0
      %v6956 = vsel %vm1453, %v6901, 0
      %v6959 = vsel %vm1453, %v6902, 0
      %v6962 = vsel %vm1453, %v6903, 0
      %6964 = vmatprep.subr.bf16.mxu0 0
      %6965 = vmatpush1.bf16.msra.mxu0 0
      %6966 = vmatprep.subr.bf16.mxu0 0
      %6967 = vmatpush1.bf16.msra.mxu0 0
      %6968 = vmatprep.subr.bf16.mxu0 0
      %6969 = vmatpush1.bf16.msra.mxu0 0
      %6970 = vmatprep.subr.bf16.mxu0 0
      %6971 = vmatpush1.bf16.msra.mxu0 0
      %6972 = vmatprep.subr.bf16.mxu0 0
      %6973 = vmatpush1.bf16.msra.mxu0 %v6911
      %6974 = vmatprep.subr.bf16.mxu0 0
      %6975 = vmatpush1.bf16.msra.mxu0 %v6909
      %6976 = vmatprep.subr.bf16.mxu0 0
      %6977 = vmatpush1.bf16.msra.mxu0 %v6907
      %6978 = vmatprep.subr.bf16.mxu0 0
      %6979 = vmatpush1.bf16.msra.mxu0 %v6905
      %6980 = vmatprep.subr.bf16.mxu0 0
      %6981 = vmatpush2.bf16.msra.mxu0 0
      %6982 = vmatprep.subr.bf16.mxu0 0
      %6983 = vmatpush2.bf16.msra.mxu0 0
      %6984 = vmatprep.subr.bf16.mxu0 0
      %6985 = vmatpush2.bf16.msra.mxu0 0
      %6986 = vmatprep.subr.bf16.mxu0 0
      %6987 = vmatpush2.bf16.msra.mxu0 0
      %6988 = vmatprep.subr.bf16.mxu0 0
      %6989 = vmatpush2.bf16.msra.mxu0 0
      %6990 = vmatprep.subr.bf16.mxu0 0
      %6991 = vmatpush2.bf16.msra.mxu0 0
      %6992 = vmatprep.subr.bf16.mxu0 0
      %6993 = vmatpush2.bf16.msra.mxu0 0
      %6994 = vmatprep.subr.bf16.mxu0 0
      %6995 = vmatpush2.bf16.msra.mxu0 0
      %6996 = vmatprep.mubr.bf16.mxu0 0
      %6997 = vmatmul.mubr.bf16.gmra.mxu0 %v6917
      %v6998 = vpop.f32.mrf.mxu0
      %v6999 = vadd.f32 0.0, %v6998
      %v7000 = vpop.f32.mrf.mxu0
      %v7001 = vpop.f32.mrf.mxu0
      %v7002 = vadd.f32 0.0, %v7001
      %v7003 = vpop.f32.mrf.mxu0
      %7004 = vmatprep.mubr.bf16.mxu0 0
      %7005 = vmatmul.mubr.bf16.gmra.mxu0 %v6920
      %v7006 = vpop.f32.mrf.mxu0
      %v7007 = vadd.f32 0.0, %v7006
      %v7008 = vpop.f32.mrf.mxu0
      %v7009 = vpop.f32.mrf.mxu0
      %v7010 = vadd.f32 0.0, %v7009
      %v7011 = vpop.f32.mrf.mxu0
      %7012 = vmatprep.mubr.bf16.mxu0 0
      %7013 = vmatmul.mubr.bf16.gmra.mxu0 %v6923
      %v7014 = vpop.f32.mrf.mxu0
      %v7015 = vadd.f32 0.0, %v7014
      %v7016 = vpop.f32.mrf.mxu0
      %v7017 = vpop.f32.mrf.mxu0
      %v7018 = vadd.f32 0.0, %v7017
      %v7019 = vpop.f32.mrf.mxu0
      %7020 = vmatprep.mubr.bf16.mxu0 0
      %7021 = vmatmul.mubr.bf16.gmra.mxu0 %v6926
      %v7022 = vpop.f32.mrf.mxu0
      %v7023 = vadd.f32 0.0, %v7022
      %v7024 = vpop.f32.mrf.mxu0
      %v7025 = vpop.f32.mrf.mxu0
      %v7026 = vadd.f32 0.0, %v7025
      %v7027 = vpop.f32.mrf.mxu0
      %7028 = vmatprep.mubr.bf16.mxu0 0
      %7029 = vmatmul.mubr.bf16.gmra.mxu0 %v6929
      %v7030 = vpop.f32.mrf.mxu0
      %v7031 = vadd.f32 0.0, %v7030
      %v7032 = vpop.f32.mrf.mxu0
      %v7033 = vpop.f32.mrf.mxu0
      %v7034 = vadd.f32 0.0, %v7033
      %v7035 = vpop.f32.mrf.mxu0
      %7036 = vmatprep.mubr.bf16.mxu0 0
      %7037 = vmatmul.mubr.bf16.gmra.mxu0 %v6932
      %v7038 = vpop.f32.mrf.mxu0
      %v7039 = vadd.f32 0.0, %v7038
      %v7040 = vpop.f32.mrf.mxu0
      %v7041 = vpop.f32.mrf.mxu0
      %v7042 = vadd.f32 0.0, %v7041
      %v7043 = vpop.f32.mrf.mxu0
      %7044 = vmatprep.mubr.bf16.mxu0 0
      %7045 = vmatmul.mubr.bf16.gmra.mxu0 %v6935
      %v7046 = vpop.f32.mrf.mxu0
      %v7047 = vadd.f32 0.0, %v7046
      %v7048 = vpop.f32.mrf.mxu0
      %v7049 = vpop.f32.mrf.mxu0
      %v7050 = vadd.f32 0.0, %v7049
      %v7051 = vpop.f32.mrf.mxu0
      %7052 = vmatprep.mubr.bf16.mxu0 0
      %7053 = vmatmul.mubr.bf16.gmra.mxu0 %v6938
      %v7054 = vpop.f32.mrf.mxu0
      %v7055 = vadd.f32 0.0, %v7054
      %v7056 = vpop.f32.mrf.mxu0
      %v7057 = vpop.f32.mrf.mxu0
      %v7058 = vadd.f32 0.0, %v7057
      %v7059 = vpop.f32.mrf.mxu0
      %7060 = vmatprep.mubr.bf16.mxu0 0
      %7061 = vmatmul.mubr.bf16.gmra.mxu0 %v6941
      %v7062 = vpop.f32.mrf.mxu0
      %v7063 = vadd.f32 0.0, %v7062
      %v7064 = vpop.f32.mrf.mxu0
      %v7065 = vpop.f32.mrf.mxu0
      %v7066 = vadd.f32 0.0, %v7065
      %v7067 = vpop.f32.mrf.mxu0
      %7068 = vmatprep.mubr.bf16.mxu0 0
      %7069 = vmatmul.mubr.bf16.gmra.mxu0 %v6944
      %v7070 = vpop.f32.mrf.mxu0
      %v7071 = vadd.f32 0.0, %v7070
      %v7072 = vpop.f32.mrf.mxu0
      %v7073 = vpop.f32.mrf.mxu0
      %v7074 = vadd.f32 0.0, %v7073
      %v7075 = vpop.f32.mrf.mxu0
      %7076 = vmatprep.mubr.bf16.mxu0 0
      %7077 = vmatmul.mubr.bf16.gmra.mxu0 %v6947
      %v7078 = vpop.f32.mrf.mxu0
      %v7079 = vadd.f32 0.0, %v7078
      %v7080 = vpop.f32.mrf.mxu0
      %v7081 = vpop.f32.mrf.mxu0
      %v7082 = vadd.f32 0.0, %v7081
      %v7083 = vpop.f32.mrf.mxu0
      %7084 = vmatprep.mubr.bf16.mxu0 0
      %7085 = vmatmul.mubr.bf16.gmra.mxu0 %v6950
      %v7086 = vpop.f32.mrf.mxu0
      %v7087 = vadd.f32 0.0, %v7086
      %v7088 = vpop.f32.mrf.mxu0
      %v7089 = vpop.f32.mrf.mxu0
      %v7090 = vadd.f32 0.0, %v7089
      %v7091 = vpop.f32.mrf.mxu0
      %7092 = vmatprep.mubr.bf16.mxu0 0
      %7093 = vmatmul.mubr.bf16.gmra.mxu0 %v6953
      %v7094 = vpop.f32.mrf.mxu0
      %v7095 = vadd.f32 0.0, %v7094
      %v7096 = vpop.f32.mrf.mxu0
      %v7097 = vpop.f32.mrf.mxu0
      %v7098 = vadd.f32 0.0, %v7097
      %v7099 = vpop.f32.mrf.mxu0
      %7100 = vmatprep.mubr.bf16.mxu0 0
      %7101 = vmatmul.mubr.bf16.gmra.mxu0 %v6956
      %v7102 = vpop.f32.mrf.mxu0
      %v7103 = vadd.f32 0.0, %v7102
      %v7104 = vpop.f32.mrf.mxu0
      %v7105 = vpop.f32.mrf.mxu0
      %v7106 = vadd.f32 0.0, %v7105
      %v7107 = vpop.f32.mrf.mxu0
      %7108 = vmatprep.mubr.bf16.mxu0 0
      %7109 = vmatmul.mubr.bf16.gmra.mxu0 %v6959
      %v7110 = vpop.f32.mrf.mxu0
      %v7111 = vadd.f32 0.0, %v7110
      %v7112 = vpop.f32.mrf.mxu0
      %v7113 = vpop.f32.mrf.mxu0
      %v7114 = vadd.f32 0.0, %v7113
      %v7115 = vpop.f32.mrf.mxu0
      %7116 = vmatprep.mubr.bf16.mxu0 0
      %7117 = vmatmul.mubr.bf16.gmra.mxu0 %v6962
      %v7118 = vpop.f32.mrf.mxu0
      %v7119 = vadd.f32 0.0, %v7118
      %v7120 = vpop.f32.mrf.mxu0
      %v7121 = vpop.f32.mrf.mxu0
      %v7122 = vadd.f32 0.0, %v7121
      %v7123 = vpop.f32.mrf.mxu0
      %7124 = vdwg.mxu0
      %7157 = vrot.lane.b32.xlu0 %v6999, 20
      %v7158 = vpop.permute.xlu0 %7157
      %7159 = vrot.lane.b32.xlu0 %v7002, 20
      %v7160 = vpop.permute.xlu0 %7159
      %7161 = vrot.lane.b32.xlu0 %v7007, 20
      %v7162 = vpop.permute.xlu0 %7161
      %7163 = vrot.lane.b32.xlu0 %v7010, 20
      %v7164 = vpop.permute.xlu0 %7163
      %7165 = vrot.lane.b32.xlu0 %v7015, 20
      %v7166 = vpop.permute.xlu0 %7165
      %7167 = vrot.lane.b32.xlu0 %v7018, 20
      %v7168 = vpop.permute.xlu0 %7167
      %7169 = vrot.lane.b32.xlu0 %v7023, 20
      %v7170 = vpop.permute.xlu0 %7169
      %7171 = vrot.lane.b32.xlu0 %v7026, 20
      %v7172 = vpop.permute.xlu0 %7171
      %7173 = vrot.lane.b32.xlu0 %v7031, 20
      %v7174 = vpop.permute.xlu0 %7173
      %7175 = vrot.lane.b32.xlu0 %v7034, 20
      %v7176 = vpop.permute.xlu0 %7175
      %7177 = vrot.lane.b32.xlu0 %v7039, 20
      %v7178 = vpop.permute.xlu0 %7177
      %7179 = vrot.lane.b32.xlu0 %v7042, 20
      %v7180 = vpop.permute.xlu0 %7179
      %7181 = vrot.lane.b32.xlu0 %v7047, 20
      %v7182 = vpop.permute.xlu0 %7181
      %7183 = vrot.lane.b32.xlu0 %v7050, 20
      %v7184 = vpop.permute.xlu0 %7183
      %7185 = vrot.lane.b32.xlu0 %v7055, 20
      %v7186 = vpop.permute.xlu0 %7185
      %7187 = vrot.lane.b32.xlu0 %v7058, 20
      %v7188 = vpop.permute.xlu0 %7187
      %7189 = vrot.lane.b32.xlu0 %v7063, 20
      %v7190 = vpop.permute.xlu0 %7189
      %7191 = vrot.lane.b32.xlu0 %v7066, 20
      %v7192 = vpop.permute.xlu0 %7191
      %7193 = vrot.lane.b32.xlu0 %v7071, 20
      %v7194 = vpop.permute.xlu0 %7193
      %7195 = vrot.lane.b32.xlu0 %v7074, 20
      %v7196 = vpop.permute.xlu0 %7195
      %7197 = vrot.lane.b32.xlu0 %v7079, 20
      %v7198 = vpop.permute.xlu0 %7197
      %7199 = vrot.lane.b32.xlu0 %v7082, 20
      %v7200 = vpop.permute.xlu0 %7199
      %7201 = vrot.lane.b32.xlu0 %v7087, 20
      %v7202 = vpop.permute.xlu0 %7201
      %7203 = vrot.lane.b32.xlu0 %v7090, 20
      %v7204 = vpop.permute.xlu0 %7203
      %7205 = vrot.lane.b32.xlu0 %v7095, 20
      %v7206 = vpop.permute.xlu0 %7205
      %7207 = vrot.lane.b32.xlu0 %v7098, 20
      %v7208 = vpop.permute.xlu0 %7207
      %7209 = vrot.lane.b32.xlu0 %v7103, 20
      %v7210 = vpop.permute.xlu0 %7209
      %7211 = vrot.lane.b32.xlu0 %v7106, 20
      %v7212 = vpop.permute.xlu0 %7211
      %7213 = vrot.lane.b32.xlu0 %v7111, 20
      %v7214 = vpop.permute.xlu0 %7213
      %7215 = vrot.lane.b32.xlu0 %v7114, 20
      %v7216 = vpop.permute.xlu0 %7215
      %7217 = vrot.lane.b32.xlu0 %v7119, 20
      %v7218 = vpop.permute.xlu0 %7217
      %7219 = vrot.lane.b32.xlu0 %v7122, 20
      %v7220 = vpop.permute.xlu0 %7219
      %vm7253 = vcmask 195744
      %7254 = vst.msk [vmem:[#allocation3] sm:$0xff] %vm7253, %v7158
      %7255 = vst.msk [vmem:[#allocation3 + $0x8] sm:$0xff] %vm7253, %v7160
      %7256 = vst.msk [vmem:[#allocation3 + $0x10] sm:$0xff] %vm7253, %v7162
      %7257 = vst.msk [vmem:[#allocation3 + $0x18] sm:$0xff] %vm7253, %v7164
      %7258 = vst.msk [vmem:[#allocation3 + $0x20] sm:$0xff] %vm7253, %v7166
      %7259 = vst.msk [vmem:[#allocation3 + $0x28] sm:$0xff] %vm7253, %v7168
      %7260 = vst.msk [vmem:[#allocation3 + $0x30] sm:$0xff] %vm7253, %v7170
      %7261 = vst.msk [vmem:[#allocation3 + $0x38] sm:$0xff] %vm7253, %v7172
      %7262 = vst.msk [vmem:[#allocation3 + $0x40] sm:$0xff] %vm7253, %v7174
      %7263 = vst.msk [vmem:[#allocation3 + $0x48] sm:$0xff] %vm7253, %v7176
      %7264 = vst.msk [vmem:[#allocation3 + $0x50] sm:$0xff] %vm7253, %v7178
      %7265 = vst.msk [vmem:[#allocation3 + $0x58] sm:$0xff] %vm7253, %v7180
      %7266 = vst.msk [vmem:[#allocation3 + $0x60] sm:$0xff] %vm7253, %v7182
      %7267 = vst.msk [vmem:[#allocation3 + $0x68] sm:$0xff] %vm7253, %v7184
      %7268 = vst.msk [vmem:[#allocation3 + $0x70] sm:$0xff] %vm7253, %v7186
      %7269 = vst.msk [vmem:[#allocation3 + $0x78] sm:$0xff] %vm7253, %v7188
      %7270 = vst.msk [vmem:[#allocation3 + $0x80] sm:$0xff] %vm7253, %v7190
      %7271 = vst.msk [vmem:[#allocation3 + $0x88] sm:$0xff] %vm7253, %v7192
      %7272 = vst.msk [vmem:[#allocation3 + $0x90] sm:$0xff] %vm7253, %v7194
      %7273 = vst.msk [vmem:[#allocation3 + $0x98] sm:$0xff] %vm7253, %v7196
      %7274 = vst.msk [vmem:[#allocation3 + $0xa0] sm:$0xff] %vm7253, %v7198
      %7275 = vst.msk [vmem:[#allocation3 + $0xa8] sm:$0xff] %vm7253, %v7200
      %7276 = vst.msk [vmem:[#allocation3 + $0xb0] sm:$0xff] %vm7253, %v7202
      %7277 = vst.msk [vmem:[#allocation3 + $0xb8] sm:$0xff] %vm7253, %v7204
      %7278 = vst.msk [vmem:[#allocation3 + $0xc0] sm:$0xff] %vm7253, %v7206
      %7279 = vst.msk [vmem:[#allocation3 + $0xc8] sm:$0xff] %vm7253, %v7208
      %7280 = vst.msk [vmem:[#allocation3 + $0xd0] sm:$0xff] %vm7253, %v7210
      %7281 = vst.msk [vmem:[#allocation3 + $0xd8] sm:$0xff] %vm7253, %v7212
      %7282 = vst.msk [vmem:[#allocation3 + $0xe0] sm:$0xff] %vm7253, %v7214
      %7283 = vst.msk [vmem:[#allocation3 + $0xe8] sm:$0xff] %vm7253, %v7216
      %7284 = vst.msk [vmem:[#allocation3 + $0xf0] sm:$0xff] %vm7253, %v7218
      %7285 = vst.msk [vmem:[#allocation3 + $0xf8] sm:$0xff] %vm7253, %v7220
      %v7286 = vld [vmem:[#allocation2] sm:$0xf]
      %v7287 = vld [vmem:[#allocation2 + $0x4] sm:$0xf]
      %v7288 = vld [vmem:[#allocation2 + $0x8] sm:$0xf]
      %v7289 = vld [vmem:[#allocation2 + $0xc] sm:$0xf]
      %v7290 = vld [vmem:[#allocation2 + $0x10] sm:$0xf]
      %v7291 = vld [vmem:[#allocation2 + $0x14] sm:$0xf]
      %v7292 = vld [vmem:[#allocation2 + $0x18] sm:$0xf]
      %v7293 = vld [vmem:[#allocation2 + $0x1c] sm:$0xf]
      %7294 = vrot.lane.b32.xlu0 %v1187, 104
      %v7295 = vpop.permute.xlu0 %7294
      %7296 = vrot.lane.b32.xlu0 %v1188, 104
      %v7297 = vpop.permute.xlu0 %7296
      %7298 = vrot.lane.b32.xlu0 %v1189, 104
      %v7299 = vpop.permute.xlu0 %7298
      %7300 = vrot.lane.b32.xlu0 %v1190, 104
      %v7301 = vpop.permute.xlu0 %7300
      %7302 = vrot.lane.b32.xlu0 %v1191, 104
      %v7303 = vpop.permute.xlu0 %7302
      %7304 = vrot.lane.b32.xlu0 %v1192, 104
      %v7305 = vpop.permute.xlu0 %7304
      %7306 = vrot.lane.b32.xlu0 %v1193, 104
      %v7307 = vpop.permute.xlu0 %7306
      %7308 = vrot.lane.b32.xlu0 %v1194, 104
      %v7309 = vpop.permute.xlu0 %7308
      %7310 = vrot.lane.b32.xlu0 %v1195, 104
      %v7311 = vpop.permute.xlu0 %7310
      %7312 = vrot.lane.b32.xlu0 %v1196, 104
      %v7313 = vpop.permute.xlu0 %7312
      %7314 = vrot.lane.b32.xlu0 %v1197, 104
      %v7315 = vpop.permute.xlu0 %7314
      %7316 = vrot.lane.b32.xlu0 %v1198, 104
      %v7317 = vpop.permute.xlu0 %7316
      %7318 = vrot.lane.b32.xlu0 %v1199, 104
      %v7319 = vpop.permute.xlu0 %7318
      %7320 = vrot.lane.b32.xlu0 %v1200, 104
      %v7321 = vpop.permute.xlu0 %7320
      %7322 = vrot.lane.b32.xlu0 %v1201, 104
      %v7323 = vpop.permute.xlu0 %7322
      %7324 = vrot.lane.b32.xlu0 %v1202, 104
      %v7325 = vpop.permute.xlu0 %7324
      %v7334 = vunpack.c.l.b16 %v7286
      %v7335 = vunpack.c.l.b16 %v7287
      %v7336 = vunpack.c.l.b16 %v7288
      %v7337 = vunpack.c.l.b16 %v7289
      %v7338 = vunpack.c.l.b16 %v7290
      %v7339 = vunpack.c.l.b16 %v7291
      %v7340 = vunpack.c.l.b16 %v7292
      %v7341 = vunpack.c.l.b16 %v7293
      %v7342 = vpack.c.b16 %v7335, %v7334
      %v7343 = vpack.c.b16 %v7337, %v7336
      %v7344 = vpack.c.b16 %v7339, %v7338
      %v7345 = vpack.c.b16 %v7341, %v7340
      %7346 = vrot.lane.b32.xlu0 %v7342, 104
      %v7347 = vpop.permute.xlu0 %7346
      %7348 = vrot.lane.b32.xlu0 %v7343, 104
      %v7349 = vpop.permute.xlu0 %7348
      %7350 = vrot.lane.b32.xlu0 %v7344, 104
      %v7351 = vpop.permute.xlu0 %7350
      %7352 = vrot.lane.b32.xlu0 %v7345, 104
      %v7353 = vpop.permute.xlu0 %7352
      %v7355 = vsel %vm1231, %v7295, 0
      %v7358 = vsel %vm1231, %v7297, 0
      %v7361 = vsel %vm1231, %v7299, 0
      %v7364 = vsel %vm1231, %v7301, 0
      %v7367 = vsel %vm1231, %v7303, 0
      %v7370 = vsel %vm1231, %v7305, 0
      %v7373 = vsel %vm1231, %v7307, 0
      %v7376 = vsel %vm1231, %v7309, 0
      %v7379 = vsel %vm1231, %v7311, 0
      %v7382 = vsel %vm1231, %v7313, 0
      %v7385 = vsel %vm1231, %v7315, 0
      %v7388 = vsel %vm1231, %v7317, 0
      %v7391 = vsel %vm1231, %v7319, 0
      %v7394 = vsel %vm1231, %v7321, 0
      %v7397 = vsel %vm1231, %v7323, 0
      %v7400 = vsel %vm1231, %v7325, 0
      %v7403 = vsel %vm1231, %v7347, 0
      %v7406 = vsel %vm1231, %v7349, 0
      %v7409 = vsel %vm1231, %v7351, 0
      %v7412 = vsel %vm1231, %v7353, 0
      %7414 = vmatprep.subr.bf16.mxu0 0
      %7415 = vmatpush1.bf16.xpose.msra.mxu0 0
      %7416 = vmatprep.subr.bf16.mxu0 0
      %7417 = vmatpush1.bf16.xpose.msra.mxu0 0
      %7418 = vmatprep.subr.bf16.mxu0 0
      %7419 = vmatpush1.bf16.xpose.msra.mxu0 0
      %7420 = vmatprep.subr.bf16.mxu0 0
      %7421 = vmatpush1.bf16.xpose.msra.mxu0 0
      %7422 = vmatprep.subr.bf16.mxu0 0
      %7423 = vmatpush1.bf16.xpose.msra.mxu0 %v7412
      %7424 = vmatprep.subr.bf16.mxu0 0
      %7425 = vmatpush1.bf16.xpose.msra.mxu0 %v7409
      %7426 = vmatprep.subr.bf16.mxu0 0
      %7427 = vmatpush1.bf16.xpose.msra.mxu0 %v7406
      %7428 = vmatprep.subr.bf16.mxu0 0
      %7429 = vmatpush1.bf16.xpose.msra.mxu0 %v7403
      %7430 = vmatprep.subr.bf16.mxu0 0
      %7431 = vmatpush2.bf16.xpose.msra.mxu0 0
      %7432 = vmatprep.subr.bf16.mxu0 0
      %7433 = vmatpush2.bf16.xpose.msra.mxu0 0
      %7434 = vmatprep.subr.bf16.mxu0 0
      %7435 = vmatpush2.bf16.xpose.msra.mxu0 0
      %7436 = vmatprep.subr.bf16.mxu0 0
      %7437 = vmatpush2.bf16.xpose.msra.mxu0 0
      %7438 = vmatprep.subr.bf16.mxu0 0
      %7439 = vmatpush2.bf16.xpose.msra.mxu0 0
      %7440 = vmatprep.subr.bf16.mxu0 0
      %7441 = vmatpush2.bf16.xpose.msra.mxu0 0
      %7442 = vmatprep.subr.bf16.mxu0 0
      %7443 = vmatpush2.bf16.xpose.msra.mxu0 0
      %7444 = vmatprep.subr.bf16.mxu0 0
      %7445 = vmatpush2.bf16.xpose.msra.mxu0 0
      %7446 = vmatprep.mubr.bf16.mxu0 0
      %7447 = vmatmul.mubr.bf16.gmra.mxu0 %v7355
      %v7448 = vpop.f32.mrf.mxu0
      %v7449 = vadd.f32 0.0, %v7448
      %v7450 = vpop.f32.mrf.mxu0
      %v7451 = vpop.f32.mrf.mxu0
      %v7452 = vadd.f32 0.0, %v7451
      %v7453 = vpop.f32.mrf.mxu0
      %7454 = vmatprep.mubr.bf16.mxu0 0
      %7455 = vmatmul.mubr.bf16.gmra.mxu0 %v7358
      %v7456 = vpop.f32.mrf.mxu0
      %v7457 = vadd.f32 0.0, %v7456
      %v7458 = vpop.f32.mrf.mxu0
      %v7459 = vpop.f32.mrf.mxu0
      %v7460 = vadd.f32 0.0, %v7459
      %v7461 = vpop.f32.mrf.mxu0
      %7462 = vmatprep.mubr.bf16.mxu0 0
      %7463 = vmatmul.mubr.bf16.gmra.mxu0 %v7361
      %v7464 = vpop.f32.mrf.mxu0
      %v7465 = vadd.f32 0.0, %v7464
      %v7466 = vpop.f32.mrf.mxu0
      %v7467 = vpop.f32.mrf.mxu0
      %v7468 = vadd.f32 0.0, %v7467
      %v7469 = vpop.f32.mrf.mxu0
      %7470 = vmatprep.mubr.bf16.mxu0 0
      %7471 = vmatmul.mubr.bf16.gmra.mxu0 %v7364
      %v7472 = vpop.f32.mrf.mxu0
      %v7473 = vadd.f32 0.0, %v7472
      %v7474 = vpop.f32.mrf.mxu0
      %v7475 = vpop.f32.mrf.mxu0
      %v7476 = vadd.f32 0.0, %v7475
      %v7477 = vpop.f32.mrf.mxu0
      %7478 = vmatprep.mubr.bf16.mxu0 0
      %7479 = vmatmul.mubr.bf16.gmra.mxu0 %v7367
      %v7480 = vpop.f32.mrf.mxu0
      %v7481 = vadd.f32 0.0, %v7480
      %v7482 = vpop.f32.mrf.mxu0
      %v7483 = vpop.f32.mrf.mxu0
      %v7484 = vadd.f32 0.0, %v7483
      %v7485 = vpop.f32.mrf.mxu0
      %7486 = vmatprep.mubr.bf16.mxu0 0
      %7487 = vmatmul.mubr.bf16.gmra.mxu0 %v7370
      %v7488 = vpop.f32.mrf.mxu0
      %v7489 = vadd.f32 0.0, %v7488
      %v7490 = vpop.f32.mrf.mxu0
      %v7491 = vpop.f32.mrf.mxu0
      %v7492 = vadd.f32 0.0, %v7491
      %v7493 = vpop.f32.mrf.mxu0
      %7494 = vmatprep.mubr.bf16.mxu0 0
      %7495 = vmatmul.mubr.bf16.gmra.mxu0 %v7373
      %v7496 = vpop.f32.mrf.mxu0
      %v7497 = vadd.f32 0.0, %v7496
      %v7498 = vpop.f32.mrf.mxu0
      %v7499 = vpop.f32.mrf.mxu0
      %v7500 = vadd.f32 0.0, %v7499
      %v7501 = vpop.f32.mrf.mxu0
      %7502 = vmatprep.mubr.bf16.mxu0 0
      %7503 = vmatmul.mubr.bf16.gmra.mxu0 %v7376
      %v7504 = vpop.f32.mrf.mxu0
      %v7505 = vadd.f32 0.0, %v7504
      %v7506 = vpop.f32.mrf.mxu0
      %v7507 = vpop.f32.mrf.mxu0
      %v7508 = vadd.f32 0.0, %v7507
      %v7509 = vpop.f32.mrf.mxu0
      %7510 = vmatprep.mubr.bf16.mxu0 0
      %7511 = vmatmul.mubr.bf16.gmra.mxu0 %v7379
      %v7512 = vpop.f32.mrf.mxu0
      %v7513 = vadd.f32 0.0, %v7512
      %v7514 = vpop.f32.mrf.mxu0
      %v7515 = vpop.f32.mrf.mxu0
      %v7516 = vadd.f32 0.0, %v7515
      %v7517 = vpop.f32.mrf.mxu0
      %7518 = vmatprep.mubr.bf16.mxu0 0
      %7519 = vmatmul.mubr.bf16.gmra.mxu0 %v7382
      %v7520 = vpop.f32.mrf.mxu0
      %v7521 = vadd.f32 0.0, %v7520
      %v7522 = vpop.f32.mrf.mxu0
      %v7523 = vpop.f32.mrf.mxu0
      %v7524 = vadd.f32 0.0, %v7523
      %v7525 = vpop.f32.mrf.mxu0
      %7526 = vmatprep.mubr.bf16.mxu0 0
      %7527 = vmatmul.mubr.bf16.gmra.mxu0 %v7385
      %v7528 = vpop.f32.mrf.mxu0
      %v7529 = vadd.f32 0.0, %v7528
      %v7530 = vpop.f32.mrf.mxu0
      %v7531 = vpop.f32.mrf.mxu0
      %v7532 = vadd.f32 0.0, %v7531
      %v7533 = vpop.f32.mrf.mxu0
      %7534 = vmatprep.mubr.bf16.mxu0 0
      %7535 = vmatmul.mubr.bf16.gmra.mxu0 %v7388
      %v7536 = vpop.f32.mrf.mxu0
      %v7537 = vadd.f32 0.0, %v7536
      %v7538 = vpop.f32.mrf.mxu0
      %v7539 = vpop.f32.mrf.mxu0
      %v7540 = vadd.f32 0.0, %v7539
      %v7541 = vpop.f32.mrf.mxu0
      %7542 = vmatprep.mubr.bf16.mxu0 0
      %7543 = vmatmul.mubr.bf16.gmra.mxu0 %v7391
      %v7544 = vpop.f32.mrf.mxu0
      %v7545 = vadd.f32 0.0, %v7544
      %v7546 = vpop.f32.mrf.mxu0
      %v7547 = vpop.f32.mrf.mxu0
      %v7548 = vadd.f32 0.0, %v7547
      %v7549 = vpop.f32.mrf.mxu0
      %7550 = vmatprep.mubr.bf16.mxu0 0
      %7551 = vmatmul.mubr.bf16.gmra.mxu0 %v7394
      %v7552 = vpop.f32.mrf.mxu0
      %v7553 = vadd.f32 0.0, %v7552
      %v7554 = vpop.f32.mrf.mxu0
      %v7555 = vpop.f32.mrf.mxu0
      %v7556 = vadd.f32 0.0, %v7555
      %v7557 = vpop.f32.mrf.mxu0
      %7558 = vmatprep.mubr.bf16.mxu0 0
      %7559 = vmatmul.mubr.bf16.gmra.mxu0 %v7397
      %v7560 = vpop.f32.mrf.mxu0
      %v7561 = vadd.f32 0.0, %v7560
      %v7562 = vpop.f32.mrf.mxu0
      %v7563 = vpop.f32.mrf.mxu0
      %v7564 = vadd.f32 0.0, %v7563
      %v7565 = vpop.f32.mrf.mxu0
      %7566 = vmatprep.mubr.bf16.mxu0 0
      %7567 = vmatmul.mubr.bf16.gmra.mxu0 %v7400
      %v7568 = vpop.f32.mrf.mxu0
      %v7569 = vadd.f32 0.0, %v7568
      %v7570 = vpop.f32.mrf.mxu0
      %v7571 = vpop.f32.mrf.mxu0
      %v7572 = vadd.f32 0.0, %v7571
      %v7573 = vpop.f32.mrf.mxu0
      %7574 = vdwg.mxu0
      %v7575 = vsel %vm1453, %v7449, -inf
      %7576 = vmax.xlane.f32.xlu0 %v7575
      %v7577 = vpop.xlane.xlu0 %7576
      %v7578 = vsel %vm1453, %v7452, -inf
      %7579 = vmax.xlane.f32.xlu0 %v7578
      %v7580 = vpop.xlane.xlu0 %7579
      %v7581 = vsel %vm1453, %v7457, -inf
      %7582 = vmax.xlane.f32.xlu0 %v7581
      %v7583 = vpop.xlane.xlu0 %7582
      %v7584 = vsel %vm1453, %v7460, -inf
      %7585 = vmax.xlane.f32.xlu0 %v7584
      %v7586 = vpop.xlane.xlu0 %7585
      %v7587 = vsel %vm1453, %v7465, -inf
      %7588 = vmax.xlane.f32.xlu0 %v7587
      %v7589 = vpop.xlane.xlu0 %7588
      %v7590 = vsel %vm1453, %v7468, -inf
      %7591 = vmax.xlane.f32.xlu0 %v7590
      %v7592 = vpop.xlane.xlu0 %7591
      %v7593 = vsel %vm1453, %v7473, -inf
      %7594 = vmax.xlane.f32.xlu0 %v7593
      %v7595 = vpop.xlane.xlu0 %7594
      %v7596 = vsel %vm1453, %v7476, -inf
      %7597 = vmax.xlane.f32.xlu0 %v7596
      %v7598 = vpop.xlane.xlu0 %7597
      %v7599 = vsel %vm1453, %v7481, -inf
      %7600 = vmax.xlane.f32.xlu0 %v7599
      %v7601 = vpop.xlane.xlu0 %7600
      %v7602 = vsel %vm1453, %v7484, -inf
      %7603 = vmax.xlane.f32.xlu0 %v7602
      %v7604 = vpop.xlane.xlu0 %7603
      %v7605 = vsel %vm1453, %v7489, -inf
      %7606 = vmax.xlane.f32.xlu0 %v7605
      %v7607 = vpop.xlane.xlu0 %7606
      %v7608 = vsel %vm1453, %v7492, -inf
      %7609 = vmax.xlane.f32.xlu0 %v7608
      %v7610 = vpop.xlane.xlu0 %7609
      %v7611 = vsel %vm1453, %v7497, -inf
      %7612 = vmax.xlane.f32.xlu0 %v7611
      %v7613 = vpop.xlane.xlu0 %7612
      %v7614 = vsel %vm1453, %v7500, -inf
      %7615 = vmax.xlane.f32.xlu0 %v7614
      %v7616 = vpop.xlane.xlu0 %7615
      %v7617 = vsel %vm1453, %v7505, -inf
      %7618 = vmax.xlane.f32.xlu0 %v7617
      %v7619 = vpop.xlane.xlu0 %7618
      %v7620 = vsel %vm1453, %v7508, -inf
      %7621 = vmax.xlane.f32.xlu0 %v7620
      %v7622 = vpop.xlane.xlu0 %7621
      %v7623 = vsel %vm1453, %v7513, -inf
      %7624 = vmax.xlane.f32.xlu0 %v7623
      %v7625 = vpop.xlane.xlu0 %7624
      %v7626 = vsel %vm1453, %v7516, -inf
      %7627 = vmax.xlane.f32.xlu0 %v7626
      %v7628 = vpop.xlane.xlu0 %7627
      %v7629 = vsel %vm1453, %v7521, -inf
      %7630 = vmax.xlane.f32.xlu0 %v7629
      %v7631 = vpop.xlane.xlu0 %7630
      %v7632 = vsel %vm1453, %v7524, -inf
      %7633 = vmax.xlane.f32.xlu0 %v7632
      %v7634 = vpop.xlane.xlu0 %7633
      %v7635 = vsel %vm1453, %v7529, -inf
      %7636 = vmax.xlane.f32.xlu0 %v7635
      %v7637 = vpop.xlane.xlu0 %7636
      %v7638 = vsel %vm1453, %v7532, -inf
      %7639 = vmax.xlane.f32.xlu0 %v7638
      %v7640 = vpop.xlane.xlu0 %7639
      %v7641 = vsel %vm1453, %v7537, -inf
      %7642 = vmax.xlane.f32.xlu0 %v7641
      %v7643 = vpop.xlane.xlu0 %7642
      %v7644 = vsel %vm1453, %v7540, -inf
      %7645 = vmax.xlane.f32.xlu0 %v7644
      %v7646 = vpop.xlane.xlu0 %7645
      %v7647 = vsel %vm1453, %v7545, -inf
      %7648 = vmax.xlane.f32.xlu0 %v7647
      %v7649 = vpop.xlane.xlu0 %7648
      %v7650 = vsel %vm1453, %v7548, -inf
      %7651 = vmax.xlane.f32.xlu0 %v7650
      %v7652 = vpop.xlane.xlu0 %7651
      %v7653 = vsel %vm1453, %v7553, -inf
      %7654 = vmax.xlane.f32.xlu0 %v7653
      %v7655 = vpop.xlane.xlu0 %7654
      %v7656 = vsel %vm1453, %v7556, -inf
      %7657 = vmax.xlane.f32.xlu0 %v7656
      %v7658 = vpop.xlane.xlu0 %7657
      %v7659 = vsel %vm1453, %v7561, -inf
      %7660 = vmax.xlane.f32.xlu0 %v7659
      %v7661 = vpop.xlane.xlu0 %7660
      %v7662 = vsel %vm1453, %v7564, -inf
      %7663 = vmax.xlane.f32.xlu0 %v7662
      %v7664 = vpop.xlane.xlu0 %7663
      %v7665 = vsel %vm1453, %v7569, -inf
      %7666 = vmax.xlane.f32.xlu0 %v7665
      %v7667 = vpop.xlane.xlu0 %7666
      %v7668 = vsel %vm1453, %v7572, -inf
      %7669 = vmax.xlane.f32.xlu0 %v7668
      %v7670 = vpop.xlane.xlu0 %7669
      %v7671 = vsub.f32 %v7449, %v7577
      %v7672 = vsub.f32 %v7452, %v7580
      %v7673 = vsub.f32 %v7457, %v7583
      %v7674 = vsub.f32 %v7460, %v7586
      %v7675 = vsub.f32 %v7465, %v7589
      %v7676 = vsub.f32 %v7468, %v7592
      %v7677 = vsub.f32 %v7473, %v7595
      %v7678 = vsub.f32 %v7476, %v7598
      %v7679 = vsub.f32 %v7481, %v7601
      %v7680 = vsub.f32 %v7484, %v7604
      %v7681 = vsub.f32 %v7489, %v7607
      %v7682 = vsub.f32 %v7492, %v7610
      %v7683 = vsub.f32 %v7497, %v7613
      %v7684 = vsub.f32 %v7500, %v7616
      %v7685 = vsub.f32 %v7505, %v7619
      %v7686 = vsub.f32 %v7508, %v7622
      %v7687 = vsub.f32 %v7513, %v7625
      %v7688 = vsub.f32 %v7516, %v7628
      %v7689 = vsub.f32 %v7521, %v7631
      %v7690 = vsub.f32 %v7524, %v7634
      %v7691 = vsub.f32 %v7529, %v7637
      %v7692 = vsub.f32 %v7532, %v7640
      %v7693 = vsub.f32 %v7537, %v7643
      %v7694 = vsub.f32 %v7540, %v7646
      %v7695 = vsub.f32 %v7545, %v7649
      %v7696 = vsub.f32 %v7548, %v7652
      %v7697 = vsub.f32 %v7553, %v7655
      %v7698 = vsub.f32 %v7556, %v7658
      %v7699 = vsub.f32 %v7561, %v7661
      %v7700 = vsub.f32 %v7564, %v7664
      %v7701 = vsub.f32 %v7569, %v7667
      %v7702 = vsub.f32 %v7572, %v7670
      %v7703 = vmul.f32 %v7671, 1.442695
      %v7704 = vpow.pop %v7703
      %v7705 = vmul.f32 %v7672, 1.442695
      %v7706 = vpow.pop %v7705
      %v7707 = vmul.f32 %v7673, 1.442695
      %v7708 = vpow.pop %v7707
      %v7709 = vmul.f32 %v7674, 1.442695
      %v7710 = vpow.pop %v7709
      %v7711 = vmul.f32 %v7675, 1.442695
      %v7712 = vpow.pop %v7711
      %v7713 = vmul.f32 %v7676, 1.442695
      %v7714 = vpow.pop %v7713
      %v7715 = vmul.f32 %v7677, 1.442695
      %v7716 = vpow.pop %v7715
      %v7717 = vmul.f32 %v7678, 1.442695
      %v7718 = vpow.pop %v7717
      %v7719 = vmul.f32 %v7679, 1.442695
      %v7720 = vpow.pop %v7719
      %v7721 = vmul.f32 %v7680, 1.442695
      %v7722 = vpow.pop %v7721
      %v7723 = vmul.f32 %v7681, 1.442695
      %v7724 = vpow.pop %v7723
      %v7725 = vmul.f32 %v7682, 1.442695
      %v7726 = vpow.pop %v7725
      %v7727 = vmul.f32 %v7683, 1.442695
      %v7728 = vpow.pop %v7727
      %v7729 = vmul.f32 %v7684, 1.442695
      %v7730 = vpow.pop %v7729
      %v7731 = vmul.f32 %v7685, 1.442695
      %v7732 = vpow.pop %v7731
      %v7733 = vmul.f32 %v7686, 1.442695
      %v7734 = vpow.pop %v7733
      %v7735 = vmul.f32 %v7687, 1.442695
      %v7736 = vpow.pop %v7735
      %v7737 = vmul.f32 %v7688, 1.442695
      %v7738 = vpow.pop %v7737
      %v7739 = vmul.f32 %v7689, 1.442695
      %v7740 = vpow.pop %v7739
      %v7741 = vmul.f32 %v7690, 1.442695
      %v7742 = vpow.pop %v7741
      %v7743 = vmul.f32 %v7691, 1.442695
      %v7744 = vpow.pop %v7743
      %v7745 = vmul.f32 %v7692, 1.442695
      %v7746 = vpow.pop %v7745
      %v7747 = vmul.f32 %v7693, 1.442695
      %v7748 = vpow.pop %v7747
      %v7749 = vmul.f32 %v7694, 1.442695
      %v7750 = vpow.pop %v7749
      %v7751 = vmul.f32 %v7695, 1.442695
      %v7752 = vpow.pop %v7751
      %v7753 = vmul.f32 %v7696, 1.442695
      %v7754 = vpow.pop %v7753
      %v7755 = vmul.f32 %v7697, 1.442695
      %v7756 = vpow.pop %v7755
      %v7757 = vmul.f32 %v7698, 1.442695
      %v7758 = vpow.pop %v7757
      %v7759 = vmul.f32 %v7699, 1.442695
      %v7760 = vpow.pop %v7759
      %v7761 = vmul.f32 %v7700, 1.442695
      %v7762 = vpow.pop %v7761
      %v7763 = vmul.f32 %v7701, 1.442695
      %v7764 = vpow.pop %v7763
      %v7765 = vmul.f32 %v7702, 1.442695
      %v7766 = vpow.pop %v7765
      %v7767 = vsel %vm1453, %v7704, 0.0
      %7768 = vadd.xlane.f32.xlu0 %v7767
      %v7769 = vpop.xlane.xlu0 %7768
      %v7770 = vsel %vm1453, %v7706, 0.0
      %7771 = vadd.xlane.f32.xlu0 %v7770
      %v7772 = vpop.xlane.xlu0 %7771
      %v7773 = vsel %vm1453, %v7708, 0.0
      %7774 = vadd.xlane.f32.xlu0 %v7773
      %v7775 = vpop.xlane.xlu0 %7774
      %v7776 = vsel %vm1453, %v7710, 0.0
      %7777 = vadd.xlane.f32.xlu0 %v7776
      %v7778 = vpop.xlane.xlu0 %7777
      %v7779 = vsel %vm1453, %v7712, 0.0
      %7780 = vadd.xlane.f32.xlu0 %v7779
      %v7781 = vpop.xlane.xlu0 %7780
      %v7782 = vsel %vm1453, %v7714, 0.0
      %7783 = vadd.xlane.f32.xlu0 %v7782
      %v7784 = vpop.xlane.xlu0 %7783
      %v7785 = vsel %vm1453, %v7716, 0.0
      %7786 = vadd.xlane.f32.xlu0 %v7785
      %v7787 = vpop.xlane.xlu0 %7786
      %v7788 = vsel %vm1453, %v7718, 0.0
      %7789 = vadd.xlane.f32.xlu0 %v7788
      %v7790 = vpop.xlane.xlu0 %7789
      %v7791 = vsel %vm1453, %v7720, 0.0
      %7792 = vadd.xlane.f32.xlu0 %v7791
      %v7793 = vpop.xlane.xlu0 %7792
      %v7794 = vsel %vm1453, %v7722, 0.0
      %7795 = vadd.xlane.f32.xlu0 %v7794
      %v7796 = vpop.xlane.xlu0 %7795
      %v7797 = vsel %vm1453, %v7724, 0.0
      %7798 = vadd.xlane.f32.xlu0 %v7797
      %v7799 = vpop.xlane.xlu0 %7798
      %v7800 = vsel %vm1453, %v7726, 0.0
      %7801 = vadd.xlane.f32.xlu0 %v7800
      %v7802 = vpop.xlane.xlu0 %7801
      %v7803 = vsel %vm1453, %v7728, 0.0
      %7804 = vadd.xlane.f32.xlu0 %v7803
      %v7805 = vpop.xlane.xlu0 %7804
      %v7806 = vsel %vm1453, %v7730, 0.0
      %7807 = vadd.xlane.f32.xlu0 %v7806
      %v7808 = vpop.xlane.xlu0 %7807
      %v7809 = vsel %vm1453, %v7732, 0.0
      %7810 = vadd.xlane.f32.xlu0 %v7809
      %v7811 = vpop.xlane.xlu0 %7810
      %v7812 = vsel %vm1453, %v7734, 0.0
      %7813 = vadd.xlane.f32.xlu0 %v7812
      %v7814 = vpop.xlane.xlu0 %7813
      %v7815 = vsel %vm1453, %v7736, 0.0
      %7816 = vadd.xlane.f32.xlu0 %v7815
      %v7817 = vpop.xlane.xlu0 %7816
      %v7818 = vsel %vm1453, %v7738, 0.0
      %7819 = vadd.xlane.f32.xlu0 %v7818
      %v7820 = vpop.xlane.xlu0 %7819
      %v7821 = vsel %vm1453, %v7740, 0.0
      %7822 = vadd.xlane.f32.xlu0 %v7821
      %v7823 = vpop.xlane.xlu0 %7822
      %v7824 = vsel %vm1453, %v7742, 0.0
      %7825 = vadd.xlane.f32.xlu0 %v7824
      %v7826 = vpop.xlane.xlu0 %7825
      %v7827 = vsel %vm1453, %v7744, 0.0
      %7828 = vadd.xlane.f32.xlu0 %v7827
      %v7829 = vpop.xlane.xlu0 %7828
      %v7830 = vsel %vm1453, %v7746, 0.0
      %7831 = vadd.xlane.f32.xlu0 %v7830
      %v7832 = vpop.xlane.xlu0 %7831
      %v7833 = vsel %vm1453, %v7748, 0.0
      %7834 = vadd.xlane.f32.xlu0 %v7833
      %v7835 = vpop.xlane.xlu0 %7834
      %v7836 = vsel %vm1453, %v7750, 0.0
      %7837 = vadd.xlane.f32.xlu0 %v7836
      %v7838 = vpop.xlane.xlu0 %7837
      %v7839 = vsel %vm1453, %v7752, 0.0
      %7840 = vadd.xlane.f32.xlu0 %v7839
      %v7841 = vpop.xlane.xlu0 %7840
      %v7842 = vsel %vm1453, %v7754, 0.0
      %7843 = vadd.xlane.f32.xlu0 %v7842
      %v7844 = vpop.xlane.xlu0 %7843
      %v7845 = vsel %vm1453, %v7756, 0.0
      %7846 = vadd.xlane.f32.xlu0 %v7845
      %v7847 = vpop.xlane.xlu0 %7846
      %v7848 = vsel %vm1453, %v7758, 0.0
      %7849 = vadd.xlane.f32.xlu0 %v7848
      %v7850 = vpop.xlane.xlu0 %7849
      %v7851 = vsel %vm1453, %v7760, 0.0
      %7852 = vadd.xlane.f32.xlu0 %v7851
      %v7853 = vpop.xlane.xlu0 %7852
      %v7854 = vsel %vm1453, %v7762, 0.0
      %7855 = vadd.xlane.f32.xlu0 %v7854
      %v7856 = vpop.xlane.xlu0 %7855
      %v7857 = vsel %vm1453, %v7764, 0.0
      %7858 = vadd.xlane.f32.xlu0 %v7857
      %v7859 = vpop.xlane.xlu0 %7858
      %v7860 = vsel %vm1453, %v7766, 0.0
      %7861 = vadd.xlane.f32.xlu0 %v7860
      %v7862 = vpop.xlane.xlu0 %7861
      %v7863 = vrcp.pop %v7769
      %v7864 = vrcp.pop %v7772
      %v7865 = vrcp.pop %v7775
      %v7866 = vrcp.pop %v7778
      %v7867 = vrcp.pop %v7781
      %v7868 = vrcp.pop %v7784
      %v7869 = vrcp.pop %v7787
      %v7870 = vrcp.pop %v7790
      %v7871 = vrcp.pop %v7793
      %v7872 = vrcp.pop %v7796
      %v7873 = vrcp.pop %v7799
      %v7874 = vrcp.pop %v7802
      %v7875 = vrcp.pop %v7805
      %v7876 = vrcp.pop %v7808
      %v7877 = vrcp.pop %v7811
      %v7878 = vrcp.pop %v7814
      %v7879 = vrcp.pop %v7817
      %v7880 = vrcp.pop %v7820
      %v7881 = vrcp.pop %v7823
      %v7882 = vrcp.pop %v7826
      %v7883 = vrcp.pop %v7829
      %v7884 = vrcp.pop %v7832
      %v7885 = vrcp.pop %v7835
      %v7886 = vrcp.pop %v7838
      %v7887 = vrcp.pop %v7841
      %v7888 = vrcp.pop %v7844
      %v7889 = vrcp.pop %v7847
      %v7890 = vrcp.pop %v7850
      %v7891 = vrcp.pop %v7853
      %v7892 = vrcp.pop %v7856
      %v7893 = vrcp.pop %v7859
      %v7894 = vrcp.pop %v7862
      %v7895 = vmul.f32 %v7704, %v7863
      %v7896 = vmul.f32 %v7706, %v7864
      %v7897 = vmul.f32 %v7708, %v7865
      %v7898 = vmul.f32 %v7710, %v7866
      %v7899 = vmul.f32 %v7712, %v7867
      %v7900 = vmul.f32 %v7714, %v7868
      %v7901 = vmul.f32 %v7716, %v7869
      %v7902 = vmul.f32 %v7718, %v7870
      %v7903 = vmul.f32 %v7720, %v7871
      %v7904 = vmul.f32 %v7722, %v7872
      %v7905 = vmul.f32 %v7724, %v7873
      %v7906 = vmul.f32 %v7726, %v7874
      %v7907 = vmul.f32 %v7728, %v7875
      %v7908 = vmul.f32 %v7730, %v7876
      %v7909 = vmul.f32 %v7732, %v7877
      %v7910 = vmul.f32 %v7734, %v7878
      %v7911 = vmul.f32 %v7736, %v7879
      %v7912 = vmul.f32 %v7738, %v7880
      %v7913 = vmul.f32 %v7740, %v7881
      %v7914 = vmul.f32 %v7742, %v7882
      %v7915 = vmul.f32 %v7744, %v7883
      %v7916 = vmul.f32 %v7746, %v7884
      %v7917 = vmul.f32 %v7748, %v7885
      %v7918 = vmul.f32 %v7750, %v7886
      %v7919 = vmul.f32 %v7752, %v7887
      %v7920 = vmul.f32 %v7754, %v7888
      %v7921 = vmul.f32 %v7756, %v7889
      %v7922 = vmul.f32 %v7758, %v7890
      %v7923 = vmul.f32 %v7760, %v7891
      %v7924 = vmul.f32 %v7762, %v7892
      %v7925 = vmul.f32 %v7764, %v7893
      %v7926 = vmul.f32 %v7766, %v7894
      %v7927 = vpack.c.bf16 %v7896, %v7895
      %v7928 = vpack.c.bf16 %v7898, %v7897
      %v7929 = vpack.c.bf16 %v7900, %v7899
      %v7930 = vpack.c.bf16 %v7902, %v7901
      %v7931 = vpack.c.bf16 %v7904, %v7903
      %v7932 = vpack.c.bf16 %v7906, %v7905
      %v7933 = vpack.c.bf16 %v7908, %v7907
      %v7934 = vpack.c.bf16 %v7910, %v7909
      %v7935 = vpack.c.bf16 %v7912, %v7911
      %v7936 = vpack.c.bf16 %v7914, %v7913
      %v7937 = vpack.c.bf16 %v7916, %v7915
      %v7938 = vpack.c.bf16 %v7918, %v7917
      %v7939 = vpack.c.bf16 %v7920, %v7919
      %v7940 = vpack.c.bf16 %v7922, %v7921
      %v7941 = vpack.c.bf16 %v7924, %v7923
      %v7942 = vpack.c.bf16 %v7926, %v7925
      %7943 = vrot.lane.b32.xlu0 %v7342, 72
      %v7944 = vpop.permute.xlu0 %7943
      %7945 = vrot.lane.b32.xlu0 %v7343, 72
      %v7946 = vpop.permute.xlu0 %7945
      %7947 = vrot.lane.b32.xlu0 %v7344, 72
      %v7948 = vpop.permute.xlu0 %7947
      %7949 = vrot.lane.b32.xlu0 %v7345, 72
      %v7950 = vpop.permute.xlu0 %7949
      %v7956 = vsel %vm1453, %v7927, 0
      %v7959 = vsel %vm1453, %v7928, 0
      %v7962 = vsel %vm1453, %v7929, 0
      %v7965 = vsel %vm1453, %v7930, 0
      %v7968 = vsel %vm1453, %v7931, 0
      %v7971 = vsel %vm1453, %v7932, 0
      %v7974 = vsel %vm1453, %v7933, 0
      %v7977 = vsel %vm1453, %v7934, 0
      %v7980 = vsel %vm1453, %v7935, 0
      %v7983 = vsel %vm1453, %v7936, 0
      %v7986 = vsel %vm1453, %v7937, 0
      %v7989 = vsel %vm1453, %v7938, 0
      %v7992 = vsel %vm1453, %v7939, 0
      %v7995 = vsel %vm1453, %v7940, 0
      %v7998 = vsel %vm1453, %v7941, 0
      %v8001 = vsel %vm1453, %v7942, 0
      %8003 = vmatprep.subr.bf16.mxu0 0
      %8004 = vmatpush1.bf16.msra.mxu0 0
      %8005 = vmatprep.subr.bf16.mxu0 0
      %8006 = vmatpush1.bf16.msra.mxu0 0
      %8007 = vmatprep.subr.bf16.mxu0 0
      %8008 = vmatpush1.bf16.msra.mxu0 0
      %8009 = vmatprep.subr.bf16.mxu0 0
      %8010 = vmatpush1.bf16.msra.mxu0 0
      %8011 = vmatprep.subr.bf16.mxu0 0
      %8012 = vmatpush1.bf16.msra.mxu0 %v7950
      %8013 = vmatprep.subr.bf16.mxu0 0
      %8014 = vmatpush1.bf16.msra.mxu0 %v7948
      %8015 = vmatprep.subr.bf16.mxu0 0
      %8016 = vmatpush1.bf16.msra.mxu0 %v7946
      %8017 = vmatprep.subr.bf16.mxu0 0
      %8018 = vmatpush1.bf16.msra.mxu0 %v7944
      %8019 = vmatprep.subr.bf16.mxu0 0
      %8020 = vmatpush2.bf16.msra.mxu0 0
      %8021 = vmatprep.subr.bf16.mxu0 0
      %8022 = vmatpush2.bf16.msra.mxu0 0
      %8023 = vmatprep.subr.bf16.mxu0 0
      %8024 = vmatpush2.bf16.msra.mxu0 0
      %8025 = vmatprep.subr.bf16.mxu0 0
      %8026 = vmatpush2.bf16.msra.mxu0 0
      %8027 = vmatprep.subr.bf16.mxu0 0
      %8028 = vmatpush2.bf16.msra.mxu0 0
      %8029 = vmatprep.subr.bf16.mxu0 0
      %8030 = vmatpush2.bf16.msra.mxu0 0
      %8031 = vmatprep.subr.bf16.mxu0 0
      %8032 = vmatpush2.bf16.msra.mxu0 0
      %8033 = vmatprep.subr.bf16.mxu0 0
      %8034 = vmatpush2.bf16.msra.mxu0 0
      %8035 = vmatprep.mubr.bf16.mxu0 0
      %8036 = vmatmul.mubr.bf16.gmra.mxu0 %v7956
      %v8037 = vpop.f32.mrf.mxu0
      %v8038 = vadd.f32 0.0, %v8037
      %v8039 = vpop.f32.mrf.mxu0
      %v8040 = vpop.f32.mrf.mxu0
      %v8041 = vadd.f32 0.0, %v8040
      %v8042 = vpop.f32.mrf.mxu0
      %8043 = vmatprep.mubr.bf16.mxu0 0
      %8044 = vmatmul.mubr.bf16.gmra.mxu0 %v7959
      %v8045 = vpop.f32.mrf.mxu0
      %v8046 = vadd.f32 0.0, %v8045
      %v8047 = vpop.f32.mrf.mxu0
      %v8048 = vpop.f32.mrf.mxu0
      %v8049 = vadd.f32 0.0, %v8048
      %v8050 = vpop.f32.mrf.mxu0
      %8051 = vmatprep.mubr.bf16.mxu0 0
      %8052 = vmatmul.mubr.bf16.gmra.mxu0 %v7962
      %v8053 = vpop.f32.mrf.mxu0
      %v8054 = vadd.f32 0.0, %v8053
      %v8055 = vpop.f32.mrf.mxu0
      %v8056 = vpop.f32.mrf.mxu0
      %v8057 = vadd.f32 0.0, %v8056
      %v8058 = vpop.f32.mrf.mxu0
      %8059 = vmatprep.mubr.bf16.mxu0 0
      %8060 = vmatmul.mubr.bf16.gmra.mxu0 %v7965
      %v8061 = vpop.f32.mrf.mxu0
      %v8062 = vadd.f32 0.0, %v8061
      %v8063 = vpop.f32.mrf.mxu0
      %v8064 = vpop.f32.mrf.mxu0
      %v8065 = vadd.f32 0.0, %v8064
      %v8066 = vpop.f32.mrf.mxu0
      %8067 = vmatprep.mubr.bf16.mxu0 0
      %8068 = vmatmul.mubr.bf16.gmra.mxu0 %v7968
      %v8069 = vpop.f32.mrf.mxu0
      %v8070 = vadd.f32 0.0, %v8069
      %v8071 = vpop.f32.mrf.mxu0
      %v8072 = vpop.f32.mrf.mxu0
      %v8073 = vadd.f32 0.0, %v8072
      %v8074 = vpop.f32.mrf.mxu0
      %8075 = vmatprep.mubr.bf16.mxu0 0
      %8076 = vmatmul.mubr.bf16.gmra.mxu0 %v7971
      %v8077 = vpop.f32.mrf.mxu0
      %v8078 = vadd.f32 0.0, %v8077
      %v8079 = vpop.f32.mrf.mxu0
      %v8080 = vpop.f32.mrf.mxu0
      %v8081 = vadd.f32 0.0, %v8080
      %v8082 = vpop.f32.mrf.mxu0
      %8083 = vmatprep.mubr.bf16.mxu0 0
      %8084 = vmatmul.mubr.bf16.gmra.mxu0 %v7974
      %v8085 = vpop.f32.mrf.mxu0
      %v8086 = vadd.f32 0.0, %v8085
      %v8087 = vpop.f32.mrf.mxu0
      %v8088 = vpop.f32.mrf.mxu0
      %v8089 = vadd.f32 0.0, %v8088
      %v8090 = vpop.f32.mrf.mxu0
      %8091 = vmatprep.mubr.bf16.mxu0 0
      %8092 = vmatmul.mubr.bf16.gmra.mxu0 %v7977
      %v8093 = vpop.f32.mrf.mxu0
      %v8094 = vadd.f32 0.0, %v8093
      %v8095 = vpop.f32.mrf.mxu0
      %v8096 = vpop.f32.mrf.mxu0
      %v8097 = vadd.f32 0.0, %v8096
      %v8098 = vpop.f32.mrf.mxu0
      %8099 = vmatprep.mubr.bf16.mxu0 0
      %8100 = vmatmul.mubr.bf16.gmra.mxu0 %v7980
      %v8101 = vpop.f32.mrf.mxu0
      %v8102 = vadd.f32 0.0, %v8101
      %v8103 = vpop.f32.mrf.mxu0
      %v8104 = vpop.f32.mrf.mxu0
      %v8105 = vadd.f32 0.0, %v8104
      %v8106 = vpop.f32.mrf.mxu0
      %8107 = vmatprep.mubr.bf16.mxu0 0
      %8108 = vmatmul.mubr.bf16.gmra.mxu0 %v7983
      %v8109 = vpop.f32.mrf.mxu0
      %v8110 = vadd.f32 0.0, %v8109
      %v8111 = vpop.f32.mrf.mxu0
      %v8112 = vpop.f32.mrf.mxu0
      %v8113 = vadd.f32 0.0, %v8112
      %v8114 = vpop.f32.mrf.mxu0
      %8115 = vmatprep.mubr.bf16.mxu0 0
      %8116 = vmatmul.mubr.bf16.gmra.mxu0 %v7986
      %v8117 = vpop.f32.mrf.mxu0
      %v8118 = vadd.f32 0.0, %v8117
      %v8119 = vpop.f32.mrf.mxu0
      %v8120 = vpop.f32.mrf.mxu0
      %v8121 = vadd.f32 0.0, %v8120
      %v8122 = vpop.f32.mrf.mxu0
      %8123 = vmatprep.mubr.bf16.mxu0 0
      %8124 = vmatmul.mubr.bf16.gmra.mxu0 %v7989
      %v8125 = vpop.f32.mrf.mxu0
      %v8126 = vadd.f32 0.0, %v8125
      %v8127 = vpop.f32.mrf.mxu0
      %v8128 = vpop.f32.mrf.mxu0
      %v8129 = vadd.f32 0.0, %v8128
      %v8130 = vpop.f32.mrf.mxu0
      %8131 = vmatprep.mubr.bf16.mxu0 0
      %8132 = vmatmul.mubr.bf16.gmra.mxu0 %v7992
      %v8133 = vpop.f32.mrf.mxu0
      %v8134 = vadd.f32 0.0, %v8133
      %v8135 = vpop.f32.mrf.mxu0
      %v8136 = vpop.f32.mrf.mxu0
      %v8137 = vadd.f32 0.0, %v8136
      %v8138 = vpop.f32.mrf.mxu0
      %8139 = vmatprep.mubr.bf16.mxu0 0
      %8140 = vmatmul.mubr.bf16.gmra.mxu0 %v7995
      %v8141 = vpop.f32.mrf.mxu0
      %v8142 = vadd.f32 0.0, %v8141
      %v8143 = vpop.f32.mrf.mxu0
      %v8144 = vpop.f32.mrf.mxu0
      %v8145 = vadd.f32 0.0, %v8144
      %v8146 = vpop.f32.mrf.mxu0
      %8147 = vmatprep.mubr.bf16.mxu0 0
      %8148 = vmatmul.mubr.bf16.gmra.mxu0 %v7998
      %v8149 = vpop.f32.mrf.mxu0
      %v8150 = vadd.f32 0.0, %v8149
      %v8151 = vpop.f32.mrf.mxu0
      %v8152 = vpop.f32.mrf.mxu0
      %v8153 = vadd.f32 0.0, %v8152
      %v8154 = vpop.f32.mrf.mxu0
      %8155 = vmatprep.mubr.bf16.mxu0 0
      %8156 = vmatmul.mubr.bf16.gmra.mxu0 %v8001
      %v8157 = vpop.f32.mrf.mxu0
      %v8158 = vadd.f32 0.0, %v8157
      %v8159 = vpop.f32.mrf.mxu0
      %v8160 = vpop.f32.mrf.mxu0
      %v8161 = vadd.f32 0.0, %v8160
      %v8162 = vpop.f32.mrf.mxu0
      %8163 = vdwg.mxu0
      %8196 = vrot.lane.b32.xlu0 %v8038, 24
      %v8197 = vpop.permute.xlu0 %8196
      %8198 = vrot.lane.b32.xlu0 %v8041, 24
      %v8199 = vpop.permute.xlu0 %8198
      %8200 = vrot.lane.b32.xlu0 %v8046, 24
      %v8201 = vpop.permute.xlu0 %8200
      %8202 = vrot.lane.b32.xlu0 %v8049, 24
      %v8203 = vpop.permute.xlu0 %8202
      %8204 = vrot.lane.b32.xlu0 %v8054, 24
      %v8205 = vpop.permute.xlu0 %8204
      %8206 = vrot.lane.b32.xlu0 %v8057, 24
      %v8207 = vpop.permute.xlu0 %8206
      %8208 = vrot.lane.b32.xlu0 %v8062, 24
      %v8209 = vpop.permute.xlu0 %8208
      %8210 = vrot.lane.b32.xlu0 %v8065, 24
      %v8211 = vpop.permute.xlu0 %8210
      %8212 = vrot.lane.b32.xlu0 %v8070, 24
      %v8213 = vpop.permute.xlu0 %8212
      %8214 = vrot.lane.b32.xlu0 %v8073, 24
      %v8215 = vpop.permute.xlu0 %8214
      %8216 = vrot.lane.b32.xlu0 %v8078, 24
      %v8217 = vpop.permute.xlu0 %8216
      %8218 = vrot.lane.b32.xlu0 %v8081, 24
      %v8219 = vpop.permute.xlu0 %8218
      %8220 = vrot.lane.b32.xlu0 %v8086, 24
      %v8221 = vpop.permute.xlu0 %8220
      %8222 = vrot.lane.b32.xlu0 %v8089, 24
      %v8223 = vpop.permute.xlu0 %8222
      %8224 = vrot.lane.b32.xlu0 %v8094, 24
      %v8225 = vpop.permute.xlu0 %8224
      %8226 = vrot.lane.b32.xlu0 %v8097, 24
      %v8227 = vpop.permute.xlu0 %8226
      %8228 = vrot.lane.b32.xlu0 %v8102, 24
      %v8229 = vpop.permute.xlu0 %8228
      %8230 = vrot.lane.b32.xlu0 %v8105, 24
      %v8231 = vpop.permute.xlu0 %8230
      %8232 = vrot.lane.b32.xlu0 %v8110, 24
      %v8233 = vpop.permute.xlu0 %8232
      %8234 = vrot.lane.b32.xlu0 %v8113, 24
      %v8235 = vpop.permute.xlu0 %8234
      %8236 = vrot.lane.b32.xlu0 %v8118, 24
      %v8237 = vpop.permute.xlu0 %8236
      %8238 = vrot.lane.b32.xlu0 %v8121, 24
      %v8239 = vpop.permute.xlu0 %8238
      %8240 = vrot.lane.b32.xlu0 %v8126, 24
      %v8241 = vpop.permute.xlu0 %8240
      %8242 = vrot.lane.b32.xlu0 %v8129, 24
      %v8243 = vpop.permute.xlu0 %8242
      %8244 = vrot.lane.b32.xlu0 %v8134, 24
      %v8245 = vpop.permute.xlu0 %8244
      %8246 = vrot.lane.b32.xlu0 %v8137, 24
      %v8247 = vpop.permute.xlu0 %8246
      %8248 = vrot.lane.b32.xlu0 %v8142, 24
      %v8249 = vpop.permute.xlu0 %8248
      %8250 = vrot.lane.b32.xlu0 %v8145, 24
      %v8251 = vpop.permute.xlu0 %8250
      %8252 = vrot.lane.b32.xlu0 %v8150, 24
      %v8253 = vpop.permute.xlu0 %8252
      %8254 = vrot.lane.b32.xlu0 %v8153, 24
      %v8255 = vpop.permute.xlu0 %8254
      %8256 = vrot.lane.b32.xlu0 %v8158, 24
      %v8257 = vpop.permute.xlu0 %8256
      %8258 = vrot.lane.b32.xlu0 %v8161, 24
      %v8259 = vpop.permute.xlu0 %8258
      %vm8292 = vcmask 228544
      %8293 = vst.msk [vmem:[#allocation3] sm:$0xff] %vm8292, %v8197
      %8294 = vst.msk [vmem:[#allocation3 + $0x8] sm:$0xff] %vm8292, %v8199
      %8295 = vst.msk [vmem:[#allocation3 + $0x10] sm:$0xff] %vm8292, %v8201
      %8296 = vst.msk [vmem:[#allocation3 + $0x18] sm:$0xff] %vm8292, %v8203
      %8297 = vst.msk [vmem:[#allocation3 + $0x20] sm:$0xff] %vm8292, %v8205
      %8298 = vst.msk [vmem:[#allocation3 + $0x28] sm:$0xff] %vm8292, %v8207
      %8299 = vst.msk [vmem:[#allocation3 + $0x30] sm:$0xff] %vm8292, %v8209
      %8300 = vst.msk [vmem:[#allocation3 + $0x38] sm:$0xff] %vm8292, %v8211
      %8301 = vst.msk [vmem:[#allocation3 + $0x40] sm:$0xff] %vm8292, %v8213
      %8302 = vst.msk [vmem:[#allocation3 + $0x48] sm:$0xff] %vm8292, %v8215
      %8303 = vst.msk [vmem:[#allocation3 + $0x50] sm:$0xff] %vm8292, %v8217
      %8304 = vst.msk [vmem:[#allocation3 + $0x58] sm:$0xff] %vm8292, %v8219
      %8305 = vst.msk [vmem:[#allocation3 + $0x60] sm:$0xff] %vm8292, %v8221
      %8306 = vst.msk [vmem:[#allocation3 + $0x68] sm:$0xff] %vm8292, %v8223
      %8307 = vst.msk [vmem:[#allocation3 + $0x70] sm:$0xff] %vm8292, %v8225
      %8308 = vst.msk [vmem:[#allocation3 + $0x78] sm:$0xff] %vm8292, %v8227
      %8309 = vst.msk [vmem:[#allocation3 + $0x80] sm:$0xff] %vm8292, %v8229
      %8310 = vst.msk [vmem:[#allocation3 + $0x88] sm:$0xff] %vm8292, %v8231
      %8311 = vst.msk [vmem:[#allocation3 + $0x90] sm:$0xff] %vm8292, %v8233
      %8312 = vst.msk [vmem:[#allocation3 + $0x98] sm:$0xff] %vm8292, %v8235
      %8313 = vst.msk [vmem:[#allocation3 + $0xa0] sm:$0xff] %vm8292, %v8237
      %8314 = vst.msk [vmem:[#allocation3 + $0xa8] sm:$0xff] %vm8292, %v8239
      %8315 = vst.msk [vmem:[#allocation3 + $0xb0] sm:$0xff] %vm8292, %v8241
      %8316 = vst.msk [vmem:[#allocation3 + $0xb8] sm:$0xff] %vm8292, %v8243
      %8317 = vst.msk [vmem:[#allocation3 + $0xc0] sm:$0xff] %vm8292, %v8245
      %8318 = vst.msk [vmem:[#allocation3 + $0xc8] sm:$0xff] %vm8292, %v8247
      %8319 = vst.msk [vmem:[#allocation3 + $0xd0] sm:$0xff] %vm8292, %v8249
      %8320 = vst.msk [vmem:[#allocation3 + $0xd8] sm:$0xff] %vm8292, %v8251
      %8321 = vst.msk [vmem:[#allocation3 + $0xe0] sm:$0xff] %vm8292, %v8253
      %8322 = vst.msk [vmem:[#allocation3 + $0xe8] sm:$0xff] %vm8292, %v8255
      %8323 = vst.msk [vmem:[#allocation3 + $0xf0] sm:$0xff] %vm8292, %v8257
      %8324 = vst.msk [vmem:[#allocation3 + $0xf8] sm:$0xff] %vm8292, %v8259
      %v8325 = vld [vmem:[#allocation2] sm:$0xf]
      %v8326 = vld [vmem:[#allocation2 + $0x4] sm:$0xf]
      %v8327 = vld [vmem:[#allocation2 + $0x8] sm:$0xf]
      %v8328 = vld [vmem:[#allocation2 + $0xc] sm:$0xf]
      %v8329 = vld [vmem:[#allocation2 + $0x10] sm:$0xf]
      %v8330 = vld [vmem:[#allocation2 + $0x14] sm:$0xf]
      %v8331 = vld [vmem:[#allocation2 + $0x18] sm:$0xf]
      %v8332 = vld [vmem:[#allocation2 + $0x1c] sm:$0xf]
      %8333 = vrot.lane.b32.xlu0 %v1187, 100
      %v8334 = vpop.permute.xlu0 %8333
      %8335 = vrot.lane.b32.xlu0 %v1188, 100
      %v8336 = vpop.permute.xlu0 %8335
      %8337 = vrot.lane.b32.xlu0 %v1189, 100
      %v8338 = vpop.permute.xlu0 %8337
      %8339 = vrot.lane.b32.xlu0 %v1190, 100
      %v8340 = vpop.permute.xlu0 %8339
      %8341 = vrot.lane.b32.xlu0 %v1191, 100
      %v8342 = vpop.permute.xlu0 %8341
      %8343 = vrot.lane.b32.xlu0 %v1192, 100
      %v8344 = vpop.permute.xlu0 %8343
      %8345 = vrot.lane.b32.xlu0 %v1193, 100
      %v8346 = vpop.permute.xlu0 %8345
      %8347 = vrot.lane.b32.xlu0 %v1194, 100
      %v8348 = vpop.permute.xlu0 %8347
      %8349 = vrot.lane.b32.xlu0 %v1195, 100
      %v8350 = vpop.permute.xlu0 %8349
      %8351 = vrot.lane.b32.xlu0 %v1196, 100
      %v8352 = vpop.permute.xlu0 %8351
      %8353 = vrot.lane.b32.xlu0 %v1197, 100
      %v8354 = vpop.permute.xlu0 %8353
      %8355 = vrot.lane.b32.xlu0 %v1198, 100
      %v8356 = vpop.permute.xlu0 %8355
      %8357 = vrot.lane.b32.xlu0 %v1199, 100
      %v8358 = vpop.permute.xlu0 %8357
      %8359 = vrot.lane.b32.xlu0 %v1200, 100
      %v8360 = vpop.permute.xlu0 %8359
      %8361 = vrot.lane.b32.xlu0 %v1201, 100
      %v8362 = vpop.permute.xlu0 %8361
      %8363 = vrot.lane.b32.xlu0 %v1202, 100
      %v8364 = vpop.permute.xlu0 %8363
      %v8373 = vunpack.c.l.b16 %v8325
      %v8374 = vunpack.c.l.b16 %v8326
      %v8375 = vunpack.c.l.b16 %v8327
      %v8376 = vunpack.c.l.b16 %v8328
      %v8377 = vunpack.c.l.b16 %v8329
      %v8378 = vunpack.c.l.b16 %v8330
      %v8379 = vunpack.c.l.b16 %v8331
      %v8380 = vunpack.c.l.b16 %v8332
      %v8381 = vpack.c.b16 %v8374, %v8373
      %v8382 = vpack.c.b16 %v8376, %v8375
      %v8383 = vpack.c.b16 %v8378, %v8377
      %v8384 = vpack.c.b16 %v8380, %v8379
      %8385 = vrot.lane.b32.xlu0 %v8381, 100
      %v8386 = vpop.permute.xlu0 %8385
      %8387 = vrot.lane.b32.xlu0 %v8382, 100
      %v8388 = vpop.permute.xlu0 %8387
      %8389 = vrot.lane.b32.xlu0 %v8383, 100
      %v8390 = vpop.permute.xlu0 %8389
      %8391 = vrot.lane.b32.xlu0 %v8384, 100
      %v8392 = vpop.permute.xlu0 %8391
      %v8394 = vsel %vm1231, %v8334, 0
      %v8397 = vsel %vm1231, %v8336, 0
      %v8400 = vsel %vm1231, %v8338, 0
      %v8403 = vsel %vm1231, %v8340, 0
      %v8406 = vsel %vm1231, %v8342, 0
      %v8409 = vsel %vm1231, %v8344, 0
      %v8412 = vsel %vm1231, %v8346, 0
      %v8415 = vsel %vm1231, %v8348, 0
      %v8418 = vsel %vm1231, %v8350, 0
      %v8421 = vsel %vm1231, %v8352, 0
      %v8424 = vsel %vm1231, %v8354, 0
      %v8427 = vsel %vm1231, %v8356, 0
      %v8430 = vsel %vm1231, %v8358, 0
      %v8433 = vsel %vm1231, %v8360, 0
      %v8436 = vsel %vm1231, %v8362, 0
      %v8439 = vsel %vm1231, %v8364, 0
      %v8442 = vsel %vm1231, %v8386, 0
      %v8445 = vsel %vm1231, %v8388, 0
      %v8448 = vsel %vm1231, %v8390, 0
      %v8451 = vsel %vm1231, %v8392, 0
      %8453 = vmatprep.subr.bf16.mxu0 0
      %8454 = vmatpush1.bf16.xpose.msra.mxu0 0
      %8455 = vmatprep.subr.bf16.mxu0 0
      %8456 = vmatpush1.bf16.xpose.msra.mxu0 0
      %8457 = vmatprep.subr.bf16.mxu0 0
      %8458 = vmatpush1.bf16.xpose.msra.mxu0 0
      %8459 = vmatprep.subr.bf16.mxu0 0
      %8460 = vmatpush1.bf16.xpose.msra.mxu0 0
      %8461 = vmatprep.subr.bf16.mxu0 0
      %8462 = vmatpush1.bf16.xpose.msra.mxu0 %v8451
      %8463 = vmatprep.subr.bf16.mxu0 0
      %8464 = vmatpush1.bf16.xpose.msra.mxu0 %v8448
      %8465 = vmatprep.subr.bf16.mxu0 0
      %8466 = vmatpush1.bf16.xpose.msra.mxu0 %v8445
      %8467 = vmatprep.subr.bf16.mxu0 0
      %8468 = vmatpush1.bf16.xpose.msra.mxu0 %v8442
      %8469 = vmatprep.subr.bf16.mxu0 0
      %8470 = vmatpush2.bf16.xpose.msra.mxu0 0
      %8471 = vmatprep.subr.bf16.mxu0 0
      %8472 = vmatpush2.bf16.xpose.msra.mxu0 0
      %8473 = vmatprep.subr.bf16.mxu0 0
      %8474 = vmatpush2.bf16.xpose.msra.mxu0 0
      %8475 = vmatprep.subr.bf16.mxu0 0
      %8476 = vmatpush2.bf16.xpose.msra.mxu0 0
      %8477 = vmatprep.subr.bf16.mxu0 0
      %8478 = vmatpush2.bf16.xpose.msra.mxu0 0
      %8479 = vmatprep.subr.bf16.mxu0 0
      %8480 = vmatpush2.bf16.xpose.msra.mxu0 0
      %8481 = vmatprep.subr.bf16.mxu0 0
      %8482 = vmatpush2.bf16.xpose.msra.mxu0 0
      %8483 = vmatprep.subr.bf16.mxu0 0
      %8484 = vmatpush2.bf16.xpose.msra.mxu0 0
      %8485 = vmatprep.mubr.bf16.mxu0 0
      %8486 = vmatmul.mubr.bf16.gmra.mxu0 %v8394
      %v8487 = vpop.f32.mrf.mxu0
      %v8488 = vadd.f32 0.0, %v8487
      %v8489 = vpop.f32.mrf.mxu0
      %v8490 = vpop.f32.mrf.mxu0
      %v8491 = vadd.f32 0.0, %v8490
      %v8492 = vpop.f32.mrf.mxu0
      %8493 = vmatprep.mubr.bf16.mxu0 0
      %8494 = vmatmul.mubr.bf16.gmra.mxu0 %v8397
      %v8495 = vpop.f32.mrf.mxu0
      %v8496 = vadd.f32 0.0, %v8495
      %v8497 = vpop.f32.mrf.mxu0
      %v8498 = vpop.f32.mrf.mxu0
      %v8499 = vadd.f32 0.0, %v8498
      %v8500 = vpop.f32.mrf.mxu0
      %8501 = vmatprep.mubr.bf16.mxu0 0
      %8502 = vmatmul.mubr.bf16.gmra.mxu0 %v8400
      %v8503 = vpop.f32.mrf.mxu0
      %v8504 = vadd.f32 0.0, %v8503
      %v8505 = vpop.f32.mrf.mxu0
      %v8506 = vpop.f32.mrf.mxu0
      %v8507 = vadd.f32 0.0, %v8506
      %v8508 = vpop.f32.mrf.mxu0
      %8509 = vmatprep.mubr.bf16.mxu0 0
      %8510 = vmatmul.mubr.bf16.gmra.mxu0 %v8403
      %v8511 = vpop.f32.mrf.mxu0
      %v8512 = vadd.f32 0.0, %v8511
      %v8513 = vpop.f32.mrf.mxu0
      %v8514 = vpop.f32.mrf.mxu0
      %v8515 = vadd.f32 0.0, %v8514
      %v8516 = vpop.f32.mrf.mxu0
      %8517 = vmatprep.mubr.bf16.mxu0 0
      %8518 = vmatmul.mubr.bf16.gmra.mxu0 %v8406
      %v8519 = vpop.f32.mrf.mxu0
      %v8520 = vadd.f32 0.0, %v8519
      %v8521 = vpop.f32.mrf.mxu0
      %v8522 = vpop.f32.mrf.mxu0
      %v8523 = vadd.f32 0.0, %v8522
      %v8524 = vpop.f32.mrf.mxu0
      %8525 = vmatprep.mubr.bf16.mxu0 0
      %8526 = vmatmul.mubr.bf16.gmra.mxu0 %v8409
      %v8527 = vpop.f32.mrf.mxu0
      %v8528 = vadd.f32 0.0, %v8527
      %v8529 = vpop.f32.mrf.mxu0
      %v8530 = vpop.f32.mrf.mxu0
      %v8531 = vadd.f32 0.0, %v8530
      %v8532 = vpop.f32.mrf.mxu0
      %8533 = vmatprep.mubr.bf16.mxu0 0
      %8534 = vmatmul.mubr.bf16.gmra.mxu0 %v8412
      %v8535 = vpop.f32.mrf.mxu0
      %v8536 = vadd.f32 0.0, %v8535
      %v8537 = vpop.f32.mrf.mxu0
      %v8538 = vpop.f32.mrf.mxu0
      %v8539 = vadd.f32 0.0, %v8538
      %v8540 = vpop.f32.mrf.mxu0
      %8541 = vmatprep.mubr.bf16.mxu0 0
      %8542 = vmatmul.mubr.bf16.gmra.mxu0 %v8415
      %v8543 = vpop.f32.mrf.mxu0
      %v8544 = vadd.f32 0.0, %v8543
      %v8545 = vpop.f32.mrf.mxu0
      %v8546 = vpop.f32.mrf.mxu0
      %v8547 = vadd.f32 0.0, %v8546
      %v8548 = vpop.f32.mrf.mxu0
      %8549 = vmatprep.mubr.bf16.mxu0 0
      %8550 = vmatmul.mubr.bf16.gmra.mxu0 %v8418
      %v8551 = vpop.f32.mrf.mxu0
      %v8552 = vadd.f32 0.0, %v8551
      %v8553 = vpop.f32.mrf.mxu0
      %v8554 = vpop.f32.mrf.mxu0
      %v8555 = vadd.f32 0.0, %v8554
      %v8556 = vpop.f32.mrf.mxu0
      %8557 = vmatprep.mubr.bf16.mxu0 0
      %8558 = vmatmul.mubr.bf16.gmra.mxu0 %v8421
      %v8559 = vpop.f32.mrf.mxu0
      %v8560 = vadd.f32 0.0, %v8559
      %v8561 = vpop.f32.mrf.mxu0
      %v8562 = vpop.f32.mrf.mxu0
      %v8563 = vadd.f32 0.0, %v8562
      %v8564 = vpop.f32.mrf.mxu0
      %8565 = vmatprep.mubr.bf16.mxu0 0
      %8566 = vmatmul.mubr.bf16.gmra.mxu0 %v8424
      %v8567 = vpop.f32.mrf.mxu0
      %v8568 = vadd.f32 0.0, %v8567
      %v8569 = vpop.f32.mrf.mxu0
      %v8570 = vpop.f32.mrf.mxu0
      %v8571 = vadd.f32 0.0, %v8570
      %v8572 = vpop.f32.mrf.mxu0
      %8573 = vmatprep.mubr.bf16.mxu0 0
      %8574 = vmatmul.mubr.bf16.gmra.mxu0 %v8427
      %v8575 = vpop.f32.mrf.mxu0
      %v8576 = vadd.f32 0.0, %v8575
      %v8577 = vpop.f32.mrf.mxu0
      %v8578 = vpop.f32.mrf.mxu0
      %v8579 = vadd.f32 0.0, %v8578
      %v8580 = vpop.f32.mrf.mxu0
      %8581 = vmatprep.mubr.bf16.mxu0 0
      %8582 = vmatmul.mubr.bf16.gmra.mxu0 %v8430
      %v8583 = vpop.f32.mrf.mxu0
      %v8584 = vadd.f32 0.0, %v8583
      %v8585 = vpop.f32.mrf.mxu0
      %v8586 = vpop.f32.mrf.mxu0
      %v8587 = vadd.f32 0.0, %v8586
      %v8588 = vpop.f32.mrf.mxu0
      %8589 = vmatprep.mubr.bf16.mxu0 0
      %8590 = vmatmul.mubr.bf16.gmra.mxu0 %v8433
      %v8591 = vpop.f32.mrf.mxu0
      %v8592 = vadd.f32 0.0, %v8591
      %v8593 = vpop.f32.mrf.mxu0
      %v8594 = vpop.f32.mrf.mxu0
      %v8595 = vadd.f32 0.0, %v8594
      %v8596 = vpop.f32.mrf.mxu0
      %8597 = vmatprep.mubr.bf16.mxu0 0
      %8598 = vmatmul.mubr.bf16.gmra.mxu0 %v8436
      %v8599 = vpop.f32.mrf.mxu0
      %v8600 = vadd.f32 0.0, %v8599
      %v8601 = vpop.f32.mrf.mxu0
      %v8602 = vpop.f32.mrf.mxu0
      %v8603 = vadd.f32 0.0, %v8602
      %v8604 = vpop.f32.mrf.mxu0
      %8605 = vmatprep.mubr.bf16.mxu0 0
      %8606 = vmatmul.mubr.bf16.gmra.mxu0 %v8439
      %v8607 = vpop.f32.mrf.mxu0
      %v8608 = vadd.f32 0.0, %v8607
      %v8609 = vpop.f32.mrf.mxu0
      %v8610 = vpop.f32.mrf.mxu0
      %v8611 = vadd.f32 0.0, %v8610
      %v8612 = vpop.f32.mrf.mxu0
      %8613 = vdwg.mxu0
      %v8614 = vsel %vm1453, %v8488, -inf
      %8615 = vmax.xlane.f32.xlu0 %v8614
      %v8616 = vpop.xlane.xlu0 %8615
      %v8617 = vsel %vm1453, %v8491, -inf
      %8618 = vmax.xlane.f32.xlu0 %v8617
      %v8619 = vpop.xlane.xlu0 %8618
      %v8620 = vsel %vm1453, %v8496, -inf
      %8621 = vmax.xlane.f32.xlu0 %v8620
      %v8622 = vpop.xlane.xlu0 %8621
      %v8623 = vsel %vm1453, %v8499, -inf
      %8624 = vmax.xlane.f32.xlu0 %v8623
      %v8625 = vpop.xlane.xlu0 %8624
      %v8626 = vsel %vm1453, %v8504, -inf
      %8627 = vmax.xlane.f32.xlu0 %v8626
      %v8628 = vpop.xlane.xlu0 %8627
      %v8629 = vsel %vm1453, %v8507, -inf
      %8630 = vmax.xlane.f32.xlu0 %v8629
      %v8631 = vpop.xlane.xlu0 %8630
      %v8632 = vsel %vm1453, %v8512, -inf
      %8633 = vmax.xlane.f32.xlu0 %v8632
      %v8634 = vpop.xlane.xlu0 %8633
      %v8635 = vsel %vm1453, %v8515, -inf
      %8636 = vmax.xlane.f32.xlu0 %v8635
      %v8637 = vpop.xlane.xlu0 %8636
      %v8638 = vsel %vm1453, %v8520, -inf
      %8639 = vmax.xlane.f32.xlu0 %v8638
      %v8640 = vpop.xlane.xlu0 %8639
      %v8641 = vsel %vm1453, %v8523, -inf
      %8642 = vmax.xlane.f32.xlu0 %v8641
      %v8643 = vpop.xlane.xlu0 %8642
      %v8644 = vsel %vm1453, %v8528, -inf
      %8645 = vmax.xlane.f32.xlu0 %v8644
      %v8646 = vpop.xlane.xlu0 %8645
      %v8647 = vsel %vm1453, %v8531, -inf
      %8648 = vmax.xlane.f32.xlu0 %v8647
      %v8649 = vpop.xlane.xlu0 %8648
      %v8650 = vsel %vm1453, %v8536, -inf
      %8651 = vmax.xlane.f32.xlu0 %v8650
      %v8652 = vpop.xlane.xlu0 %8651
      %v8653 = vsel %vm1453, %v8539, -inf
      %8654 = vmax.xlane.f32.xlu0 %v8653
      %v8655 = vpop.xlane.xlu0 %8654
      %v8656 = vsel %vm1453, %v8544, -inf
      %8657 = vmax.xlane.f32.xlu0 %v8656
      %v8658 = vpop.xlane.xlu0 %8657
      %v8659 = vsel %vm1453, %v8547, -inf
      %8660 = vmax.xlane.f32.xlu0 %v8659
      %v8661 = vpop.xlane.xlu0 %8660
      %v8662 = vsel %vm1453, %v8552, -inf
      %8663 = vmax.xlane.f32.xlu0 %v8662
      %v8664 = vpop.xlane.xlu0 %8663
      %v8665 = vsel %vm1453, %v8555, -inf
      %8666 = vmax.xlane.f32.xlu0 %v8665
      %v8667 = vpop.xlane.xlu0 %8666
      %v8668 = vsel %vm1453, %v8560, -inf
      %8669 = vmax.xlane.f32.xlu0 %v8668
      %v8670 = vpop.xlane.xlu0 %8669
      %v8671 = vsel %vm1453, %v8563, -inf
      %8672 = vmax.xlane.f32.xlu0 %v8671
      %v8673 = vpop.xlane.xlu0 %8672
      %v8674 = vsel %vm1453, %v8568, -inf
      %8675 = vmax.xlane.f32.xlu0 %v8674
      %v8676 = vpop.xlane.xlu0 %8675
      %v8677 = vsel %vm1453, %v8571, -inf
      %8678 = vmax.xlane.f32.xlu0 %v8677
      %v8679 = vpop.xlane.xlu0 %8678
      %v8680 = vsel %vm1453, %v8576, -inf
      %8681 = vmax.xlane.f32.xlu0 %v8680
      %v8682 = vpop.xlane.xlu0 %8681
      %v8683 = vsel %vm1453, %v8579, -inf
      %8684 = vmax.xlane.f32.xlu0 %v8683
      %v8685 = vpop.xlane.xlu0 %8684
      %v8686 = vsel %vm1453, %v8584, -inf
      %8687 = vmax.xlane.f32.xlu0 %v8686
      %v8688 = vpop.xlane.xlu0 %8687
      %v8689 = vsel %vm1453, %v8587, -inf
      %8690 = vmax.xlane.f32.xlu0 %v8689
      %v8691 = vpop.xlane.xlu0 %8690
      %v8692 = vsel %vm1453, %v8592, -inf
      %8693 = vmax.xlane.f32.xlu0 %v8692
      %v8694 = vpop.xlane.xlu0 %8693
      %v8695 = vsel %vm1453, %v8595, -inf
      %8696 = vmax.xlane.f32.xlu0 %v8695
      %v8697 = vpop.xlane.xlu0 %8696
      %v8698 = vsel %vm1453, %v8600, -inf
      %8699 = vmax.xlane.f32.xlu0 %v8698
      %v8700 = vpop.xlane.xlu0 %8699
      %v8701 = vsel %vm1453, %v8603, -inf
      %8702 = vmax.xlane.f32.xlu0 %v8701
      %v8703 = vpop.xlane.xlu0 %8702
      %v8704 = vsel %vm1453, %v8608, -inf
      %8705 = vmax.xlane.f32.xlu0 %v8704
      %v8706 = vpop.xlane.xlu0 %8705
      %v8707 = vsel %vm1453, %v8611, -inf
      %8708 = vmax.xlane.f32.xlu0 %v8707
      %v8709 = vpop.xlane.xlu0 %8708
      %v8710 = vsub.f32 %v8488, %v8616
      %v8711 = vsub.f32 %v8491, %v8619
      %v8712 = vsub.f32 %v8496, %v8622
      %v8713 = vsub.f32 %v8499, %v8625
      %v8714 = vsub.f32 %v8504, %v8628
      %v8715 = vsub.f32 %v8507, %v8631
      %v8716 = vsub.f32 %v8512, %v8634
      %v8717 = vsub.f32 %v8515, %v8637
      %v8718 = vsub.f32 %v8520, %v8640
      %v8719 = vsub.f32 %v8523, %v8643
      %v8720 = vsub.f32 %v8528, %v8646
      %v8721 = vsub.f32 %v8531, %v8649
      %v8722 = vsub.f32 %v8536, %v8652
      %v8723 = vsub.f32 %v8539, %v8655
      %v8724 = vsub.f32 %v8544, %v8658
      %v8725 = vsub.f32 %v8547, %v8661
      %v8726 = vsub.f32 %v8552, %v8664
      %v8727 = vsub.f32 %v8555, %v8667
      %v8728 = vsub.f32 %v8560, %v8670
      %v8729 = vsub.f32 %v8563, %v8673
      %v8730 = vsub.f32 %v8568, %v8676
      %v8731 = vsub.f32 %v8571, %v8679
      %v8732 = vsub.f32 %v8576, %v8682
      %v8733 = vsub.f32 %v8579, %v8685
      %v8734 = vsub.f32 %v8584, %v8688
      %v8735 = vsub.f32 %v8587, %v8691
      %v8736 = vsub.f32 %v8592, %v8694
      %v8737 = vsub.f32 %v8595, %v8697
      %v8738 = vsub.f32 %v8600, %v8700
      %v8739 = vsub.f32 %v8603, %v8703
      %v8740 = vsub.f32 %v8608, %v8706
      %v8741 = vsub.f32 %v8611, %v8709
      %v8742 = vmul.f32 %v8710, 1.442695
      %v8743 = vpow.pop %v8742
      %v8744 = vmul.f32 %v8711, 1.442695
      %v8745 = vpow.pop %v8744
      %v8746 = vmul.f32 %v8712, 1.442695
      %v8747 = vpow.pop %v8746
      %v8748 = vmul.f32 %v8713, 1.442695
      %v8749 = vpow.pop %v8748
      %v8750 = vmul.f32 %v8714, 1.442695
      %v8751 = vpow.pop %v8750
      %v8752 = vmul.f32 %v8715, 1.442695
      %v8753 = vpow.pop %v8752
      %v8754 = vmul.f32 %v8716, 1.442695
      %v8755 = vpow.pop %v8754
      %v8756 = vmul.f32 %v8717, 1.442695
      %v8757 = vpow.pop %v8756
      %v8758 = vmul.f32 %v8718, 1.442695
      %v8759 = vpow.pop %v8758
      %v8760 = vmul.f32 %v8719, 1.442695
      %v8761 = vpow.pop %v8760
      %v8762 = vmul.f32 %v8720, 1.442695
      %v8763 = vpow.pop %v8762
      %v8764 = vmul.f32 %v8721, 1.442695
      %v8765 = vpow.pop %v8764
      %v8766 = vmul.f32 %v8722, 1.442695
      %v8767 = vpow.pop %v8766
      %v8768 = vmul.f32 %v8723, 1.442695
      %v8769 = vpow.pop %v8768
      %v8770 = vmul.f32 %v8724, 1.442695
      %v8771 = vpow.pop %v8770
      %v8772 = vmul.f32 %v8725, 1.442695
      %v8773 = vpow.pop %v8772
      %v8774 = vmul.f32 %v8726, 1.442695
      %v8775 = vpow.pop %v8774
      %v8776 = vmul.f32 %v8727, 1.442695
      %v8777 = vpow.pop %v8776
      %v8778 = vmul.f32 %v8728, 1.442695
      %v8779 = vpow.pop %v8778
      %v8780 = vmul.f32 %v8729, 1.442695
      %v8781 = vpow.pop %v8780
      %v8782 = vmul.f32 %v8730, 1.442695
      %v8783 = vpow.pop %v8782
      %v8784 = vmul.f32 %v8731, 1.442695
      %v8785 = vpow.pop %v8784
      %v8786 = vmul.f32 %v8732, 1.442695
      %v8787 = vpow.pop %v8786
      %v8788 = vmul.f32 %v8733, 1.442695
      %v8789 = vpow.pop %v8788
      %v8790 = vmul.f32 %v8734, 1.442695
      %v8791 = vpow.pop %v8790
      %v8792 = vmul.f32 %v8735, 1.442695
      %v8793 = vpow.pop %v8792
      %v8794 = vmul.f32 %v8736, 1.442695
      %v8795 = vpow.pop %v8794
      %v8796 = vmul.f32 %v8737, 1.442695
      %v8797 = vpow.pop %v8796
      %v8798 = vmul.f32 %v8738, 1.442695
      %v8799 = vpow.pop %v8798
      %v8800 = vmul.f32 %v8739, 1.442695
      %v8801 = vpow.pop %v8800
      %v8802 = vmul.f32 %v8740, 1.442695
      %v8803 = vpow.pop %v8802
      %v8804 = vmul.f32 %v8741, 1.442695
      %v8805 = vpow.pop %v8804
      %v8806 = vsel %vm1453, %v8743, 0.0
      %8807 = vadd.xlane.f32.xlu0 %v8806
      %v8808 = vpop.xlane.xlu0 %8807
      %v8809 = vsel %vm1453, %v8745, 0.0
      %8810 = vadd.xlane.f32.xlu0 %v8809
      %v8811 = vpop.xlane.xlu0 %8810
      %v8812 = vsel %vm1453, %v8747, 0.0
      %8813 = vadd.xlane.f32.xlu0 %v8812
      %v8814 = vpop.xlane.xlu0 %8813
      %v8815 = vsel %vm1453, %v8749, 0.0
      %8816 = vadd.xlane.f32.xlu0 %v8815
      %v8817 = vpop.xlane.xlu0 %8816
      %v8818 = vsel %vm1453, %v8751, 0.0
      %8819 = vadd.xlane.f32.xlu0 %v8818
      %v8820 = vpop.xlane.xlu0 %8819
      %v8821 = vsel %vm1453, %v8753, 0.0
      %8822 = vadd.xlane.f32.xlu0 %v8821
      %v8823 = vpop.xlane.xlu0 %8822
      %v8824 = vsel %vm1453, %v8755, 0.0
      %8825 = vadd.xlane.f32.xlu0 %v8824
      %v8826 = vpop.xlane.xlu0 %8825
      %v8827 = vsel %vm1453, %v8757, 0.0
      %8828 = vadd.xlane.f32.xlu0 %v8827
      %v8829 = vpop.xlane.xlu0 %8828
      %v8830 = vsel %vm1453, %v8759, 0.0
      %8831 = vadd.xlane.f32.xlu0 %v8830
      %v8832 = vpop.xlane.xlu0 %8831
      %v8833 = vsel %vm1453, %v8761, 0.0
      %8834 = vadd.xlane.f32.xlu0 %v8833
      %v8835 = vpop.xlane.xlu0 %8834
      %v8836 = vsel %vm1453, %v8763, 0.0
      %8837 = vadd.xlane.f32.xlu0 %v8836
      %v8838 = vpop.xlane.xlu0 %8837
      %v8839 = vsel %vm1453, %v8765, 0.0
      %8840 = vadd.xlane.f32.xlu0 %v8839
      %v8841 = vpop.xlane.xlu0 %8840
      %v8842 = vsel %vm1453, %v8767, 0.0
      %8843 = vadd.xlane.f32.xlu0 %v8842
      %v8844 = vpop.xlane.xlu0 %8843
      %v8845 = vsel %vm1453, %v8769, 0.0
      %8846 = vadd.xlane.f32.xlu0 %v8845
      %v8847 = vpop.xlane.xlu0 %8846
      %v8848 = vsel %vm1453, %v8771, 0.0
      %8849 = vadd.xlane.f32.xlu0 %v8848
      %v8850 = vpop.xlane.xlu0 %8849
      %v8851 = vsel %vm1453, %v8773, 0.0
      %8852 = vadd.xlane.f32.xlu0 %v8851
      %v8853 = vpop.xlane.xlu0 %8852
      %v8854 = vsel %vm1453, %v8775, 0.0
      %8855 = vadd.xlane.f32.xlu0 %v8854
      %v8856 = vpop.xlane.xlu0 %8855
      %v8857 = vsel %vm1453, %v8777, 0.0
      %8858 = vadd.xlane.f32.xlu0 %v8857
      %v8859 = vpop.xlane.xlu0 %8858
      %v8860 = vsel %vm1453, %v8779, 0.0
      %8861 = vadd.xlane.f32.xlu0 %v8860
      %v8862 = vpop.xlane.xlu0 %8861
      %v8863 = vsel %vm1453, %v8781, 0.0
      %8864 = vadd.xlane.f32.xlu0 %v8863
      %v8865 = vpop.xlane.xlu0 %8864
      %v8866 = vsel %vm1453, %v8783, 0.0
      %8867 = vadd.xlane.f32.xlu0 %v8866
      %v8868 = vpop.xlane.xlu0 %8867
      %v8869 = vsel %vm1453, %v8785, 0.0
      %8870 = vadd.xlane.f32.xlu0 %v8869
      %v8871 = vpop.xlane.xlu0 %8870
      %v8872 = vsel %vm1453, %v8787, 0.0
      %8873 = vadd.xlane.f32.xlu0 %v8872
      %v8874 = vpop.xlane.xlu0 %8873
      %v8875 = vsel %vm1453, %v8789, 0.0
      %8876 = vadd.xlane.f32.xlu0 %v8875
      %v8877 = vpop.xlane.xlu0 %8876
      %v8878 = vsel %vm1453, %v8791, 0.0
      %8879 = vadd.xlane.f32.xlu0 %v8878
      %v8880 = vpop.xlane.xlu0 %8879
      %v8881 = vsel %vm1453, %v8793, 0.0
      %8882 = vadd.xlane.f32.xlu0 %v8881
      %v8883 = vpop.xlane.xlu0 %8882
      %v8884 = vsel %vm1453, %v8795, 0.0
      %8885 = vadd.xlane.f32.xlu0 %v8884
      %v8886 = vpop.xlane.xlu0 %8885
      %v8887 = vsel %vm1453, %v8797, 0.0
      %8888 = vadd.xlane.f32.xlu0 %v8887
      %v8889 = vpop.xlane.xlu0 %8888
      %v8890 = vsel %vm1453, %v8799, 0.0
      %8891 = vadd.xlane.f32.xlu0 %v8890
      %v8892 = vpop.xlane.xlu0 %8891
      %v8893 = vsel %vm1453, %v8801, 0.0
      %8894 = vadd.xlane.f32.xlu0 %v8893
      %v8895 = vpop.xlane.xlu0 %8894
      %v8896 = vsel %vm1453, %v8803, 0.0
      %8897 = vadd.xlane.f32.xlu0 %v8896
      %v8898 = vpop.xlane.xlu0 %8897
      %v8899 = vsel %vm1453, %v8805, 0.0
      %8900 = vadd.xlane.f32.xlu0 %v8899
      %v8901 = vpop.xlane.xlu0 %8900
      %v8902 = vrcp.pop %v8808
      %v8903 = vrcp.pop %v8811
      %v8904 = vrcp.pop %v8814
      %v8905 = vrcp.pop %v8817
      %v8906 = vrcp.pop %v8820
      %v8907 = vrcp.pop %v8823
      %v8908 = vrcp.pop %v8826
      %v8909 = vrcp.pop %v8829
      %v8910 = vrcp.pop %v8832
      %v8911 = vrcp.pop %v8835
      %v8912 = vrcp.pop %v8838
      %v8913 = vrcp.pop %v8841
      %v8914 = vrcp.pop %v8844
      %v8915 = vrcp.pop %v8847
      %v8916 = vrcp.pop %v8850
      %v8917 = vrcp.pop %v8853
      %v8918 = vrcp.pop %v8856
      %v8919 = vrcp.pop %v8859
      %v8920 = vrcp.pop %v8862
      %v8921 = vrcp.pop %v8865
      %v8922 = vrcp.pop %v8868
      %v8923 = vrcp.pop %v8871
      %v8924 = vrcp.pop %v8874
      %v8925 = vrcp.pop %v8877
      %v8926 = vrcp.pop %v8880
      %v8927 = vrcp.pop %v8883
      %v8928 = vrcp.pop %v8886
      %v8929 = vrcp.pop %v8889
      %v8930 = vrcp.pop %v8892
      %v8931 = vrcp.pop %v8895
      %v8932 = vrcp.pop %v8898
      %v8933 = vrcp.pop %v8901
      %v8934 = vmul.f32 %v8743, %v8902
      %v8935 = vmul.f32 %v8745, %v8903
      %v8936 = vmul.f32 %v8747, %v8904
      %v8937 = vmul.f32 %v8749, %v8905
      %v8938 = vmul.f32 %v8751, %v8906
      %v8939 = vmul.f32 %v8753, %v8907
      %v8940 = vmul.f32 %v8755, %v8908
      %v8941 = vmul.f32 %v8757, %v8909
      %v8942 = vmul.f32 %v8759, %v8910
      %v8943 = vmul.f32 %v8761, %v8911
      %v8944 = vmul.f32 %v8763, %v8912
      %v8945 = vmul.f32 %v8765, %v8913
      %v8946 = vmul.f32 %v8767, %v8914
      %v8947 = vmul.f32 %v8769, %v8915
      %v8948 = vmul.f32 %v8771, %v8916
      %v8949 = vmul.f32 %v8773, %v8917
      %v8950 = vmul.f32 %v8775, %v8918
      %v8951 = vmul.f32 %v8777, %v8919
      %v8952 = vmul.f32 %v8779, %v8920
      %v8953 = vmul.f32 %v8781, %v8921
      %v8954 = vmul.f32 %v8783, %v8922
      %v8955 = vmul.f32 %v8785, %v8923
      %v8956 = vmul.f32 %v8787, %v8924
      %v8957 = vmul.f32 %v8789, %v8925
      %v8958 = vmul.f32 %v8791, %v8926
      %v8959 = vmul.f32 %v8793, %v8927
      %v8960 = vmul.f32 %v8795, %v8928
      %v8961 = vmul.f32 %v8797, %v8929
      %v8962 = vmul.f32 %v8799, %v8930
      %v8963 = vmul.f32 %v8801, %v8931
      %v8964 = vmul.f32 %v8803, %v8932
      %v8965 = vmul.f32 %v8805, %v8933
      %v8966 = vpack.c.bf16 %v8935, %v8934
      %v8967 = vpack.c.bf16 %v8937, %v8936
      %v8968 = vpack.c.bf16 %v8939, %v8938
      %v8969 = vpack.c.bf16 %v8941, %v8940
      %v8970 = vpack.c.bf16 %v8943, %v8942
      %v8971 = vpack.c.bf16 %v8945, %v8944
      %v8972 = vpack.c.bf16 %v8947, %v8946
      %v8973 = vpack.c.bf16 %v8949, %v8948
      %v8974 = vpack.c.bf16 %v8951, %v8950
      %v8975 = vpack.c.bf16 %v8953, %v8952
      %v8976 = vpack.c.bf16 %v8955, %v8954
      %v8977 = vpack.c.bf16 %v8957, %v8956
      %v8978 = vpack.c.bf16 %v8959, %v8958
      %v8979 = vpack.c.bf16 %v8961, %v8960
      %v8980 = vpack.c.bf16 %v8963, %v8962
      %v8981 = vpack.c.bf16 %v8965, %v8964
      %8982 = vrot.lane.b32.xlu0 %v8381, 68
      %v8983 = vpop.permute.xlu0 %8982
      %8984 = vrot.lane.b32.xlu0 %v8382, 68
      %v8985 = vpop.permute.xlu0 %8984
      %8986 = vrot.lane.b32.xlu0 %v8383, 68
      %v8987 = vpop.permute.xlu0 %8986
      %8988 = vrot.lane.b32.xlu0 %v8384, 68
      %v8989 = vpop.permute.xlu0 %8988
      %v8995 = vsel %vm1453, %v8966, 0
      %v8998 = vsel %vm1453, %v8967, 0
      %v9001 = vsel %vm1453, %v8968, 0
      %v9004 = vsel %vm1453, %v8969, 0
      %v9007 = vsel %vm1453, %v8970, 0
      %v9010 = vsel %vm1453, %v8971, 0
      %v9013 = vsel %vm1453, %v8972, 0
      %v9016 = vsel %vm1453, %v8973, 0
      %v9019 = vsel %vm1453, %v8974, 0
      %v9022 = vsel %vm1453, %v8975, 0
      %v9025 = vsel %vm1453, %v8976, 0
      %v9028 = vsel %vm1453, %v8977, 0
      %v9031 = vsel %vm1453, %v8978, 0
      %v9034 = vsel %vm1453, %v8979, 0
      %v9037 = vsel %vm1453, %v8980, 0
      %v9040 = vsel %vm1453, %v8981, 0
      %9042 = vmatprep.subr.bf16.mxu0 0
      %9043 = vmatpush1.bf16.msra.mxu0 0
      %9044 = vmatprep.subr.bf16.mxu0 0
      %9045 = vmatpush1.bf16.msra.mxu0 0
      %9046 = vmatprep.subr.bf16.mxu0 0
      %9047 = vmatpush1.bf16.msra.mxu0 0
      %9048 = vmatprep.subr.bf16.mxu0 0
      %9049 = vmatpush1.bf16.msra.mxu0 0
      %9050 = vmatprep.subr.bf16.mxu0 0
      %9051 = vmatpush1.bf16.msra.mxu0 %v8989
      %9052 = vmatprep.subr.bf16.mxu0 0
      %9053 = vmatpush1.bf16.msra.mxu0 %v8987
      %9054 = vmatprep.subr.bf16.mxu0 0
      %9055 = vmatpush1.bf16.msra.mxu0 %v8985
      %9056 = vmatprep.subr.bf16.mxu0 0
      %9057 = vmatpush1.bf16.msra.mxu0 %v8983
      %9058 = vmatprep.subr.bf16.mxu0 0
      %9059 = vmatpush2.bf16.msra.mxu0 0
      %9060 = vmatprep.subr.bf16.mxu0 0
      %9061 = vmatpush2.bf16.msra.mxu0 0
      %9062 = vmatprep.subr.bf16.mxu0 0
      %9063 = vmatpush2.bf16.msra.mxu0 0
      %9064 = vmatprep.subr.bf16.mxu0 0
      %9065 = vmatpush2.bf16.msra.mxu0 0
      %9066 = vmatprep.subr.bf16.mxu0 0
      %9067 = vmatpush2.bf16.msra.mxu0 0
      %9068 = vmatprep.subr.bf16.mxu0 0
      %9069 = vmatpush2.bf16.msra.mxu0 0
      %9070 = vmatprep.subr.bf16.mxu0 0
      %9071 = vmatpush2.bf16.msra.mxu0 0
      %9072 = vmatprep.subr.bf16.mxu0 0
      %9073 = vmatpush2.bf16.msra.mxu0 0
      %9074 = vmatprep.mubr.bf16.mxu0 0
      %9075 = vmatmul.mubr.bf16.gmra.mxu0 %v8995
      %v9076 = vpop.f32.mrf.mxu0
      %v9077 = vadd.f32 0.0, %v9076
      %v9078 = vpop.f32.mrf.mxu0
      %v9079 = vpop.f32.mrf.mxu0
      %v9080 = vadd.f32 0.0, %v9079
      %v9081 = vpop.f32.mrf.mxu0
      %9082 = vmatprep.mubr.bf16.mxu0 0
      %9083 = vmatmul.mubr.bf16.gmra.mxu0 %v8998
      %v9084 = vpop.f32.mrf.mxu0
      %v9085 = vadd.f32 0.0, %v9084
      %v9086 = vpop.f32.mrf.mxu0
      %v9087 = vpop.f32.mrf.mxu0
      %v9088 = vadd.f32 0.0, %v9087
      %v9089 = vpop.f32.mrf.mxu0
      %9090 = vmatprep.mubr.bf16.mxu0 0
      %9091 = vmatmul.mubr.bf16.gmra.mxu0 %v9001
      %v9092 = vpop.f32.mrf.mxu0
      %v9093 = vadd.f32 0.0, %v9092
      %v9094 = vpop.f32.mrf.mxu0
      %v9095 = vpop.f32.mrf.mxu0
      %v9096 = vadd.f32 0.0, %v9095
      %v9097 = vpop.f32.mrf.mxu0
      %9098 = vmatprep.mubr.bf16.mxu0 0
      %9099 = vmatmul.mubr.bf16.gmra.mxu0 %v9004
      %v9100 = vpop.f32.mrf.mxu0
      %v9101 = vadd.f32 0.0, %v9100
      %v9102 = vpop.f32.mrf.mxu0
      %v9103 = vpop.f32.mrf.mxu0
      %v9104 = vadd.f32 0.0, %v9103
      %v9105 = vpop.f32.mrf.mxu0
      %9106 = vmatprep.mubr.bf16.mxu0 0
      %9107 = vmatmul.mubr.bf16.gmra.mxu0 %v9007
      %v9108 = vpop.f32.mrf.mxu0
      %v9109 = vadd.f32 0.0, %v9108
      %v9110 = vpop.f32.mrf.mxu0
      %v9111 = vpop.f32.mrf.mxu0
      %v9112 = vadd.f32 0.0, %v9111
      %v9113 = vpop.f32.mrf.mxu0
      %9114 = vmatprep.mubr.bf16.mxu0 0
      %9115 = vmatmul.mubr.bf16.gmra.mxu0 %v9010
      %v9116 = vpop.f32.mrf.mxu0
      %v9117 = vadd.f32 0.0, %v9116
      %v9118 = vpop.f32.mrf.mxu0
      %v9119 = vpop.f32.mrf.mxu0
      %v9120 = vadd.f32 0.0, %v9119
      %v9121 = vpop.f32.mrf.mxu0
      %9122 = vmatprep.mubr.bf16.mxu0 0
      %9123 = vmatmul.mubr.bf16.gmra.mxu0 %v9013
      %v9124 = vpop.f32.mrf.mxu0
      %v9125 = vadd.f32 0.0, %v9124
      %v9126 = vpop.f32.mrf.mxu0
      %v9127 = vpop.f32.mrf.mxu0
      %v9128 = vadd.f32 0.0, %v9127
      %v9129 = vpop.f32.mrf.mxu0
      %9130 = vmatprep.mubr.bf16.mxu0 0
      %9131 = vmatmul.mubr.bf16.gmra.mxu0 %v9016
      %v9132 = vpop.f32.mrf.mxu0
      %v9133 = vadd.f32 0.0, %v9132
      %v9134 = vpop.f32.mrf.mxu0
      %v9135 = vpop.f32.mrf.mxu0
      %v9136 = vadd.f32 0.0, %v9135
      %v9137 = vpop.f32.mrf.mxu0
      %9138 = vmatprep.mubr.bf16.mxu0 0
      %9139 = vmatmul.mubr.bf16.gmra.mxu0 %v9019
      %v9140 = vpop.f32.mrf.mxu0
      %v9141 = vadd.f32 0.0, %v9140
      %v9142 = vpop.f32.mrf.mxu0
      %v9143 = vpop.f32.mrf.mxu0
      %v9144 = vadd.f32 0.0, %v9143
      %v9145 = vpop.f32.mrf.mxu0
      %9146 = vmatprep.mubr.bf16.mxu0 0
      %9147 = vmatmul.mubr.bf16.gmra.mxu0 %v9022
      %v9148 = vpop.f32.mrf.mxu0
      %v9149 = vadd.f32 0.0, %v9148
      %v9150 = vpop.f32.mrf.mxu0
      %v9151 = vpop.f32.mrf.mxu0
      %v9152 = vadd.f32 0.0, %v9151
      %v9153 = vpop.f32.mrf.mxu0
      %9154 = vmatprep.mubr.bf16.mxu0 0
      %9155 = vmatmul.mubr.bf16.gmra.mxu0 %v9025
      %v9156 = vpop.f32.mrf.mxu0
      %v9157 = vadd.f32 0.0, %v9156
      %v9158 = vpop.f32.mrf.mxu0
      %v9159 = vpop.f32.mrf.mxu0
      %v9160 = vadd.f32 0.0, %v9159
      %v9161 = vpop.f32.mrf.mxu0
      %9162 = vmatprep.mubr.bf16.mxu0 0
      %9163 = vmatmul.mubr.bf16.gmra.mxu0 %v9028
      %v9164 = vpop.f32.mrf.mxu0
      %v9165 = vadd.f32 0.0, %v9164
      %v9166 = vpop.f32.mrf.mxu0
      %v9167 = vpop.f32.mrf.mxu0
      %v9168 = vadd.f32 0.0, %v9167
      %v9169 = vpop.f32.mrf.mxu0
      %9170 = vmatprep.mubr.bf16.mxu0 0
      %9171 = vmatmul.mubr.bf16.gmra.mxu0 %v9031
      %v9172 = vpop.f32.mrf.mxu0
      %v9173 = vadd.f32 0.0, %v9172
      %v9174 = vpop.f32.mrf.mxu0
      %v9175 = vpop.f32.mrf.mxu0
      %v9176 = vadd.f32 0.0, %v9175
      %v9177 = vpop.f32.mrf.mxu0
      %9178 = vmatprep.mubr.bf16.mxu0 0
      %9179 = vmatmul.mubr.bf16.gmra.mxu0 %v9034
      %v9180 = vpop.f32.mrf.mxu0
      %v9181 = vadd.f32 0.0, %v9180
      %v9182 = vpop.f32.mrf.mxu0
      %v9183 = vpop.f32.mrf.mxu0
      %v9184 = vadd.f32 0.0, %v9183
      %v9185 = vpop.f32.mrf.mxu0
      %9186 = vmatprep.mubr.bf16.mxu0 0
      %9187 = vmatmul.mubr.bf16.gmra.mxu0 %v9037
      %v9188 = vpop.f32.mrf.mxu0
      %v9189 = vadd.f32 0.0, %v9188
      %v9190 = vpop.f32.mrf.mxu0
      %v9191 = vpop.f32.mrf.mxu0
      %v9192 = vadd.f32 0.0, %v9191
      %v9193 = vpop.f32.mrf.mxu0
      %9194 = vmatprep.mubr.bf16.mxu0 0
      %9195 = vmatmul.mubr.bf16.gmra.mxu0 %v9040
      %v9196 = vpop.f32.mrf.mxu0
      %v9197 = vadd.f32 0.0, %v9196
      %v9198 = vpop.f32.mrf.mxu0
      %v9199 = vpop.f32.mrf.mxu0
      %v9200 = vadd.f32 0.0, %v9199
      %v9201 = vpop.f32.mrf.mxu0
      %9202 = vdwg.mxu0
      %9235 = vrot.lane.b32.xlu0 %v9077, 28
      %v9236 = vpop.permute.xlu0 %9235
      %9237 = vrot.lane.b32.xlu0 %v9080, 28
      %v9238 = vpop.permute.xlu0 %9237
      %9239 = vrot.lane.b32.xlu0 %v9085, 28
      %v9240 = vpop.permute.xlu0 %9239
      %9241 = vrot.lane.b32.xlu0 %v9088, 28
      %v9242 = vpop.permute.xlu0 %9241
      %9243 = vrot.lane.b32.xlu0 %v9093, 28
      %v9244 = vpop.permute.xlu0 %9243
      %9245 = vrot.lane.b32.xlu0 %v9096, 28
      %v9246 = vpop.permute.xlu0 %9245
      %9247 = vrot.lane.b32.xlu0 %v9101, 28
      %v9248 = vpop.permute.xlu0 %9247
      %9249 = vrot.lane.b32.xlu0 %v9104, 28
      %v9250 = vpop.permute.xlu0 %9249
      %9251 = vrot.lane.b32.xlu0 %v9109, 28
      %v9252 = vpop.permute.xlu0 %9251
      %9253 = vrot.lane.b32.xlu0 %v9112, 28
      %v9254 = vpop.permute.xlu0 %9253
      %9255 = vrot.lane.b32.xlu0 %v9117, 28
      %v9256 = vpop.permute.xlu0 %9255
      %9257 = vrot.lane.b32.xlu0 %v9120, 28
      %v9258 = vpop.permute.xlu0 %9257
      %9259 = vrot.lane.b32.xlu0 %v9125, 28
      %v9260 = vpop.permute.xlu0 %9259
      %9261 = vrot.lane.b32.xlu0 %v9128, 28
      %v9262 = vpop.permute.xlu0 %9261
      %9263 = vrot.lane.b32.xlu0 %v9133, 28
      %v9264 = vpop.permute.xlu0 %9263
      %9265 = vrot.lane.b32.xlu0 %v9136, 28
      %v9266 = vpop.permute.xlu0 %9265
      %9267 = vrot.lane.b32.xlu0 %v9141, 28
      %v9268 = vpop.permute.xlu0 %9267
      %9269 = vrot.lane.b32.xlu0 %v9144, 28
      %v9270 = vpop.permute.xlu0 %9269
      %9271 = vrot.lane.b32.xlu0 %v9149, 28
      %v9272 = vpop.permute.xlu0 %9271
      %9273 = vrot.lane.b32.xlu0 %v9152, 28
      %v9274 = vpop.permute.xlu0 %9273
      %9275 = vrot.lane.b32.xlu0 %v9157, 28
      %v9276 = vpop.permute.xlu0 %9275
      %9277 = vrot.lane.b32.xlu0 %v9160, 28
      %v9278 = vpop.permute.xlu0 %9277
      %9279 = vrot.lane.b32.xlu0 %v9165, 28
      %v9280 = vpop.permute.xlu0 %9279
      %9281 = vrot.lane.b32.xlu0 %v9168, 28
      %v9282 = vpop.permute.xlu0 %9281
      %9283 = vrot.lane.b32.xlu0 %v9173, 28
      %v9284 = vpop.permute.xlu0 %9283
      %9285 = vrot.lane.b32.xlu0 %v9176, 28
      %v9286 = vpop.permute.xlu0 %9285
      %9287 = vrot.lane.b32.xlu0 %v9181, 28
      %v9288 = vpop.permute.xlu0 %9287
      %9289 = vrot.lane.b32.xlu0 %v9184, 28
      %v9290 = vpop.permute.xlu0 %9289
      %9291 = vrot.lane.b32.xlu0 %v9189, 28
      %v9292 = vpop.permute.xlu0 %9291
      %9293 = vrot.lane.b32.xlu0 %v9192, 28
      %v9294 = vpop.permute.xlu0 %9293
      %9295 = vrot.lane.b32.xlu0 %v9197, 28
      %v9296 = vpop.permute.xlu0 %9295
      %9297 = vrot.lane.b32.xlu0 %v9200, 28
      %v9298 = vpop.permute.xlu0 %9297
      %vm9331 = vcmask 261344
      %9332 = vst.msk [vmem:[#allocation3] sm:$0xff] %vm9331, %v9236
      %9333 = vst.msk [vmem:[#allocation3 + $0x8] sm:$0xff] %vm9331, %v9238
      %9334 = vst.msk [vmem:[#allocation3 + $0x10] sm:$0xff] %vm9331, %v9240
      %9335 = vst.msk [vmem:[#allocation3 + $0x18] sm:$0xff] %vm9331, %v9242
      %9336 = vst.msk [vmem:[#allocation3 + $0x20] sm:$0xff] %vm9331, %v9244
      %9337 = vst.msk [vmem:[#allocation3 + $0x28] sm:$0xff] %vm9331, %v9246
      %9338 = vst.msk [vmem:[#allocation3 + $0x30] sm:$0xff] %vm9331, %v9248
      %9339 = vst.msk [vmem:[#allocation3 + $0x38] sm:$0xff] %vm9331, %v9250
      %9340 = vst.msk [vmem:[#allocation3 + $0x40] sm:$0xff] %vm9331, %v9252
      %9341 = vst.msk [vmem:[#allocation3 + $0x48] sm:$0xff] %vm9331, %v9254
      %9342 = vst.msk [vmem:[#allocation3 + $0x50] sm:$0xff] %vm9331, %v9256
      %9343 = vst.msk [vmem:[#allocation3 + $0x58] sm:$0xff] %vm9331, %v9258
      %9344 = vst.msk [vmem:[#allocation3 + $0x60] sm:$0xff] %vm9331, %v9260
      %9345 = vst.msk [vmem:[#allocation3 + $0x68] sm:$0xff] %vm9331, %v9262
      %9346 = vst.msk [vmem:[#allocation3 + $0x70] sm:$0xff] %vm9331, %v9264
      %9347 = vst.msk [vmem:[#allocation3 + $0x78] sm:$0xff] %vm9331, %v9266
      %9348 = vst.msk [vmem:[#allocation3 + $0x80] sm:$0xff] %vm9331, %v9268
      %9349 = vst.msk [vmem:[#allocation3 + $0x88] sm:$0xff] %vm9331, %v9270
      %9350 = vst.msk [vmem:[#allocation3 + $0x90] sm:$0xff] %vm9331, %v9272
      %9351 = vst.msk [vmem:[#allocation3 + $0x98] sm:$0xff] %vm9331, %v9274
      %9352 = vst.msk [vmem:[#allocation3 + $0xa0] sm:$0xff] %vm9331, %v9276
      %9353 = vst.msk [vmem:[#allocation3 + $0xa8] sm:$0xff] %vm9331, %v9278
      %9354 = vst.msk [vmem:[#allocation3 + $0xb0] sm:$0xff] %vm9331, %v9280
      %9355 = vst.msk [vmem:[#allocation3 + $0xb8] sm:$0xff] %vm9331, %v9282
      %9356 = vst.msk [vmem:[#allocation3 + $0xc0] sm:$0xff] %vm9331, %v9284
      %9357 = vst.msk [vmem:[#allocation3 + $0xc8] sm:$0xff] %vm9331, %v9286
      %9358 = vst.msk [vmem:[#allocation3 + $0xd0] sm:$0xff] %vm9331, %v9288
      %9359 = vst.msk [vmem:[#allocation3 + $0xd8] sm:$0xff] %vm9331, %v9290
      %9360 = vst.msk [vmem:[#allocation3 + $0xe0] sm:$0xff] %vm9331, %v9292
      %9361 = vst.msk [vmem:[#allocation3 + $0xe8] sm:$0xff] %vm9331, %v9294
      %9362 = vst.msk [vmem:[#allocation3 + $0xf0] sm:$0xff] %vm9331, %v9296
      %9363 = vst.msk [vmem:[#allocation3 + $0xf8] sm:$0xff] %vm9331, %v9298
      %v9364 = vld [vmem:[#allocation3] sm:$0xff]
      %v9365 = vld [vmem:[#allocation3 + $0x8] sm:$0xff]
      %v9366 = vld [vmem:[#allocation3 + $0x10] sm:$0xff]
      %v9367 = vld [vmem:[#allocation3 + $0x18] sm:$0xff]
      %v9368 = vld [vmem:[#allocation3 + $0x20] sm:$0xff]
      %v9369 = vld [vmem:[#allocation3 + $0x28] sm:$0xff]
      %v9370 = vld [vmem:[#allocation3 + $0x30] sm:$0xff]
      %v9371 = vld [vmem:[#allocation3 + $0x38] sm:$0xff]
      %v9372 = vld [vmem:[#allocation3 + $0x40] sm:$0xff]
      %v9373 = vld [vmem:[#allocation3 + $0x48] sm:$0xff]
      %v9374 = vld [vmem:[#allocation3 + $0x50] sm:$0xff]
      %v9375 = vld [vmem:[#allocation3 + $0x58] sm:$0xff]
      %v9376 = vld [vmem:[#allocation3 + $0x60] sm:$0xff]
      %v9377 = vld [vmem:[#allocation3 + $0x68] sm:$0xff]
      %v9378 = vld [vmem:[#allocation3 + $0x70] sm:$0xff]
      %v9379 = vld [vmem:[#allocation3 + $0x78] sm:$0xff]
      %v9380 = vld [vmem:[#allocation3 + $0x80] sm:$0xff]
      %v9381 = vld [vmem:[#allocation3 + $0x88] sm:$0xff]
      %v9382 = vld [vmem:[#allocation3 + $0x90] sm:$0xff]
      %v9383 = vld [vmem:[#allocation3 + $0x98] sm:$0xff]
      %v9384 = vld [vmem:[#allocation3 + $0xa0] sm:$0xff]
      %v9385 = vld [vmem:[#allocation3 + $0xa8] sm:$0xff]
      %v9386 = vld [vmem:[#allocation3 + $0xb0] sm:$0xff]
      %v9387 = vld [vmem:[#allocation3 + $0xb8] sm:$0xff]
      %v9388 = vld [vmem:[#allocation3 + $0xc0] sm:$0xff]
      %v9389 = vld [vmem:[#allocation3 + $0xc8] sm:$0xff]
      %v9390 = vld [vmem:[#allocation3 + $0xd0] sm:$0xff]
      %v9391 = vld [vmem:[#allocation3 + $0xd8] sm:$0xff]
      %v9392 = vld [vmem:[#allocation3 + $0xe0] sm:$0xff]
      %v9393 = vld [vmem:[#allocation3 + $0xe8] sm:$0xff]
      %v9394 = vld [vmem:[#allocation3 + $0xf0] sm:$0xff]
      %v9395 = vld [vmem:[#allocation3 + $0xf8] sm:$0xff]
      %v9396 = vpack.c.bf16 %v9365, %v9364
      %v9397 = vpack.c.bf16 %v9367, %v9366
      %v9398 = vpack.c.bf16 %v9369, %v9368
      %v9399 = vpack.c.bf16 %v9371, %v9370
      %v9400 = vpack.c.bf16 %v9373, %v9372
      %v9401 = vpack.c.bf16 %v9375, %v9374
      %v9402 = vpack.c.bf16 %v9377, %v9376
      %v9403 = vpack.c.bf16 %v9379, %v9378
      %v9404 = vpack.c.bf16 %v9381, %v9380
      %v9405 = vpack.c.bf16 %v9383, %v9382
      %v9406 = vpack.c.bf16 %v9385, %v9384
      %v9407 = vpack.c.bf16 %v9387, %v9386
      %v9408 = vpack.c.bf16 %v9389, %v9388
      %v9409 = vpack.c.bf16 %v9391, %v9390
      %v9410 = vpack.c.bf16 %v9393, %v9392
      %v9411 = vpack.c.bf16 %v9395, %v9394
      %v9412 = vld [vmem:[%s8] sm:$0xf]
      %v9413 = vld [vmem:[%s8 + $0x4] sm:$0xf]
      %v9414 = vld [vmem:[%s8 + $0x8] sm:$0xf]
      %v9415 = vld [vmem:[%s8 + $0xc] sm:$0xf]
      %v9416 = vld [vmem:[%s9] sm:$0xff]
      %v9417 = vld [vmem:[%s9 + $0x8] sm:$0xff]
      %v9418 = vld [vmem:[%s9 + $0x10] sm:$0xff]
      %v9419 = vld [vmem:[%s9 + $0x18] sm:$0xff]
      %9421 = vset.pattern.permute.xlu0 0
      %9422 = vperm.xlu0 %9421, %v9416
      %v9423 = vpop.permute.xlu0 %9422
      %9426 = vset.pattern.permute.xlu0 0
      %9427 = vperm.xlu0 %9426, %v9417
      %v9428 = vpop.permute.xlu0 %9427
      %9431 = vset.pattern.permute.xlu0 0
      %9432 = vperm.xlu0 %9431, %v9418
      %v9433 = vpop.permute.xlu0 %9432
      %9436 = vset.pattern.permute.xlu0 0
      %9437 = vperm.xlu0 %9436, %v9419
      %v9438 = vpop.permute.xlu0 %9437
      %v9444 = vunpack.c.l.b16 %v9412
      %v9445 = vunpack.c.l.b16 %v9413
      %v9446 = vunpack.c.l.b16 %v9414
      %v9447 = vunpack.c.l.b16 %v9415
      %v9448 = vpack.c.b16 %v9445, %v9444
      %v9449 = vpack.c.b16 %v9447, %v9446
      %v9451 = vsel %vm977, %v9448, 0
      %v9454 = vsel %vm977, %v9449, 0
      %v9457 = vsel %vm977, %v9396, 0
      %v9460 = vsel %vm977, %v9397, 0
      %v9463 = vsel %vm977, %v9398, 0
      %v9466 = vsel %vm977, %v9399, 0
      %v9469 = vsel %vm977, %v9400, 0
      %v9472 = vsel %vm977, %v9401, 0
      %v9475 = vsel %vm977, %v9402, 0
      %v9478 = vsel %vm977, %v9403, 0
      %v9481 = vsel %vm977, %v9404, 0
      %v9484 = vsel %vm977, %v9405, 0
      %v9487 = vsel %vm977, %v9406, 0
      %v9490 = vsel %vm977, %v9407, 0
      %v9493 = vsel %vm977, %v9408, 0
      %v9496 = vsel %vm977, %v9409, 0
      %v9499 = vsel %vm977, %v9410, 0
      %v9502 = vsel %vm977, %v9411, 0
      %9504 = vmatprep.subr.bf16.mxu0 0
      %9505 = vmatpush1.bf16.xpose.msra.mxu0 %v9478
      %9506 = vmatprep.subr.bf16.mxu0 0
      %9507 = vmatpush1.bf16.xpose.msra.mxu0 %v9475
      %9508 = vmatprep.subr.bf16.mxu0 0
      %9509 = vmatpush1.bf16.xpose.msra.mxu0 %v9472
      %9510 = vmatprep.subr.bf16.mxu0 0
      %9511 = vmatpush1.bf16.xpose.msra.mxu0 %v9469
      %9512 = vmatprep.subr.bf16.mxu0 0
      %9513 = vmatpush1.bf16.xpose.msra.mxu0 %v9466
      %9514 = vmatprep.subr.bf16.mxu0 0
      %9515 = vmatpush1.bf16.xpose.msra.mxu0 %v9463
      %9516 = vmatprep.subr.bf16.mxu0 0
      %9517 = vmatpush1.bf16.xpose.msra.mxu0 %v9460
      %9518 = vmatprep.subr.bf16.mxu0 0
      %9519 = vmatpush1.bf16.xpose.msra.mxu0 %v9457
      %9520 = vmatprep.subr.bf16.mxu0 0
      %9521 = vmatpush2.bf16.xpose.msra.mxu0 %v9502
      %9522 = vmatprep.subr.bf16.mxu0 0
      %9523 = vmatpush2.bf16.xpose.msra.mxu0 %v9499
      %9524 = vmatprep.subr.bf16.mxu0 0
      %9525 = vmatpush2.bf16.xpose.msra.mxu0 %v9496
      %9526 = vmatprep.subr.bf16.mxu0 0
      %9527 = vmatpush2.bf16.xpose.msra.mxu0 %v9493
      %9528 = vmatprep.subr.bf16.mxu0 0
      %9529 = vmatpush2.bf16.xpose.msra.mxu0 %v9490
      %9530 = vmatprep.subr.bf16.mxu0 0
      %9531 = vmatpush2.bf16.xpose.msra.mxu0 %v9487
      %9532 = vmatprep.subr.bf16.mxu0 0
      %9533 = vmatpush2.bf16.xpose.msra.mxu0 %v9484
      %9534 = vmatprep.subr.bf16.mxu0 0
      %9535 = vmatpush2.bf16.xpose.msra.mxu0 %v9481
      %9536 = vmatprep.mubr.bf16.mxu0 0
      %9537 = vmatmul.mubr.bf16.gmra.mxu0 %v9451
      %v9538 = vpop.f32.mrf.mxu0
      %v9539 = vadd.f32 %v9423, %v9538
      %v9540 = vpop.f32.mrf.mxu0
      %v9541 = vadd.f32 %v9423, %v9540
      %v9542 = vpop.f32.mrf.mxu0
      %v9543 = vadd.f32 %v9428, %v9542
      %v9544 = vpop.f32.mrf.mxu0
      %v9545 = vadd.f32 %v9428, %v9544
      %9546 = vmatprep.mubr.bf16.mxu0 0
      %9547 = vmatmul.mubr.bf16.gmra.mxu0 %v9454
      %v9548 = vpop.f32.mrf.mxu0
      %v9549 = vadd.f32 %v9433, %v9548
      %v9550 = vpop.f32.mrf.mxu0
      %v9551 = vadd.f32 %v9433, %v9550
      %v9552 = vpop.f32.mrf.mxu0
      %v9553 = vadd.f32 %v9438, %v9552
      %v9554 = vpop.f32.mrf.mxu0
      %v9555 = vadd.f32 %v9438, %v9554
      %9556 = vdwg.mxu0
      %9557 = vst [vmem:[%s417] sm:$0xff] %v9539
      %9558 = vst [vmem:[%s417 + $0x8] sm:$0xff] %v9541
      %9559 = vst [vmem:[%s417 + $0x10] sm:$0xff] %v9543
      %9560 = vst [vmem:[%s417 + $0x18] sm:$0xff] %v9545
      %9561 = vst [vmem:[%s417 + $0x20] sm:$0xff] %v9549
      %9562 = vst [vmem:[%s417 + $0x28] sm:$0xff] %v9551
      %9563 = vst [vmem:[%s417 + $0x30] sm:$0xff] %v9553
      %9564 = vst [vmem:[%s417 + $0x38] sm:$0xff] %v9555
      %s9565 = smul.u32 2, %s26
      %p9566 = scmp.lt.s32.totalorder %s25, 1
      %s9567 = scalar_select %p9566, %s25, 1
      %p9568 = scmp.lt.s32.totalorder %s9565, 1
      %s9569 = scalar_select %p9568, %s9565, 1
      %s9570 = smul.addr %s9567, 8
      %s9571 = sadd.s32 %s9569, %s9570
      %s9572 = smul.addr %s9571, 8
      %s9573 = scalar_lea.vmem %s10, %s9572
      // Predicated region
      $region65: #{sra_forward.1} parent=59 // pred_check
        %p9574 = pneg %p275
      $region66: #{sra_forward.1} parent=59 // pred_check_branch
        %9576 = sbr.rel (%p9574) target = $region68
      $region67: #{sra_forward.1} parent=59 // pred_region
        %s9577 = smul.u32 2, %s26
      $region68: #{sra_forward.1} parent=59 // pred_fallthru
        _
    $region60: #{sra_forward.1} parent=5 // pred_fallthru
      _
    %p9578 = scmp.le.s32.totalorder 2, %s16
    // Predicated region
    $region69: #{sra_forward.1} parent=5 // pred_check
      %p9579 = pneg %p9578
    $region70: #{sra_forward.1} parent=5 // pred_check_branch
      %9581 = sbr.rel (%p9579) target = $region72
    $region71: #{sra_forward.1} parent=5 // pred_region
      %s9582 = ssub.s32 %s16, 2
      // Predicated region
      $region73: #{sra_forward.1} parent=71 // pred_check
        %p9583 = pneg %p281
      $region74: #{sra_forward.1} parent=71 // pred_check_branch
        %9585 = sbr.rel (%p9583) target = $region76
      $region75: #{sra_forward.1} parent=71 // pred_region
        %s9586 = smul.u32 2, %s28
        %p9587 = scmp.lt.s32.totalorder %s27, 1
        %s9588 = scalar_select %p9587, %s27, 1
        %p9589 = scmp.lt.s32.totalorder %s9586, 1
        %s9590 = scalar_select %p9589, %s9586, 1
        %s9591 = smul.addr %s9588, 8
        %s9592 = sadd.s32 %s9590, %s9591
        %s9593 = smul.addr %s9592, 8
        %s9594 = scalar_lea.vmem %s10, %s9593
      $region76: #{sra_forward.1} parent=71 // pred_fallthru
        _
    $region72: #{sra_forward.1} parent=5 // pred_fallthru
      _
  $region6: #{sra_forward.1} parent=0 // loop_footer
    %s20 = sadd.s32 1, %s16
  $region7: #{sra_forward.1} parent=0 // loop_footer_branch
    %15 = sbr.rel target = $region3
  $region8: #{sra_forward.1} parent=0 // loop_exit
    _

</llo_original>
